<compile_context>
chip_gen: v5e
topology: v5e:2x2
jax: 0.10.0
libtpu: 0.0.40
codegen_flags: <defaults>
</compile_context>

<pallas_src>
import jax
import jax.numpy as jnp
from jax.experimental import pallas as pl
from jax.experimental.pallas import tpu as pltpu

PH = 2    # input H halo (largest kernel reading the input along H: the 5x5)
PW = 10   # input W halo (the 1x21 first stage)
PS = 10   # scratch H halo (largest second-stage (K,1) kernel: 21 taps)

# (offset into packed wa/wb, number of taps, half width) per separable branch
_BRANCHES = ((0, 7, 3), (7, 11, 5), (18, 21, 10))


def _fma(acc, x, w):
    term = x * w
    return term if acc is None else acc + term


def _conv_attention_kernel(xp_ref, w55_ref, wa_ref, wb_ref, w11_ref, bias_ref,
                           out_ref, scr_ref):
    # xp_ref : (1, C, H+2*PH, W+2*PW) zero-padded input          (VMEM block)
    # w55_ref: (C, 25)  wa_ref/wb_ref: (C, 39)  w11_ref: (C, C)
    # bias_ref: (C, 4) = [b17_0, b111_0, b211_0, b11_eff]        (all SMEM)
    # out_ref: (1, C, H, W)
    # scr_ref: (H+2*PS, W) VMEM scratch for H-zero-padded intermediates
    _, C, _, _ = xp_ref.shape
    _, _, H, W = out_ref.shape

    # Zero only the scratch halo rows (interior is fully overwritten below).
    halo = jnp.zeros((PS, W), jnp.float32)
    scr_ref[0:PS, :] = halo
    scr_ref[PS + H:PS + H + PS, :] = halo

    adds = []
    for c in range(C):
        xc = xp_ref[0, c]                                   # (H+2*PH, W+2*PW)

        # ---- depthwise 5x5, padding 2 (starts the per-channel branch sum) ----
        acc = None
        for dj in range(5):
            band = xc[:, PW - 2 + dj:PW - 2 + dj + W]       # (H+2*PH, W)
            for di in range(5):
                acc = _fma(acc, band[di:di + H, :], w55_ref[c, di * 5 + dj])

        # ---- fused first stages of the (1,7)/(1,11)/(1,21) branches ----------
        t7 = t11 = t21 = None
        for j in range(21):
            d = j - 10
            win = xc[PH:PH + H, PW + d:PW + d + W]          # (H, W)
            t21 = _fma(t21, win, wa_ref[c, 18 + j])
            if abs(d) <= 5:
                t11 = _fma(t11, win, wa_ref[c, 7 + d + 5])
            if abs(d) <= 3:
                t7 = _fma(t7, win, wa_ref[c, d + 3])
        t7 = t7 + bias_ref[c, 0]
        t11 = t11 + bias_ref[c, 1]
        t21 = t21 + bias_ref[c, 2]

        # ---- second stages: (K,1) convs over H-zero-padded intermediates -----
        for t, (off, K, pad) in zip((t7, t11, t21), _BRANCHES):
            scr_ref[PS:PS + H, :] = t
            for i in range(K):
                r0 = PS - pad + i
                acc = acc + scr_ref[r0:r0 + H, :] * wb_ref[c, off + i]

        adds.append(acc)

    # ---- 1x1 channel mixer (kept on the VPU) + gating with the skip input ----
    for co in range(C):
        m = adds[0] * w11_ref[co, 0]
        for ci in range(1, C):
            m = m + adds[ci] * w11_ref[co, ci]
        m = m + bias_ref[co, 3]
        skip = xp_ref[0, co, PH:PH + H, PW:PW + W]
        out_ref[0, co] = (m * skip).astype(out_ref.dtype)


def conv_attention(x_nchw, params):
    """Pallas forward of ConvolutionalAttention.  x_nchw: (B, C, H, W) f32."""
    B, C, H, W = x_nchw.shape

    x = x_nchw.astype(jnp.float32)
    xp = jnp.pad(x, ((0, 0), (0, 0), (PH, PH), (PW, PW)))

    f32 = lambda a: a.astype(jnp.float32)
    # parameter re-layout: per-channel scalar taps packed for SMEM.
    w55 = f32(params['w55'][:, 0].reshape(C, 25))
    wa = f32(jnp.concatenate([params['w17_0'][:, 0, 0, :],
                              params['w111_0'][:, 0, 0, :],
                              params['w211_0'][:, 0, 0, :]], axis=1))     # (C,39)
    wb = f32(jnp.concatenate([params['w17_1'][:, 0, :, 0],
                              params['w111_1'][:, 0, :, 0],
                              params['w211_1'][:, 0, :, 0]], axis=1))     # (C,39)
    w11 = f32(params['w11'][:, :, 0, 0])                                  # (Co,Ci)
    # second-stage biases are spatially uniform -> fold through the 1x1 mixer.
    b_second = (params['b55'] + params['b17_1'] + params['b111_1']
                + params['b211_1'])
    b11_eff = params['b11'] + jnp.sum(w11 * b_second[None, :], axis=1)
    bias = f32(jnp.stack([params['b17_0'], params['b111_0'],
                          params['b211_0'], b11_eff], axis=1))            # (C, 4)

    smem = pl.BlockSpec(memory_space=pltpu.MemorySpace.SMEM)
    out = pl.pallas_call(
        _conv_attention_kernel,
        out_shape=jax.ShapeDtypeStruct((B, C, H, W), jnp.float32),
        grid_spec=pltpu.PrefetchScalarGridSpec(
            num_scalar_prefetch=0,
            grid=(B,),
            in_specs=[pl.BlockSpec((1, C, H + 2 * PH, W + 2 * PW),
                                   lambda b: (b, 0, 0, 0)),
                      smem, smem, smem, smem, smem],
            out_specs=pl.BlockSpec((1, C, H, W), lambda b: (b, 0, 0, 0)),
            scratch_shapes=[pltpu.VMEM((H + 2 * PS, W), jnp.float32)]),
        compiler_params=pltpu.CompilerParams(
            dimension_semantics=("parallel",),   # shards batch over v7x's 2 TCs
            vmem_limit_bytes=48 * 1024 * 1024),
    )(xp, w55, wa, wb, w11, bias)
    return out


# ---------------- deterministic params + pure-JAX reference ----------------
def init_params(dim, key):
    ks = jax.random.split(key, 16)
    w = lambda k, s: jax.random.normal(k, s, jnp.float32) * 0.1
    return {
        'w55': w(ks[0], (dim, 1, 5, 5)),   'b55': w(ks[1], (dim,)),
        'w17_0': w(ks[2], (dim, 1, 1, 7)), 'b17_0': w(ks[3], (dim,)),
        'w17_1': w(ks[4], (dim, 1, 7, 1)), 'b17_1': w(ks[5], (dim,)),
        'w111_0': w(ks[6], (dim, 1, 1, 11)), 'b111_0': w(ks[7], (dim,)),
        'w111_1': w(ks[8], (dim, 1, 11, 1)), 'b111_1': w(ks[9], (dim,)),
        'w211_0': w(ks[10], (dim, 1, 1, 21)), 'b211_0': w(ks[11], (dim,)),
        'w211_1': w(ks[12], (dim, 1, 21, 1)), 'b211_1': w(ks[13], (dim,)),
        'w11': w(ks[14], (dim, dim, 1, 1)), 'b11': w(ks[15], (dim,)),
    }


def _dw_conv(x, w, b, pad):
    C = x.shape[1]
    y = jax.lax.conv_general_dilated(
        x, w, (1, 1), ((pad[0], pad[0]), (pad[1], pad[1])),
        dimension_numbers=('NCHW', 'OIHW', 'NCHW'),
        feature_group_count=C, precision=jax.lax.Precision.HIGHEST)
    return y + b[None, :, None, None]


def ref_forward(x, p):
    c55 = _dw_conv(x, p['w55'], p['b55'], (2, 2))
    c17 = _dw_conv(_dw_conv(x, p['w17_0'], p['b17_0'], (0, 3)),
                   p['w17_1'], p['b17_1'], (3, 0))
    c111 = _dw_conv(_dw_conv(x, p['w111_0'], p['b111_0'], (0, 5)),
                    p['w111_1'], p['b111_1'], (5, 0))
    c211 = _dw_conv(_dw_conv(x, p['w211_0'], p['b211_0'], (0, 10)),
                    p['w211_1'], p['b211_1'], (10, 0))
    add = c55 + c17 + c111 + c211
    mixer = jax.lax.conv_general_dilated(
        add, p['w11'], (1, 1), 'VALID',
        dimension_numbers=('NCHW', 'OIHW', 'NCHW'),
        precision=jax.lax.Precision.HIGHEST) + p['b11'][None, :, None, None]
    return mixer * x


if __name__ == "__main__":
    key = jax.random.PRNGKey(0)
    kx, kp = jax.random.split(key)
    B, C, H, W = 2, 4, 16, 16
    x = jax.random.normal(kx, (B, C, H, W), jnp.float32)
    params = init_params(C, kp)

    out = jax.block_until_ready(conv_attention(x, params))
    ref = jax.block_until_ready(ref_forward(x, params))
    assert out.shape == ref.shape == (B, C, H, W)
    err = float(jnp.max(jnp.abs(out - ref)))
    if err > 1e-4:
        raise AssertionError(f"mismatch vs reference: max abs err {err}")
    print("KERNEL_OK")
</pallas_src>

<mosaic_0001>
module attributes {stable_mosaic.version = 11 : i64} {
  func.func @_conv_attention_kernel(%arg0: i32, %arg1: memref<1x4x20x36xf32, #tpu.memory_space<vmem>>, %arg2: memref<4x25xf32, #tpu.memory_space<smem>>, %arg3: memref<4x39xf32, #tpu.memory_space<smem>>, %arg4: memref<4x39xf32, #tpu.memory_space<smem>>, %arg5: memref<4x4xf32, #tpu.memory_space<smem>>, %arg6: memref<4x4xf32, #tpu.memory_space<smem>>, %arg7: memref<1x4x16x16xf32, #tpu.memory_space<vmem>>, %arg8: memref<36x16xf32, #tpu.memory_space<vmem>>) attributes {dimension_semantics = [#tpu.dimension_semantics<parallel>], iteration_bounds = array<i64: 2>, scalar_prefetch = 0 : i64, scratch_operands = 1 : i64, tpu.core_type = #tpu.core_type<tc>, window_params = [{transform_indices = @transform_0, window_bounds = array<i64: 1, 4, 20, 36>}, {transform_indices = @transform_1, window_bounds = array<i64: 4, 25>}, {transform_indices = @transform_2, window_bounds = array<i64: 4, 39>}, {transform_indices = @transform_3, window_bounds = array<i64: 4, 39>}, {transform_indices = @transform_4, window_bounds = array<i64: 4, 4>}, {transform_indices = @transform_5, window_bounds = array<i64: 4, 4>}, {transform_indices = @transform_6, window_bounds = array<i64: 1, 4, 16, 16>}]} {
    %cst = arith.constant 0.000000e+00 : f32
    %0 = vector.broadcast %cst : f32 to vector<10x16xf32>
    %c0 = arith.constant 0 : index
    %c0_0 = arith.constant 0 : index
    %1 = vector.load %arg8[%c0, %c0_0] : memref<36x16xf32, #tpu.memory_space<vmem>>, vector<10x16xf32>
    tpu.vector_store %arg8[%c0, %c0_0], %0 {strides = array<i32>} : memref<36x16xf32, #tpu.memory_space<vmem>>, vector<10x16xf32>,
    %c26 = arith.constant 26 : index
    %c0_1 = arith.constant 0 : index
    %2 = vector.load %arg8[%c26, %c0_1] : memref<36x16xf32, #tpu.memory_space<vmem>>, vector<10x16xf32>
    tpu.vector_store %arg8[%c26, %c0_1], %0 {strides = array<i32>} : memref<36x16xf32, #tpu.memory_space<vmem>>, vector<10x16xf32>,
    %c0_2 = arith.constant 0 : index
    %c0_3 = arith.constant 0 : index
    %c0_4 = arith.constant 0 : index
    %c0_5 = arith.constant 0 : index
    %3 = vector.load %arg1[%c0_2, %c0_3, %c0_4, %c0_5] : memref<1x4x20x36xf32, #tpu.memory_space<vmem>>, vector<1x1x20x36xf32>
    %4 = vector.shape_cast %3 : vector<1x1x20x36xf32> to vector<20x36xf32>
    %5 = vector.extract_strided_slice %4 {offsets = [0, 8], sizes = [20, 16], strides = [1, 1]} : vector<20x36xf32> to vector<20x16xf32>
    %6 = vector.extract_strided_slice %5 {offsets = [0, 0], sizes = [16, 16], strides = [1, 1]} : vector<20x16xf32> to vector<16x16xf32>
    %c0_6 = arith.constant 0 : index
    %c0_7 = arith.constant 0 : index
    %7 = memref.load %arg2[%c0_6, %c0_7] : memref<4x25xf32, #tpu.memory_space<smem>>
    %8 = vector.broadcast %7 : f32 to vector<16x16xf32>
    %9 = arith.mulf %6, %8 : vector<16x16xf32>
    %10 = vector.extract_strided_slice %5 {offsets = [1, 0], sizes = [16, 16], strides = [1, 1]} : vector<20x16xf32> to vector<16x16xf32>
    %c0_8 = arith.constant 0 : index
    %c5 = arith.constant 5 : index
    %11 = memref.load %arg2[%c0_8, %c5] : memref<4x25xf32, #tpu.memory_space<smem>>
    %12 = vector.broadcast %11 : f32 to vector<16x16xf32>
    %13 = arith.mulf %10, %12 : vector<16x16xf32>
    %14 = arith.addf %9, %13 : vector<16x16xf32>
    %15 = vector.extract_strided_slice %5 {offsets = [2, 0], sizes = [16, 16], strides = [1, 1]} : vector<20x16xf32> to vector<16x16xf32>
    %c0_9 = arith.constant 0 : index
    %c10 = arith.constant 10 : index
    %16 = memref.load %arg2[%c0_9, %c10] : memref<4x25xf32, #tpu.memory_space<smem>>
    %17 = vector.broadcast %16 : f32 to vector<16x16xf32>
    %18 = arith.mulf %15, %17 : vector<16x16xf32>
    %19 = arith.addf %14, %18 : vector<16x16xf32>
    %20 = vector.extract_strided_slice %5 {offsets = [3, 0], sizes = [16, 16], strides = [1, 1]} : vector<20x16xf32> to vector<16x16xf32>
    %c0_10 = arith.constant 0 : index
    %c15 = arith.constant 15 : index
    %21 = memref.load %arg2[%c0_10, %c15] : memref<4x25xf32, #tpu.memory_space<smem>>
    %22 = vector.broadcast %21 : f32 to vector<16x16xf32>
    %23 = arith.mulf %20, %22 : vector<16x16xf32>
    %24 = arith.addf %19, %23 : vector<16x16xf32>
    %25 = vector.extract_strided_slice %5 {offsets = [4, 0], sizes = [16, 16], strides = [1, 1]} : vector<20x16xf32> to vector<16x16xf32>
    %c0_11 = arith.constant 0 : index
    %c20 = arith.constant 20 : index
    %26 = memref.load %arg2[%c0_11, %c20] : memref<4x25xf32, #tpu.memory_space<smem>>
    %27 = vector.broadcast %26 : f32 to vector<16x16xf32>
    %28 = arith.mulf %25, %27 : vector<16x16xf32>
    %29 = arith.addf %24, %28 : vector<16x16xf32>
    %30 = vector.extract_strided_slice %4 {offsets = [0, 9], sizes = [20, 16], strides = [1, 1]} : vector<20x36xf32> to vector<20x16xf32>
    %31 = vector.extract_strided_slice %30 {offsets = [0, 0], sizes = [16, 16], strides = [1, 1]} : vector<20x16xf32> to vector<16x16xf32>
    %c0_12 = arith.constant 0 : index
    %c1 = arith.constant 1 : index
    %32 = memref.load %arg2[%c0_12, %c1] : memref<4x25xf32, #tpu.memory_space<smem>>
    %33 = vector.broadcast %32 : f32 to vector<16x16xf32>
    %34 = arith.mulf %31, %33 : vector<16x16xf32>
    %35 = arith.addf %29, %34 : vector<16x16xf32>
    %36 = vector.extract_strided_slice %30 {offsets = [1, 0], sizes = [16, 16], strides = [1, 1]} : vector<20x16xf32> to vector<16x16xf32>
    %c0_13 = arith.constant 0 : index
    %c6 = arith.constant 6 : index
    %37 = memref.load %arg2[%c0_13, %c6] : memref<4x25xf32, #tpu.memory_space<smem>>
    %38 = vector.broadcast %37 : f32 to vector<16x16xf32>
    %39 = arith.mulf %36, %38 : vector<16x16xf32>
    %40 = arith.addf %35, %39 : vector<16x16xf32>
    %41 = vector.extract_strided_slice %30 {offsets = [2, 0], sizes = [16, 16], strides = [1, 1]} : vector<20x16xf32> to vector<16x16xf32>
    %c0_14 = arith.constant 0 : index
    %c11 = arith.constant 11 : index
    %42 = memref.load %arg2[%c0_14, %c11] : memref<4x25xf32, #tpu.memory_space<smem>>
    %43 = vector.broadcast %42 : f32 to vector<16x16xf32>
    %44 = arith.mulf %41, %43 : vector<16x16xf32>
    %45 = arith.addf %40, %44 : vector<16x16xf32>
    %46 = vector.extract_strided_slice %30 {offsets = [3, 0], sizes = [16, 16], strides = [1, 1]} : vector<20x16xf32> to vector<16x16xf32>
    %c0_15 = arith.constant 0 : index
    %c16 = arith.constant 16 : index
    %47 = memref.load %arg2[%c0_15, %c16] : memref<4x25xf32, #tpu.memory_space<smem>>
    %48 = vector.broadcast %47 : f32 to vector<16x16xf32>
    %49 = arith.mulf %46, %48 : vector<16x16xf32>
    %50 = arith.addf %45, %49 : vector<16x16xf32>
    %51 = vector.extract_strided_slice %30 {offsets = [4, 0], sizes = [16, 16], strides = [1, 1]} : vector<20x16xf32> to vector<16x16xf32>
    %c0_16 = arith.constant 0 : index
    %c21 = arith.constant 21 : index
    %52 = memref.load %arg2[%c0_16, %c21] : memref<4x25xf32, #tpu.memory_space<smem>>
    %53 = vector.broadcast %52 : f32 to vector<16x16xf32>
    %54 = arith.mulf %51, %53 : vector<16x16xf32>
    %55 = arith.addf %50, %54 : vector<16x16xf32>
    %56 = vector.extract_strided_slice %4 {offsets = [0, 10], sizes = [20, 16], strides = [1, 1]} : vector<20x36xf32> to vector<20x16xf32>
    %57 = vector.extract_strided_slice %56 {offsets = [0, 0], sizes = [16, 16], strides = [1, 1]} : vector<20x16xf32> to vector<16x16xf32>
    %c0_17 = arith.constant 0 : index
    %c2 = arith.constant 2 : index
    %58 = memref.load %arg2[%c0_17, %c2] : memref<4x25xf32, #tpu.memory_space<smem>>
    %59 = vector.broadcast %58 : f32 to vector<16x16xf32>
    %60 = arith.mulf %57, %59 : vector<16x16xf32>
    %61 = arith.addf %55, %60 : vector<16x16xf32>
    %62 = vector.extract_strided_slice %56 {offsets = [1, 0], sizes = [16, 16], strides = [1, 1]} : vector<20x16xf32> to vector<16x16xf32>
    %c0_18 = arith.constant 0 : index
    %c7 = arith.constant 7 : index
    %63 = memref.load %arg2[%c0_18, %c7] : memref<4x25xf32, #tpu.memory_space<smem>>
    %64 = vector.broadcast %63 : f32 to vector<16x16xf32>
    %65 = arith.mulf %62, %64 : vector<16x16xf32>
    %66 = arith.addf %61, %65 : vector<16x16xf32>
    %67 = vector.extract_strided_slice %56 {offsets = [2, 0], sizes = [16, 16], strides = [1, 1]} : vector<20x16xf32> to vector<16x16xf32>
    %c0_19 = arith.constant 0 : index
    %c12 = arith.constant 12 : index
    %68 = memref.load %arg2[%c0_19, %c12] : memref<4x25xf32, #tpu.memory_space<smem>>
    %69 = vector.broadcast %68 : f32 to vector<16x16xf32>
    %70 = arith.mulf %67, %69 : vector<16x16xf32>
    %71 = arith.addf %66, %70 : vector<16x16xf32>
    %72 = vector.extract_strided_slice %56 {offsets = [3, 0], sizes = [16, 16], strides = [1, 1]} : vector<20x16xf32> to vector<16x16xf32>
    %c0_20 = arith.constant 0 : index
    %c17 = arith.constant 17 : index
    %73 = memref.load %arg2[%c0_20, %c17] : memref<4x25xf32, #tpu.memory_space<smem>>
    %74 = vector.broadcast %73 : f32 to vector<16x16xf32>
    %75 = arith.mulf %72, %74 : vector<16x16xf32>
    %76 = arith.addf %71, %75 : vector<16x16xf32>
    %77 = vector.extract_strided_slice %56 {offsets = [4, 0], sizes = [16, 16], strides = [1, 1]} : vector<20x16xf32> to vector<16x16xf32>
    %c0_21 = arith.constant 0 : index
    %c22 = arith.constant 22 : index
    %78 = memref.load %arg2[%c0_21, %c22] : memref<4x25xf32, #tpu.memory_space<smem>>
    %79 = vector.broadcast %78 : f32 to vector<16x16xf32>
    %80 = arith.mulf %77, %79 : vector<16x16xf32>
    %81 = arith.addf %76, %80 : vector<16x16xf32>
    %82 = vector.extract_strided_slice %4 {offsets = [0, 11], sizes = [20, 16], strides = [1, 1]} : vector<20x36xf32> to vector<20x16xf32>
    %83 = vector.extract_strided_slice %82 {offsets = [0, 0], sizes = [16, 16], strides = [1, 1]} : vector<20x16xf32> to vector<16x16xf32>
    %c0_22 = arith.constant 0 : index
    %c3 = arith.constant 3 : index
    %84 = memref.load %arg2[%c0_22, %c3] : memref<4x25xf32, #tpu.memory_space<smem>>
    %85 = vector.broadcast %84 : f32 to vector<16x16xf32>
    %86 = arith.mulf %83, %85 : vector<16x16xf32>
    %87 = arith.addf %81, %86 : vector<16x16xf32>
    %88 = vector.extract_strided_slice %82 {offsets = [1, 0], sizes = [16, 16], strides = [1, 1]} : vector<20x16xf32> to vector<16x16xf32>
    %c0_23 = arith.constant 0 : index
    %c8 = arith.constant 8 : index
    %89 = memref.load %arg2[%c0_23, %c8] : memref<4x25xf32, #tpu.memory_space<smem>>
    %90 = vector.broadcast %89 : f32 to vector<16x16xf32>
    %91 = arith.mulf %88, %90 : vector<16x16xf32>
    %92 = arith.addf %87, %91 : vector<16x16xf32>
    %93 = vector.extract_strided_slice %82 {offsets = [2, 0], sizes = [16, 16], strides = [1, 1]} : vector<20x16xf32> to vector<16x16xf32>
    %c0_24 = arith.constant 0 : index
    %c13 = arith.constant 13 : index
    %94 = memref.load %arg2[%c0_24, %c13] : memref<4x25xf32, #tpu.memory_space<smem>>
    %95 = vector.broadcast %94 : f32 to vector<16x16xf32>
    %96 = arith.mulf %93, %95 : vector<16x16xf32>
    %97 = arith.addf %92, %96 : vector<16x16xf32>
    %98 = vector.extract_strided_slice %82 {offsets = [3, 0], sizes = [16, 16], strides = [1, 1]} : vector<20x16xf32> to vector<16x16xf32>
    %c0_25 = arith.constant 0 : index
    %c18 = arith.constant 18 : index
    %99 = memref.load %arg2[%c0_25, %c18] : memref<4x25xf32, #tpu.memory_space<smem>>
    %100 = vector.broadcast %99 : f32 to vector<16x16xf32>
    %101 = arith.mulf %98, %100 : vector<16x16xf32>
    %102 = arith.addf %97, %101 : vector<16x16xf32>
    %103 = vector.extract_strided_slice %82 {offsets = [4, 0], sizes = [16, 16], strides = [1, 1]} : vector<20x16xf32> to vector<16x16xf32>
    %c0_26 = arith.constant 0 : index
    %c23 = arith.constant 23 : index
    %104 = memref.load %arg2[%c0_26, %c23] : memref<4x25xf32, #tpu.memory_space<smem>>
    %105 = vector.broadcast %104 : f32 to vector<16x16xf32>
    %106 = arith.mulf %103, %105 : vector<16x16xf32>
    %107 = arith.addf %102, %106 : vector<16x16xf32>
    %108 = vector.extract_strided_slice %4 {offsets = [0, 12], sizes = [20, 16], strides = [1, 1]} : vector<20x36xf32> to vector<20x16xf32>
    %109 = vector.extract_strided_slice %108 {offsets = [0, 0], sizes = [16, 16], strides = [1, 1]} : vector<20x16xf32> to vector<16x16xf32>
    %c0_27 = arith.constant 0 : index
    %c4 = arith.constant 4 : index
    %110 = memref.load %arg2[%c0_27, %c4] : memref<4x25xf32, #tpu.memory_space<smem>>
    %111 = vector.broadcast %110 : f32 to vector<16x16xf32>
    %112 = arith.mulf %109, %111 : vector<16x16xf32>
    %113 = arith.addf %107, %112 : vector<16x16xf32>
    %114 = vector.extract_strided_slice %108 {offsets = [1, 0], sizes = [16, 16], strides = [1, 1]} : vector<20x16xf32> to vector<16x16xf32>
    %c0_28 = arith.constant 0 : index
    %c9 = arith.constant 9 : index
    %115 = memref.load %arg2[%c0_28, %c9] : memref<4x25xf32, #tpu.memory_space<smem>>
    %116 = vector.broadcast %115 : f32 to vector<16x16xf32>
    %117 = arith.mulf %114, %116 : vector<16x16xf32>
    %118 = arith.addf %113, %117 : vector<16x16xf32>
    %119 = vector.extract_strided_slice %108 {offsets = [2, 0], sizes = [16, 16], strides = [1, 1]} : vector<20x16xf32> to vector<16x16xf32>
    %c0_29 = arith.constant 0 : index
    %c14 = arith.constant 14 : index
    %120 = memref.load %arg2[%c0_29, %c14] : memref<4x25xf32, #tpu.memory_space<smem>>
    %121 = vector.broadcast %120 : f32 to vector<16x16xf32>
    %122 = arith.mulf %119, %121 : vector<16x16xf32>
    %123 = arith.addf %118, %122 : vector<16x16xf32>
    %124 = vector.extract_strided_slice %108 {offsets = [3, 0], sizes = [16, 16], strides = [1, 1]} : vector<20x16xf32> to vector<16x16xf32>
    %c0_30 = arith.constant 0 : index
    %c19 = arith.constant 19 : index
    %125 = memref.load %arg2[%c0_30, %c19] : memref<4x25xf32, #tpu.memory_space<smem>>
    %126 = vector.broadcast %125 : f32 to vector<16x16xf32>
    %127 = arith.mulf %124, %126 : vector<16x16xf32>
    %128 = arith.addf %123, %127 : vector<16x16xf32>
    %129 = vector.extract_strided_slice %108 {offsets = [4, 0], sizes = [16, 16], strides = [1, 1]} : vector<20x16xf32> to vector<16x16xf32>
    %c0_31 = arith.constant 0 : index
    %c24 = arith.constant 24 : index
    %130 = memref.load %arg2[%c0_31, %c24] : memref<4x25xf32, #tpu.memory_space<smem>>
    %131 = vector.broadcast %130 : f32 to vector<16x16xf32>
    %132 = arith.mulf %129, %131 : vector<16x16xf32>
    %133 = arith.addf %128, %132 : vector<16x16xf32>
    %134 = vector.extract_strided_slice %4 {offsets = [2, 0], sizes = [16, 16], strides = [1, 1]} : vector<20x36xf32> to vector<16x16xf32>
    %c0_32 = arith.constant 0 : index
    %c18_33 = arith.constant 18 : index
    %135 = memref.load %arg3[%c0_32, %c18_33] : memref<4x39xf32, #tpu.memory_space<smem>>
    %136 = vector.broadcast %135 : f32 to vector<16x16xf32>
    %137 = arith.mulf %134, %136 : vector<16x16xf32>
    %138 = vector.extract_strided_slice %4 {offsets = [2, 1], sizes = [16, 16], strides = [1, 1]} : vector<20x36xf32> to vector<16x16xf32>
    %c0_34 = arith.constant 0 : index
    %c19_35 = arith.constant 19 : index
    %139 = memref.load %arg3[%c0_34, %c19_35] : memref<4x39xf32, #tpu.memory_space<smem>>
    %140 = vector.broadcast %139 : f32 to vector<16x16xf32>
    %141 = arith.mulf %138, %140 : vector<16x16xf32>
    %142 = arith.addf %137, %141 : vector<16x16xf32>
    %143 = vector.extract_strided_slice %4 {offsets = [2, 2], sizes = [16, 16], strides = [1, 1]} : vector<20x36xf32> to vector<16x16xf32>
    %c0_36 = arith.constant 0 : index
    %c20_37 = arith.constant 20 : index
    %144 = memref.load %arg3[%c0_36, %c20_37] : memref<4x39xf32, #tpu.memory_space<smem>>
    %145 = vector.broadcast %144 : f32 to vector<16x16xf32>
    %146 = arith.mulf %143, %145 : vector<16x16xf32>
    %147 = arith.addf %142, %146 : vector<16x16xf32>
    %148 = vector.extract_strided_slice %4 {offsets = [2, 3], sizes = [16, 16], strides = [1, 1]} : vector<20x36xf32> to vector<16x16xf32>
    %c0_38 = arith.constant 0 : index
    %c21_39 = arith.constant 21 : index
    %149 = memref.load %arg3[%c0_38, %c21_39] : memref<4x39xf32, #tpu.memory_space<smem>>
    %150 = vector.broadcast %149 : f32 to vector<16x16xf32>
    %151 = arith.mulf %148, %150 : vector<16x16xf32>
    %152 = arith.addf %147, %151 : vector<16x16xf32>
    %153 = vector.extract_strided_slice %4 {offsets = [2, 4], sizes = [16, 16], strides = [1, 1]} : vector<20x36xf32> to vector<16x16xf32>
    %c0_40 = arith.constant 0 : index
    %c22_41 = arith.constant 22 : index
    %154 = memref.load %arg3[%c0_40, %c22_41] : memref<4x39xf32, #tpu.memory_space<smem>>
    %155 = vector.broadcast %154 : f32 to vector<16x16xf32>
    %156 = arith.mulf %153, %155 : vector<16x16xf32>
    %157 = arith.addf %152, %156 : vector<16x16xf32>
    %158 = vector.extract_strided_slice %4 {offsets = [2, 5], sizes = [16, 16], strides = [1, 1]} : vector<20x36xf32> to vector<16x16xf32>
    %c0_42 = arith.constant 0 : index
    %c23_43 = arith.constant 23 : index
    %159 = memref.load %arg3[%c0_42, %c23_43] : memref<4x39xf32, #tpu.memory_space<smem>>
    %160 = vector.broadcast %159 : f32 to vector<16x16xf32>
    %161 = arith.mulf %158, %160 : vector<16x16xf32>
    %162 = arith.addf %157, %161 : vector<16x16xf32>
    %c0_44 = arith.constant 0 : index
    %c7_45 = arith.constant 7 : index
    %163 = memref.load %arg3[%c0_44, %c7_45] : memref<4x39xf32, #tpu.memory_space<smem>>
    %164 = vector.broadcast %163 : f32 to vector<16x16xf32>
    %165 = arith.mulf %158, %164 : vector<16x16xf32>
    %166 = vector.extract_strided_slice %4 {offsets = [2, 6], sizes = [16, 16], strides = [1, 1]} : vector<20x36xf32> to vector<16x16xf32>
    %c0_46 = arith.constant 0 : index
    %c24_47 = arith.constant 24 : index
    %167 = memref.load %arg3[%c0_46, %c24_47] : memref<4x39xf32, #tpu.memory_space<smem>>
    %168 = vector.broadcast %167 : f32 to vector<16x16xf32>
    %169 = arith.mulf %166, %168 : vector<16x16xf32>
    %170 = arith.addf %162, %169 : vector<16x16xf32>
    %c0_48 = arith.constant 0 : index
    %c8_49 = arith.constant 8 : index
    %171 = memref.load %arg3[%c0_48, %c8_49] : memref<4x39xf32, #tpu.memory_space<smem>>
    %172 = vector.broadcast %171 : f32 to vector<16x16xf32>
    %173 = arith.mulf %166, %172 : vector<16x16xf32>
    %174 = arith.addf %165, %173 : vector<16x16xf32>
    %175 = vector.extract_strided_slice %4 {offsets = [2, 7], sizes = [16, 16], strides = [1, 1]} : vector<20x36xf32> to vector<16x16xf32>
    %c0_50 = arith.constant 0 : index
    %c25 = arith.constant 25 : index
    %176 = memref.load %arg3[%c0_50, %c25] : memref<4x39xf32, #tpu.memory_space<smem>>
    %177 = vector.broadcast %176 : f32 to vector<16x16xf32>
    %178 = arith.mulf %175, %177 : vector<16x16xf32>
    %179 = arith.addf %170, %178 : vector<16x16xf32>
    %c0_51 = arith.constant 0 : index
    %c9_52 = arith.constant 9 : index
    %180 = memref.load %arg3[%c0_51, %c9_52] : memref<4x39xf32, #tpu.memory_space<smem>>
    %181 = vector.broadcast %180 : f32 to vector<16x16xf32>
    %182 = arith.mulf %175, %181 : vector<16x16xf32>
    %183 = arith.addf %174, %182 : vector<16x16xf32>
    %c0_53 = arith.constant 0 : index
    %c0_54 = arith.constant 0 : index
    %184 = memref.load %arg3[%c0_53, %c0_54] : memref<4x39xf32, #tpu.memory_space<smem>>
    %185 = vector.broadcast %184 : f32 to vector<16x16xf32>
    %186 = arith.mulf %175, %185 : vector<16x16xf32>
    %187 = vector.extract_strided_slice %4 {offsets = [2, 8], sizes = [16, 16], strides = [1, 1]} : vector<20x36xf32> to vector<16x16xf32>
    %c0_55 = arith.constant 0 : index
    %c26_56 = arith.constant 26 : index
    %188 = memref.load %arg3[%c0_55, %c26_56] : memref<4x39xf32, #tpu.memory_space<smem>>
    %189 = vector.broadcast %188 : f32 to vector<16x16xf32>
    %190 = arith.mulf %187, %189 : vector<16x16xf32>
    %191 = arith.addf %179, %190 : vector<16x16xf32>
    %c0_57 = arith.constant 0 : index
    %c10_58 = arith.constant 10 : index
    %192 = memref.load %arg3[%c0_57, %c10_58] : memref<4x39xf32, #tpu.memory_space<smem>>
    %193 = vector.broadcast %192 : f32 to vector<16x16xf32>
    %194 = arith.mulf %187, %193 : vector<16x16xf32>
    %195 = arith.addf %183, %194 : vector<16x16xf32>
    %c0_59 = arith.constant 0 : index
    %c1_60 = arith.constant 1 : index
    %196 = memref.load %arg3[%c0_59, %c1_60] : memref<4x39xf32, #tpu.memory_space<smem>>
    %197 = vector.broadcast %196 : f32 to vector<16x16xf32>
    %198 = arith.mulf %187, %197 : vector<16x16xf32>
    %199 = arith.addf %186, %198 : vector<16x16xf32>
    %200 = vector.extract_strided_slice %4 {offsets = [2, 9], sizes = [16, 16], strides = [1, 1]} : vector<20x36xf32> to vector<16x16xf32>
    %c0_61 = arith.constant 0 : index
    %c27 = arith.constant 27 : index
    %201 = memref.load %arg3[%c0_61, %c27] : memref<4x39xf32, #tpu.memory_space<smem>>
    %202 = vector.broadcast %201 : f32 to vector<16x16xf32>
    %203 = arith.mulf %200, %202 : vector<16x16xf32>
    %204 = arith.addf %191, %203 : vector<16x16xf32>
    %c0_62 = arith.constant 0 : index
    %c11_63 = arith.constant 11 : index
    %205 = memref.load %arg3[%c0_62, %c11_63] : memref<4x39xf32, #tpu.memory_space<smem>>
    %206 = vector.broadcast %205 : f32 to vector<16x16xf32>
    %207 = arith.mulf %200, %206 : vector<16x16xf32>
    %208 = arith.addf %195, %207 : vector<16x16xf32>
    %c0_64 = arith.constant 0 : index
    %c2_65 = arith.constant 2 : index
    %209 = memref.load %arg3[%c0_64, %c2_65] : memref<4x39xf32, #tpu.memory_space<smem>>
    %210 = vector.broadcast %209 : f32 to vector<16x16xf32>
    %211 = arith.mulf %200, %210 : vector<16x16xf32>
    %212 = arith.addf %199, %211 : vector<16x16xf32>
    %213 = vector.extract_strided_slice %4 {offsets = [2, 10], sizes = [16, 16], strides = [1, 1]} : vector<20x36xf32> to vector<16x16xf32>
    %c0_66 = arith.constant 0 : index
    %c28 = arith.constant 28 : index
    %214 = memref.load %arg3[%c0_66, %c28] : memref<4x39xf32, #tpu.memory_space<smem>>
    %215 = vector.broadcast %214 : f32 to vector<16x16xf32>
    %216 = arith.mulf %213, %215 : vector<16x16xf32>
    %217 = arith.addf %204, %216 : vector<16x16xf32>
    %c0_67 = arith.constant 0 : index
    %c12_68 = arith.constant 12 : index
    %218 = memref.load %arg3[%c0_67, %c12_68] : memref<4x39xf32, #tpu.memory_space<smem>>
    %219 = vector.broadcast %218 : f32 to vector<16x16xf32>
    %220 = arith.mulf %213, %219 : vector<16x16xf32>
    %221 = arith.addf %208, %220 : vector<16x16xf32>
    %c0_69 = arith.constant 0 : index
    %c3_70 = arith.constant 3 : index
    %222 = memref.load %arg3[%c0_69, %c3_70] : memref<4x39xf32, #tpu.memory_space<smem>>
    %223 = vector.broadcast %222 : f32 to vector<16x16xf32>
    %224 = arith.mulf %213, %223 : vector<16x16xf32>
    %225 = arith.addf %212, %224 : vector<16x16xf32>
    %226 = vector.extract_strided_slice %4 {offsets = [2, 11], sizes = [16, 16], strides = [1, 1]} : vector<20x36xf32> to vector<16x16xf32>
    %c0_71 = arith.constant 0 : index
    %c29 = arith.constant 29 : index
    %227 = memref.load %arg3[%c0_71, %c29] : memref<4x39xf32, #tpu.memory_space<smem>>
    %228 = vector.broadcast %227 : f32 to vector<16x16xf32>
    %229 = arith.mulf %226, %228 : vector<16x16xf32>
    %230 = arith.addf %217, %229 : vector<16x16xf32>
    %c0_72 = arith.constant 0 : index
    %c13_73 = arith.constant 13 : index
    %231 = memref.load %arg3[%c0_72, %c13_73] : memref<4x39xf32, #tpu.memory_space<smem>>
    %232 = vector.broadcast %231 : f32 to vector<16x16xf32>
    %233 = arith.mulf %226, %232 : vector<16x16xf32>
    %234 = arith.addf %221, %233 : vector<16x16xf32>
    %c0_74 = arith.constant 0 : index
    %c4_75 = arith.constant 4 : index
    %235 = memref.load %arg3[%c0_74, %c4_75] : memref<4x39xf32, #tpu.memory_space<smem>>
    %236 = vector.broadcast %235 : f32 to vector<16x16xf32>
    %237 = arith.mulf %226, %236 : vector<16x16xf32>
    %238 = arith.addf %225, %237 : vector<16x16xf32>
    %239 = vector.extract_strided_slice %4 {offsets = [2, 12], sizes = [16, 16], strides = [1, 1]} : vector<20x36xf32> to vector<16x16xf32>
    %c0_76 = arith.constant 0 : index
    %c30 = arith.constant 30 : index
    %240 = memref.load %arg3[%c0_76, %c30] : memref<4x39xf32, #tpu.memory_space<smem>>
    %241 = vector.broadcast %240 : f32 to vector<16x16xf32>
    %242 = arith.mulf %239, %241 : vector<16x16xf32>
    %243 = arith.addf %230, %242 : vector<16x16xf32>
    %c0_77 = arith.constant 0 : index
    %c14_78 = arith.constant 14 : index
    %244 = memref.load %arg3[%c0_77, %c14_78] : memref<4x39xf32, #tpu.memory_space<smem>>
    %245 = vector.broadcast %244 : f32 to vector<16x16xf32>
    %246 = arith.mulf %239, %245 : vector<16x16xf32>
    %247 = arith.addf %234, %246 : vector<16x16xf32>
    %c0_79 = arith.constant 0 : index
    %c5_80 = arith.constant 5 : index
    %248 = memref.load %arg3[%c0_79, %c5_80] : memref<4x39xf32, #tpu.memory_space<smem>>
    %249 = vector.broadcast %248 : f32 to vector<16x16xf32>
    %250 = arith.mulf %239, %249 : vector<16x16xf32>
    %251 = arith.addf %238, %250 : vector<16x16xf32>
    %252 = vector.extract_strided_slice %4 {offsets = [2, 13], sizes = [16, 16], strides = [1, 1]} : vector<20x36xf32> to vector<16x16xf32>
    %c0_81 = arith.constant 0 : index
    %c31 = arith.constant 31 : index
    %253 = memref.load %arg3[%c0_81, %c31] : memref<4x39xf32, #tpu.memory_space<smem>>
    %254 = vector.broadcast %253 : f32 to vector<16x16xf32>
    %255 = arith.mulf %252, %254 : vector<16x16xf32>
    %256 = arith.addf %243, %255 : vector<16x16xf32>
    %c0_82 = arith.constant 0 : index
    %c15_83 = arith.constant 15 : index
    %257 = memref.load %arg3[%c0_82, %c15_83] : memref<4x39xf32, #tpu.memory_space<smem>>
    %258 = vector.broadcast %257 : f32 to vector<16x16xf32>
    %259 = arith.mulf %252, %258 : vector<16x16xf32>
    %260 = arith.addf %247, %259 : vector<16x16xf32>
    %c0_84 = arith.constant 0 : index
    %c6_85 = arith.constant 6 : index
    %261 = memref.load %arg3[%c0_84, %c6_85] : memref<4x39xf32, #tpu.memory_space<smem>>
    %262 = vector.broadcast %261 : f32 to vector<16x16xf32>
    %263 = arith.mulf %252, %262 : vector<16x16xf32>
    %264 = arith.addf %251, %263 : vector<16x16xf32>
    %265 = vector.extract_strided_slice %4 {offsets = [2, 14], sizes = [16, 16], strides = [1, 1]} : vector<20x36xf32> to vector<16x16xf32>
    %c0_86 = arith.constant 0 : index
    %c32 = arith.constant 32 : index
    %266 = memref.load %arg3[%c0_86, %c32] : memref<4x39xf32, #tpu.memory_space<smem>>
    %267 = vector.broadcast %266 : f32 to vector<16x16xf32>
    %268 = arith.mulf %265, %267 : vector<16x16xf32>
    %269 = arith.addf %256, %268 : vector<16x16xf32>
    %c0_87 = arith.constant 0 : index
    %c16_88 = arith.constant 16 : index
    %270 = memref.load %arg3[%c0_87, %c16_88] : memref<4x39xf32, #tpu.memory_space<smem>>
    %271 = vector.broadcast %270 : f32 to vector<16x16xf32>
    %272 = arith.mulf %265, %271 : vector<16x16xf32>
    %273 = arith.addf %260, %272 : vector<16x16xf32>
    %274 = vector.extract_strided_slice %4 {offsets = [2, 15], sizes = [16, 16], strides = [1, 1]} : vector<20x36xf32> to vector<16x16xf32>
    %c0_89 = arith.constant 0 : index
    %c33 = arith.constant 33 : index
    %275 = memref.load %arg3[%c0_89, %c33] : memref<4x39xf32, #tpu.memory_space<smem>>
    %276 = vector.broadcast %275 : f32 to vector<16x16xf32>
    %277 = arith.mulf %274, %276 : vector<16x16xf32>
    %278 = arith.addf %269, %277 : vector<16x16xf32>
    %c0_90 = arith.constant 0 : index
    %c17_91 = arith.constant 17 : index
    %279 = memref.load %arg3[%c0_90, %c17_91] : memref<4x39xf32, #tpu.memory_space<smem>>
    %280 = vector.broadcast %279 : f32 to vector<16x16xf32>
    %281 = arith.mulf %274, %280 : vector<16x16xf32>
    %282 = arith.addf %273, %281 : vector<16x16xf32>
    %283 = vector.extract_strided_slice %4 {offsets = [2, 16], sizes = [16, 16], strides = [1, 1]} : vector<20x36xf32> to vector<16x16xf32>
    %c0_92 = arith.constant 0 : index
    %c34 = arith.constant 34 : index
    %284 = memref.load %arg3[%c0_92, %c34] : memref<4x39xf32, #tpu.memory_space<smem>>
    %285 = vector.broadcast %284 : f32 to vector<16x16xf32>
    %286 = arith.mulf %283, %285 : vector<16x16xf32>
    %287 = arith.addf %278, %286 : vector<16x16xf32>
    %288 = vector.extract_strided_slice %4 {offsets = [2, 17], sizes = [16, 16], strides = [1, 1]} : vector<20x36xf32> to vector<16x16xf32>
    %c0_93 = arith.constant 0 : index
    %c35 = arith.constant 35 : index
    %289 = memref.load %arg3[%c0_93, %c35] : memref<4x39xf32, #tpu.memory_space<smem>>
    %290 = vector.broadcast %289 : f32 to vector<16x16xf32>
    %291 = arith.mulf %288, %290 : vector<16x16xf32>
    %292 = arith.addf %287, %291 : vector<16x16xf32>
    %293 = vector.extract_strided_slice %4 {offsets = [2, 18], sizes = [16, 16], strides = [1, 1]} : vector<20x36xf32> to vector<16x16xf32>
    %c0_94 = arith.constant 0 : index
    %c36 = arith.constant 36 : index
    %294 = memref.load %arg3[%c0_94, %c36] : memref<4x39xf32, #tpu.memory_space<smem>>
    %295 = vector.broadcast %294 : f32 to vector<16x16xf32>
    %296 = arith.mulf %293, %295 : vector<16x16xf32>
    %297 = arith.addf %292, %296 : vector<16x16xf32>
    %298 = vector.extract_strided_slice %4 {offsets = [2, 19], sizes = [16, 16], strides = [1, 1]} : vector<20x36xf32> to vector<16x16xf32>
    %c0_95 = arith.constant 0 : index
    %c37 = arith.constant 37 : index
    %299 = memref.load %arg3[%c0_95, %c37] : memref<4x39xf32, #tpu.memory_space<smem>>
    %300 = vector.broadcast %299 : f32 to vector<16x16xf32>
    %301 = arith.mulf %298, %300 : vector<16x16xf32>
    %302 = arith.addf %297, %301 : vector<16x16xf32>
    %303 = vector.extract_strided_slice %4 {offsets = [2, 20], sizes = [16, 16], strides = [1, 1]} : vector<20x36xf32> to vector<16x16xf32>
    %c0_96 = arith.constant 0 : index
    %c38 = arith.constant 38 : index
    %304 = memref.load %arg3[%c0_96, %c38] : memref<4x39xf32, #tpu.memory_space<smem>>
    %305 = vector.broadcast %304 : f32 to vector<16x16xf32>
    %306 = arith.mulf %303, %305 : vector<16x16xf32>
    %307 = arith.addf %302, %306 : vector<16x16xf32>
    %c0_97 = arith.constant 0 : index
    %c0_98 = arith.constant 0 : index
    %308 = memref.load %arg6[%c0_97, %c0_98] : memref<4x4xf32, #tpu.memory_space<smem>>
    %309 = vector.broadcast %308 : f32 to vector<16x16xf32>
    %310 = arith.addf %264, %309 : vector<16x16xf32>
    %c0_99 = arith.constant 0 : index
    %c1_100 = arith.constant 1 : index
    %311 = memref.load %arg6[%c0_99, %c1_100] : memref<4x4xf32, #tpu.memory_space<smem>>
    %312 = vector.broadcast %311 : f32 to vector<16x16xf32>
    %313 = arith.addf %282, %312 : vector<16x16xf32>
    %c0_101 = arith.constant 0 : index
    %c2_102 = arith.constant 2 : index
    %314 = memref.load %arg6[%c0_101, %c2_102] : memref<4x4xf32, #tpu.memory_space<smem>>
    %315 = vector.broadcast %314 : f32 to vector<16x16xf32>
    %316 = arith.addf %307, %315 : vector<16x16xf32>
    %c10_103 = arith.constant 10 : index
    %c0_104 = arith.constant 0 : index
    %317 = vector.load %arg8[%c10_103, %c0_104] : memref<36x16xf32, #tpu.memory_space<vmem>>, vector<16x16xf32>
    tpu.vector_store %arg8[%c10_103, %c0_104], %310 {strides = array<i32>} : memref<36x16xf32, #tpu.memory_space<vmem>>, vector<16x16xf32>,
    %c7_105 = arith.constant 7 : index
    %c0_106 = arith.constant 0 : index
    %318 = vector.load %arg8[%c7_105, %c0_106] : memref<36x16xf32, #tpu.memory_space<vmem>>, vector<16x16xf32>
    %c0_107 = arith.constant 0 : index
    %c0_108 = arith.constant 0 : index
    %319 = memref.load %arg4[%c0_107, %c0_108] : memref<4x39xf32, #tpu.memory_space<smem>>
    %320 = vector.broadcast %319 : f32 to vector<16x16xf32>
    %321 = arith.mulf %318, %320 : vector<16x16xf32>
    %322 = arith.addf %133, %321 : vector<16x16xf32>
    %c8_109 = arith.constant 8 : index
    %c0_110 = arith.constant 0 : index
    %323 = vector.load %arg8[%c8_109, %c0_110] : memref<36x16xf32, #tpu.memory_space<vmem>>, vector<16x16xf32>
    %c0_111 = arith.constant 0 : index
    %c1_112 = arith.constant 1 : index
    %324 = memref.load %arg4[%c0_111, %c1_112] : memref<4x39xf32, #tpu.memory_space<smem>>
    %325 = vector.broadcast %324 : f32 to vector<16x16xf32>
    %326 = arith.mulf %323, %325 : vector<16x16xf32>
    %327 = arith.addf %322, %326 : vector<16x16xf32>
    %c9_113 = arith.constant 9 : index
    %c0_114 = arith.constant 0 : index
    %328 = vector.load %arg8[%c9_113, %c0_114] : memref<36x16xf32, #tpu.memory_space<vmem>>, vector<16x16xf32>
    %c0_115 = arith.constant 0 : index
    %c2_116 = arith.constant 2 : index
    %329 = memref.load %arg4[%c0_115, %c2_116] : memref<4x39xf32, #tpu.memory_space<smem>>
    %330 = vector.broadcast %329 : f32 to vector<16x16xf32>
    %331 = arith.mulf %328, %330 : vector<16x16xf32>
    %332 = arith.addf %327, %331 : vector<16x16xf32>
    %c10_117 = arith.constant 10 : index
    %c0_118 = arith.constant 0 : index
    %333 = vector.load %arg8[%c10_117, %c0_118] : memref<36x16xf32, #tpu.memory_space<vmem>>, vector<16x16xf32>
    %c0_119 = arith.constant 0 : index
    %c3_120 = arith.constant 3 : index
    %334 = memref.load %arg4[%c0_119, %c3_120] : memref<4x39xf32, #tpu.memory_space<smem>>
    %335 = vector.broadcast %334 : f32 to vector<16x16xf32>
    %336 = arith.mulf %333, %335 : vector<16x16xf32>
    %337 = arith.addf %332, %336 : vector<16x16xf32>
    %c11_121 = arith.constant 11 : index
    %c0_122 = arith.constant 0 : index
    %338 = vector.load %arg8[%c11_121, %c0_122] : memref<36x16xf32, #tpu.memory_space<vmem>>, vector<16x16xf32>
    %c0_123 = arith.constant 0 : index
    %c4_124 = arith.constant 4 : index
    %339 = memref.load %arg4[%c0_123, %c4_124] : memref<4x39xf32, #tpu.memory_space<smem>>
    %340 = vector.broadcast %339 : f32 to vector<16x16xf32>
    %341 = arith.mulf %338, %340 : vector<16x16xf32>
    %342 = arith.addf %337, %341 : vector<16x16xf32>
    %c12_125 = arith.constant 12 : index
    %c0_126 = arith.constant 0 : index
    %343 = vector.load %arg8[%c12_125, %c0_126] : memref<36x16xf32, #tpu.memory_space<vmem>>, vector<16x16xf32>
    %c0_127 = arith.constant 0 : index
    %c5_128 = arith.constant 5 : index
    %344 = memref.load %arg4[%c0_127, %c5_128] : memref<4x39xf32, #tpu.memory_space<smem>>
    %345 = vector.broadcast %344 : f32 to vector<16x16xf32>
    %346 = arith.mulf %343, %345 : vector<16x16xf32>
    %347 = arith.addf %342, %346 : vector<16x16xf32>
    %c13_129 = arith.constant 13 : index
    %c0_130 = arith.constant 0 : index
    %348 = vector.load %arg8[%c13_129, %c0_130] : memref<36x16xf32, #tpu.memory_space<vmem>>, vector<16x16xf32>
    %c0_131 = arith.constant 0 : index
    %c6_132 = arith.constant 6 : index
    %349 = memref.load %arg4[%c0_131, %c6_132] : memref<4x39xf32, #tpu.memory_space<smem>>
    %350 = vector.broadcast %349 : f32 to vector<16x16xf32>
    %351 = arith.mulf %348, %350 : vector<16x16xf32>
    %352 = arith.addf %347, %351 : vector<16x16xf32>
    %c10_133 = arith.constant 10 : index
    %c0_134 = arith.constant 0 : index
    %353 = vector.load %arg8[%c10_133, %c0_134] : memref<36x16xf32, #tpu.memory_space<vmem>>, vector<16x16xf32>
    tpu.vector_store %arg8[%c10_133, %c0_134], %313 {strides = array<i32>} : memref<36x16xf32, #tpu.memory_space<vmem>>, vector<16x16xf32>,
    %c5_135 = arith.constant 5 : index
    %c0_136 = arith.constant 0 : index
    %354 = vector.load %arg8[%c5_135, %c0_136] : memref<36x16xf32, #tpu.memory_space<vmem>>, vector<16x16xf32>
    %c0_137 = arith.constant 0 : index
    %c7_138 = arith.constant 7 : index
    %355 = memref.load %arg4[%c0_137, %c7_138] : memref<4x39xf32, #tpu.memory_space<smem>>
    %356 = vector.broadcast %355 : f32 to vector<16x16xf32>
    %357 = arith.mulf %354, %356 : vector<16x16xf32>
    %358 = arith.addf %352, %357 : vector<16x16xf32>
    %c6_139 = arith.constant 6 : index
    %c0_140 = arith.constant 0 : index
    %359 = vector.load %arg8[%c6_139, %c0_140] : memref<36x16xf32, #tpu.memory_space<vmem>>, vector<16x16xf32>
    %c0_141 = arith.constant 0 : index
    %c8_142 = arith.constant 8 : index
    %360 = memref.load %arg4[%c0_141, %c8_142] : memref<4x39xf32, #tpu.memory_space<smem>>
    %361 = vector.broadcast %360 : f32 to vector<16x16xf32>
    %362 = arith.mulf %359, %361 : vector<16x16xf32>
    %363 = arith.addf %358, %362 : vector<16x16xf32>
    %c7_143 = arith.constant 7 : index
    %c0_144 = arith.constant 0 : index
    %364 = vector.load %arg8[%c7_143, %c0_144] : memref<36x16xf32, #tpu.memory_space<vmem>>, vector<16x16xf32>
    %c0_145 = arith.constant 0 : index
    %c9_146 = arith.constant 9 : index
    %365 = memref.load %arg4[%c0_145, %c9_146] : memref<4x39xf32, #tpu.memory_space<smem>>
    %366 = vector.broadcast %365 : f32 to vector<16x16xf32>
    %367 = arith.mulf %364, %366 : vector<16x16xf32>
    %368 = arith.addf %363, %367 : vector<16x16xf32>
    %c8_147 = arith.constant 8 : index
    %c0_148 = arith.constant 0 : index
    %369 = vector.load %arg8[%c8_147, %c0_148] : memref<36x16xf32, #tpu.memory_space<vmem>>, vector<16x16xf32>
    %c0_149 = arith.constant 0 : index
    %c10_150 = arith.constant 10 : index
    %370 = memref.load %arg4[%c0_149, %c10_150] : memref<4x39xf32, #tpu.memory_space<smem>>
    %371 = vector.broadcast %370 : f32 to vector<16x16xf32>
    %372 = arith.mulf %369, %371 : vector<16x16xf32>
    %373 = arith.addf %368, %372 : vector<16x16xf32>
    %c9_151 = arith.constant 9 : index
    %c0_152 = arith.constant 0 : index
    %374 = vector.load %arg8[%c9_151, %c0_152] : memref<36x16xf32, #tpu.memory_space<vmem>>, vector<16x16xf32>
    %c0_153 = arith.constant 0 : index
    %c11_154 = arith.constant 11 : index
    %375 = memref.load %arg4[%c0_153, %c11_154] : memref<4x39xf32, #tpu.memory_space<smem>>
    %376 = vector.broadcast %375 : f32 to vector<16x16xf32>
    %377 = arith.mulf %374, %376 : vector<16x16xf32>
    %378 = arith.addf %373, %377 : vector<16x16xf32>
    %c10_155 = arith.constant 10 : index
    %c0_156 = arith.constant 0 : index
    %379 = vector.load %arg8[%c10_155, %c0_156] : memref<36x16xf32, #tpu.memory_space<vmem>>, vector<16x16xf32>
    %c0_157 = arith.constant 0 : index
    %c12_158 = arith.constant 12 : index
    %380 = memref.load %arg4[%c0_157, %c12_158] : memref<4x39xf32, #tpu.memory_space<smem>>
    %381 = vector.broadcast %380 : f32 to vector<16x16xf32>
    %382 = arith.mulf %379, %381 : vector<16x16xf32>
    %383 = arith.addf %378, %382 : vector<16x16xf32>
    %c11_159 = arith.constant 11 : index
    %c0_160 = arith.constant 0 : index
    %384 = vector.load %arg8[%c11_159, %c0_160] : memref<36x16xf32, #tpu.memory_space<vmem>>, vector<16x16xf32>
    %c0_161 = arith.constant 0 : index
    %c13_162 = arith.constant 13 : index
    %385 = memref.load %arg4[%c0_161, %c13_162] : memref<4x39xf32, #tpu.memory_space<smem>>
    %386 = vector.broadcast %385 : f32 to vector<16x16xf32>
    %387 = arith.mulf %384, %386 : vector<16x16xf32>
    %388 = arith.addf %383, %387 : vector<16x16xf32>
    %c12_163 = arith.constant 12 : index
    %c0_164 = arith.constant 0 : index
    %389 = vector.load %arg8[%c12_163, %c0_164] : memref<36x16xf32, #tpu.memory_space<vmem>>, vector<16x16xf32>
    %c0_165 = arith.constant 0 : index
    %c14_166 = arith.constant 14 : index
    %390 = memref.load %arg4[%c0_165, %c14_166] : memref<4x39xf32, #tpu.memory_space<smem>>
    %391 = vector.broadcast %390 : f32 to vector<16x16xf32>
    %392 = arith.mulf %389, %391 : vector<16x16xf32>
    %393 = arith.addf %388, %392 : vector<16x16xf32>
    %c13_167 = arith.constant 13 : index
    %c0_168 = arith.constant 0 : index
    %394 = vector.load %arg8[%c13_167, %c0_168] : memref<36x16xf32, #tpu.memory_space<vmem>>, vector<16x16xf32>
    %c0_169 = arith.constant 0 : index
    %c15_170 = arith.constant 15 : index
    %395 = memref.load %arg4[%c0_169, %c15_170] : memref<4x39xf32, #tpu.memory_space<smem>>
    %396 = vector.broadcast %395 : f32 to vector<16x16xf32>
    %397 = arith.mulf %394, %396 : vector<16x16xf32>
    %398 = arith.addf %393, %397 : vector<16x16xf32>
    %c14_171 = arith.constant 14 : index
    %c0_172 = arith.constant 0 : index
    %399 = vector.load %arg8[%c14_171, %c0_172] : memref<36x16xf32, #tpu.memory_space<vmem>>, vector<16x16xf32>
    %c0_173 = arith.constant 0 : index
    %c16_174 = arith.constant 16 : index
    %400 = memref.load %arg4[%c0_173, %c16_174] : memref<4x39xf32, #tpu.memory_space<smem>>
    %401 = vector.broadcast %400 : f32 to vector<16x16xf32>
    %402 = arith.mulf %399, %401 : vector<16x16xf32>
    %403 = arith.addf %398, %402 : vector<16x16xf32>
    %c15_175 = arith.constant 15 : index
    %c0_176 = arith.constant 0 : index
    %404 = vector.load %arg8[%c15_175, %c0_176] : memref<36x16xf32, #tpu.memory_space<vmem>>, vector<16x16xf32>
    %c0_177 = arith.constant 0 : index
    %c17_178 = arith.constant 17 : index
    %405 = memref.load %arg4[%c0_177, %c17_178] : memref<4x39xf32, #tpu.memory_space<smem>>
    %406 = vector.broadcast %405 : f32 to vector<16x16xf32>
    %407 = arith.mulf %404, %406 : vector<16x16xf32>
    %408 = arith.addf %403, %407 : vector<16x16xf32>
    %c10_179 = arith.constant 10 : index
    %c0_180 = arith.constant 0 : index
    %409 = vector.load %arg8[%c10_179, %c0_180] : memref<36x16xf32, #tpu.memory_space<vmem>>, vector<16x16xf32>
    tpu.vector_store %arg8[%c10_179, %c0_180], %316 {strides = array<i32>} : memref<36x16xf32, #tpu.memory_space<vmem>>, vector<16x16xf32>,
    %c0_181 = arith.constant 0 : index
    %c0_182 = arith.constant 0 : index
    %410 = vector.load %arg8[%c0_181, %c0_182] : memref<36x16xf32, #tpu.memory_space<vmem>>, vector<16x16xf32>
    %c0_183 = arith.constant 0 : index
    %c18_184 = arith.constant 18 : index
    %411 = memref.load %arg4[%c0_183, %c18_184] : memref<4x39xf32, #tpu.memory_space<smem>>
    %412 = vector.broadcast %411 : f32 to vector<16x16xf32>
    %413 = arith.mulf %410, %412 : vector<16x16xf32>
    %414 = arith.addf %408, %413 : vector<16x16xf32>
    %c1_185 = arith.constant 1 : index
    %c0_186 = arith.constant 0 : index
    %415 = vector.load %arg8[%c1_185, %c0_186] : memref<36x16xf32, #tpu.memory_space<vmem>>, vector<16x16xf32>
    %c0_187 = arith.constant 0 : index
    %c19_188 = arith.constant 19 : index
    %416 = memref.load %arg4[%c0_187, %c19_188] : memref<4x39xf32, #tpu.memory_space<smem>>
    %417 = vector.broadcast %416 : f32 to vector<16x16xf32>
    %418 = arith.mulf %415, %417 : vector<16x16xf32>
    %419 = arith.addf %414, %418 : vector<16x16xf32>
    %c2_189 = arith.constant 2 : index
    %c0_190 = arith.constant 0 : index
    %420 = vector.load %arg8[%c2_189, %c0_190] : memref<36x16xf32, #tpu.memory_space<vmem>>, vector<16x16xf32>
    %c0_191 = arith.constant 0 : index
    %c20_192 = arith.constant 20 : index
    %421 = memref.load %arg4[%c0_191, %c20_192] : memref<4x39xf32, #tpu.memory_space<smem>>
    %422 = vector.broadcast %421 : f32 to vector<16x16xf32>
    %423 = arith.mulf %420, %422 : vector<16x16xf32>
    %424 = arith.addf %419, %423 : vector<16x16xf32>
    %c3_193 = arith.constant 3 : index
    %c0_194 = arith.constant 0 : index
    %425 = vector.load %arg8[%c3_193, %c0_194] : memref<36x16xf32, #tpu.memory_space<vmem>>, vector<16x16xf32>
    %c0_195 = arith.constant 0 : index
    %c21_196 = arith.constant 21 : index
    %426 = memref.load %arg4[%c0_195, %c21_196] : memref<4x39xf32, #tpu.memory_space<smem>>
    %427 = vector.broadcast %426 : f32 to vector<16x16xf32>
    %428 = arith.mulf %425, %427 : vector<16x16xf32>
    %429 = arith.addf %424, %428 : vector<16x16xf32>
    %c4_197 = arith.constant 4 : index
    %c0_198 = arith.constant 0 : index
    %430 = vector.load %arg8[%c4_197, %c0_198] : memref<36x16xf32, #tpu.memory_space<vmem>>, vector<16x16xf32>
    %c0_199 = arith.constant 0 : index
    %c22_200 = arith.constant 22 : index
    %431 = memref.load %arg4[%c0_199, %c22_200] : memref<4x39xf32, #tpu.memory_space<smem>>
    %432 = vector.broadcast %431 : f32 to vector<16x16xf32>
    %433 = arith.mulf %430, %432 : vector<16x16xf32>
    %434 = arith.addf %429, %433 : vector<16x16xf32>
    %c5_201 = arith.constant 5 : index
    %c0_202 = arith.constant 0 : index
    %435 = vector.load %arg8[%c5_201, %c0_202] : memref<36x16xf32, #tpu.memory_space<vmem>>, vector<16x16xf32>
    %c0_203 = arith.constant 0 : index
    %c23_204 = arith.constant 23 : index
    %436 = memref.load %arg4[%c0_203, %c23_204] : memref<4x39xf32, #tpu.memory_space<smem>>
    %437 = vector.broadcast %436 : f32 to vector<16x16xf32>
    %438 = arith.mulf %435, %437 : vector<16x16xf32>
    %439 = arith.addf %434, %438 : vector<16x16xf32>
    %c6_205 = arith.constant 6 : index
    %c0_206 = arith.constant 0 : index
    %440 = vector.load %arg8[%c6_205, %c0_206] : memref<36x16xf32, #tpu.memory_space<vmem>>, vector<16x16xf32>
    %c0_207 = arith.constant 0 : index
    %c24_208 = arith.constant 24 : index
    %441 = memref.load %arg4[%c0_207, %c24_208] : memref<4x39xf32, #tpu.memory_space<smem>>
    %442 = vector.broadcast %441 : f32 to vector<16x16xf32>
    %443 = arith.mulf %440, %442 : vector<16x16xf32>
    %444 = arith.addf %439, %443 : vector<16x16xf32>
    %c7_209 = arith.constant 7 : index
    %c0_210 = arith.constant 0 : index
    %445 = vector.load %arg8[%c7_209, %c0_210] : memref<36x16xf32, #tpu.memory_space<vmem>>, vector<16x16xf32>
    %c0_211 = arith.constant 0 : index
    %c25_212 = arith.constant 25 : index
    %446 = memref.load %arg4[%c0_211, %c25_212] : memref<4x39xf32, #tpu.memory_space<smem>>
    %447 = vector.broadcast %446 : f32 to vector<16x16xf32>
    %448 = arith.mulf %445, %447 : vector<16x16xf32>
    %449 = arith.addf %444, %448 : vector<16x16xf32>
    %c8_213 = arith.constant 8 : index
    %c0_214 = arith.constant 0 : index
    %450 = vector.load %arg8[%c8_213, %c0_214] : memref<36x16xf32, #tpu.memory_space<vmem>>, vector<16x16xf32>
    %c0_215 = arith.constant 0 : index
    %c26_216 = arith.constant 26 : index
    %451 = memref.load %arg4[%c0_215, %c26_216] : memref<4x39xf32, #tpu.memory_space<smem>>
    %452 = vector.broadcast %451 : f32 to vector<16x16xf32>
    %453 = arith.mulf %450, %452 : vector<16x16xf32>
    %454 = arith.addf %449, %453 : vector<16x16xf32>
    %c9_217 = arith.constant 9 : index
    %c0_218 = arith.constant 0 : index
    %455 = vector.load %arg8[%c9_217, %c0_218] : memref<36x16xf32, #tpu.memory_space<vmem>>, vector<16x16xf32>
    %c0_219 = arith.constant 0 : index
    %c27_220 = arith.constant 27 : index
    %456 = memref.load %arg4[%c0_219, %c27_220] : memref<4x39xf32, #tpu.memory_space<smem>>
    %457 = vector.broadcast %456 : f32 to vector<16x16xf32>
    %458 = arith.mulf %455, %457 : vector<16x16xf32>
    %459 = arith.addf %454, %458 : vector<16x16xf32>
    %c10_221 = arith.constant 10 : index
    %c0_222 = arith.constant 0 : index
    %460 = vector.load %arg8[%c10_221, %c0_222] : memref<36x16xf32, #tpu.memory_space<vmem>>, vector<16x16xf32>
    %c0_223 = arith.constant 0 : index
    %c28_224 = arith.constant 28 : index
    %461 = memref.load %arg4[%c0_223, %c28_224] : memref<4x39xf32, #tpu.memory_space<smem>>
    %462 = vector.broadcast %461 : f32 to vector<16x16xf32>
    %463 = arith.mulf %460, %462 : vector<16x16xf32>
    %464 = arith.addf %459, %463 : vector<16x16xf32>
    %c11_225 = arith.constant 11 : index
    %c0_226 = arith.constant 0 : index
    %465 = vector.load %arg8[%c11_225, %c0_226] : memref<36x16xf32, #tpu.memory_space<vmem>>, vector<16x16xf32>
    %c0_227 = arith.constant 0 : index
    %c29_228 = arith.constant 29 : index
    %466 = memref.load %arg4[%c0_227, %c29_228] : memref<4x39xf32, #tpu.memory_space<smem>>
    %467 = vector.broadcast %466 : f32 to vector<16x16xf32>
    %468 = arith.mulf %465, %467 : vector<16x16xf32>
    %469 = arith.addf %464, %468 : vector<16x16xf32>
    %c12_229 = arith.constant 12 : index
    %c0_230 = arith.constant 0 : index
    %470 = vector.load %arg8[%c12_229, %c0_230] : memref<36x16xf32, #tpu.memory_space<vmem>>, vector<16x16xf32>
    %c0_231 = arith.constant 0 : index
    %c30_232 = arith.constant 30 : index
    %471 = memref.load %arg4[%c0_231, %c30_232] : memref<4x39xf32, #tpu.memory_space<smem>>
    %472 = vector.broadcast %471 : f32 to vector<16x16xf32>
    %473 = arith.mulf %470, %472 : vector<16x16xf32>
    %474 = arith.addf %469, %473 : vector<16x16xf32>
    %c13_233 = arith.constant 13 : index
    %c0_234 = arith.constant 0 : index
    %475 = vector.load %arg8[%c13_233, %c0_234] : memref<36x16xf32, #tpu.memory_space<vmem>>, vector<16x16xf32>
    %c0_235 = arith.constant 0 : index
    %c31_236 = arith.constant 31 : index
    %476 = memref.load %arg4[%c0_235, %c31_236] : memref<4x39xf32, #tpu.memory_space<smem>>
    %477 = vector.broadcast %476 : f32 to vector<16x16xf32>
    %478 = arith.mulf %475, %477 : vector<16x16xf32>
    %479 = arith.addf %474, %478 : vector<16x16xf32>
    %c14_237 = arith.constant 14 : index
    %c0_238 = arith.constant 0 : index
    %480 = vector.load %arg8[%c14_237, %c0_238] : memref<36x16xf32, #tpu.memory_space<vmem>>, vector<16x16xf32>
    %c0_239 = arith.constant 0 : index
    %c32_240 = arith.constant 32 : index
    %481 = memref.load %arg4[%c0_239, %c32_240] : memref<4x39xf32, #tpu.memory_space<smem>>
    %482 = vector.broadcast %481 : f32 to vector<16x16xf32>
    %483 = arith.mulf %480, %482 : vector<16x16xf32>
    %484 = arith.addf %479, %483 : vector<16x16xf32>
    %c15_241 = arith.constant 15 : index
    %c0_242 = arith.constant 0 : index
    %485 = vector.load %arg8[%c15_241, %c0_242] : memref<36x16xf32, #tpu.memory_space<vmem>>, vector<16x16xf32>
    %c0_243 = arith.constant 0 : index
    %c33_244 = arith.constant 33 : index
    %486 = memref.load %arg4[%c0_243, %c33_244] : memref<4x39xf32, #tpu.memory_space<smem>>
    %487 = vector.broadcast %486 : f32 to vector<16x16xf32>
    %488 = arith.mulf %485, %487 : vector<16x16xf32>
    %489 = arith.addf %484, %488 : vector<16x16xf32>
    %c16_245 = arith.constant 16 : index
    %c0_246 = arith.constant 0 : index
    %490 = vector.load %arg8[%c16_245, %c0_246] : memref<36x16xf32, #tpu.memory_space<vmem>>, vector<16x16xf32>
    %c0_247 = arith.constant 0 : index
    %c34_248 = arith.constant 34 : index
    %491 = memref.load %arg4[%c0_247, %c34_248] : memref<4x39xf32, #tpu.memory_space<smem>>
    %492 = vector.broadcast %491 : f32 to vector<16x16xf32>
    %493 = arith.mulf %490, %492 : vector<16x16xf32>
    %494 = arith.addf %489, %493 : vector<16x16xf32>
    %c17_249 = arith.constant 17 : index
    %c0_250 = arith.constant 0 : index
    %495 = vector.load %arg8[%c17_249, %c0_250] : memref<36x16xf32, #tpu.memory_space<vmem>>, vector<16x16xf32>
    %c0_251 = arith.constant 0 : index
    %c35_252 = arith.constant 35 : index
    %496 = memref.load %arg4[%c0_251, %c35_252] : memref<4x39xf32, #tpu.memory_space<smem>>
    %497 = vector.broadcast %496 : f32 to vector<16x16xf32>
    %498 = arith.mulf %495, %497 : vector<16x16xf32>
    %499 = arith.addf %494, %498 : vector<16x16xf32>
    %c18_253 = arith.constant 18 : index
    %c0_254 = arith.constant 0 : index
    %500 = vector.load %arg8[%c18_253, %c0_254] : memref<36x16xf32, #tpu.memory_space<vmem>>, vector<16x16xf32>
    %c0_255 = arith.constant 0 : index
    %c36_256 = arith.constant 36 : index
    %501 = memref.load %arg4[%c0_255, %c36_256] : memref<4x39xf32, #tpu.memory_space<smem>>
    %502 = vector.broadcast %501 : f32 to vector<16x16xf32>
    %503 = arith.mulf %500, %502 : vector<16x16xf32>
    %504 = arith.addf %499, %503 : vector<16x16xf32>
    %c19_257 = arith.constant 19 : index
    %c0_258 = arith.constant 0 : index
    %505 = vector.load %arg8[%c19_257, %c0_258] : memref<36x16xf32, #tpu.memory_space<vmem>>, vector<16x16xf32>
    %c0_259 = arith.constant 0 : index
    %c37_260 = arith.constant 37 : index
    %506 = memref.load %arg4[%c0_259, %c37_260] : memref<4x39xf32, #tpu.memory_space<smem>>
    %507 = vector.broadcast %506 : f32 to vector<16x16xf32>
    %508 = arith.mulf %505, %507 : vector<16x16xf32>
    %509 = arith.addf %504, %508 : vector<16x16xf32>
    %c20_261 = arith.constant 20 : index
    %c0_262 = arith.constant 0 : index
    %510 = vector.load %arg8[%c20_261, %c0_262] : memref<36x16xf32, #tpu.memory_space<vmem>>, vector<16x16xf32>
    %c0_263 = arith.constant 0 : index
    %c38_264 = arith.constant 38 : index
    %511 = memref.load %arg4[%c0_263, %c38_264] : memref<4x39xf32, #tpu.memory_space<smem>>
    %512 = vector.broadcast %511 : f32 to vector<16x16xf32>
    %513 = arith.mulf %510, %512 : vector<16x16xf32>
    %514 = arith.addf %509, %513 : vector<16x16xf32>
    %c0_265 = arith.constant 0 : index
    %c1_266 = arith.constant 1 : index
    %c0_267 = arith.constant 0 : index
    %c0_268 = arith.constant 0 : index
    %515 = vector.load %arg1[%c0_265, %c1_266, %c0_267, %c0_268] : memref<1x4x20x36xf32, #tpu.memory_space<vmem>>, vector<1x1x20x36xf32>
    %516 = vector.shape_cast %515 : vector<1x1x20x36xf32> to vector<20x36xf32>
    %517 = vector.extract_strided_slice %516 {offsets = [0, 8], sizes = [20, 16], strides = [1, 1]} : vector<20x36xf32> to vector<20x16xf32>
    %518 = vector.extract_strided_slice %517 {offsets = [0, 0], sizes = [16, 16], strides = [1, 1]} : vector<20x16xf32> to vector<16x16xf32>
    %c1_269 = arith.constant 1 : index
    %c0_270 = arith.constant 0 : index
    %519 = memref.load %arg2[%c1_269, %c0_270] : memref<4x25xf32, #tpu.memory_space<smem>>
    %520 = vector.broadcast %519 : f32 to vector<16x16xf32>
    %521 = arith.mulf %518, %520 : vector<16x16xf32>
    %522 = vector.extract_strided_slice %517 {offsets = [1, 0], sizes = [16, 16], strides = [1, 1]} : vector<20x16xf32> to vector<16x16xf32>
    %c1_271 = arith.constant 1 : index
    %c5_272 = arith.constant 5 : index
    %523 = memref.load %arg2[%c1_271, %c5_272] : memref<4x25xf32, #tpu.memory_space<smem>>
    %524 = vector.broadcast %523 : f32 to vector<16x16xf32>
    %525 = arith.mulf %522, %524 : vector<16x16xf32>
    %526 = arith.addf %521, %525 : vector<16x16xf32>
    %527 = vector.extract_strided_slice %517 {offsets = [2, 0], sizes = [16, 16], strides = [1, 1]} : vector<20x16xf32> to vector<16x16xf32>
    %c1_273 = arith.constant 1 : index
    %c10_274 = arith.constant 10 : index
    %528 = memref.load %arg2[%c1_273, %c10_274] : memref<4x25xf32, #tpu.memory_space<smem>>
    %529 = vector.broadcast %528 : f32 to vector<16x16xf32>
    %530 = arith.mulf %527, %529 : vector<16x16xf32>
    %531 = arith.addf %526, %530 : vector<16x16xf32>
    %532 = vector.extract_strided_slice %517 {offsets = [3, 0], sizes = [16, 16], strides = [1, 1]} : vector<20x16xf32> to vector<16x16xf32>
    %c1_275 = arith.constant 1 : index
    %c15_276 = arith.constant 15 : index
    %533 = memref.load %arg2[%c1_275, %c15_276] : memref<4x25xf32, #tpu.memory_space<smem>>
    %534 = vector.broadcast %533 : f32 to vector<16x16xf32>
    %535 = arith.mulf %532, %534 : vector<16x16xf32>
    %536 = arith.addf %531, %535 : vector<16x16xf32>
    %537 = vector.extract_strided_slice %517 {offsets = [4, 0], sizes = [16, 16], strides = [1, 1]} : vector<20x16xf32> to vector<16x16xf32>
    %c1_277 = arith.constant 1 : index
    %c20_278 = arith.constant 20 : index
    %538 = memref.load %arg2[%c1_277, %c20_278] : memref<4x25xf32, #tpu.memory_space<smem>>
    %539 = vector.broadcast %538 : f32 to vector<16x16xf32>
    %540 = arith.mulf %537, %539 : vector<16x16xf32>
    %541 = arith.addf %536, %540 : vector<16x16xf32>
    %542 = vector.extract_strided_slice %516 {offsets = [0, 9], sizes = [20, 16], strides = [1, 1]} : vector<20x36xf32> to vector<20x16xf32>
    %543 = vector.extract_strided_slice %542 {offsets = [0, 0], sizes = [16, 16], strides = [1, 1]} : vector<20x16xf32> to vector<16x16xf32>
    %c1_279 = arith.constant 1 : index
    %c1_280 = arith.constant 1 : index
    %544 = memref.load %arg2[%c1_279, %c1_280] : memref<4x25xf32, #tpu.memory_space<smem>>
    %545 = vector.broadcast %544 : f32 to vector<16x16xf32>
    %546 = arith.mulf %543, %545 : vector<16x16xf32>
    %547 = arith.addf %541, %546 : vector<16x16xf32>
    %548 = vector.extract_strided_slice %542 {offsets = [1, 0], sizes = [16, 16], strides = [1, 1]} : vector<20x16xf32> to vector<16x16xf32>
    %c1_281 = arith.constant 1 : index
    %c6_282 = arith.constant 6 : index
    %549 = memref.load %arg2[%c1_281, %c6_282] : memref<4x25xf32, #tpu.memory_space<smem>>
    %550 = vector.broadcast %549 : f32 to vector<16x16xf32>
    %551 = arith.mulf %548, %550 : vector<16x16xf32>
    %552 = arith.addf %547, %551 : vector<16x16xf32>
    %553 = vector.extract_strided_slice %542 {offsets = [2, 0], sizes = [16, 16], strides = [1, 1]} : vector<20x16xf32> to vector<16x16xf32>
    %c1_283 = arith.constant 1 : index
    %c11_284 = arith.constant 11 : index
    %554 = memref.load %arg2[%c1_283, %c11_284] : memref<4x25xf32, #tpu.memory_space<smem>>
    %555 = vector.broadcast %554 : f32 to vector<16x16xf32>
    %556 = arith.mulf %553, %555 : vector<16x16xf32>
    %557 = arith.addf %552, %556 : vector<16x16xf32>
    %558 = vector.extract_strided_slice %542 {offsets = [3, 0], sizes = [16, 16], strides = [1, 1]} : vector<20x16xf32> to vector<16x16xf32>
    %c1_285 = arith.constant 1 : index
    %c16_286 = arith.constant 16 : index
    %559 = memref.load %arg2[%c1_285, %c16_286] : memref<4x25xf32, #tpu.memory_space<smem>>
    %560 = vector.broadcast %559 : f32 to vector<16x16xf32>
    %561 = arith.mulf %558, %560 : vector<16x16xf32>
    %562 = arith.addf %557, %561 : vector<16x16xf32>
    %563 = vector.extract_strided_slice %542 {offsets = [4, 0], sizes = [16, 16], strides = [1, 1]} : vector<20x16xf32> to vector<16x16xf32>
    %c1_287 = arith.constant 1 : index
    %c21_288 = arith.constant 21 : index
    %564 = memref.load %arg2[%c1_287, %c21_288] : memref<4x25xf32, #tpu.memory_space<smem>>
    %565 = vector.broadcast %564 : f32 to vector<16x16xf32>
    %566 = arith.mulf %563, %565 : vector<16x16xf32>
    %567 = arith.addf %562, %566 : vector<16x16xf32>
    %568 = vector.extract_strided_slice %516 {offsets = [0, 10], sizes = [20, 16], strides = [1, 1]} : vector<20x36xf32> to vector<20x16xf32>
    %569 = vector.extract_strided_slice %568 {offsets = [0, 0], sizes = [16, 16], strides = [1, 1]} : vector<20x16xf32> to vector<16x16xf32>
    %c1_289 = arith.constant 1 : index
    %c2_290 = arith.constant 2 : index
    %570 = memref.load %arg2[%c1_289, %c2_290] : memref<4x25xf32, #tpu.memory_space<smem>>
    %571 = vector.broadcast %570 : f32 to vector<16x16xf32>
    %572 = arith.mulf %569, %571 : vector<16x16xf32>
    %573 = arith.addf %567, %572 : vector<16x16xf32>
    %574 = vector.extract_strided_slice %568 {offsets = [1, 0], sizes = [16, 16], strides = [1, 1]} : vector<20x16xf32> to vector<16x16xf32>
    %c1_291 = arith.constant 1 : index
    %c7_292 = arith.constant 7 : index
    %575 = memref.load %arg2[%c1_291, %c7_292] : memref<4x25xf32, #tpu.memory_space<smem>>
    %576 = vector.broadcast %575 : f32 to vector<16x16xf32>
    %577 = arith.mulf %574, %576 : vector<16x16xf32>
    %578 = arith.addf %573, %577 : vector<16x16xf32>
    %579 = vector.extract_strided_slice %568 {offsets = [2, 0], sizes = [16, 16], strides = [1, 1]} : vector<20x16xf32> to vector<16x16xf32>
    %c1_293 = arith.constant 1 : index
    %c12_294 = arith.constant 12 : index
    %580 = memref.load %arg2[%c1_293, %c12_294] : memref<4x25xf32, #tpu.memory_space<smem>>
    %581 = vector.broadcast %580 : f32 to vector<16x16xf32>
    %582 = arith.mulf %579, %581 : vector<16x16xf32>
    %583 = arith.addf %578, %582 : vector<16x16xf32>
    %584 = vector.extract_strided_slice %568 {offsets = [3, 0], sizes = [16, 16], strides = [1, 1]} : vector<20x16xf32> to vector<16x16xf32>
    %c1_295 = arith.constant 1 : index
    %c17_296 = arith.constant 17 : index
    %585 = memref.load %arg2[%c1_295, %c17_296] : memref<4x25xf32, #tpu.memory_space<smem>>
    %586 = vector.broadcast %585 : f32 to vector<16x16xf32>
    %587 = arith.mulf %584, %586 : vector<16x16xf32>
    %588 = arith.addf %583, %587 : vector<16x16xf32>
    %589 = vector.extract_strided_slice %568 {offsets = [4, 0], sizes = [16, 16], strides = [1, 1]} : vector<20x16xf32> to vector<16x16xf32>
    %c1_297 = arith.constant 1 : index
    %c22_298 = arith.constant 22 : index
    %590 = memref.load %arg2[%c1_297, %c22_298] : memref<4x25xf32, #tpu.memory_space<smem>>
    %591 = vector.broadcast %590 : f32 to vector<16x16xf32>
    %592 = arith.mulf %589, %591 : vector<16x16xf32>
    %593 = arith.addf %588, %592 : vector<16x16xf32>
    %594 = vector.extract_strided_slice %516 {offsets = [0, 11], sizes = [20, 16], strides = [1, 1]} : vector<20x36xf32> to vector<20x16xf32>
    %595 = vector.extract_strided_slice %594 {offsets = [0, 0], sizes = [16, 16], strides = [1, 1]} : vector<20x16xf32> to vector<16x16xf32>
    %c1_299 = arith.constant 1 : index
    %c3_300 = arith.constant 3 : index
    %596 = memref.load %arg2[%c1_299, %c3_300] : memref<4x25xf32, #tpu.memory_space<smem>>
    %597 = vector.broadcast %596 : f32 to vector<16x16xf32>
    %598 = arith.mulf %595, %597 : vector<16x16xf32>
    %599 = arith.addf %593, %598 : vector<16x16xf32>
    %600 = vector.extract_strided_slice %594 {offsets = [1, 0], sizes = [16, 16], strides = [1, 1]} : vector<20x16xf32> to vector<16x16xf32>
    %c1_301 = arith.constant 1 : index
    %c8_302 = arith.constant 8 : index
    %601 = memref.load %arg2[%c1_301, %c8_302] : memref<4x25xf32, #tpu.memory_space<smem>>
    %602 = vector.broadcast %601 : f32 to vector<16x16xf32>
    %603 = arith.mulf %600, %602 : vector<16x16xf32>
    %604 = arith.addf %599, %603 : vector<16x16xf32>
    %605 = vector.extract_strided_slice %594 {offsets = [2, 0], sizes = [16, 16], strides = [1, 1]} : vector<20x16xf32> to vector<16x16xf32>
    %c1_303 = arith.constant 1 : index
    %c13_304 = arith.constant 13 : index
    %606 = memref.load %arg2[%c1_303, %c13_304] : memref<4x25xf32, #tpu.memory_space<smem>>
    %607 = vector.broadcast %606 : f32 to vector<16x16xf32>
    %608 = arith.mulf %605, %607 : vector<16x16xf32>
    %609 = arith.addf %604, %608 : vector<16x16xf32>
    %610 = vector.extract_strided_slice %594 {offsets = [3, 0], sizes = [16, 16], strides = [1, 1]} : vector<20x16xf32> to vector<16x16xf32>
    %c1_305 = arith.constant 1 : index
    %c18_306 = arith.constant 18 : index
    %611 = memref.load %arg2[%c1_305, %c18_306] : memref<4x25xf32, #tpu.memory_space<smem>>
    %612 = vector.broadcast %611 : f32 to vector<16x16xf32>
    %613 = arith.mulf %610, %612 : vector<16x16xf32>
    %614 = arith.addf %609, %613 : vector<16x16xf32>
    %615 = vector.extract_strided_slice %594 {offsets = [4, 0], sizes = [16, 16], strides = [1, 1]} : vector<20x16xf32> to vector<16x16xf32>
    %c1_307 = arith.constant 1 : index
    %c23_308 = arith.constant 23 : index
    %616 = memref.load %arg2[%c1_307, %c23_308] : memref<4x25xf32, #tpu.memory_space<smem>>
    %617 = vector.broadcast %616 : f32 to vector<16x16xf32>
    %618 = arith.mulf %615, %617 : vector<16x16xf32>
    %619 = arith.addf %614, %618 : vector<16x16xf32>
    %620 = vector.extract_strided_slice %516 {offsets = [0, 12], sizes = [20, 16], strides = [1, 1]} : vector<20x36xf32> to vector<20x16xf32>
    %621 = vector.extract_strided_slice %620 {offsets = [0, 0], sizes = [16, 16], strides = [1, 1]} : vector<20x16xf32> to vector<16x16xf32>
    %c1_309 = arith.constant 1 : index
    %c4_310 = arith.constant 4 : index
    %622 = memref.load %arg2[%c1_309, %c4_310] : memref<4x25xf32, #tpu.memory_space<smem>>
    %623 = vector.broadcast %622 : f32 to vector<16x16xf32>
    %624 = arith.mulf %621, %623 : vector<16x16xf32>
    %625 = arith.addf %619, %624 : vector<16x16xf32>
    %626 = vector.extract_strided_slice %620 {offsets = [1, 0], sizes = [16, 16], strides = [1, 1]} : vector<20x16xf32> to vector<16x16xf32>
    %c1_311 = arith.constant 1 : index
    %c9_312 = arith.constant 9 : index
    %627 = memref.load %arg2[%c1_311, %c9_312] : memref<4x25xf32, #tpu.memory_space<smem>>
    %628 = vector.broadcast %627 : f32 to vector<16x16xf32>
    %629 = arith.mulf %626, %628 : vector<16x16xf32>
    %630 = arith.addf %625, %629 : vector<16x16xf32>
    %631 = vector.extract_strided_slice %620 {offsets = [2, 0], sizes = [16, 16], strides = [1, 1]} : vector<20x16xf32> to vector<16x16xf32>
    %c1_313 = arith.constant 1 : index
    %c14_314 = arith.constant 14 : index
    %632 = memref.load %arg2[%c1_313, %c14_314] : memref<4x25xf32, #tpu.memory_space<smem>>
    %633 = vector.broadcast %632 : f32 to vector<16x16xf32>
    %634 = arith.mulf %631, %633 : vector<16x16xf32>
    %635 = arith.addf %630, %634 : vector<16x16xf32>
    %636 = vector.extract_strided_slice %620 {offsets = [3, 0], sizes = [16, 16], strides = [1, 1]} : vector<20x16xf32> to vector<16x16xf32>
    %c1_315 = arith.constant 1 : index
    %c19_316 = arith.constant 19 : index
    %637 = memref.load %arg2[%c1_315, %c19_316] : memref<4x25xf32, #tpu.memory_space<smem>>
    %638 = vector.broadcast %637 : f32 to vector<16x16xf32>
    %639 = arith.mulf %636, %638 : vector<16x16xf32>
    %640 = arith.addf %635, %639 : vector<16x16xf32>
    %641 = vector.extract_strided_slice %620 {offsets = [4, 0], sizes = [16, 16], strides = [1, 1]} : vector<20x16xf32> to vector<16x16xf32>
    %c1_317 = arith.constant 1 : index
    %c24_318 = arith.constant 24 : index
    %642 = memref.load %arg2[%c1_317, %c24_318] : memref<4x25xf32, #tpu.memory_space<smem>>
    %643 = vector.broadcast %642 : f32 to vector<16x16xf32>
    %644 = arith.mulf %641, %643 : vector<16x16xf32>
    %645 = arith.addf %640, %644 : vector<16x16xf32>
    %646 = vector.extract_strided_slice %516 {offsets = [2, 0], sizes = [16, 16], strides = [1, 1]} : vector<20x36xf32> to vector<16x16xf32>
    %c1_319 = arith.constant 1 : index
    %c18_320 = arith.constant 18 : index
    %647 = memref.load %arg3[%c1_319, %c18_320] : memref<4x39xf32, #tpu.memory_space<smem>>
    %648 = vector.broadcast %647 : f32 to vector<16x16xf32>
    %649 = arith.mulf %646, %648 : vector<16x16xf32>
    %650 = vector.extract_strided_slice %516 {offsets = [2, 1], sizes = [16, 16], strides = [1, 1]} : vector<20x36xf32> to vector<16x16xf32>
    %c1_321 = arith.constant 1 : index
    %c19_322 = arith.constant 19 : index
    %651 = memref.load %arg3[%c1_321, %c19_322] : memref<4x39xf32, #tpu.memory_space<smem>>
    %652 = vector.broadcast %651 : f32 to vector<16x16xf32>
    %653 = arith.mulf %650, %652 : vector<16x16xf32>
    %654 = arith.addf %649, %653 : vector<16x16xf32>
    %655 = vector.extract_strided_slice %516 {offsets = [2, 2], sizes = [16, 16], strides = [1, 1]} : vector<20x36xf32> to vector<16x16xf32>
    %c1_323 = arith.constant 1 : index
    %c20_324 = arith.constant 20 : index
    %656 = memref.load %arg3[%c1_323, %c20_324] : memref<4x39xf32, #tpu.memory_space<smem>>
    %657 = vector.broadcast %656 : f32 to vector<16x16xf32>
    %658 = arith.mulf %655, %657 : vector<16x16xf32>
    %659 = arith.addf %654, %658 : vector<16x16xf32>
    %660 = vector.extract_strided_slice %516 {offsets = [2, 3], sizes = [16, 16], strides = [1, 1]} : vector<20x36xf32> to vector<16x16xf32>
    %c1_325 = arith.constant 1 : index
    %c21_326 = arith.constant 21 : index
    %661 = memref.load %arg3[%c1_325, %c21_326] : memref<4x39xf32, #tpu.memory_space<smem>>
    %662 = vector.broadcast %661 : f32 to vector<16x16xf32>
    %663 = arith.mulf %660, %662 : vector<16x16xf32>
    %664 = arith.addf %659, %663 : vector<16x16xf32>
    %665 = vector.extract_strided_slice %516 {offsets = [2, 4], sizes = [16, 16], strides = [1, 1]} : vector<20x36xf32> to vector<16x16xf32>
    %c1_327 = arith.constant 1 : index
    %c22_328 = arith.constant 22 : index
    %666 = memref.load %arg3[%c1_327, %c22_328] : memref<4x39xf32, #tpu.memory_space<smem>>
    %667 = vector.broadcast %666 : f32 to vector<16x16xf32>
    %668 = arith.mulf %665, %667 : vector<16x16xf32>
    %669 = arith.addf %664, %668 : vector<16x16xf32>
    %670 = vector.extract_strided_slice %516 {offsets = [2, 5], sizes = [16, 16], strides = [1, 1]} : vector<20x36xf32> to vector<16x16xf32>
    %c1_329 = arith.constant 1 : index
    %c23_330 = arith.constant 23 : index
    %671 = memref.load %arg3[%c1_329, %c23_330] : memref<4x39xf32, #tpu.memory_space<smem>>
    %672 = vector.broadcast %671 : f32 to vector<16x16xf32>
    %673 = arith.mulf %670, %672 : vector<16x16xf32>
    %674 = arith.addf %669, %673 : vector<16x16xf32>
    %c1_331 = arith.constant 1 : index
    %c7_332 = arith.constant 7 : index
    %675 = memref.load %arg3[%c1_331, %c7_332] : memref<4x39xf32, #tpu.memory_space<smem>>
    %676 = vector.broadcast %675 : f32 to vector<16x16xf32>
    %677 = arith.mulf %670, %676 : vector<16x16xf32>
    %678 = vector.extract_strided_slice %516 {offsets = [2, 6], sizes = [16, 16], strides = [1, 1]} : vector<20x36xf32> to vector<16x16xf32>
    %c1_333 = arith.constant 1 : index
    %c24_334 = arith.constant 24 : index
    %679 = memref.load %arg3[%c1_333, %c24_334] : memref<4x39xf32, #tpu.memory_space<smem>>
    %680 = vector.broadcast %679 : f32 to vector<16x16xf32>
    %681 = arith.mulf %678, %680 : vector<16x16xf32>
    %682 = arith.addf %674, %681 : vector<16x16xf32>
    %c1_335 = arith.constant 1 : index
    %c8_336 = arith.constant 8 : index
    %683 = memref.load %arg3[%c1_335, %c8_336] : memref<4x39xf32, #tpu.memory_space<smem>>
    %684 = vector.broadcast %683 : f32 to vector<16x16xf32>
    %685 = arith.mulf %678, %684 : vector<16x16xf32>
    %686 = arith.addf %677, %685 : vector<16x16xf32>
    %687 = vector.extract_strided_slice %516 {offsets = [2, 7], sizes = [16, 16], strides = [1, 1]} : vector<20x36xf32> to vector<16x16xf32>
    %c1_337 = arith.constant 1 : index
    %c25_338 = arith.constant 25 : index
    %688 = memref.load %arg3[%c1_337, %c25_338] : memref<4x39xf32, #tpu.memory_space<smem>>
    %689 = vector.broadcast %688 : f32 to vector<16x16xf32>
    %690 = arith.mulf %687, %689 : vector<16x16xf32>
    %691 = arith.addf %682, %690 : vector<16x16xf32>
    %c1_339 = arith.constant 1 : index
    %c9_340 = arith.constant 9 : index
    %692 = memref.load %arg3[%c1_339, %c9_340] : memref<4x39xf32, #tpu.memory_space<smem>>
    %693 = vector.broadcast %692 : f32 to vector<16x16xf32>
    %694 = arith.mulf %687, %693 : vector<16x16xf32>
    %695 = arith.addf %686, %694 : vector<16x16xf32>
    %c1_341 = arith.constant 1 : index
    %c0_342 = arith.constant 0 : index
    %696 = memref.load %arg3[%c1_341, %c0_342] : memref<4x39xf32, #tpu.memory_space<smem>>
    %697 = vector.broadcast %696 : f32 to vector<16x16xf32>
    %698 = arith.mulf %687, %697 : vector<16x16xf32>
    %699 = vector.extract_strided_slice %516 {offsets = [2, 8], sizes = [16, 16], strides = [1, 1]} : vector<20x36xf32> to vector<16x16xf32>
    %c1_343 = arith.constant 1 : index
    %c26_344 = arith.constant 26 : index
    %700 = memref.load %arg3[%c1_343, %c26_344] : memref<4x39xf32, #tpu.memory_space<smem>>
    %701 = vector.broadcast %700 : f32 to vector<16x16xf32>
    %702 = arith.mulf %699, %701 : vector<16x16xf32>
    %703 = arith.addf %691, %702 : vector<16x16xf32>
    %c1_345 = arith.constant 1 : index
    %c10_346 = arith.constant 10 : index
    %704 = memref.load %arg3[%c1_345, %c10_346] : memref<4x39xf32, #tpu.memory_space<smem>>
    %705 = vector.broadcast %704 : f32 to vector<16x16xf32>
    %706 = arith.mulf %699, %705 : vector<16x16xf32>
    %707 = arith.addf %695, %706 : vector<16x16xf32>
    %c1_347 = arith.constant 1 : index
    %c1_348 = arith.constant 1 : index
    %708 = memref.load %arg3[%c1_347, %c1_348] : memref<4x39xf32, #tpu.memory_space<smem>>
    %709 = vector.broadcast %708 : f32 to vector<16x16xf32>
    %710 = arith.mulf %699, %709 : vector<16x16xf32>
    %711 = arith.addf %698, %710 : vector<16x16xf32>
    %712 = vector.extract_strided_slice %516 {offsets = [2, 9], sizes = [16, 16], strides = [1, 1]} : vector<20x36xf32> to vector<16x16xf32>
    %c1_349 = arith.constant 1 : index
    %c27_350 = arith.constant 27 : index
    %713 = memref.load %arg3[%c1_349, %c27_350] : memref<4x39xf32, #tpu.memory_space<smem>>
    %714 = vector.broadcast %713 : f32 to vector<16x16xf32>
    %715 = arith.mulf %712, %714 : vector<16x16xf32>
    %716 = arith.addf %703, %715 : vector<16x16xf32>
    %c1_351 = arith.constant 1 : index
    %c11_352 = arith.constant 11 : index
    %717 = memref.load %arg3[%c1_351, %c11_352] : memref<4x39xf32, #tpu.memory_space<smem>>
    %718 = vector.broadcast %717 : f32 to vector<16x16xf32>
    %719 = arith.mulf %712, %718 : vector<16x16xf32>
    %720 = arith.addf %707, %719 : vector<16x16xf32>
    %c1_353 = arith.constant 1 : index
    %c2_354 = arith.constant 2 : index
    %721 = memref.load %arg3[%c1_353, %c2_354] : memref<4x39xf32, #tpu.memory_space<smem>>
    %722 = vector.broadcast %721 : f32 to vector<16x16xf32>
    %723 = arith.mulf %712, %722 : vector<16x16xf32>
    %724 = arith.addf %711, %723 : vector<16x16xf32>
    %725 = vector.extract_strided_slice %516 {offsets = [2, 10], sizes = [16, 16], strides = [1, 1]} : vector<20x36xf32> to vector<16x16xf32>
    %c1_355 = arith.constant 1 : index
    %c28_356 = arith.constant 28 : index
    %726 = memref.load %arg3[%c1_355, %c28_356] : memref<4x39xf32, #tpu.memory_space<smem>>
    %727 = vector.broadcast %726 : f32 to vector<16x16xf32>
    %728 = arith.mulf %725, %727 : vector<16x16xf32>
    %729 = arith.addf %716, %728 : vector<16x16xf32>
    %c1_357 = arith.constant 1 : index
    %c12_358 = arith.constant 12 : index
    %730 = memref.load %arg3[%c1_357, %c12_358] : memref<4x39xf32, #tpu.memory_space<smem>>
    %731 = vector.broadcast %730 : f32 to vector<16x16xf32>
    %732 = arith.mulf %725, %731 : vector<16x16xf32>
    %733 = arith.addf %720, %732 : vector<16x16xf32>
    %c1_359 = arith.constant 1 : index
    %c3_360 = arith.constant 3 : index
    %734 = memref.load %arg3[%c1_359, %c3_360] : memref<4x39xf32, #tpu.memory_space<smem>>
    %735 = vector.broadcast %734 : f32 to vector<16x16xf32>
    %736 = arith.mulf %725, %735 : vector<16x16xf32>
    %737 = arith.addf %724, %736 : vector<16x16xf32>
    %738 = vector.extract_strided_slice %516 {offsets = [2, 11], sizes = [16, 16], strides = [1, 1]} : vector<20x36xf32> to vector<16x16xf32>
    %c1_361 = arith.constant 1 : index
    %c29_362 = arith.constant 29 : index
    %739 = memref.load %arg3[%c1_361, %c29_362] : memref<4x39xf32, #tpu.memory_space<smem>>
    %740 = vector.broadcast %739 : f32 to vector<16x16xf32>
    %741 = arith.mulf %738, %740 : vector<16x16xf32>
    %742 = arith.addf %729, %741 : vector<16x16xf32>
    %c1_363 = arith.constant 1 : index
    %c13_364 = arith.constant 13 : index
    %743 = memref.load %arg3[%c1_363, %c13_364] : memref<4x39xf32, #tpu.memory_space<smem>>
    %744 = vector.broadcast %743 : f32 to vector<16x16xf32>
    %745 = arith.mulf %738, %744 : vector<16x16xf32>
    %746 = arith.addf %733, %745 : vector<16x16xf32>
    %c1_365 = arith.constant 1 : index
    %c4_366 = arith.constant 4 : index
    %747 = memref.load %arg3[%c1_365, %c4_366] : memref<4x39xf32, #tpu.memory_space<smem>>
    %748 = vector.broadcast %747 : f32 to vector<16x16xf32>
    %749 = arith.mulf %738, %748 : vector<16x16xf32>
    %750 = arith.addf %737, %749 : vector<16x16xf32>
    %751 = vector.extract_strided_slice %516 {offsets = [2, 12], sizes = [16, 16], strides = [1, 1]} : vector<20x36xf32> to vector<16x16xf32>
    %c1_367 = arith.constant 1 : index
    %c30_368 = arith.constant 30 : index
    %752 = memref.load %arg3[%c1_367, %c30_368] : memref<4x39xf32, #tpu.memory_space<smem>>
    %753 = vector.broadcast %752 : f32 to vector<16x16xf32>
    %754 = arith.mulf %751, %753 : vector<16x16xf32>
    %755 = arith.addf %742, %754 : vector<16x16xf32>
    %c1_369 = arith.constant 1 : index
    %c14_370 = arith.constant 14 : index
    %756 = memref.load %arg3[%c1_369, %c14_370] : memref<4x39xf32, #tpu.memory_space<smem>>
    %757 = vector.broadcast %756 : f32 to vector<16x16xf32>
    %758 = arith.mulf %751, %757 : vector<16x16xf32>
    %759 = arith.addf %746, %758 : vector<16x16xf32>
    %c1_371 = arith.constant 1 : index
    %c5_372 = arith.constant 5 : index
    %760 = memref.load %arg3[%c1_371, %c5_372] : memref<4x39xf32, #tpu.memory_space<smem>>
    %761 = vector.broadcast %760 : f32 to vector<16x16xf32>
    %762 = arith.mulf %751, %761 : vector<16x16xf32>
    %763 = arith.addf %750, %762 : vector<16x16xf32>
    %764 = vector.extract_strided_slice %516 {offsets = [2, 13], sizes = [16, 16], strides = [1, 1]} : vector<20x36xf32> to vector<16x16xf32>
    %c1_373 = arith.constant 1 : index
    %c31_374 = arith.constant 31 : index
    %765 = memref.load %arg3[%c1_373, %c31_374] : memref<4x39xf32, #tpu.memory_space<smem>>
    %766 = vector.broadcast %765 : f32 to vector<16x16xf32>
    %767 = arith.mulf %764, %766 : vector<16x16xf32>
    %768 = arith.addf %755, %767 : vector<16x16xf32>
    %c1_375 = arith.constant 1 : index
    %c15_376 = arith.constant 15 : index
    %769 = memref.load %arg3[%c1_375, %c15_376] : memref<4x39xf32, #tpu.memory_space<smem>>
    %770 = vector.broadcast %769 : f32 to vector<16x16xf32>
    %771 = arith.mulf %764, %770 : vector<16x16xf32>
    %772 = arith.addf %759, %771 : vector<16x16xf32>
    %c1_377 = arith.constant 1 : index
    %c6_378 = arith.constant 6 : index
    %773 = memref.load %arg3[%c1_377, %c6_378] : memref<4x39xf32, #tpu.memory_space<smem>>
    %774 = vector.broadcast %773 : f32 to vector<16x16xf32>
    %775 = arith.mulf %764, %774 : vector<16x16xf32>
    %776 = arith.addf %763, %775 : vector<16x16xf32>
    %777 = vector.extract_strided_slice %516 {offsets = [2, 14], sizes = [16, 16], strides = [1, 1]} : vector<20x36xf32> to vector<16x16xf32>
    %c1_379 = arith.constant 1 : index
    %c32_380 = arith.constant 32 : index
    %778 = memref.load %arg3[%c1_379, %c32_380] : memref<4x39xf32, #tpu.memory_space<smem>>
    %779 = vector.broadcast %778 : f32 to vector<16x16xf32>
    %780 = arith.mulf %777, %779 : vector<16x16xf32>
    %781 = arith.addf %768, %780 : vector<16x16xf32>
    %c1_381 = arith.constant 1 : index
    %c16_382 = arith.constant 16 : index
    %782 = memref.load %arg3[%c1_381, %c16_382] : memref<4x39xf32, #tpu.memory_space<smem>>
    %783 = vector.broadcast %782 : f32 to vector<16x16xf32>
    %784 = arith.mulf %777, %783 : vector<16x16xf32>
    %785 = arith.addf %772, %784 : vector<16x16xf32>
    %786 = vector.extract_strided_slice %516 {offsets = [2, 15], sizes = [16, 16], strides = [1, 1]} : vector<20x36xf32> to vector<16x16xf32>
    %c1_383 = arith.constant 1 : index
    %c33_384 = arith.constant 33 : index
    %787 = memref.load %arg3[%c1_383, %c33_384] : memref<4x39xf32, #tpu.memory_space<smem>>
    %788 = vector.broadcast %787 : f32 to vector<16x16xf32>
    %789 = arith.mulf %786, %788 : vector<16x16xf32>
    %790 = arith.addf %781, %789 : vector<16x16xf32>
    %c1_385 = arith.constant 1 : index
    %c17_386 = arith.constant 17 : index
    %791 = memref.load %arg3[%c1_385, %c17_386] : memref<4x39xf32, #tpu.memory_space<smem>>
    %792 = vector.broadcast %791 : f32 to vector<16x16xf32>
    %793 = arith.mulf %786, %792 : vector<16x16xf32>
    %794 = arith.addf %785, %793 : vector<16x16xf32>
    %795 = vector.extract_strided_slice %516 {offsets = [2, 16], sizes = [16, 16], strides = [1, 1]} : vector<20x36xf32> to vector<16x16xf32>
    %c1_387 = arith.constant 1 : index
    %c34_388 = arith.constant 34 : index
    %796 = memref.load %arg3[%c1_387, %c34_388] : memref<4x39xf32, #tpu.memory_space<smem>>
    %797 = vector.broadcast %796 : f32 to vector<16x16xf32>
    %798 = arith.mulf %795, %797 : vector<16x16xf32>
    %799 = arith.addf %790, %798 : vector<16x16xf32>
    %800 = vector.extract_strided_slice %516 {offsets = [2, 17], sizes = [16, 16], strides = [1, 1]} : vector<20x36xf32> to vector<16x16xf32>
    %c1_389 = arith.constant 1 : index
    %c35_390 = arith.constant 35 : index
    %801 = memref.load %arg3[%c1_389, %c35_390] : memref<4x39xf32, #tpu.memory_space<smem>>
    %802 = vector.broadcast %801 : f32 to vector<16x16xf32>
    %803 = arith.mulf %800, %802 : vector<16x16xf32>
    %804 = arith.addf %799, %803 : vector<16x16xf32>
    %805 = vector.extract_strided_slice %516 {offsets = [2, 18], sizes = [16, 16], strides = [1, 1]} : vector<20x36xf32> to vector<16x16xf32>
    %c1_391 = arith.constant 1 : index
    %c36_392 = arith.constant 36 : index
    %806 = memref.load %arg3[%c1_391, %c36_392] : memref<4x39xf32, #tpu.memory_space<smem>>
    %807 = vector.broadcast %806 : f32 to vector<16x16xf32>
    %808 = arith.mulf %805, %807 : vector<16x16xf32>
    %809 = arith.addf %804, %808 : vector<16x16xf32>
    %810 = vector.extract_strided_slice %516 {offsets = [2, 19], sizes = [16, 16], strides = [1, 1]} : vector<20x36xf32> to vector<16x16xf32>
    %c1_393 = arith.constant 1 : index
    %c37_394 = arith.constant 37 : index
    %811 = memref.load %arg3[%c1_393, %c37_394] : memref<4x39xf32, #tpu.memory_space<smem>>
    %812 = vector.broadcast %811 : f32 to vector<16x16xf32>
    %813 = arith.mulf %810, %812 : vector<16x16xf32>
    %814 = arith.addf %809, %813 : vector<16x16xf32>
    %815 = vector.extract_strided_slice %516 {offsets = [2, 20], sizes = [16, 16], strides = [1, 1]} : vector<20x36xf32> to vector<16x16xf32>
    %c1_395 = arith.constant 1 : index
    %c38_396 = arith.constant 38 : index
    %816 = memref.load %arg3[%c1_395, %c38_396] : memref<4x39xf32, #tpu.memory_space<smem>>
    %817 = vector.broadcast %816 : f32 to vector<16x16xf32>
    %818 = arith.mulf %815, %817 : vector<16x16xf32>
    %819 = arith.addf %814, %818 : vector<16x16xf32>
    %c1_397 = arith.constant 1 : index
    %c0_398 = arith.constant 0 : index
    %820 = memref.load %arg6[%c1_397, %c0_398] : memref<4x4xf32, #tpu.memory_space<smem>>
    %821 = vector.broadcast %820 : f32 to vector<16x16xf32>
    %822 = arith.addf %776, %821 : vector<16x16xf32>
    %c1_399 = arith.constant 1 : index
    %c1_400 = arith.constant 1 : index
    %823 = memref.load %arg6[%c1_399, %c1_400] : memref<4x4xf32, #tpu.memory_space<smem>>
    %824 = vector.broadcast %823 : f32 to vector<16x16xf32>
    %825 = arith.addf %794, %824 : vector<16x16xf32>
    %c1_401 = arith.constant 1 : index
    %c2_402 = arith.constant 2 : index
    %826 = memref.load %arg6[%c1_401, %c2_402] : memref<4x4xf32, #tpu.memory_space<smem>>
    %827 = vector.broadcast %826 : f32 to vector<16x16xf32>
    %828 = arith.addf %819, %827 : vector<16x16xf32>
    %c10_403 = arith.constant 10 : index
    %c0_404 = arith.constant 0 : index
    %829 = vector.load %arg8[%c10_403, %c0_404] : memref<36x16xf32, #tpu.memory_space<vmem>>, vector<16x16xf32>
    tpu.vector_store %arg8[%c10_403, %c0_404], %822 {strides = array<i32>} : memref<36x16xf32, #tpu.memory_space<vmem>>, vector<16x16xf32>,
    %c7_405 = arith.constant 7 : index
    %c0_406 = arith.constant 0 : index
    %830 = vector.load %arg8[%c7_405, %c0_406] : memref<36x16xf32, #tpu.memory_space<vmem>>, vector<16x16xf32>
    %c1_407 = arith.constant 1 : index
    %c0_408 = arith.constant 0 : index
    %831 = memref.load %arg4[%c1_407, %c0_408] : memref<4x39xf32, #tpu.memory_space<smem>>
    %832 = vector.broadcast %831 : f32 to vector<16x16xf32>
    %833 = arith.mulf %830, %832 : vector<16x16xf32>
    %834 = arith.addf %645, %833 : vector<16x16xf32>
    %c8_409 = arith.constant 8 : index
    %c0_410 = arith.constant 0 : index
    %835 = vector.load %arg8[%c8_409, %c0_410] : memref<36x16xf32, #tpu.memory_space<vmem>>, vector<16x16xf32>
    %c1_411 = arith.constant 1 : index
    %c1_412 = arith.constant 1 : index
    %836 = memref.load %arg4[%c1_411, %c1_412] : memref<4x39xf32, #tpu.memory_space<smem>>
    %837 = vector.broadcast %836 : f32 to vector<16x16xf32>
    %838 = arith.mulf %835, %837 : vector<16x16xf32>
    %839 = arith.addf %834, %838 : vector<16x16xf32>
    %c9_413 = arith.constant 9 : index
    %c0_414 = arith.constant 0 : index
    %840 = vector.load %arg8[%c9_413, %c0_414] : memref<36x16xf32, #tpu.memory_space<vmem>>, vector<16x16xf32>
    %c1_415 = arith.constant 1 : index
    %c2_416 = arith.constant 2 : index
    %841 = memref.load %arg4[%c1_415, %c2_416] : memref<4x39xf32, #tpu.memory_space<smem>>
    %842 = vector.broadcast %841 : f32 to vector<16x16xf32>
    %843 = arith.mulf %840, %842 : vector<16x16xf32>
    %844 = arith.addf %839, %843 : vector<16x16xf32>
    %c10_417 = arith.constant 10 : index
    %c0_418 = arith.constant 0 : index
    %845 = vector.load %arg8[%c10_417, %c0_418] : memref<36x16xf32, #tpu.memory_space<vmem>>, vector<16x16xf32>
    %c1_419 = arith.constant 1 : index
    %c3_420 = arith.constant 3 : index
    %846 = memref.load %arg4[%c1_419, %c3_420] : memref<4x39xf32, #tpu.memory_space<smem>>
    %847 = vector.broadcast %846 : f32 to vector<16x16xf32>
    %848 = arith.mulf %845, %847 : vector<16x16xf32>
    %849 = arith.addf %844, %848 : vector<16x16xf32>
    %c11_421 = arith.constant 11 : index
    %c0_422 = arith.constant 0 : index
    %850 = vector.load %arg8[%c11_421, %c0_422] : memref<36x16xf32, #tpu.memory_space<vmem>>, vector<16x16xf32>
    %c1_423 = arith.constant 1 : index
    %c4_424 = arith.constant 4 : index
    %851 = memref.load %arg4[%c1_423, %c4_424] : memref<4x39xf32, #tpu.memory_space<smem>>
    %852 = vector.broadcast %851 : f32 to vector<16x16xf32>
    %853 = arith.mulf %850, %852 : vector<16x16xf32>
    %854 = arith.addf %849, %853 : vector<16x16xf32>
    %c12_425 = arith.constant 12 : index
    %c0_426 = arith.constant 0 : index
    %855 = vector.load %arg8[%c12_425, %c0_426] : memref<36x16xf32, #tpu.memory_space<vmem>>, vector<16x16xf32>
    %c1_427 = arith.constant 1 : index
    %c5_428 = arith.constant 5 : index
    %856 = memref.load %arg4[%c1_427, %c5_428] : memref<4x39xf32, #tpu.memory_space<smem>>
    %857 = vector.broadcast %856 : f32 to vector<16x16xf32>
    %858 = arith.mulf %855, %857 : vector<16x16xf32>
    %859 = arith.addf %854, %858 : vector<16x16xf32>
    %c13_429 = arith.constant 13 : index
    %c0_430 = arith.constant 0 : index
    %860 = vector.load %arg8[%c13_429, %c0_430] : memref<36x16xf32, #tpu.memory_space<vmem>>, vector<16x16xf32>
    %c1_431 = arith.constant 1 : index
    %c6_432 = arith.constant 6 : index
    %861 = memref.load %arg4[%c1_431, %c6_432] : memref<4x39xf32, #tpu.memory_space<smem>>
    %862 = vector.broadcast %861 : f32 to vector<16x16xf32>
    %863 = arith.mulf %860, %862 : vector<16x16xf32>
    %864 = arith.addf %859, %863 : vector<16x16xf32>
    %c10_433 = arith.constant 10 : index
    %c0_434 = arith.constant 0 : index
    %865 = vector.load %arg8[%c10_433, %c0_434] : memref<36x16xf32, #tpu.memory_space<vmem>>, vector<16x16xf32>
    tpu.vector_store %arg8[%c10_433, %c0_434], %825 {strides = array<i32>} : memref<36x16xf32, #tpu.memory_space<vmem>>, vector<16x16xf32>,
    %c5_435 = arith.constant 5 : index
    %c0_436 = arith.constant 0 : index
    %866 = vector.load %arg8[%c5_435, %c0_436] : memref<36x16xf32, #tpu.memory_space<vmem>>, vector<16x16xf32>
    %c1_437 = arith.constant 1 : index
    %c7_438 = arith.constant 7 : index
    %867 = memref.load %arg4[%c1_437, %c7_438] : memref<4x39xf32, #tpu.memory_space<smem>>
    %868 = vector.broadcast %867 : f32 to vector<16x16xf32>
    %869 = arith.mulf %866, %868 : vector<16x16xf32>
    %870 = arith.addf %864, %869 : vector<16x16xf32>
    %c6_439 = arith.constant 6 : index
    %c0_440 = arith.constant 0 : index
    %871 = vector.load %arg8[%c6_439, %c0_440] : memref<36x16xf32, #tpu.memory_space<vmem>>, vector<16x16xf32>
    %c1_441 = arith.constant 1 : index
    %c8_442 = arith.constant 8 : index
    %872 = memref.load %arg4[%c1_441, %c8_442] : memref<4x39xf32, #tpu.memory_space<smem>>
    %873 = vector.broadcast %872 : f32 to vector<16x16xf32>
    %874 = arith.mulf %871, %873 : vector<16x16xf32>
    %875 = arith.addf %870, %874 : vector<16x16xf32>
    %c7_443 = arith.constant 7 : index
    %c0_444 = arith.constant 0 : index
    %876 = vector.load %arg8[%c7_443, %c0_444] : memref<36x16xf32, #tpu.memory_space<vmem>>, vector<16x16xf32>
    %c1_445 = arith.constant 1 : index
    %c9_446 = arith.constant 9 : index
    %877 = memref.load %arg4[%c1_445, %c9_446] : memref<4x39xf32, #tpu.memory_space<smem>>
    %878 = vector.broadcast %877 : f32 to vector<16x16xf32>
    %879 = arith.mulf %876, %878 : vector<16x16xf32>
    %880 = arith.addf %875, %879 : vector<16x16xf32>
    %c8_447 = arith.constant 8 : index
    %c0_448 = arith.constant 0 : index
    %881 = vector.load %arg8[%c8_447, %c0_448] : memref<36x16xf32, #tpu.memory_space<vmem>>, vector<16x16xf32>
    %c1_449 = arith.constant 1 : index
    %c10_450 = arith.constant 10 : index
    %882 = memref.load %arg4[%c1_449, %c10_450] : memref<4x39xf32, #tpu.memory_space<smem>>
    %883 = vector.broadcast %882 : f32 to vector<16x16xf32>
    %884 = arith.mulf %881, %883 : vector<16x16xf32>
    %885 = arith.addf %880, %884 : vector<16x16xf32>
    %c9_451 = arith.constant 9 : index
    %c0_452 = arith.constant 0 : index
    %886 = vector.load %arg8[%c9_451, %c0_452] : memref<36x16xf32, #tpu.memory_space<vmem>>, vector<16x16xf32>
    %c1_453 = arith.constant 1 : index
    %c11_454 = arith.constant 11 : index
    %887 = memref.load %arg4[%c1_453, %c11_454] : memref<4x39xf32, #tpu.memory_space<smem>>
    %888 = vector.broadcast %887 : f32 to vector<16x16xf32>
    %889 = arith.mulf %886, %888 : vector<16x16xf32>
    %890 = arith.addf %885, %889 : vector<16x16xf32>
    %c10_455 = arith.constant 10 : index
    %c0_456 = arith.constant 0 : index
    %891 = vector.load %arg8[%c10_455, %c0_456] : memref<36x16xf32, #tpu.memory_space<vmem>>, vector<16x16xf32>
    %c1_457 = arith.constant 1 : index
    %c12_458 = arith.constant 12 : index
    %892 = memref.load %arg4[%c1_457, %c12_458] : memref<4x39xf32, #tpu.memory_space<smem>>
    %893 = vector.broadcast %892 : f32 to vector<16x16xf32>
    %894 = arith.mulf %891, %893 : vector<16x16xf32>
    %895 = arith.addf %890, %894 : vector<16x16xf32>
    %c11_459 = arith.constant 11 : index
    %c0_460 = arith.constant 0 : index
    %896 = vector.load %arg8[%c11_459, %c0_460] : memref<36x16xf32, #tpu.memory_space<vmem>>, vector<16x16xf32>
    %c1_461 = arith.constant 1 : index
    %c13_462 = arith.constant 13 : index
    %897 = memref.load %arg4[%c1_461, %c13_462] : memref<4x39xf32, #tpu.memory_space<smem>>
    %898 = vector.broadcast %897 : f32 to vector<16x16xf32>
    %899 = arith.mulf %896, %898 : vector<16x16xf32>
    %900 = arith.addf %895, %899 : vector<16x16xf32>
    %c12_463 = arith.constant 12 : index
    %c0_464 = arith.constant 0 : index
    %901 = vector.load %arg8[%c12_463, %c0_464] : memref<36x16xf32, #tpu.memory_space<vmem>>, vector<16x16xf32>
    %c1_465 = arith.constant 1 : index
    %c14_466 = arith.constant 14 : index
    %902 = memref.load %arg4[%c1_465, %c14_466] : memref<4x39xf32, #tpu.memory_space<smem>>
    %903 = vector.broadcast %902 : f32 to vector<16x16xf32>
    %904 = arith.mulf %901, %903 : vector<16x16xf32>
    %905 = arith.addf %900, %904 : vector<16x16xf32>
    %c13_467 = arith.constant 13 : index
    %c0_468 = arith.constant 0 : index
    %906 = vector.load %arg8[%c13_467, %c0_468] : memref<36x16xf32, #tpu.memory_space<vmem>>, vector<16x16xf32>
    %c1_469 = arith.constant 1 : index
    %c15_470 = arith.constant 15 : index
    %907 = memref.load %arg4[%c1_469, %c15_470] : memref<4x39xf32, #tpu.memory_space<smem>>
    %908 = vector.broadcast %907 : f32 to vector<16x16xf32>
    %909 = arith.mulf %906, %908 : vector<16x16xf32>
    %910 = arith.addf %905, %909 : vector<16x16xf32>
    %c14_471 = arith.constant 14 : index
    %c0_472 = arith.constant 0 : index
    %911 = vector.load %arg8[%c14_471, %c0_472] : memref<36x16xf32, #tpu.memory_space<vmem>>, vector<16x16xf32>
    %c1_473 = arith.constant 1 : index
    %c16_474 = arith.constant 16 : index
    %912 = memref.load %arg4[%c1_473, %c16_474] : memref<4x39xf32, #tpu.memory_space<smem>>
    %913 = vector.broadcast %912 : f32 to vector<16x16xf32>
    %914 = arith.mulf %911, %913 : vector<16x16xf32>
    %915 = arith.addf %910, %914 : vector<16x16xf32>
    %c15_475 = arith.constant 15 : index
    %c0_476 = arith.constant 0 : index
    %916 = vector.load %arg8[%c15_475, %c0_476] : memref<36x16xf32, #tpu.memory_space<vmem>>, vector<16x16xf32>
    %c1_477 = arith.constant 1 : index
    %c17_478 = arith.constant 17 : index
    %917 = memref.load %arg4[%c1_477, %c17_478] : memref<4x39xf32, #tpu.memory_space<smem>>
    %918 = vector.broadcast %917 : f32 to vector<16x16xf32>
    %919 = arith.mulf %916, %918 : vector<16x16xf32>
    %920 = arith.addf %915, %919 : vector<16x16xf32>
    %c10_479 = arith.constant 10 : index
    %c0_480 = arith.constant 0 : index
    %921 = vector.load %arg8[%c10_479, %c0_480] : memref<36x16xf32, #tpu.memory_space<vmem>>, vector<16x16xf32>
    tpu.vector_store %arg8[%c10_479, %c0_480], %828 {strides = array<i32>} : memref<36x16xf32, #tpu.memory_space<vmem>>, vector<16x16xf32>,
    %c0_481 = arith.constant 0 : index
    %c0_482 = arith.constant 0 : index
    %922 = vector.load %arg8[%c0_481, %c0_482] : memref<36x16xf32, #tpu.memory_space<vmem>>, vector<16x16xf32>
    %c1_483 = arith.constant 1 : index
    %c18_484 = arith.constant 18 : index
    %923 = memref.load %arg4[%c1_483, %c18_484] : memref<4x39xf32, #tpu.memory_space<smem>>
    %924 = vector.broadcast %923 : f32 to vector<16x16xf32>
    %925 = arith.mulf %922, %924 : vector<16x16xf32>
    %926 = arith.addf %920, %925 : vector<16x16xf32>
    %c1_485 = arith.constant 1 : index
    %c0_486 = arith.constant 0 : index
    %927 = vector.load %arg8[%c1_485, %c0_486] : memref<36x16xf32, #tpu.memory_space<vmem>>, vector<16x16xf32>
    %c1_487 = arith.constant 1 : index
    %c19_488 = arith.constant 19 : index
    %928 = memref.load %arg4[%c1_487, %c19_488] : memref<4x39xf32, #tpu.memory_space<smem>>
    %929 = vector.broadcast %928 : f32 to vector<16x16xf32>
    %930 = arith.mulf %927, %929 : vector<16x16xf32>
    %931 = arith.addf %926, %930 : vector<16x16xf32>
    %c2_489 = arith.constant 2 : index
    %c0_490 = arith.constant 0 : index
    %932 = vector.load %arg8[%c2_489, %c0_490] : memref<36x16xf32, #tpu.memory_space<vmem>>, vector<16x16xf32>
    %c1_491 = arith.constant 1 : index
    %c20_492 = arith.constant 20 : index
    %933 = memref.load %arg4[%c1_491, %c20_492] : memref<4x39xf32, #tpu.memory_space<smem>>
    %934 = vector.broadcast %933 : f32 to vector<16x16xf32>
    %935 = arith.mulf %932, %934 : vector<16x16xf32>
    %936 = arith.addf %931, %935 : vector<16x16xf32>
    %c3_493 = arith.constant 3 : index
    %c0_494 = arith.constant 0 : index
    %937 = vector.load %arg8[%c3_493, %c0_494] : memref<36x16xf32, #tpu.memory_space<vmem>>, vector<16x16xf32>
    %c1_495 = arith.constant 1 : index
    %c21_496 = arith.constant 21 : index
    %938 = memref.load %arg4[%c1_495, %c21_496] : memref<4x39xf32, #tpu.memory_space<smem>>
    %939 = vector.broadcast %938 : f32 to vector<16x16xf32>
    %940 = arith.mulf %937, %939 : vector<16x16xf32>
    %941 = arith.addf %936, %940 : vector<16x16xf32>
    %c4_497 = arith.constant 4 : index
    %c0_498 = arith.constant 0 : index
    %942 = vector.load %arg8[%c4_497, %c0_498] : memref<36x16xf32, #tpu.memory_space<vmem>>, vector<16x16xf32>
    %c1_499 = arith.constant 1 : index
    %c22_500 = arith.constant 22 : index
    %943 = memref.load %arg4[%c1_499, %c22_500] : memref<4x39xf32, #tpu.memory_space<smem>>
    %944 = vector.broadcast %943 : f32 to vector<16x16xf32>
    %945 = arith.mulf %942, %944 : vector<16x16xf32>
    %946 = arith.addf %941, %945 : vector<16x16xf32>
    %c5_501 = arith.constant 5 : index
    %c0_502 = arith.constant 0 : index
    %947 = vector.load %arg8[%c5_501, %c0_502] : memref<36x16xf32, #tpu.memory_space<vmem>>, vector<16x16xf32>
    %c1_503 = arith.constant 1 : index
    %c23_504 = arith.constant 23 : index
    %948 = memref.load %arg4[%c1_503, %c23_504] : memref<4x39xf32, #tpu.memory_space<smem>>
    %949 = vector.broadcast %948 : f32 to vector<16x16xf32>
    %950 = arith.mulf %947, %949 : vector<16x16xf32>
    %951 = arith.addf %946, %950 : vector<16x16xf32>
    %c6_505 = arith.constant 6 : index
    %c0_506 = arith.constant 0 : index
    %952 = vector.load %arg8[%c6_505, %c0_506] : memref<36x16xf32, #tpu.memory_space<vmem>>, vector<16x16xf32>
    %c1_507 = arith.constant 1 : index
    %c24_508 = arith.constant 24 : index
    %953 = memref.load %arg4[%c1_507, %c24_508] : memref<4x39xf32, #tpu.memory_space<smem>>
    %954 = vector.broadcast %953 : f32 to vector<16x16xf32>
    %955 = arith.mulf %952, %954 : vector<16x16xf32>
    %956 = arith.addf %951, %955 : vector<16x16xf32>
    %c7_509 = arith.constant 7 : index
    %c0_510 = arith.constant 0 : index
    %957 = vector.load %arg8[%c7_509, %c0_510] : memref<36x16xf32, #tpu.memory_space<vmem>>, vector<16x16xf32>
    %c1_511 = arith.constant 1 : index
    %c25_512 = arith.constant 25 : index
    %958 = memref.load %arg4[%c1_511, %c25_512] : memref<4x39xf32, #tpu.memory_space<smem>>
    %959 = vector.broadcast %958 : f32 to vector<16x16xf32>
    %960 = arith.mulf %957, %959 : vector<16x16xf32>
    %961 = arith.addf %956, %960 : vector<16x16xf32>
    %c8_513 = arith.constant 8 : index
    %c0_514 = arith.constant 0 : index
    %962 = vector.load %arg8[%c8_513, %c0_514] : memref<36x16xf32, #tpu.memory_space<vmem>>, vector<16x16xf32>
    %c1_515 = arith.constant 1 : index
    %c26_516 = arith.constant 26 : index
    %963 = memref.load %arg4[%c1_515, %c26_516] : memref<4x39xf32, #tpu.memory_space<smem>>
    %964 = vector.broadcast %963 : f32 to vector<16x16xf32>
    %965 = arith.mulf %962, %964 : vector<16x16xf32>
    %966 = arith.addf %961, %965 : vector<16x16xf32>
    %c9_517 = arith.constant 9 : index
    %c0_518 = arith.constant 0 : index
    %967 = vector.load %arg8[%c9_517, %c0_518] : memref<36x16xf32, #tpu.memory_space<vmem>>, vector<16x16xf32>
    %c1_519 = arith.constant 1 : index
    %c27_520 = arith.constant 27 : index
    %968 = memref.load %arg4[%c1_519, %c27_520] : memref<4x39xf32, #tpu.memory_space<smem>>
    %969 = vector.broadcast %968 : f32 to vector<16x16xf32>
    %970 = arith.mulf %967, %969 : vector<16x16xf32>
    %971 = arith.addf %966, %970 : vector<16x16xf32>
    %c10_521 = arith.constant 10 : index
    %c0_522 = arith.constant 0 : index
    %972 = vector.load %arg8[%c10_521, %c0_522] : memref<36x16xf32, #tpu.memory_space<vmem>>, vector<16x16xf32>
    %c1_523 = arith.constant 1 : index
    %c28_524 = arith.constant 28 : index
    %973 = memref.load %arg4[%c1_523, %c28_524] : memref<4x39xf32, #tpu.memory_space<smem>>
    %974 = vector.broadcast %973 : f32 to vector<16x16xf32>
    %975 = arith.mulf %972, %974 : vector<16x16xf32>
    %976 = arith.addf %971, %975 : vector<16x16xf32>
    %c11_525 = arith.constant 11 : index
    %c0_526 = arith.constant 0 : index
    %977 = vector.load %arg8[%c11_525, %c0_526] : memref<36x16xf32, #tpu.memory_space<vmem>>, vector<16x16xf32>
    %c1_527 = arith.constant 1 : index
    %c29_528 = arith.constant 29 : index
    %978 = memref.load %arg4[%c1_527, %c29_528] : memref<4x39xf32, #tpu.memory_space<smem>>
    %979 = vector.broadcast %978 : f32 to vector<16x16xf32>
    %980 = arith.mulf %977, %979 : vector<16x16xf32>
    %981 = arith.addf %976, %980 : vector<16x16xf32>
    %c12_529 = arith.constant 12 : index
    %c0_530 = arith.constant 0 : index
    %982 = vector.load %arg8[%c12_529, %c0_530] : memref<36x16xf32, #tpu.memory_space<vmem>>, vector<16x16xf32>
    %c1_531 = arith.constant 1 : index
    %c30_532 = arith.constant 30 : index
    %983 = memref.load %arg4[%c1_531, %c30_532] : memref<4x39xf32, #tpu.memory_space<smem>>
    %984 = vector.broadcast %983 : f32 to vector<16x16xf32>
    %985 = arith.mulf %982, %984 : vector<16x16xf32>
    %986 = arith.addf %981, %985 : vector<16x16xf32>
    %c13_533 = arith.constant 13 : index
    %c0_534 = arith.constant 0 : index
    %987 = vector.load %arg8[%c13_533, %c0_534] : memref<36x16xf32, #tpu.memory_space<vmem>>, vector<16x16xf32>
    %c1_535 = arith.constant 1 : index
    %c31_536 = arith.constant 31 : index
    %988 = memref.load %arg4[%c1_535, %c31_536] : memref<4x39xf32, #tpu.memory_space<smem>>
    %989 = vector.broadcast %988 : f32 to vector<16x16xf32>
    %990 = arith.mulf %987, %989 : vector<16x16xf32>
    %991 = arith.addf %986, %990 : vector<16x16xf32>
    %c14_537 = arith.constant 14 : index
    %c0_538 = arith.constant 0 : index
    %992 = vector.load %arg8[%c14_537, %c0_538] : memref<36x16xf32, #tpu.memory_space<vmem>>, vector<16x16xf32>
    %c1_539 = arith.constant 1 : index
    %c32_540 = arith.constant 32 : index
    %993 = memref.load %arg4[%c1_539, %c32_540] : memref<4x39xf32, #tpu.memory_space<smem>>
    %994 = vector.broadcast %993 : f32 to vector<16x16xf32>
    %995 = arith.mulf %992, %994 : vector<16x16xf32>
    %996 = arith.addf %991, %995 : vector<16x16xf32>
    %c15_541 = arith.constant 15 : index
    %c0_542 = arith.constant 0 : index
    %997 = vector.load %arg8[%c15_541, %c0_542] : memref<36x16xf32, #tpu.memory_space<vmem>>, vector<16x16xf32>
    %c1_543 = arith.constant 1 : index
    %c33_544 = arith.constant 33 : index
    %998 = memref.load %arg4[%c1_543, %c33_544] : memref<4x39xf32, #tpu.memory_space<smem>>
    %999 = vector.broadcast %998 : f32 to vector<16x16xf32>
    %1000 = arith.mulf %997, %999 : vector<16x16xf32>
    %1001 = arith.addf %996, %1000 : vector<16x16xf32>
    %c16_545 = arith.constant 16 : index
    %c0_546 = arith.constant 0 : index
    %1002 = vector.load %arg8[%c16_545, %c0_546] : memref<36x16xf32, #tpu.memory_space<vmem>>, vector<16x16xf32>
    %c1_547 = arith.constant 1 : index
    %c34_548 = arith.constant 34 : index
    %1003 = memref.load %arg4[%c1_547, %c34_548] : memref<4x39xf32, #tpu.memory_space<smem>>
    %1004 = vector.broadcast %1003 : f32 to vector<16x16xf32>
    %1005 = arith.mulf %1002, %1004 : vector<16x16xf32>
    %1006 = arith.addf %1001, %1005 : vector<16x16xf32>
    %c17_549 = arith.constant 17 : index
    %c0_550 = arith.constant 0 : index
    %1007 = vector.load %arg8[%c17_549, %c0_550] : memref<36x16xf32, #tpu.memory_space<vmem>>, vector<16x16xf32>
    %c1_551 = arith.constant 1 : index
    %c35_552 = arith.constant 35 : index
    %1008 = memref.load %arg4[%c1_551, %c35_552] : memref<4x39xf32, #tpu.memory_space<smem>>
    %1009 = vector.broadcast %1008 : f32 to vector<16x16xf32>
    %1010 = arith.mulf %1007, %1009 : vector<16x16xf32>
    %1011 = arith.addf %1006, %1010 : vector<16x16xf32>
    %c18_553 = arith.constant 18 : index
    %c0_554 = arith.constant 0 : index
    %1012 = vector.load %arg8[%c18_553, %c0_554] : memref<36x16xf32, #tpu.memory_space<vmem>>, vector<16x16xf32>
    %c1_555 = arith.constant 1 : index
    %c36_556 = arith.constant 36 : index
    %1013 = memref.load %arg4[%c1_555, %c36_556] : memref<4x39xf32, #tpu.memory_space<smem>>
    %1014 = vector.broadcast %1013 : f32 to vector<16x16xf32>
    %1015 = arith.mulf %1012, %1014 : vector<16x16xf32>
    %1016 = arith.addf %1011, %1015 : vector<16x16xf32>
    %c19_557 = arith.constant 19 : index
    %c0_558 = arith.constant 0 : index
    %1017 = vector.load %arg8[%c19_557, %c0_558] : memref<36x16xf32, #tpu.memory_space<vmem>>, vector<16x16xf32>
    %c1_559 = arith.constant 1 : index
    %c37_560 = arith.constant 37 : index
    %1018 = memref.load %arg4[%c1_559, %c37_560] : memref<4x39xf32, #tpu.memory_space<smem>>
    %1019 = vector.broadcast %1018 : f32 to vector<16x16xf32>
    %1020 = arith.mulf %1017, %1019 : vector<16x16xf32>
    %1021 = arith.addf %1016, %1020 : vector<16x16xf32>
    %c20_561 = arith.constant 20 : index
    %c0_562 = arith.constant 0 : index
    %1022 = vector.load %arg8[%c20_561, %c0_562] : memref<36x16xf32, #tpu.memory_space<vmem>>, vector<16x16xf32>
    %c1_563 = arith.constant 1 : index
    %c38_564 = arith.constant 38 : index
    %1023 = memref.load %arg4[%c1_563, %c38_564] : memref<4x39xf32, #tpu.memory_space<smem>>
    %1024 = vector.broadcast %1023 : f32 to vector<16x16xf32>
    %1025 = arith.mulf %1022, %1024 : vector<16x16xf32>
    %1026 = arith.addf %1021, %1025 : vector<16x16xf32>
    %c0_565 = arith.constant 0 : index
    %c2_566 = arith.constant 2 : index
    %c0_567 = arith.constant 0 : index
    %c0_568 = arith.constant 0 : index
    %1027 = vector.load %arg1[%c0_565, %c2_566, %c0_567, %c0_568] : memref<1x4x20x36xf32, #tpu.memory_space<vmem>>, vector<1x1x20x36xf32>
    %1028 = vector.shape_cast %1027 : vector<1x1x20x36xf32> to vector<20x36xf32>
    %1029 = vector.extract_strided_slice %1028 {offsets = [0, 8], sizes = [20, 16], strides = [1, 1]} : vector<20x36xf32> to vector<20x16xf32>
    %1030 = vector.extract_strided_slice %1029 {offsets = [0, 0], sizes = [16, 16], strides = [1, 1]} : vector<20x16xf32> to vector<16x16xf32>
    %c2_569 = arith.constant 2 : index
    %c0_570 = arith.constant 0 : index
    %1031 = memref.load %arg2[%c2_569, %c0_570] : memref<4x25xf32, #tpu.memory_space<smem>>
    %1032 = vector.broadcast %1031 : f32 to vector<16x16xf32>
    %1033 = arith.mulf %1030, %1032 : vector<16x16xf32>
    %1034 = vector.extract_strided_slice %1029 {offsets = [1, 0], sizes = [16, 16], strides = [1, 1]} : vector<20x16xf32> to vector<16x16xf32>
    %c2_571 = arith.constant 2 : index
    %c5_572 = arith.constant 5 : index
    %1035 = memref.load %arg2[%c2_571, %c5_572] : memref<4x25xf32, #tpu.memory_space<smem>>
    %1036 = vector.broadcast %1035 : f32 to vector<16x16xf32>
    %1037 = arith.mulf %1034, %1036 : vector<16x16xf32>
    %1038 = arith.addf %1033, %1037 : vector<16x16xf32>
    %1039 = vector.extract_strided_slice %1029 {offsets = [2, 0], sizes = [16, 16], strides = [1, 1]} : vector<20x16xf32> to vector<16x16xf32>
    %c2_573 = arith.constant 2 : index
    %c10_574 = arith.constant 10 : index
    %1040 = memref.load %arg2[%c2_573, %c10_574] : memref<4x25xf32, #tpu.memory_space<smem>>
    %1041 = vector.broadcast %1040 : f32 to vector<16x16xf32>
    %1042 = arith.mulf %1039, %1041 : vector<16x16xf32>
    %1043 = arith.addf %1038, %1042 : vector<16x16xf32>
    %1044 = vector.extract_strided_slice %1029 {offsets = [3, 0], sizes = [16, 16], strides = [1, 1]} : vector<20x16xf32> to vector<16x16xf32>
    %c2_575 = arith.constant 2 : index
    %c15_576 = arith.constant 15 : index
    %1045 = memref.load %arg2[%c2_575, %c15_576] : memref<4x25xf32, #tpu.memory_space<smem>>
    %1046 = vector.broadcast %1045 : f32 to vector<16x16xf32>
    %1047 = arith.mulf %1044, %1046 : vector<16x16xf32>
    %1048 = arith.addf %1043, %1047 : vector<16x16xf32>
    %1049 = vector.extract_strided_slice %1029 {offsets = [4, 0], sizes = [16, 16], strides = [1, 1]} : vector<20x16xf32> to vector<16x16xf32>
    %c2_577 = arith.constant 2 : index
    %c20_578 = arith.constant 20 : index
    %1050 = memref.load %arg2[%c2_577, %c20_578] : memref<4x25xf32, #tpu.memory_space<smem>>
    %1051 = vector.broadcast %1050 : f32 to vector<16x16xf32>
    %1052 = arith.mulf %1049, %1051 : vector<16x16xf32>
    %1053 = arith.addf %1048, %1052 : vector<16x16xf32>
    %1054 = vector.extract_strided_slice %1028 {offsets = [0, 9], sizes = [20, 16], strides = [1, 1]} : vector<20x36xf32> to vector<20x16xf32>
    %1055 = vector.extract_strided_slice %1054 {offsets = [0, 0], sizes = [16, 16], strides = [1, 1]} : vector<20x16xf32> to vector<16x16xf32>
    %c2_579 = arith.constant 2 : index
    %c1_580 = arith.constant 1 : index
    %1056 = memref.load %arg2[%c2_579, %c1_580] : memref<4x25xf32, #tpu.memory_space<smem>>
    %1057 = vector.broadcast %1056 : f32 to vector<16x16xf32>
    %1058 = arith.mulf %1055, %1057 : vector<16x16xf32>
    %1059 = arith.addf %1053, %1058 : vector<16x16xf32>
    %1060 = vector.extract_strided_slice %1054 {offsets = [1, 0], sizes = [16, 16], strides = [1, 1]} : vector<20x16xf32> to vector<16x16xf32>
    %c2_581 = arith.constant 2 : index
    %c6_582 = arith.constant 6 : index
    %1061 = memref.load %arg2[%c2_581, %c6_582] : memref<4x25xf32, #tpu.memory_space<smem>>
    %1062 = vector.broadcast %1061 : f32 to vector<16x16xf32>
    %1063 = arith.mulf %1060, %1062 : vector<16x16xf32>
    %1064 = arith.addf %1059, %1063 : vector<16x16xf32>
    %1065 = vector.extract_strided_slice %1054 {offsets = [2, 0], sizes = [16, 16], strides = [1, 1]} : vector<20x16xf32> to vector<16x16xf32>
    %c2_583 = arith.constant 2 : index
    %c11_584 = arith.constant 11 : index
    %1066 = memref.load %arg2[%c2_583, %c11_584] : memref<4x25xf32, #tpu.memory_space<smem>>
    %1067 = vector.broadcast %1066 : f32 to vector<16x16xf32>
    %1068 = arith.mulf %1065, %1067 : vector<16x16xf32>
    %1069 = arith.addf %1064, %1068 : vector<16x16xf32>
    %1070 = vector.extract_strided_slice %1054 {offsets = [3, 0], sizes = [16, 16], strides = [1, 1]} : vector<20x16xf32> to vector<16x16xf32>
    %c2_585 = arith.constant 2 : index
    %c16_586 = arith.constant 16 : index
    %1071 = memref.load %arg2[%c2_585, %c16_586] : memref<4x25xf32, #tpu.memory_space<smem>>
    %1072 = vector.broadcast %1071 : f32 to vector<16x16xf32>
    %1073 = arith.mulf %1070, %1072 : vector<16x16xf32>
    %1074 = arith.addf %1069, %1073 : vector<16x16xf32>
    %1075 = vector.extract_strided_slice %1054 {offsets = [4, 0], sizes = [16, 16], strides = [1, 1]} : vector<20x16xf32> to vector<16x16xf32>
    %c2_587 = arith.constant 2 : index
    %c21_588 = arith.constant 21 : index
    %1076 = memref.load %arg2[%c2_587, %c21_588] : memref<4x25xf32, #tpu.memory_space<smem>>
    %1077 = vector.broadcast %1076 : f32 to vector<16x16xf32>
    %1078 = arith.mulf %1075, %1077 : vector<16x16xf32>
    %1079 = arith.addf %1074, %1078 : vector<16x16xf32>
    %1080 = vector.extract_strided_slice %1028 {offsets = [0, 10], sizes = [20, 16], strides = [1, 1]} : vector<20x36xf32> to vector<20x16xf32>
    %1081 = vector.extract_strided_slice %1080 {offsets = [0, 0], sizes = [16, 16], strides = [1, 1]} : vector<20x16xf32> to vector<16x16xf32>
    %c2_589 = arith.constant 2 : index
    %c2_590 = arith.constant 2 : index
    %1082 = memref.load %arg2[%c2_589, %c2_590] : memref<4x25xf32, #tpu.memory_space<smem>>
    %1083 = vector.broadcast %1082 : f32 to vector<16x16xf32>
    %1084 = arith.mulf %1081, %1083 : vector<16x16xf32>
    %1085 = arith.addf %1079, %1084 : vector<16x16xf32>
    %1086 = vector.extract_strided_slice %1080 {offsets = [1, 0], sizes = [16, 16], strides = [1, 1]} : vector<20x16xf32> to vector<16x16xf32>
    %c2_591 = arith.constant 2 : index
    %c7_592 = arith.constant 7 : index
    %1087 = memref.load %arg2[%c2_591, %c7_592] : memref<4x25xf32, #tpu.memory_space<smem>>
    %1088 = vector.broadcast %1087 : f32 to vector<16x16xf32>
    %1089 = arith.mulf %1086, %1088 : vector<16x16xf32>
    %1090 = arith.addf %1085, %1089 : vector<16x16xf32>
    %1091 = vector.extract_strided_slice %1080 {offsets = [2, 0], sizes = [16, 16], strides = [1, 1]} : vector<20x16xf32> to vector<16x16xf32>
    %c2_593 = arith.constant 2 : index
    %c12_594 = arith.constant 12 : index
    %1092 = memref.load %arg2[%c2_593, %c12_594] : memref<4x25xf32, #tpu.memory_space<smem>>
    %1093 = vector.broadcast %1092 : f32 to vector<16x16xf32>
    %1094 = arith.mulf %1091, %1093 : vector<16x16xf32>
    %1095 = arith.addf %1090, %1094 : vector<16x16xf32>
    %1096 = vector.extract_strided_slice %1080 {offsets = [3, 0], sizes = [16, 16], strides = [1, 1]} : vector<20x16xf32> to vector<16x16xf32>
    %c2_595 = arith.constant 2 : index
    %c17_596 = arith.constant 17 : index
    %1097 = memref.load %arg2[%c2_595, %c17_596] : memref<4x25xf32, #tpu.memory_space<smem>>
    %1098 = vector.broadcast %1097 : f32 to vector<16x16xf32>
    %1099 = arith.mulf %1096, %1098 : vector<16x16xf32>
    %1100 = arith.addf %1095, %1099 : vector<16x16xf32>
    %1101 = vector.extract_strided_slice %1080 {offsets = [4, 0], sizes = [16, 16], strides = [1, 1]} : vector<20x16xf32> to vector<16x16xf32>
    %c2_597 = arith.constant 2 : index
    %c22_598 = arith.constant 22 : index
    %1102 = memref.load %arg2[%c2_597, %c22_598] : memref<4x25xf32, #tpu.memory_space<smem>>
    %1103 = vector.broadcast %1102 : f32 to vector<16x16xf32>
    %1104 = arith.mulf %1101, %1103 : vector<16x16xf32>
    %1105 = arith.addf %1100, %1104 : vector<16x16xf32>
    %1106 = vector.extract_strided_slice %1028 {offsets = [0, 11], sizes = [20, 16], strides = [1, 1]} : vector<20x36xf32> to vector<20x16xf32>
    %1107 = vector.extract_strided_slice %1106 {offsets = [0, 0], sizes = [16, 16], strides = [1, 1]} : vector<20x16xf32> to vector<16x16xf32>
    %c2_599 = arith.constant 2 : index
    %c3_600 = arith.constant 3 : index
    %1108 = memref.load %arg2[%c2_599, %c3_600] : memref<4x25xf32, #tpu.memory_space<smem>>
    %1109 = vector.broadcast %1108 : f32 to vector<16x16xf32>
    %1110 = arith.mulf %1107, %1109 : vector<16x16xf32>
    %1111 = arith.addf %1105, %1110 : vector<16x16xf32>
    %1112 = vector.extract_strided_slice %1106 {offsets = [1, 0], sizes = [16, 16], strides = [1, 1]} : vector<20x16xf32> to vector<16x16xf32>
    %c2_601 = arith.constant 2 : index
    %c8_602 = arith.constant 8 : index
    %1113 = memref.load %arg2[%c2_601, %c8_602] : memref<4x25xf32, #tpu.memory_space<smem>>
    %1114 = vector.broadcast %1113 : f32 to vector<16x16xf32>
    %1115 = arith.mulf %1112, %1114 : vector<16x16xf32>
    %1116 = arith.addf %1111, %1115 : vector<16x16xf32>
    %1117 = vector.extract_strided_slice %1106 {offsets = [2, 0], sizes = [16, 16], strides = [1, 1]} : vector<20x16xf32> to vector<16x16xf32>
    %c2_603 = arith.constant 2 : index
    %c13_604 = arith.constant 13 : index
    %1118 = memref.load %arg2[%c2_603, %c13_604] : memref<4x25xf32, #tpu.memory_space<smem>>
    %1119 = vector.broadcast %1118 : f32 to vector<16x16xf32>
    %1120 = arith.mulf %1117, %1119 : vector<16x16xf32>
    %1121 = arith.addf %1116, %1120 : vector<16x16xf32>
    %1122 = vector.extract_strided_slice %1106 {offsets = [3, 0], sizes = [16, 16], strides = [1, 1]} : vector<20x16xf32> to vector<16x16xf32>
    %c2_605 = arith.constant 2 : index
    %c18_606 = arith.constant 18 : index
    %1123 = memref.load %arg2[%c2_605, %c18_606] : memref<4x25xf32, #tpu.memory_space<smem>>
    %1124 = vector.broadcast %1123 : f32 to vector<16x16xf32>
    %1125 = arith.mulf %1122, %1124 : vector<16x16xf32>
    %1126 = arith.addf %1121, %1125 : vector<16x16xf32>
    %1127 = vector.extract_strided_slice %1106 {offsets = [4, 0], sizes = [16, 16], strides = [1, 1]} : vector<20x16xf32> to vector<16x16xf32>
    %c2_607 = arith.constant 2 : index
    %c23_608 = arith.constant 23 : index
    %1128 = memref.load %arg2[%c2_607, %c23_608] : memref<4x25xf32, #tpu.memory_space<smem>>
    %1129 = vector.broadcast %1128 : f32 to vector<16x16xf32>
    %1130 = arith.mulf %1127, %1129 : vector<16x16xf32>
    %1131 = arith.addf %1126, %1130 : vector<16x16xf32>
    %1132 = vector.extract_strided_slice %1028 {offsets = [0, 12], sizes = [20, 16], strides = [1, 1]} : vector<20x36xf32> to vector<20x16xf32>
    %1133 = vector.extract_strided_slice %1132 {offsets = [0, 0], sizes = [16, 16], strides = [1, 1]} : vector<20x16xf32> to vector<16x16xf32>
    %c2_609 = arith.constant 2 : index
    %c4_610 = arith.constant 4 : index
    %1134 = memref.load %arg2[%c2_609, %c4_610] : memref<4x25xf32, #tpu.memory_space<smem>>
    %1135 = vector.broadcast %1134 : f32 to vector<16x16xf32>
    %1136 = arith.mulf %1133, %1135 : vector<16x16xf32>
    %1137 = arith.addf %1131, %1136 : vector<16x16xf32>
    %1138 = vector.extract_strided_slice %1132 {offsets = [1, 0], sizes = [16, 16], strides = [1, 1]} : vector<20x16xf32> to vector<16x16xf32>
    %c2_611 = arith.constant 2 : index
    %c9_612 = arith.constant 9 : index
    %1139 = memref.load %arg2[%c2_611, %c9_612] : memref<4x25xf32, #tpu.memory_space<smem>>
    %1140 = vector.broadcast %1139 : f32 to vector<16x16xf32>
    %1141 = arith.mulf %1138, %1140 : vector<16x16xf32>
    %1142 = arith.addf %1137, %1141 : vector<16x16xf32>
    %1143 = vector.extract_strided_slice %1132 {offsets = [2, 0], sizes = [16, 16], strides = [1, 1]} : vector<20x16xf32> to vector<16x16xf32>
    %c2_613 = arith.constant 2 : index
    %c14_614 = arith.constant 14 : index
    %1144 = memref.load %arg2[%c2_613, %c14_614] : memref<4x25xf32, #tpu.memory_space<smem>>
    %1145 = vector.broadcast %1144 : f32 to vector<16x16xf32>
    %1146 = arith.mulf %1143, %1145 : vector<16x16xf32>
    %1147 = arith.addf %1142, %1146 : vector<16x16xf32>
    %1148 = vector.extract_strided_slice %1132 {offsets = [3, 0], sizes = [16, 16], strides = [1, 1]} : vector<20x16xf32> to vector<16x16xf32>
    %c2_615 = arith.constant 2 : index
    %c19_616 = arith.constant 19 : index
    %1149 = memref.load %arg2[%c2_615, %c19_616] : memref<4x25xf32, #tpu.memory_space<smem>>
    %1150 = vector.broadcast %1149 : f32 to vector<16x16xf32>
    %1151 = arith.mulf %1148, %1150 : vector<16x16xf32>
    %1152 = arith.addf %1147, %1151 : vector<16x16xf32>
    %1153 = vector.extract_strided_slice %1132 {offsets = [4, 0], sizes = [16, 16], strides = [1, 1]} : vector<20x16xf32> to vector<16x16xf32>
    %c2_617 = arith.constant 2 : index
    %c24_618 = arith.constant 24 : index
    %1154 = memref.load %arg2[%c2_617, %c24_618] : memref<4x25xf32, #tpu.memory_space<smem>>
    %1155 = vector.broadcast %1154 : f32 to vector<16x16xf32>
    %1156 = arith.mulf %1153, %1155 : vector<16x16xf32>
    %1157 = arith.addf %1152, %1156 : vector<16x16xf32>
    %1158 = vector.extract_strided_slice %1028 {offsets = [2, 0], sizes = [16, 16], strides = [1, 1]} : vector<20x36xf32> to vector<16x16xf32>
    %c2_619 = arith.constant 2 : index
    %c18_620 = arith.constant 18 : index
    %1159 = memref.load %arg3[%c2_619, %c18_620] : memref<4x39xf32, #tpu.memory_space<smem>>
    %1160 = vector.broadcast %1159 : f32 to vector<16x16xf32>
    %1161 = arith.mulf %1158, %1160 : vector<16x16xf32>
    %1162 = vector.extract_strided_slice %1028 {offsets = [2, 1], sizes = [16, 16], strides = [1, 1]} : vector<20x36xf32> to vector<16x16xf32>
    %c2_621 = arith.constant 2 : index
    %c19_622 = arith.constant 19 : index
    %1163 = memref.load %arg3[%c2_621, %c19_622] : memref<4x39xf32, #tpu.memory_space<smem>>
    %1164 = vector.broadcast %1163 : f32 to vector<16x16xf32>
    %1165 = arith.mulf %1162, %1164 : vector<16x16xf32>
    %1166 = arith.addf %1161, %1165 : vector<16x16xf32>
    %1167 = vector.extract_strided_slice %1028 {offsets = [2, 2], sizes = [16, 16], strides = [1, 1]} : vector<20x36xf32> to vector<16x16xf32>
    %c2_623 = arith.constant 2 : index
    %c20_624 = arith.constant 20 : index
    %1168 = memref.load %arg3[%c2_623, %c20_624] : memref<4x39xf32, #tpu.memory_space<smem>>
    %1169 = vector.broadcast %1168 : f32 to vector<16x16xf32>
    %1170 = arith.mulf %1167, %1169 : vector<16x16xf32>
    %1171 = arith.addf %1166, %1170 : vector<16x16xf32>
    %1172 = vector.extract_strided_slice %1028 {offsets = [2, 3], sizes = [16, 16], strides = [1, 1]} : vector<20x36xf32> to vector<16x16xf32>
    %c2_625 = arith.constant 2 : index
    %c21_626 = arith.constant 21 : index
    %1173 = memref.load %arg3[%c2_625, %c21_626] : memref<4x39xf32, #tpu.memory_space<smem>>
    %1174 = vector.broadcast %1173 : f32 to vector<16x16xf32>
    %1175 = arith.mulf %1172, %1174 : vector<16x16xf32>
    %1176 = arith.addf %1171, %1175 : vector<16x16xf32>
    %1177 = vector.extract_strided_slice %1028 {offsets = [2, 4], sizes = [16, 16], strides = [1, 1]} : vector<20x36xf32> to vector<16x16xf32>
    %c2_627 = arith.constant 2 : index
    %c22_628 = arith.constant 22 : index
    %1178 = memref.load %arg3[%c2_627, %c22_628] : memref<4x39xf32, #tpu.memory_space<smem>>
    %1179 = vector.broadcast %1178 : f32 to vector<16x16xf32>
    %1180 = arith.mulf %1177, %1179 : vector<16x16xf32>
    %1181 = arith.addf %1176, %1180 : vector<16x16xf32>
    %1182 = vector.extract_strided_slice %1028 {offsets = [2, 5], sizes = [16, 16], strides = [1, 1]} : vector<20x36xf32> to vector<16x16xf32>
    %c2_629 = arith.constant 2 : index
    %c23_630 = arith.constant 23 : index
    %1183 = memref.load %arg3[%c2_629, %c23_630] : memref<4x39xf32, #tpu.memory_space<smem>>
    %1184 = vector.broadcast %1183 : f32 to vector<16x16xf32>
    %1185 = arith.mulf %1182, %1184 : vector<16x16xf32>
    %1186 = arith.addf %1181, %1185 : vector<16x16xf32>
    %c2_631 = arith.constant 2 : index
    %c7_632 = arith.constant 7 : index
    %1187 = memref.load %arg3[%c2_631, %c7_632] : memref<4x39xf32, #tpu.memory_space<smem>>
    %1188 = vector.broadcast %1187 : f32 to vector<16x16xf32>
    %1189 = arith.mulf %1182, %1188 : vector<16x16xf32>
    %1190 = vector.extract_strided_slice %1028 {offsets = [2, 6], sizes = [16, 16], strides = [1, 1]} : vector<20x36xf32> to vector<16x16xf32>
    %c2_633 = arith.constant 2 : index
    %c24_634 = arith.constant 24 : index
    %1191 = memref.load %arg3[%c2_633, %c24_634] : memref<4x39xf32, #tpu.memory_space<smem>>
    %1192 = vector.broadcast %1191 : f32 to vector<16x16xf32>
    %1193 = arith.mulf %1190, %1192 : vector<16x16xf32>
    %1194 = arith.addf %1186, %1193 : vector<16x16xf32>
    %c2_635 = arith.constant 2 : index
    %c8_636 = arith.constant 8 : index
    %1195 = memref.load %arg3[%c2_635, %c8_636] : memref<4x39xf32, #tpu.memory_space<smem>>
    %1196 = vector.broadcast %1195 : f32 to vector<16x16xf32>
    %1197 = arith.mulf %1190, %1196 : vector<16x16xf32>
    %1198 = arith.addf %1189, %1197 : vector<16x16xf32>
    %1199 = vector.extract_strided_slice %1028 {offsets = [2, 7], sizes = [16, 16], strides = [1, 1]} : vector<20x36xf32> to vector<16x16xf32>
    %c2_637 = arith.constant 2 : index
    %c25_638 = arith.constant 25 : index
    %1200 = memref.load %arg3[%c2_637, %c25_638] : memref<4x39xf32, #tpu.memory_space<smem>>
    %1201 = vector.broadcast %1200 : f32 to vector<16x16xf32>
    %1202 = arith.mulf %1199, %1201 : vector<16x16xf32>
    %1203 = arith.addf %1194, %1202 : vector<16x16xf32>
    %c2_639 = arith.constant 2 : index
    %c9_640 = arith.constant 9 : index
    %1204 = memref.load %arg3[%c2_639, %c9_640] : memref<4x39xf32, #tpu.memory_space<smem>>
    %1205 = vector.broadcast %1204 : f32 to vector<16x16xf32>
    %1206 = arith.mulf %1199, %1205 : vector<16x16xf32>
    %1207 = arith.addf %1198, %1206 : vector<16x16xf32>
    %c2_641 = arith.constant 2 : index
    %c0_642 = arith.constant 0 : index
    %1208 = memref.load %arg3[%c2_641, %c0_642] : memref<4x39xf32, #tpu.memory_space<smem>>
    %1209 = vector.broadcast %1208 : f32 to vector<16x16xf32>
    %1210 = arith.mulf %1199, %1209 : vector<16x16xf32>
    %1211 = vector.extract_strided_slice %1028 {offsets = [2, 8], sizes = [16, 16], strides = [1, 1]} : vector<20x36xf32> to vector<16x16xf32>
    %c2_643 = arith.constant 2 : index
    %c26_644 = arith.constant 26 : index
    %1212 = memref.load %arg3[%c2_643, %c26_644] : memref<4x39xf32, #tpu.memory_space<smem>>
    %1213 = vector.broadcast %1212 : f32 to vector<16x16xf32>
    %1214 = arith.mulf %1211, %1213 : vector<16x16xf32>
    %1215 = arith.addf %1203, %1214 : vector<16x16xf32>
    %c2_645 = arith.constant 2 : index
    %c10_646 = arith.constant 10 : index
    %1216 = memref.load %arg3[%c2_645, %c10_646] : memref<4x39xf32, #tpu.memory_space<smem>>
    %1217 = vector.broadcast %1216 : f32 to vector<16x16xf32>
    %1218 = arith.mulf %1211, %1217 : vector<16x16xf32>
    %1219 = arith.addf %1207, %1218 : vector<16x16xf32>
    %c2_647 = arith.constant 2 : index
    %c1_648 = arith.constant 1 : index
    %1220 = memref.load %arg3[%c2_647, %c1_648] : memref<4x39xf32, #tpu.memory_space<smem>>
    %1221 = vector.broadcast %1220 : f32 to vector<16x16xf32>
    %1222 = arith.mulf %1211, %1221 : vector<16x16xf32>
    %1223 = arith.addf %1210, %1222 : vector<16x16xf32>
    %1224 = vector.extract_strided_slice %1028 {offsets = [2, 9], sizes = [16, 16], strides = [1, 1]} : vector<20x36xf32> to vector<16x16xf32>
    %c2_649 = arith.constant 2 : index
    %c27_650 = arith.constant 27 : index
    %1225 = memref.load %arg3[%c2_649, %c27_650] : memref<4x39xf32, #tpu.memory_space<smem>>
    %1226 = vector.broadcast %1225 : f32 to vector<16x16xf32>
    %1227 = arith.mulf %1224, %1226 : vector<16x16xf32>
    %1228 = arith.addf %1215, %1227 : vector<16x16xf32>
    %c2_651 = arith.constant 2 : index
    %c11_652 = arith.constant 11 : index
    %1229 = memref.load %arg3[%c2_651, %c11_652] : memref<4x39xf32, #tpu.memory_space<smem>>
    %1230 = vector.broadcast %1229 : f32 to vector<16x16xf32>
    %1231 = arith.mulf %1224, %1230 : vector<16x16xf32>
    %1232 = arith.addf %1219, %1231 : vector<16x16xf32>
    %c2_653 = arith.constant 2 : index
    %c2_654 = arith.constant 2 : index
    %1233 = memref.load %arg3[%c2_653, %c2_654] : memref<4x39xf32, #tpu.memory_space<smem>>
    %1234 = vector.broadcast %1233 : f32 to vector<16x16xf32>
    %1235 = arith.mulf %1224, %1234 : vector<16x16xf32>
    %1236 = arith.addf %1223, %1235 : vector<16x16xf32>
    %1237 = vector.extract_strided_slice %1028 {offsets = [2, 10], sizes = [16, 16], strides = [1, 1]} : vector<20x36xf32> to vector<16x16xf32>
    %c2_655 = arith.constant 2 : index
    %c28_656 = arith.constant 28 : index
    %1238 = memref.load %arg3[%c2_655, %c28_656] : memref<4x39xf32, #tpu.memory_space<smem>>
    %1239 = vector.broadcast %1238 : f32 to vector<16x16xf32>
    %1240 = arith.mulf %1237, %1239 : vector<16x16xf32>
    %1241 = arith.addf %1228, %1240 : vector<16x16xf32>
    %c2_657 = arith.constant 2 : index
    %c12_658 = arith.constant 12 : index
    %1242 = memref.load %arg3[%c2_657, %c12_658] : memref<4x39xf32, #tpu.memory_space<smem>>
    %1243 = vector.broadcast %1242 : f32 to vector<16x16xf32>
    %1244 = arith.mulf %1237, %1243 : vector<16x16xf32>
    %1245 = arith.addf %1232, %1244 : vector<16x16xf32>
    %c2_659 = arith.constant 2 : index
    %c3_660 = arith.constant 3 : index
    %1246 = memref.load %arg3[%c2_659, %c3_660] : memref<4x39xf32, #tpu.memory_space<smem>>
    %1247 = vector.broadcast %1246 : f32 to vector<16x16xf32>
    %1248 = arith.mulf %1237, %1247 : vector<16x16xf32>
    %1249 = arith.addf %1236, %1248 : vector<16x16xf32>
    %1250 = vector.extract_strided_slice %1028 {offsets = [2, 11], sizes = [16, 16], strides = [1, 1]} : vector<20x36xf32> to vector<16x16xf32>
    %c2_661 = arith.constant 2 : index
    %c29_662 = arith.constant 29 : index
    %1251 = memref.load %arg3[%c2_661, %c29_662] : memref<4x39xf32, #tpu.memory_space<smem>>
    %1252 = vector.broadcast %1251 : f32 to vector<16x16xf32>
    %1253 = arith.mulf %1250, %1252 : vector<16x16xf32>
    %1254 = arith.addf %1241, %1253 : vector<16x16xf32>
    %c2_663 = arith.constant 2 : index
    %c13_664 = arith.constant 13 : index
    %1255 = memref.load %arg3[%c2_663, %c13_664] : memref<4x39xf32, #tpu.memory_space<smem>>
    %1256 = vector.broadcast %1255 : f32 to vector<16x16xf32>
    %1257 = arith.mulf %1250, %1256 : vector<16x16xf32>
    %1258 = arith.addf %1245, %1257 : vector<16x16xf32>
    %c2_665 = arith.constant 2 : index
    %c4_666 = arith.constant 4 : index
    %1259 = memref.load %arg3[%c2_665, %c4_666] : memref<4x39xf32, #tpu.memory_space<smem>>
    %1260 = vector.broadcast %1259 : f32 to vector<16x16xf32>
    %1261 = arith.mulf %1250, %1260 : vector<16x16xf32>
    %1262 = arith.addf %1249, %1261 : vector<16x16xf32>
    %1263 = vector.extract_strided_slice %1028 {offsets = [2, 12], sizes = [16, 16], strides = [1, 1]} : vector<20x36xf32> to vector<16x16xf32>
    %c2_667 = arith.constant 2 : index
    %c30_668 = arith.constant 30 : index
    %1264 = memref.load %arg3[%c2_667, %c30_668] : memref<4x39xf32, #tpu.memory_space<smem>>
    %1265 = vector.broadcast %1264 : f32 to vector<16x16xf32>
    %1266 = arith.mulf %1263, %1265 : vector<16x16xf32>
    %1267 = arith.addf %1254, %1266 : vector<16x16xf32>
    %c2_669 = arith.constant 2 : index
    %c14_670 = arith.constant 14 : index
    %1268 = memref.load %arg3[%c2_669, %c14_670] : memref<4x39xf32, #tpu.memory_space<smem>>
    %1269 = vector.broadcast %1268 : f32 to vector<16x16xf32>
    %1270 = arith.mulf %1263, %1269 : vector<16x16xf32>
    %1271 = arith.addf %1258, %1270 : vector<16x16xf32>
    %c2_671 = arith.constant 2 : index
    %c5_672 = arith.constant 5 : index
    %1272 = memref.load %arg3[%c2_671, %c5_672] : memref<4x39xf32, #tpu.memory_space<smem>>
    %1273 = vector.broadcast %1272 : f32 to vector<16x16xf32>
    %1274 = arith.mulf %1263, %1273 : vector<16x16xf32>
    %1275 = arith.addf %1262, %1274 : vector<16x16xf32>
    %1276 = vector.extract_strided_slice %1028 {offsets = [2, 13], sizes = [16, 16], strides = [1, 1]} : vector<20x36xf32> to vector<16x16xf32>
    %c2_673 = arith.constant 2 : index
    %c31_674 = arith.constant 31 : index
    %1277 = memref.load %arg3[%c2_673, %c31_674] : memref<4x39xf32, #tpu.memory_space<smem>>
    %1278 = vector.broadcast %1277 : f32 to vector<16x16xf32>
    %1279 = arith.mulf %1276, %1278 : vector<16x16xf32>
    %1280 = arith.addf %1267, %1279 : vector<16x16xf32>
    %c2_675 = arith.constant 2 : index
    %c15_676 = arith.constant 15 : index
    %1281 = memref.load %arg3[%c2_675, %c15_676] : memref<4x39xf32, #tpu.memory_space<smem>>
    %1282 = vector.broadcast %1281 : f32 to vector<16x16xf32>
    %1283 = arith.mulf %1276, %1282 : vector<16x16xf32>
    %1284 = arith.addf %1271, %1283 : vector<16x16xf32>
    %c2_677 = arith.constant 2 : index
    %c6_678 = arith.constant 6 : index
    %1285 = memref.load %arg3[%c2_677, %c6_678] : memref<4x39xf32, #tpu.memory_space<smem>>
    %1286 = vector.broadcast %1285 : f32 to vector<16x16xf32>
    %1287 = arith.mulf %1276, %1286 : vector<16x16xf32>
    %1288 = arith.addf %1275, %1287 : vector<16x16xf32>
    %1289 = vector.extract_strided_slice %1028 {offsets = [2, 14], sizes = [16, 16], strides = [1, 1]} : vector<20x36xf32> to vector<16x16xf32>
    %c2_679 = arith.constant 2 : index
    %c32_680 = arith.constant 32 : index
    %1290 = memref.load %arg3[%c2_679, %c32_680] : memref<4x39xf32, #tpu.memory_space<smem>>
    %1291 = vector.broadcast %1290 : f32 to vector<16x16xf32>
    %1292 = arith.mulf %1289, %1291 : vector<16x16xf32>
    %1293 = arith.addf %1280, %1292 : vector<16x16xf32>
    %c2_681 = arith.constant 2 : index
    %c16_682 = arith.constant 16 : index
    %1294 = memref.load %arg3[%c2_681, %c16_682] : memref<4x39xf32, #tpu.memory_space<smem>>
    %1295 = vector.broadcast %1294 : f32 to vector<16x16xf32>
    %1296 = arith.mulf %1289, %1295 : vector<16x16xf32>
    %1297 = arith.addf %1284, %1296 : vector<16x16xf32>
    %1298 = vector.extract_strided_slice %1028 {offsets = [2, 15], sizes = [16, 16], strides = [1, 1]} : vector<20x36xf32> to vector<16x16xf32>
    %c2_683 = arith.constant 2 : index
    %c33_684 = arith.constant 33 : index
    %1299 = memref.load %arg3[%c2_683, %c33_684] : memref<4x39xf32, #tpu.memory_space<smem>>
    %1300 = vector.broadcast %1299 : f32 to vector<16x16xf32>
    %1301 = arith.mulf %1298, %1300 : vector<16x16xf32>
    %1302 = arith.addf %1293, %1301 : vector<16x16xf32>
    %c2_685 = arith.constant 2 : index
    %c17_686 = arith.constant 17 : index
    %1303 = memref.load %arg3[%c2_685, %c17_686] : memref<4x39xf32, #tpu.memory_space<smem>>
    %1304 = vector.broadcast %1303 : f32 to vector<16x16xf32>
    %1305 = arith.mulf %1298, %1304 : vector<16x16xf32>
    %1306 = arith.addf %1297, %1305 : vector<16x16xf32>
    %1307 = vector.extract_strided_slice %1028 {offsets = [2, 16], sizes = [16, 16], strides = [1, 1]} : vector<20x36xf32> to vector<16x16xf32>
    %c2_687 = arith.constant 2 : index
    %c34_688 = arith.constant 34 : index
    %1308 = memref.load %arg3[%c2_687, %c34_688] : memref<4x39xf32, #tpu.memory_space<smem>>
    %1309 = vector.broadcast %1308 : f32 to vector<16x16xf32>
    %1310 = arith.mulf %1307, %1309 : vector<16x16xf32>
    %1311 = arith.addf %1302, %1310 : vector<16x16xf32>
    %1312 = vector.extract_strided_slice %1028 {offsets = [2, 17], sizes = [16, 16], strides = [1, 1]} : vector<20x36xf32> to vector<16x16xf32>
    %c2_689 = arith.constant 2 : index
    %c35_690 = arith.constant 35 : index
    %1313 = memref.load %arg3[%c2_689, %c35_690] : memref<4x39xf32, #tpu.memory_space<smem>>
    %1314 = vector.broadcast %1313 : f32 to vector<16x16xf32>
    %1315 = arith.mulf %1312, %1314 : vector<16x16xf32>
    %1316 = arith.addf %1311, %1315 : vector<16x16xf32>
    %1317 = vector.extract_strided_slice %1028 {offsets = [2, 18], sizes = [16, 16], strides = [1, 1]} : vector<20x36xf32> to vector<16x16xf32>
    %c2_691 = arith.constant 2 : index
    %c36_692 = arith.constant 36 : index
    %1318 = memref.load %arg3[%c2_691, %c36_692] : memref<4x39xf32, #tpu.memory_space<smem>>
    %1319 = vector.broadcast %1318 : f32 to vector<16x16xf32>
    %1320 = arith.mulf %1317, %1319 : vector<16x16xf32>
    %1321 = arith.addf %1316, %1320 : vector<16x16xf32>
    %1322 = vector.extract_strided_slice %1028 {offsets = [2, 19], sizes = [16, 16], strides = [1, 1]} : vector<20x36xf32> to vector<16x16xf32>
    %c2_693 = arith.constant 2 : index
    %c37_694 = arith.constant 37 : index
    %1323 = memref.load %arg3[%c2_693, %c37_694] : memref<4x39xf32, #tpu.memory_space<smem>>
    %1324 = vector.broadcast %1323 : f32 to vector<16x16xf32>
    %1325 = arith.mulf %1322, %1324 : vector<16x16xf32>
    %1326 = arith.addf %1321, %1325 : vector<16x16xf32>
    %1327 = vector.extract_strided_slice %1028 {offsets = [2, 20], sizes = [16, 16], strides = [1, 1]} : vector<20x36xf32> to vector<16x16xf32>
    %c2_695 = arith.constant 2 : index
    %c38_696 = arith.constant 38 : index
    %1328 = memref.load %arg3[%c2_695, %c38_696] : memref<4x39xf32, #tpu.memory_space<smem>>
    %1329 = vector.broadcast %1328 : f32 to vector<16x16xf32>
    %1330 = arith.mulf %1327, %1329 : vector<16x16xf32>
    %1331 = arith.addf %1326, %1330 : vector<16x16xf32>
    %c2_697 = arith.constant 2 : index
    %c0_698 = arith.constant 0 : index
    %1332 = memref.load %arg6[%c2_697, %c0_698] : memref<4x4xf32, #tpu.memory_space<smem>>
    %1333 = vector.broadcast %1332 : f32 to vector<16x16xf32>
    %1334 = arith.addf %1288, %1333 : vector<16x16xf32>
    %c2_699 = arith.constant 2 : index
    %c1_700 = arith.constant 1 : index
    %1335 = memref.load %arg6[%c2_699, %c1_700] : memref<4x4xf32, #tpu.memory_space<smem>>
    %1336 = vector.broadcast %1335 : f32 to vector<16x16xf32>
    %1337 = arith.addf %1306, %1336 : vector<16x16xf32>
    %c2_701 = arith.constant 2 : index
    %c2_702 = arith.constant 2 : index
    %1338 = memref.load %arg6[%c2_701, %c2_702] : memref<4x4xf32, #tpu.memory_space<smem>>
    %1339 = vector.broadcast %1338 : f32 to vector<16x16xf32>
    %1340 = arith.addf %1331, %1339 : vector<16x16xf32>
    %c10_703 = arith.constant 10 : index
    %c0_704 = arith.constant 0 : index
    %1341 = vector.load %arg8[%c10_703, %c0_704] : memref<36x16xf32, #tpu.memory_space<vmem>>, vector<16x16xf32>
    tpu.vector_store %arg8[%c10_703, %c0_704], %1334 {strides = array<i32>} : memref<36x16xf32, #tpu.memory_space<vmem>>, vector<16x16xf32>,
    %c7_705 = arith.constant 7 : index
    %c0_706 = arith.constant 0 : index
    %1342 = vector.load %arg8[%c7_705, %c0_706] : memref<36x16xf32, #tpu.memory_space<vmem>>, vector<16x16xf32>
    %c2_707 = arith.constant 2 : index
    %c0_708 = arith.constant 0 : index
    %1343 = memref.load %arg4[%c2_707, %c0_708] : memref<4x39xf32, #tpu.memory_space<smem>>
    %1344 = vector.broadcast %1343 : f32 to vector<16x16xf32>
    %1345 = arith.mulf %1342, %1344 : vector<16x16xf32>
    %1346 = arith.addf %1157, %1345 : vector<16x16xf32>
    %c8_709 = arith.constant 8 : index
    %c0_710 = arith.constant 0 : index
    %1347 = vector.load %arg8[%c8_709, %c0_710] : memref<36x16xf32, #tpu.memory_space<vmem>>, vector<16x16xf32>
    %c2_711 = arith.constant 2 : index
    %c1_712 = arith.constant 1 : index
    %1348 = memref.load %arg4[%c2_711, %c1_712] : memref<4x39xf32, #tpu.memory_space<smem>>
    %1349 = vector.broadcast %1348 : f32 to vector<16x16xf32>
    %1350 = arith.mulf %1347, %1349 : vector<16x16xf32>
    %1351 = arith.addf %1346, %1350 : vector<16x16xf32>
    %c9_713 = arith.constant 9 : index
    %c0_714 = arith.constant 0 : index
    %1352 = vector.load %arg8[%c9_713, %c0_714] : memref<36x16xf32, #tpu.memory_space<vmem>>, vector<16x16xf32>
    %c2_715 = arith.constant 2 : index
    %c2_716 = arith.constant 2 : index
    %1353 = memref.load %arg4[%c2_715, %c2_716] : memref<4x39xf32, #tpu.memory_space<smem>>
    %1354 = vector.broadcast %1353 : f32 to vector<16x16xf32>
    %1355 = arith.mulf %1352, %1354 : vector<16x16xf32>
    %1356 = arith.addf %1351, %1355 : vector<16x16xf32>
    %c10_717 = arith.constant 10 : index
    %c0_718 = arith.constant 0 : index
    %1357 = vector.load %arg8[%c10_717, %c0_718] : memref<36x16xf32, #tpu.memory_space<vmem>>, vector<16x16xf32>
    %c2_719 = arith.constant 2 : index
    %c3_720 = arith.constant 3 : index
    %1358 = memref.load %arg4[%c2_719, %c3_720] : memref<4x39xf32, #tpu.memory_space<smem>>
    %1359 = vector.broadcast %1358 : f32 to vector<16x16xf32>
    %1360 = arith.mulf %1357, %1359 : vector<16x16xf32>
    %1361 = arith.addf %1356, %1360 : vector<16x16xf32>
    %c11_721 = arith.constant 11 : index
    %c0_722 = arith.constant 0 : index
    %1362 = vector.load %arg8[%c11_721, %c0_722] : memref<36x16xf32, #tpu.memory_space<vmem>>, vector<16x16xf32>
    %c2_723 = arith.constant 2 : index
    %c4_724 = arith.constant 4 : index
    %1363 = memref.load %arg4[%c2_723, %c4_724] : memref<4x39xf32, #tpu.memory_space<smem>>
    %1364 = vector.broadcast %1363 : f32 to vector<16x16xf32>
    %1365 = arith.mulf %1362, %1364 : vector<16x16xf32>
    %1366 = arith.addf %1361, %1365 : vector<16x16xf32>
    %c12_725 = arith.constant 12 : index
    %c0_726 = arith.constant 0 : index
    %1367 = vector.load %arg8[%c12_725, %c0_726] : memref<36x16xf32, #tpu.memory_space<vmem>>, vector<16x16xf32>
    %c2_727 = arith.constant 2 : index
    %c5_728 = arith.constant 5 : index
    %1368 = memref.load %arg4[%c2_727, %c5_728] : memref<4x39xf32, #tpu.memory_space<smem>>
    %1369 = vector.broadcast %1368 : f32 to vector<16x16xf32>
    %1370 = arith.mulf %1367, %1369 : vector<16x16xf32>
    %1371 = arith.addf %1366, %1370 : vector<16x16xf32>
    %c13_729 = arith.constant 13 : index
    %c0_730 = arith.constant 0 : index
    %1372 = vector.load %arg8[%c13_729, %c0_730] : memref<36x16xf32, #tpu.memory_space<vmem>>, vector<16x16xf32>
    %c2_731 = arith.constant 2 : index
    %c6_732 = arith.constant 6 : index
    %1373 = memref.load %arg4[%c2_731, %c6_732] : memref<4x39xf32, #tpu.memory_space<smem>>
    %1374 = vector.broadcast %1373 : f32 to vector<16x16xf32>
    %1375 = arith.mulf %1372, %1374 : vector<16x16xf32>
    %1376 = arith.addf %1371, %1375 : vector<16x16xf32>
    %c10_733 = arith.constant 10 : index
    %c0_734 = arith.constant 0 : index
    %1377 = vector.load %arg8[%c10_733, %c0_734] : memref<36x16xf32, #tpu.memory_space<vmem>>, vector<16x16xf32>
    tpu.vector_store %arg8[%c10_733, %c0_734], %1337 {strides = array<i32>} : memref<36x16xf32, #tpu.memory_space<vmem>>, vector<16x16xf32>,
    %c5_735 = arith.constant 5 : index
    %c0_736 = arith.constant 0 : index
    %1378 = vector.load %arg8[%c5_735, %c0_736] : memref<36x16xf32, #tpu.memory_space<vmem>>, vector<16x16xf32>
    %c2_737 = arith.constant 2 : index
    %c7_738 = arith.constant 7 : index
    %1379 = memref.load %arg4[%c2_737, %c7_738] : memref<4x39xf32, #tpu.memory_space<smem>>
    %1380 = vector.broadcast %1379 : f32 to vector<16x16xf32>
    %1381 = arith.mulf %1378, %1380 : vector<16x16xf32>
    %1382 = arith.addf %1376, %1381 : vector<16x16xf32>
    %c6_739 = arith.constant 6 : index
    %c0_740 = arith.constant 0 : index
    %1383 = vector.load %arg8[%c6_739, %c0_740] : memref<36x16xf32, #tpu.memory_space<vmem>>, vector<16x16xf32>
    %c2_741 = arith.constant 2 : index
    %c8_742 = arith.constant 8 : index
    %1384 = memref.load %arg4[%c2_741, %c8_742] : memref<4x39xf32, #tpu.memory_space<smem>>
    %1385 = vector.broadcast %1384 : f32 to vector<16x16xf32>
    %1386 = arith.mulf %1383, %1385 : vector<16x16xf32>
    %1387 = arith.addf %1382, %1386 : vector<16x16xf32>
    %c7_743 = arith.constant 7 : index
    %c0_744 = arith.constant 0 : index
    %1388 = vector.load %arg8[%c7_743, %c0_744] : memref<36x16xf32, #tpu.memory_space<vmem>>, vector<16x16xf32>
    %c2_745 = arith.constant 2 : index
    %c9_746 = arith.constant 9 : index
    %1389 = memref.load %arg4[%c2_745, %c9_746] : memref<4x39xf32, #tpu.memory_space<smem>>
    %1390 = vector.broadcast %1389 : f32 to vector<16x16xf32>
    %1391 = arith.mulf %1388, %1390 : vector<16x16xf32>
    %1392 = arith.addf %1387, %1391 : vector<16x16xf32>
    %c8_747 = arith.constant 8 : index
    %c0_748 = arith.constant 0 : index
    %1393 = vector.load %arg8[%c8_747, %c0_748] : memref<36x16xf32, #tpu.memory_space<vmem>>, vector<16x16xf32>
    %c2_749 = arith.constant 2 : index
    %c10_750 = arith.constant 10 : index
    %1394 = memref.load %arg4[%c2_749, %c10_750] : memref<4x39xf32, #tpu.memory_space<smem>>
    %1395 = vector.broadcast %1394 : f32 to vector<16x16xf32>
    %1396 = arith.mulf %1393, %1395 : vector<16x16xf32>
    %1397 = arith.addf %1392, %1396 : vector<16x16xf32>
    %c9_751 = arith.constant 9 : index
    %c0_752 = arith.constant 0 : index
    %1398 = vector.load %arg8[%c9_751, %c0_752] : memref<36x16xf32, #tpu.memory_space<vmem>>, vector<16x16xf32>
    %c2_753 = arith.constant 2 : index
    %c11_754 = arith.constant 11 : index
    %1399 = memref.load %arg4[%c2_753, %c11_754] : memref<4x39xf32, #tpu.memory_space<smem>>
    %1400 = vector.broadcast %1399 : f32 to vector<16x16xf32>
    %1401 = arith.mulf %1398, %1400 : vector<16x16xf32>
    %1402 = arith.addf %1397, %1401 : vector<16x16xf32>
    %c10_755 = arith.constant 10 : index
    %c0_756 = arith.constant 0 : index
    %1403 = vector.load %arg8[%c10_755, %c0_756] : memref<36x16xf32, #tpu.memory_space<vmem>>, vector<16x16xf32>
    %c2_757 = arith.constant 2 : index
    %c12_758 = arith.constant 12 : index
    %1404 = memref.load %arg4[%c2_757, %c12_758] : memref<4x39xf32, #tpu.memory_space<smem>>
    %1405 = vector.broadcast %1404 : f32 to vector<16x16xf32>
    %1406 = arith.mulf %1403, %1405 : vector<16x16xf32>
    %1407 = arith.addf %1402, %1406 : vector<16x16xf32>
    %c11_759 = arith.constant 11 : index
    %c0_760 = arith.constant 0 : index
    %1408 = vector.load %arg8[%c11_759, %c0_760] : memref<36x16xf32, #tpu.memory_space<vmem>>, vector<16x16xf32>
    %c2_761 = arith.constant 2 : index
    %c13_762 = arith.constant 13 : index
    %1409 = memref.load %arg4[%c2_761, %c13_762] : memref<4x39xf32, #tpu.memory_space<smem>>
    %1410 = vector.broadcast %1409 : f32 to vector<16x16xf32>
    %1411 = arith.mulf %1408, %1410 : vector<16x16xf32>
    %1412 = arith.addf %1407, %1411 : vector<16x16xf32>
    %c12_763 = arith.constant 12 : index
    %c0_764 = arith.constant 0 : index
    %1413 = vector.load %arg8[%c12_763, %c0_764] : memref<36x16xf32, #tpu.memory_space<vmem>>, vector<16x16xf32>
    %c2_765 = arith.constant 2 : index
    %c14_766 = arith.constant 14 : index
    %1414 = memref.load %arg4[%c2_765, %c14_766] : memref<4x39xf32, #tpu.memory_space<smem>>
    %1415 = vector.broadcast %1414 : f32 to vector<16x16xf32>
    %1416 = arith.mulf %1413, %1415 : vector<16x16xf32>
    %1417 = arith.addf %1412, %1416 : vector<16x16xf32>
    %c13_767 = arith.constant 13 : index
    %c0_768 = arith.constant 0 : index
    %1418 = vector.load %arg8[%c13_767, %c0_768] : memref<36x16xf32, #tpu.memory_space<vmem>>, vector<16x16xf32>
    %c2_769 = arith.constant 2 : index
    %c15_770 = arith.constant 15 : index
    %1419 = memref.load %arg4[%c2_769, %c15_770] : memref<4x39xf32, #tpu.memory_space<smem>>
    %1420 = vector.broadcast %1419 : f32 to vector<16x16xf32>
    %1421 = arith.mulf %1418, %1420 : vector<16x16xf32>
    %1422 = arith.addf %1417, %1421 : vector<16x16xf32>
    %c14_771 = arith.constant 14 : index
    %c0_772 = arith.constant 0 : index
    %1423 = vector.load %arg8[%c14_771, %c0_772] : memref<36x16xf32, #tpu.memory_space<vmem>>, vector<16x16xf32>
    %c2_773 = arith.constant 2 : index
    %c16_774 = arith.constant 16 : index
    %1424 = memref.load %arg4[%c2_773, %c16_774] : memref<4x39xf32, #tpu.memory_space<smem>>
    %1425 = vector.broadcast %1424 : f32 to vector<16x16xf32>
    %1426 = arith.mulf %1423, %1425 : vector<16x16xf32>
    %1427 = arith.addf %1422, %1426 : vector<16x16xf32>
    %c15_775 = arith.constant 15 : index
    %c0_776 = arith.constant 0 : index
    %1428 = vector.load %arg8[%c15_775, %c0_776] : memref<36x16xf32, #tpu.memory_space<vmem>>, vector<16x16xf32>
    %c2_777 = arith.constant 2 : index
    %c17_778 = arith.constant 17 : index
    %1429 = memref.load %arg4[%c2_777, %c17_778] : memref<4x39xf32, #tpu.memory_space<smem>>
    %1430 = vector.broadcast %1429 : f32 to vector<16x16xf32>
    %1431 = arith.mulf %1428, %1430 : vector<16x16xf32>
    %1432 = arith.addf %1427, %1431 : vector<16x16xf32>
    %c10_779 = arith.constant 10 : index
    %c0_780 = arith.constant 0 : index
    %1433 = vector.load %arg8[%c10_779, %c0_780] : memref<36x16xf32, #tpu.memory_space<vmem>>, vector<16x16xf32>
    tpu.vector_store %arg8[%c10_779, %c0_780], %1340 {strides = array<i32>} : memref<36x16xf32, #tpu.memory_space<vmem>>, vector<16x16xf32>,
    %c0_781 = arith.constant 0 : index
    %c0_782 = arith.constant 0 : index
    %1434 = vector.load %arg8[%c0_781, %c0_782] : memref<36x16xf32, #tpu.memory_space<vmem>>, vector<16x16xf32>
    %c2_783 = arith.constant 2 : index
    %c18_784 = arith.constant 18 : index
    %1435 = memref.load %arg4[%c2_783, %c18_784] : memref<4x39xf32, #tpu.memory_space<smem>>
    %1436 = vector.broadcast %1435 : f32 to vector<16x16xf32>
    %1437 = arith.mulf %1434, %1436 : vector<16x16xf32>
    %1438 = arith.addf %1432, %1437 : vector<16x16xf32>
    %c1_785 = arith.constant 1 : index
    %c0_786 = arith.constant 0 : index
    %1439 = vector.load %arg8[%c1_785, %c0_786] : memref<36x16xf32, #tpu.memory_space<vmem>>, vector<16x16xf32>
    %c2_787 = arith.constant 2 : index
    %c19_788 = arith.constant 19 : index
    %1440 = memref.load %arg4[%c2_787, %c19_788] : memref<4x39xf32, #tpu.memory_space<smem>>
    %1441 = vector.broadcast %1440 : f32 to vector<16x16xf32>
    %1442 = arith.mulf %1439, %1441 : vector<16x16xf32>
    %1443 = arith.addf %1438, %1442 : vector<16x16xf32>
    %c2_789 = arith.constant 2 : index
    %c0_790 = arith.constant 0 : index
    %1444 = vector.load %arg8[%c2_789, %c0_790] : memref<36x16xf32, #tpu.memory_space<vmem>>, vector<16x16xf32>
    %c2_791 = arith.constant 2 : index
    %c20_792 = arith.constant 20 : index
    %1445 = memref.load %arg4[%c2_791, %c20_792] : memref<4x39xf32, #tpu.memory_space<smem>>
    %1446 = vector.broadcast %1445 : f32 to vector<16x16xf32>
    %1447 = arith.mulf %1444, %1446 : vector<16x16xf32>
    %1448 = arith.addf %1443, %1447 : vector<16x16xf32>
    %c3_793 = arith.constant 3 : index
    %c0_794 = arith.constant 0 : index
    %1449 = vector.load %arg8[%c3_793, %c0_794] : memref<36x16xf32, #tpu.memory_space<vmem>>, vector<16x16xf32>
    %c2_795 = arith.constant 2 : index
    %c21_796 = arith.constant 21 : index
    %1450 = memref.load %arg4[%c2_795, %c21_796] : memref<4x39xf32, #tpu.memory_space<smem>>
    %1451 = vector.broadcast %1450 : f32 to vector<16x16xf32>
    %1452 = arith.mulf %1449, %1451 : vector<16x16xf32>
    %1453 = arith.addf %1448, %1452 : vector<16x16xf32>
    %c4_797 = arith.constant 4 : index
    %c0_798 = arith.constant 0 : index
    %1454 = vector.load %arg8[%c4_797, %c0_798] : memref<36x16xf32, #tpu.memory_space<vmem>>, vector<16x16xf32>
    %c2_799 = arith.constant 2 : index
    %c22_800 = arith.constant 22 : index
    %1455 = memref.load %arg4[%c2_799, %c22_800] : memref<4x39xf32, #tpu.memory_space<smem>>
    %1456 = vector.broadcast %1455 : f32 to vector<16x16xf32>
    %1457 = arith.mulf %1454, %1456 : vector<16x16xf32>
    %1458 = arith.addf %1453, %1457 : vector<16x16xf32>
    %c5_801 = arith.constant 5 : index
    %c0_802 = arith.constant 0 : index
    %1459 = vector.load %arg8[%c5_801, %c0_802] : memref<36x16xf32, #tpu.memory_space<vmem>>, vector<16x16xf32>
    %c2_803 = arith.constant 2 : index
    %c23_804 = arith.constant 23 : index
    %1460 = memref.load %arg4[%c2_803, %c23_804] : memref<4x39xf32, #tpu.memory_space<smem>>
    %1461 = vector.broadcast %1460 : f32 to vector<16x16xf32>
    %1462 = arith.mulf %1459, %1461 : vector<16x16xf32>
    %1463 = arith.addf %1458, %1462 : vector<16x16xf32>
    %c6_805 = arith.constant 6 : index
    %c0_806 = arith.constant 0 : index
    %1464 = vector.load %arg8[%c6_805, %c0_806] : memref<36x16xf32, #tpu.memory_space<vmem>>, vector<16x16xf32>
    %c2_807 = arith.constant 2 : index
    %c24_808 = arith.constant 24 : index
    %1465 = memref.load %arg4[%c2_807, %c24_808] : memref<4x39xf32, #tpu.memory_space<smem>>
    %1466 = vector.broadcast %1465 : f32 to vector<16x16xf32>
    %1467 = arith.mulf %1464, %1466 : vector<16x16xf32>
    %1468 = arith.addf %1463, %1467 : vector<16x16xf32>
    %c7_809 = arith.constant 7 : index
    %c0_810 = arith.constant 0 : index
    %1469 = vector.load %arg8[%c7_809, %c0_810] : memref<36x16xf32, #tpu.memory_space<vmem>>, vector<16x16xf32>
    %c2_811 = arith.constant 2 : index
    %c25_812 = arith.constant 25 : index
    %1470 = memref.load %arg4[%c2_811, %c25_812] : memref<4x39xf32, #tpu.memory_space<smem>>
    %1471 = vector.broadcast %1470 : f32 to vector<16x16xf32>
    %1472 = arith.mulf %1469, %1471 : vector<16x16xf32>
    %1473 = arith.addf %1468, %1472 : vector<16x16xf32>
    %c8_813 = arith.constant 8 : index
    %c0_814 = arith.constant 0 : index
    %1474 = vector.load %arg8[%c8_813, %c0_814] : memref<36x16xf32, #tpu.memory_space<vmem>>, vector<16x16xf32>
    %c2_815 = arith.constant 2 : index
    %c26_816 = arith.constant 26 : index
    %1475 = memref.load %arg4[%c2_815, %c26_816] : memref<4x39xf32, #tpu.memory_space<smem>>
    %1476 = vector.broadcast %1475 : f32 to vector<16x16xf32>
    %1477 = arith.mulf %1474, %1476 : vector<16x16xf32>
    %1478 = arith.addf %1473, %1477 : vector<16x16xf32>
    %c9_817 = arith.constant 9 : index
    %c0_818 = arith.constant 0 : index
    %1479 = vector.load %arg8[%c9_817, %c0_818] : memref<36x16xf32, #tpu.memory_space<vmem>>, vector<16x16xf32>
    %c2_819 = arith.constant 2 : index
    %c27_820 = arith.constant 27 : index
    %1480 = memref.load %arg4[%c2_819, %c27_820] : memref<4x39xf32, #tpu.memory_space<smem>>
    %1481 = vector.broadcast %1480 : f32 to vector<16x16xf32>
    %1482 = arith.mulf %1479, %1481 : vector<16x16xf32>
    %1483 = arith.addf %1478, %1482 : vector<16x16xf32>
    %c10_821 = arith.constant 10 : index
    %c0_822 = arith.constant 0 : index
    %1484 = vector.load %arg8[%c10_821, %c0_822] : memref<36x16xf32, #tpu.memory_space<vmem>>, vector<16x16xf32>
    %c2_823 = arith.constant 2 : index
    %c28_824 = arith.constant 28 : index
    %1485 = memref.load %arg4[%c2_823, %c28_824] : memref<4x39xf32, #tpu.memory_space<smem>>
    %1486 = vector.broadcast %1485 : f32 to vector<16x16xf32>
    %1487 = arith.mulf %1484, %1486 : vector<16x16xf32>
    %1488 = arith.addf %1483, %1487 : vector<16x16xf32>
    %c11_825 = arith.constant 11 : index
    %c0_826 = arith.constant 0 : index
    %1489 = vector.load %arg8[%c11_825, %c0_826] : memref<36x16xf32, #tpu.memory_space<vmem>>, vector<16x16xf32>
    %c2_827 = arith.constant 2 : index
    %c29_828 = arith.constant 29 : index
    %1490 = memref.load %arg4[%c2_827, %c29_828] : memref<4x39xf32, #tpu.memory_space<smem>>
    %1491 = vector.broadcast %1490 : f32 to vector<16x16xf32>
    %1492 = arith.mulf %1489, %1491 : vector<16x16xf32>
    %1493 = arith.addf %1488, %1492 : vector<16x16xf32>
    %c12_829 = arith.constant 12 : index
    %c0_830 = arith.constant 0 : index
    %1494 = vector.load %arg8[%c12_829, %c0_830] : memref<36x16xf32, #tpu.memory_space<vmem>>, vector<16x16xf32>
    %c2_831 = arith.constant 2 : index
    %c30_832 = arith.constant 30 : index
    %1495 = memref.load %arg4[%c2_831, %c30_832] : memref<4x39xf32, #tpu.memory_space<smem>>
    %1496 = vector.broadcast %1495 : f32 to vector<16x16xf32>
    %1497 = arith.mulf %1494, %1496 : vector<16x16xf32>
    %1498 = arith.addf %1493, %1497 : vector<16x16xf32>
    %c13_833 = arith.constant 13 : index
    %c0_834 = arith.constant 0 : index
    %1499 = vector.load %arg8[%c13_833, %c0_834] : memref<36x16xf32, #tpu.memory_space<vmem>>, vector<16x16xf32>
    %c2_835 = arith.constant 2 : index
    %c31_836 = arith.constant 31 : index
    %1500 = memref.load %arg4[%c2_835, %c31_836] : memref<4x39xf32, #tpu.memory_space<smem>>
    %1501 = vector.broadcast %1500 : f32 to vector<16x16xf32>
    %1502 = arith.mulf %1499, %1501 : vector<16x16xf32>
    %1503 = arith.addf %1498, %1502 : vector<16x16xf32>
    %c14_837 = arith.constant 14 : index
    %c0_838 = arith.constant 0 : index
    %1504 = vector.load %arg8[%c14_837, %c0_838] : memref<36x16xf32, #tpu.memory_space<vmem>>, vector<16x16xf32>
    %c2_839 = arith.constant 2 : index
    %c32_840 = arith.constant 32 : index
    %1505 = memref.load %arg4[%c2_839, %c32_840] : memref<4x39xf32, #tpu.memory_space<smem>>
    %1506 = vector.broadcast %1505 : f32 to vector<16x16xf32>
    %1507 = arith.mulf %1504, %1506 : vector<16x16xf32>
    %1508 = arith.addf %1503, %1507 : vector<16x16xf32>
    %c15_841 = arith.constant 15 : index
    %c0_842 = arith.constant 0 : index
    %1509 = vector.load %arg8[%c15_841, %c0_842] : memref<36x16xf32, #tpu.memory_space<vmem>>, vector<16x16xf32>
    %c2_843 = arith.constant 2 : index
    %c33_844 = arith.constant 33 : index
    %1510 = memref.load %arg4[%c2_843, %c33_844] : memref<4x39xf32, #tpu.memory_space<smem>>
    %1511 = vector.broadcast %1510 : f32 to vector<16x16xf32>
    %1512 = arith.mulf %1509, %1511 : vector<16x16xf32>
    %1513 = arith.addf %1508, %1512 : vector<16x16xf32>
    %c16_845 = arith.constant 16 : index
    %c0_846 = arith.constant 0 : index
    %1514 = vector.load %arg8[%c16_845, %c0_846] : memref<36x16xf32, #tpu.memory_space<vmem>>, vector<16x16xf32>
    %c2_847 = arith.constant 2 : index
    %c34_848 = arith.constant 34 : index
    %1515 = memref.load %arg4[%c2_847, %c34_848] : memref<4x39xf32, #tpu.memory_space<smem>>
    %1516 = vector.broadcast %1515 : f32 to vector<16x16xf32>
    %1517 = arith.mulf %1514, %1516 : vector<16x16xf32>
    %1518 = arith.addf %1513, %1517 : vector<16x16xf32>
    %c17_849 = arith.constant 17 : index
    %c0_850 = arith.constant 0 : index
    %1519 = vector.load %arg8[%c17_849, %c0_850] : memref<36x16xf32, #tpu.memory_space<vmem>>, vector<16x16xf32>
    %c2_851 = arith.constant 2 : index
    %c35_852 = arith.constant 35 : index
    %1520 = memref.load %arg4[%c2_851, %c35_852] : memref<4x39xf32, #tpu.memory_space<smem>>
    %1521 = vector.broadcast %1520 : f32 to vector<16x16xf32>
    %1522 = arith.mulf %1519, %1521 : vector<16x16xf32>
    %1523 = arith.addf %1518, %1522 : vector<16x16xf32>
    %c18_853 = arith.constant 18 : index
    %c0_854 = arith.constant 0 : index
    %1524 = vector.load %arg8[%c18_853, %c0_854] : memref<36x16xf32, #tpu.memory_space<vmem>>, vector<16x16xf32>
    %c2_855 = arith.constant 2 : index
    %c36_856 = arith.constant 36 : index
    %1525 = memref.load %arg4[%c2_855, %c36_856] : memref<4x39xf32, #tpu.memory_space<smem>>
    %1526 = vector.broadcast %1525 : f32 to vector<16x16xf32>
    %1527 = arith.mulf %1524, %1526 : vector<16x16xf32>
    %1528 = arith.addf %1523, %1527 : vector<16x16xf32>
    %c19_857 = arith.constant 19 : index
    %c0_858 = arith.constant 0 : index
    %1529 = vector.load %arg8[%c19_857, %c0_858] : memref<36x16xf32, #tpu.memory_space<vmem>>, vector<16x16xf32>
    %c2_859 = arith.constant 2 : index
    %c37_860 = arith.constant 37 : index
    %1530 = memref.load %arg4[%c2_859, %c37_860] : memref<4x39xf32, #tpu.memory_space<smem>>
    %1531 = vector.broadcast %1530 : f32 to vector<16x16xf32>
    %1532 = arith.mulf %1529, %1531 : vector<16x16xf32>
    %1533 = arith.addf %1528, %1532 : vector<16x16xf32>
    %c20_861 = arith.constant 20 : index
    %c0_862 = arith.constant 0 : index
    %1534 = vector.load %arg8[%c20_861, %c0_862] : memref<36x16xf32, #tpu.memory_space<vmem>>, vector<16x16xf32>
    %c2_863 = arith.constant 2 : index
    %c38_864 = arith.constant 38 : index
    %1535 = memref.load %arg4[%c2_863, %c38_864] : memref<4x39xf32, #tpu.memory_space<smem>>
    %1536 = vector.broadcast %1535 : f32 to vector<16x16xf32>
    %1537 = arith.mulf %1534, %1536 : vector<16x16xf32>
    %1538 = arith.addf %1533, %1537 : vector<16x16xf32>
    %c0_865 = arith.constant 0 : index
    %c3_866 = arith.constant 3 : index
    %c0_867 = arith.constant 0 : index
    %c0_868 = arith.constant 0 : index
    %1539 = vector.load %arg1[%c0_865, %c3_866, %c0_867, %c0_868] : memref<1x4x20x36xf32, #tpu.memory_space<vmem>>, vector<1x1x20x36xf32>
    %1540 = vector.shape_cast %1539 : vector<1x1x20x36xf32> to vector<20x36xf32>
    %1541 = vector.extract_strided_slice %1540 {offsets = [0, 8], sizes = [20, 16], strides = [1, 1]} : vector<20x36xf32> to vector<20x16xf32>
    %1542 = vector.extract_strided_slice %1541 {offsets = [0, 0], sizes = [16, 16], strides = [1, 1]} : vector<20x16xf32> to vector<16x16xf32>
    %c3_869 = arith.constant 3 : index
    %c0_870 = arith.constant 0 : index
    %1543 = memref.load %arg2[%c3_869, %c0_870] : memref<4x25xf32, #tpu.memory_space<smem>>
    %1544 = vector.broadcast %1543 : f32 to vector<16x16xf32>
    %1545 = arith.mulf %1542, %1544 : vector<16x16xf32>
    %1546 = vector.extract_strided_slice %1541 {offsets = [1, 0], sizes = [16, 16], strides = [1, 1]} : vector<20x16xf32> to vector<16x16xf32>
    %c3_871 = arith.constant 3 : index
    %c5_872 = arith.constant 5 : index
    %1547 = memref.load %arg2[%c3_871, %c5_872] : memref<4x25xf32, #tpu.memory_space<smem>>
    %1548 = vector.broadcast %1547 : f32 to vector<16x16xf32>
    %1549 = arith.mulf %1546, %1548 : vector<16x16xf32>
    %1550 = arith.addf %1545, %1549 : vector<16x16xf32>
    %1551 = vector.extract_strided_slice %1541 {offsets = [2, 0], sizes = [16, 16], strides = [1, 1]} : vector<20x16xf32> to vector<16x16xf32>
    %c3_873 = arith.constant 3 : index
    %c10_874 = arith.constant 10 : index
    %1552 = memref.load %arg2[%c3_873, %c10_874] : memref<4x25xf32, #tpu.memory_space<smem>>
    %1553 = vector.broadcast %1552 : f32 to vector<16x16xf32>
    %1554 = arith.mulf %1551, %1553 : vector<16x16xf32>
    %1555 = arith.addf %1550, %1554 : vector<16x16xf32>
    %1556 = vector.extract_strided_slice %1541 {offsets = [3, 0], sizes = [16, 16], strides = [1, 1]} : vector<20x16xf32> to vector<16x16xf32>
    %c3_875 = arith.constant 3 : index
    %c15_876 = arith.constant 15 : index
    %1557 = memref.load %arg2[%c3_875, %c15_876] : memref<4x25xf32, #tpu.memory_space<smem>>
    %1558 = vector.broadcast %1557 : f32 to vector<16x16xf32>
    %1559 = arith.mulf %1556, %1558 : vector<16x16xf32>
    %1560 = arith.addf %1555, %1559 : vector<16x16xf32>
    %1561 = vector.extract_strided_slice %1541 {offsets = [4, 0], sizes = [16, 16], strides = [1, 1]} : vector<20x16xf32> to vector<16x16xf32>
    %c3_877 = arith.constant 3 : index
    %c20_878 = arith.constant 20 : index
    %1562 = memref.load %arg2[%c3_877, %c20_878] : memref<4x25xf32, #tpu.memory_space<smem>>
    %1563 = vector.broadcast %1562 : f32 to vector<16x16xf32>
    %1564 = arith.mulf %1561, %1563 : vector<16x16xf32>
    %1565 = arith.addf %1560, %1564 : vector<16x16xf32>
    %1566 = vector.extract_strided_slice %1540 {offsets = [0, 9], sizes = [20, 16], strides = [1, 1]} : vector<20x36xf32> to vector<20x16xf32>
    %1567 = vector.extract_strided_slice %1566 {offsets = [0, 0], sizes = [16, 16], strides = [1, 1]} : vector<20x16xf32> to vector<16x16xf32>
    %c3_879 = arith.constant 3 : index
    %c1_880 = arith.constant 1 : index
    %1568 = memref.load %arg2[%c3_879, %c1_880] : memref<4x25xf32, #tpu.memory_space<smem>>
    %1569 = vector.broadcast %1568 : f32 to vector<16x16xf32>
    %1570 = arith.mulf %1567, %1569 : vector<16x16xf32>
    %1571 = arith.addf %1565, %1570 : vector<16x16xf32>
    %1572 = vector.extract_strided_slice %1566 {offsets = [1, 0], sizes = [16, 16], strides = [1, 1]} : vector<20x16xf32> to vector<16x16xf32>
    %c3_881 = arith.constant 3 : index
    %c6_882 = arith.constant 6 : index
    %1573 = memref.load %arg2[%c3_881, %c6_882] : memref<4x25xf32, #tpu.memory_space<smem>>
    %1574 = vector.broadcast %1573 : f32 to vector<16x16xf32>
    %1575 = arith.mulf %1572, %1574 : vector<16x16xf32>
    %1576 = arith.addf %1571, %1575 : vector<16x16xf32>
    %1577 = vector.extract_strided_slice %1566 {offsets = [2, 0], sizes = [16, 16], strides = [1, 1]} : vector<20x16xf32> to vector<16x16xf32>
    %c3_883 = arith.constant 3 : index
    %c11_884 = arith.constant 11 : index
    %1578 = memref.load %arg2[%c3_883, %c11_884] : memref<4x25xf32, #tpu.memory_space<smem>>
    %1579 = vector.broadcast %1578 : f32 to vector<16x16xf32>
    %1580 = arith.mulf %1577, %1579 : vector<16x16xf32>
    %1581 = arith.addf %1576, %1580 : vector<16x16xf32>
    %1582 = vector.extract_strided_slice %1566 {offsets = [3, 0], sizes = [16, 16], strides = [1, 1]} : vector<20x16xf32> to vector<16x16xf32>
    %c3_885 = arith.constant 3 : index
    %c16_886 = arith.constant 16 : index
    %1583 = memref.load %arg2[%c3_885, %c16_886] : memref<4x25xf32, #tpu.memory_space<smem>>
    %1584 = vector.broadcast %1583 : f32 to vector<16x16xf32>
    %1585 = arith.mulf %1582, %1584 : vector<16x16xf32>
    %1586 = arith.addf %1581, %1585 : vector<16x16xf32>
    %1587 = vector.extract_strided_slice %1566 {offsets = [4, 0], sizes = [16, 16], strides = [1, 1]} : vector<20x16xf32> to vector<16x16xf32>
    %c3_887 = arith.constant 3 : index
    %c21_888 = arith.constant 21 : index
    %1588 = memref.load %arg2[%c3_887, %c21_888] : memref<4x25xf32, #tpu.memory_space<smem>>
    %1589 = vector.broadcast %1588 : f32 to vector<16x16xf32>
    %1590 = arith.mulf %1587, %1589 : vector<16x16xf32>
    %1591 = arith.addf %1586, %1590 : vector<16x16xf32>
    %1592 = vector.extract_strided_slice %1540 {offsets = [0, 10], sizes = [20, 16], strides = [1, 1]} : vector<20x36xf32> to vector<20x16xf32>
    %1593 = vector.extract_strided_slice %1592 {offsets = [0, 0], sizes = [16, 16], strides = [1, 1]} : vector<20x16xf32> to vector<16x16xf32>
    %c3_889 = arith.constant 3 : index
    %c2_890 = arith.constant 2 : index
    %1594 = memref.load %arg2[%c3_889, %c2_890] : memref<4x25xf32, #tpu.memory_space<smem>>
    %1595 = vector.broadcast %1594 : f32 to vector<16x16xf32>
    %1596 = arith.mulf %1593, %1595 : vector<16x16xf32>
    %1597 = arith.addf %1591, %1596 : vector<16x16xf32>
    %1598 = vector.extract_strided_slice %1592 {offsets = [1, 0], sizes = [16, 16], strides = [1, 1]} : vector<20x16xf32> to vector<16x16xf32>
    %c3_891 = arith.constant 3 : index
    %c7_892 = arith.constant 7 : index
    %1599 = memref.load %arg2[%c3_891, %c7_892] : memref<4x25xf32, #tpu.memory_space<smem>>
    %1600 = vector.broadcast %1599 : f32 to vector<16x16xf32>
    %1601 = arith.mulf %1598, %1600 : vector<16x16xf32>
    %1602 = arith.addf %1597, %1601 : vector<16x16xf32>
    %1603 = vector.extract_strided_slice %1592 {offsets = [2, 0], sizes = [16, 16], strides = [1, 1]} : vector<20x16xf32> to vector<16x16xf32>
    %c3_893 = arith.constant 3 : index
    %c12_894 = arith.constant 12 : index
    %1604 = memref.load %arg2[%c3_893, %c12_894] : memref<4x25xf32, #tpu.memory_space<smem>>
    %1605 = vector.broadcast %1604 : f32 to vector<16x16xf32>
    %1606 = arith.mulf %1603, %1605 : vector<16x16xf32>
    %1607 = arith.addf %1602, %1606 : vector<16x16xf32>
    %1608 = vector.extract_strided_slice %1592 {offsets = [3, 0], sizes = [16, 16], strides = [1, 1]} : vector<20x16xf32> to vector<16x16xf32>
    %c3_895 = arith.constant 3 : index
    %c17_896 = arith.constant 17 : index
    %1609 = memref.load %arg2[%c3_895, %c17_896] : memref<4x25xf32, #tpu.memory_space<smem>>
    %1610 = vector.broadcast %1609 : f32 to vector<16x16xf32>
    %1611 = arith.mulf %1608, %1610 : vector<16x16xf32>
    %1612 = arith.addf %1607, %1611 : vector<16x16xf32>
    %1613 = vector.extract_strided_slice %1592 {offsets = [4, 0], sizes = [16, 16], strides = [1, 1]} : vector<20x16xf32> to vector<16x16xf32>
    %c3_897 = arith.constant 3 : index
    %c22_898 = arith.constant 22 : index
    %1614 = memref.load %arg2[%c3_897, %c22_898] : memref<4x25xf32, #tpu.memory_space<smem>>
    %1615 = vector.broadcast %1614 : f32 to vector<16x16xf32>
    %1616 = arith.mulf %1613, %1615 : vector<16x16xf32>
    %1617 = arith.addf %1612, %1616 : vector<16x16xf32>
    %1618 = vector.extract_strided_slice %1540 {offsets = [0, 11], sizes = [20, 16], strides = [1, 1]} : vector<20x36xf32> to vector<20x16xf32>
    %1619 = vector.extract_strided_slice %1618 {offsets = [0, 0], sizes = [16, 16], strides = [1, 1]} : vector<20x16xf32> to vector<16x16xf32>
    %c3_899 = arith.constant 3 : index
    %c3_900 = arith.constant 3 : index
    %1620 = memref.load %arg2[%c3_899, %c3_900] : memref<4x25xf32, #tpu.memory_space<smem>>
    %1621 = vector.broadcast %1620 : f32 to vector<16x16xf32>
    %1622 = arith.mulf %1619, %1621 : vector<16x16xf32>
    %1623 = arith.addf %1617, %1622 : vector<16x16xf32>
    %1624 = vector.extract_strided_slice %1618 {offsets = [1, 0], sizes = [16, 16], strides = [1, 1]} : vector<20x16xf32> to vector<16x16xf32>
    %c3_901 = arith.constant 3 : index
    %c8_902 = arith.constant 8 : index
    %1625 = memref.load %arg2[%c3_901, %c8_902] : memref<4x25xf32, #tpu.memory_space<smem>>
    %1626 = vector.broadcast %1625 : f32 to vector<16x16xf32>
    %1627 = arith.mulf %1624, %1626 : vector<16x16xf32>
    %1628 = arith.addf %1623, %1627 : vector<16x16xf32>
    %1629 = vector.extract_strided_slice %1618 {offsets = [2, 0], sizes = [16, 16], strides = [1, 1]} : vector<20x16xf32> to vector<16x16xf32>
    %c3_903 = arith.constant 3 : index
    %c13_904 = arith.constant 13 : index
    %1630 = memref.load %arg2[%c3_903, %c13_904] : memref<4x25xf32, #tpu.memory_space<smem>>
    %1631 = vector.broadcast %1630 : f32 to vector<16x16xf32>
    %1632 = arith.mulf %1629, %1631 : vector<16x16xf32>
    %1633 = arith.addf %1628, %1632 : vector<16x16xf32>
    %1634 = vector.extract_strided_slice %1618 {offsets = [3, 0], sizes = [16, 16], strides = [1, 1]} : vector<20x16xf32> to vector<16x16xf32>
    %c3_905 = arith.constant 3 : index
    %c18_906 = arith.constant 18 : index
    %1635 = memref.load %arg2[%c3_905, %c18_906] : memref<4x25xf32, #tpu.memory_space<smem>>
    %1636 = vector.broadcast %1635 : f32 to vector<16x16xf32>
    %1637 = arith.mulf %1634, %1636 : vector<16x16xf32>
    %1638 = arith.addf %1633, %1637 : vector<16x16xf32>
    %1639 = vector.extract_strided_slice %1618 {offsets = [4, 0], sizes = [16, 16], strides = [1, 1]} : vector<20x16xf32> to vector<16x16xf32>
    %c3_907 = arith.constant 3 : index
    %c23_908 = arith.constant 23 : index
    %1640 = memref.load %arg2[%c3_907, %c23_908] : memref<4x25xf32, #tpu.memory_space<smem>>
    %1641 = vector.broadcast %1640 : f32 to vector<16x16xf32>
    %1642 = arith.mulf %1639, %1641 : vector<16x16xf32>
    %1643 = arith.addf %1638, %1642 : vector<16x16xf32>
    %1644 = vector.extract_strided_slice %1540 {offsets = [0, 12], sizes = [20, 16], strides = [1, 1]} : vector<20x36xf32> to vector<20x16xf32>
    %1645 = vector.extract_strided_slice %1644 {offsets = [0, 0], sizes = [16, 16], strides = [1, 1]} : vector<20x16xf32> to vector<16x16xf32>
    %c3_909 = arith.constant 3 : index
    %c4_910 = arith.constant 4 : index
    %1646 = memref.load %arg2[%c3_909, %c4_910] : memref<4x25xf32, #tpu.memory_space<smem>>
    %1647 = vector.broadcast %1646 : f32 to vector<16x16xf32>
    %1648 = arith.mulf %1645, %1647 : vector<16x16xf32>
    %1649 = arith.addf %1643, %1648 : vector<16x16xf32>
    %1650 = vector.extract_strided_slice %1644 {offsets = [1, 0], sizes = [16, 16], strides = [1, 1]} : vector<20x16xf32> to vector<16x16xf32>
    %c3_911 = arith.constant 3 : index
    %c9_912 = arith.constant 9 : index
    %1651 = memref.load %arg2[%c3_911, %c9_912] : memref<4x25xf32, #tpu.memory_space<smem>>
    %1652 = vector.broadcast %1651 : f32 to vector<16x16xf32>
    %1653 = arith.mulf %1650, %1652 : vector<16x16xf32>
    %1654 = arith.addf %1649, %1653 : vector<16x16xf32>
    %1655 = vector.extract_strided_slice %1644 {offsets = [2, 0], sizes = [16, 16], strides = [1, 1]} : vector<20x16xf32> to vector<16x16xf32>
    %c3_913 = arith.constant 3 : index
    %c14_914 = arith.constant 14 : index
    %1656 = memref.load %arg2[%c3_913, %c14_914] : memref<4x25xf32, #tpu.memory_space<smem>>
    %1657 = vector.broadcast %1656 : f32 to vector<16x16xf32>
    %1658 = arith.mulf %1655, %1657 : vector<16x16xf32>
    %1659 = arith.addf %1654, %1658 : vector<16x16xf32>
    %1660 = vector.extract_strided_slice %1644 {offsets = [3, 0], sizes = [16, 16], strides = [1, 1]} : vector<20x16xf32> to vector<16x16xf32>
    %c3_915 = arith.constant 3 : index
    %c19_916 = arith.constant 19 : index
    %1661 = memref.load %arg2[%c3_915, %c19_916] : memref<4x25xf32, #tpu.memory_space<smem>>
    %1662 = vector.broadcast %1661 : f32 to vector<16x16xf32>
    %1663 = arith.mulf %1660, %1662 : vector<16x16xf32>
    %1664 = arith.addf %1659, %1663 : vector<16x16xf32>
    %1665 = vector.extract_strided_slice %1644 {offsets = [4, 0], sizes = [16, 16], strides = [1, 1]} : vector<20x16xf32> to vector<16x16xf32>
    %c3_917 = arith.constant 3 : index
    %c24_918 = arith.constant 24 : index
    %1666 = memref.load %arg2[%c3_917, %c24_918] : memref<4x25xf32, #tpu.memory_space<smem>>
    %1667 = vector.broadcast %1666 : f32 to vector<16x16xf32>
    %1668 = arith.mulf %1665, %1667 : vector<16x16xf32>
    %1669 = arith.addf %1664, %1668 : vector<16x16xf32>
    %1670 = vector.extract_strided_slice %1540 {offsets = [2, 0], sizes = [16, 16], strides = [1, 1]} : vector<20x36xf32> to vector<16x16xf32>
    %c3_919 = arith.constant 3 : index
    %c18_920 = arith.constant 18 : index
    %1671 = memref.load %arg3[%c3_919, %c18_920] : memref<4x39xf32, #tpu.memory_space<smem>>
    %1672 = vector.broadcast %1671 : f32 to vector<16x16xf32>
    %1673 = arith.mulf %1670, %1672 : vector<16x16xf32>
    %1674 = vector.extract_strided_slice %1540 {offsets = [2, 1], sizes = [16, 16], strides = [1, 1]} : vector<20x36xf32> to vector<16x16xf32>
    %c3_921 = arith.constant 3 : index
    %c19_922 = arith.constant 19 : index
    %1675 = memref.load %arg3[%c3_921, %c19_922] : memref<4x39xf32, #tpu.memory_space<smem>>
    %1676 = vector.broadcast %1675 : f32 to vector<16x16xf32>
    %1677 = arith.mulf %1674, %1676 : vector<16x16xf32>
    %1678 = arith.addf %1673, %1677 : vector<16x16xf32>
    %1679 = vector.extract_strided_slice %1540 {offsets = [2, 2], sizes = [16, 16], strides = [1, 1]} : vector<20x36xf32> to vector<16x16xf32>
    %c3_923 = arith.constant 3 : index
    %c20_924 = arith.constant 20 : index
    %1680 = memref.load %arg3[%c3_923, %c20_924] : memref<4x39xf32, #tpu.memory_space<smem>>
    %1681 = vector.broadcast %1680 : f32 to vector<16x16xf32>
    %1682 = arith.mulf %1679, %1681 : vector<16x16xf32>
    %1683 = arith.addf %1678, %1682 : vector<16x16xf32>
    %1684 = vector.extract_strided_slice %1540 {offsets = [2, 3], sizes = [16, 16], strides = [1, 1]} : vector<20x36xf32> to vector<16x16xf32>
    %c3_925 = arith.constant 3 : index
    %c21_926 = arith.constant 21 : index
    %1685 = memref.load %arg3[%c3_925, %c21_926] : memref<4x39xf32, #tpu.memory_space<smem>>
    %1686 = vector.broadcast %1685 : f32 to vector<16x16xf32>
    %1687 = arith.mulf %1684, %1686 : vector<16x16xf32>
    %1688 = arith.addf %1683, %1687 : vector<16x16xf32>
    %1689 = vector.extract_strided_slice %1540 {offsets = [2, 4], sizes = [16, 16], strides = [1, 1]} : vector<20x36xf32> to vector<16x16xf32>
    %c3_927 = arith.constant 3 : index
    %c22_928 = arith.constant 22 : index
    %1690 = memref.load %arg3[%c3_927, %c22_928] : memref<4x39xf32, #tpu.memory_space<smem>>
    %1691 = vector.broadcast %1690 : f32 to vector<16x16xf32>
    %1692 = arith.mulf %1689, %1691 : vector<16x16xf32>
    %1693 = arith.addf %1688, %1692 : vector<16x16xf32>
    %1694 = vector.extract_strided_slice %1540 {offsets = [2, 5], sizes = [16, 16], strides = [1, 1]} : vector<20x36xf32> to vector<16x16xf32>
    %c3_929 = arith.constant 3 : index
    %c23_930 = arith.constant 23 : index
    %1695 = memref.load %arg3[%c3_929, %c23_930] : memref<4x39xf32, #tpu.memory_space<smem>>
    %1696 = vector.broadcast %1695 : f32 to vector<16x16xf32>
    %1697 = arith.mulf %1694, %1696 : vector<16x16xf32>
    %1698 = arith.addf %1693, %1697 : vector<16x16xf32>
    %c3_931 = arith.constant 3 : index
    %c7_932 = arith.constant 7 : index
    %1699 = memref.load %arg3[%c3_931, %c7_932] : memref<4x39xf32, #tpu.memory_space<smem>>
    %1700 = vector.broadcast %1699 : f32 to vector<16x16xf32>
    %1701 = arith.mulf %1694, %1700 : vector<16x16xf32>
    %1702 = vector.extract_strided_slice %1540 {offsets = [2, 6], sizes = [16, 16], strides = [1, 1]} : vector<20x36xf32> to vector<16x16xf32>
    %c3_933 = arith.constant 3 : index
    %c24_934 = arith.constant 24 : index
    %1703 = memref.load %arg3[%c3_933, %c24_934] : memref<4x39xf32, #tpu.memory_space<smem>>
    %1704 = vector.broadcast %1703 : f32 to vector<16x16xf32>
    %1705 = arith.mulf %1702, %1704 : vector<16x16xf32>
    %1706 = arith.addf %1698, %1705 : vector<16x16xf32>
    %c3_935 = arith.constant 3 : index
    %c8_936 = arith.constant 8 : index
    %1707 = memref.load %arg3[%c3_935, %c8_936] : memref<4x39xf32, #tpu.memory_space<smem>>
    %1708 = vector.broadcast %1707 : f32 to vector<16x16xf32>
    %1709 = arith.mulf %1702, %1708 : vector<16x16xf32>
    %1710 = arith.addf %1701, %1709 : vector<16x16xf32>
    %1711 = vector.extract_strided_slice %1540 {offsets = [2, 7], sizes = [16, 16], strides = [1, 1]} : vector<20x36xf32> to vector<16x16xf32>
    %c3_937 = arith.constant 3 : index
    %c25_938 = arith.constant 25 : index
    %1712 = memref.load %arg3[%c3_937, %c25_938] : memref<4x39xf32, #tpu.memory_space<smem>>
    %1713 = vector.broadcast %1712 : f32 to vector<16x16xf32>
    %1714 = arith.mulf %1711, %1713 : vector<16x16xf32>
    %1715 = arith.addf %1706, %1714 : vector<16x16xf32>
    %c3_939 = arith.constant 3 : index
    %c9_940 = arith.constant 9 : index
    %1716 = memref.load %arg3[%c3_939, %c9_940] : memref<4x39xf32, #tpu.memory_space<smem>>
    %1717 = vector.broadcast %1716 : f32 to vector<16x16xf32>
    %1718 = arith.mulf %1711, %1717 : vector<16x16xf32>
    %1719 = arith.addf %1710, %1718 : vector<16x16xf32>
    %c3_941 = arith.constant 3 : index
    %c0_942 = arith.constant 0 : index
    %1720 = memref.load %arg3[%c3_941, %c0_942] : memref<4x39xf32, #tpu.memory_space<smem>>
    %1721 = vector.broadcast %1720 : f32 to vector<16x16xf32>
    %1722 = arith.mulf %1711, %1721 : vector<16x16xf32>
    %1723 = vector.extract_strided_slice %1540 {offsets = [2, 8], sizes = [16, 16], strides = [1, 1]} : vector<20x36xf32> to vector<16x16xf32>
    %c3_943 = arith.constant 3 : index
    %c26_944 = arith.constant 26 : index
    %1724 = memref.load %arg3[%c3_943, %c26_944] : memref<4x39xf32, #tpu.memory_space<smem>>
    %1725 = vector.broadcast %1724 : f32 to vector<16x16xf32>
    %1726 = arith.mulf %1723, %1725 : vector<16x16xf32>
    %1727 = arith.addf %1715, %1726 : vector<16x16xf32>
    %c3_945 = arith.constant 3 : index
    %c10_946 = arith.constant 10 : index
    %1728 = memref.load %arg3[%c3_945, %c10_946] : memref<4x39xf32, #tpu.memory_space<smem>>
    %1729 = vector.broadcast %1728 : f32 to vector<16x16xf32>
    %1730 = arith.mulf %1723, %1729 : vector<16x16xf32>
    %1731 = arith.addf %1719, %1730 : vector<16x16xf32>
    %c3_947 = arith.constant 3 : index
    %c1_948 = arith.constant 1 : index
    %1732 = memref.load %arg3[%c3_947, %c1_948] : memref<4x39xf32, #tpu.memory_space<smem>>
    %1733 = vector.broadcast %1732 : f32 to vector<16x16xf32>
    %1734 = arith.mulf %1723, %1733 : vector<16x16xf32>
    %1735 = arith.addf %1722, %1734 : vector<16x16xf32>
    %1736 = vector.extract_strided_slice %1540 {offsets = [2, 9], sizes = [16, 16], strides = [1, 1]} : vector<20x36xf32> to vector<16x16xf32>
    %c3_949 = arith.constant 3 : index
    %c27_950 = arith.constant 27 : index
    %1737 = memref.load %arg3[%c3_949, %c27_950] : memref<4x39xf32, #tpu.memory_space<smem>>
    %1738 = vector.broadcast %1737 : f32 to vector<16x16xf32>
    %1739 = arith.mulf %1736, %1738 : vector<16x16xf32>
    %1740 = arith.addf %1727, %1739 : vector<16x16xf32>
    %c3_951 = arith.constant 3 : index
    %c11_952 = arith.constant 11 : index
    %1741 = memref.load %arg3[%c3_951, %c11_952] : memref<4x39xf32, #tpu.memory_space<smem>>
    %1742 = vector.broadcast %1741 : f32 to vector<16x16xf32>
    %1743 = arith.mulf %1736, %1742 : vector<16x16xf32>
    %1744 = arith.addf %1731, %1743 : vector<16x16xf32>
    %c3_953 = arith.constant 3 : index
    %c2_954 = arith.constant 2 : index
    %1745 = memref.load %arg3[%c3_953, %c2_954] : memref<4x39xf32, #tpu.memory_space<smem>>
    %1746 = vector.broadcast %1745 : f32 to vector<16x16xf32>
    %1747 = arith.mulf %1736, %1746 : vector<16x16xf32>
    %1748 = arith.addf %1735, %1747 : vector<16x16xf32>
    %1749 = vector.extract_strided_slice %1540 {offsets = [2, 10], sizes = [16, 16], strides = [1, 1]} : vector<20x36xf32> to vector<16x16xf32>
    %c3_955 = arith.constant 3 : index
    %c28_956 = arith.constant 28 : index
    %1750 = memref.load %arg3[%c3_955, %c28_956] : memref<4x39xf32, #tpu.memory_space<smem>>
    %1751 = vector.broadcast %1750 : f32 to vector<16x16xf32>
    %1752 = arith.mulf %1749, %1751 : vector<16x16xf32>
    %1753 = arith.addf %1740, %1752 : vector<16x16xf32>
    %c3_957 = arith.constant 3 : index
    %c12_958 = arith.constant 12 : index
    %1754 = memref.load %arg3[%c3_957, %c12_958] : memref<4x39xf32, #tpu.memory_space<smem>>
    %1755 = vector.broadcast %1754 : f32 to vector<16x16xf32>
    %1756 = arith.mulf %1749, %1755 : vector<16x16xf32>
    %1757 = arith.addf %1744, %1756 : vector<16x16xf32>
    %c3_959 = arith.constant 3 : index
    %c3_960 = arith.constant 3 : index
    %1758 = memref.load %arg3[%c3_959, %c3_960] : memref<4x39xf32, #tpu.memory_space<smem>>
    %1759 = vector.broadcast %1758 : f32 to vector<16x16xf32>
    %1760 = arith.mulf %1749, %1759 : vector<16x16xf32>
    %1761 = arith.addf %1748, %1760 : vector<16x16xf32>
    %1762 = vector.extract_strided_slice %1540 {offsets = [2, 11], sizes = [16, 16], strides = [1, 1]} : vector<20x36xf32> to vector<16x16xf32>
    %c3_961 = arith.constant 3 : index
    %c29_962 = arith.constant 29 : index
    %1763 = memref.load %arg3[%c3_961, %c29_962] : memref<4x39xf32, #tpu.memory_space<smem>>
    %1764 = vector.broadcast %1763 : f32 to vector<16x16xf32>
    %1765 = arith.mulf %1762, %1764 : vector<16x16xf32>
    %1766 = arith.addf %1753, %1765 : vector<16x16xf32>
    %c3_963 = arith.constant 3 : index
    %c13_964 = arith.constant 13 : index
    %1767 = memref.load %arg3[%c3_963, %c13_964] : memref<4x39xf32, #tpu.memory_space<smem>>
    %1768 = vector.broadcast %1767 : f32 to vector<16x16xf32>
    %1769 = arith.mulf %1762, %1768 : vector<16x16xf32>
    %1770 = arith.addf %1757, %1769 : vector<16x16xf32>
    %c3_965 = arith.constant 3 : index
    %c4_966 = arith.constant 4 : index
    %1771 = memref.load %arg3[%c3_965, %c4_966] : memref<4x39xf32, #tpu.memory_space<smem>>
    %1772 = vector.broadcast %1771 : f32 to vector<16x16xf32>
    %1773 = arith.mulf %1762, %1772 : vector<16x16xf32>
    %1774 = arith.addf %1761, %1773 : vector<16x16xf32>
    %1775 = vector.extract_strided_slice %1540 {offsets = [2, 12], sizes = [16, 16], strides = [1, 1]} : vector<20x36xf32> to vector<16x16xf32>
    %c3_967 = arith.constant 3 : index
    %c30_968 = arith.constant 30 : index
    %1776 = memref.load %arg3[%c3_967, %c30_968] : memref<4x39xf32, #tpu.memory_space<smem>>
    %1777 = vector.broadcast %1776 : f32 to vector<16x16xf32>
    %1778 = arith.mulf %1775, %1777 : vector<16x16xf32>
    %1779 = arith.addf %1766, %1778 : vector<16x16xf32>
    %c3_969 = arith.constant 3 : index
    %c14_970 = arith.constant 14 : index
    %1780 = memref.load %arg3[%c3_969, %c14_970] : memref<4x39xf32, #tpu.memory_space<smem>>
    %1781 = vector.broadcast %1780 : f32 to vector<16x16xf32>
    %1782 = arith.mulf %1775, %1781 : vector<16x16xf32>
    %1783 = arith.addf %1770, %1782 : vector<16x16xf32>
    %c3_971 = arith.constant 3 : index
    %c5_972 = arith.constant 5 : index
    %1784 = memref.load %arg3[%c3_971, %c5_972] : memref<4x39xf32, #tpu.memory_space<smem>>
    %1785 = vector.broadcast %1784 : f32 to vector<16x16xf32>
    %1786 = arith.mulf %1775, %1785 : vector<16x16xf32>
    %1787 = arith.addf %1774, %1786 : vector<16x16xf32>
    %1788 = vector.extract_strided_slice %1540 {offsets = [2, 13], sizes = [16, 16], strides = [1, 1]} : vector<20x36xf32> to vector<16x16xf32>
    %c3_973 = arith.constant 3 : index
    %c31_974 = arith.constant 31 : index
    %1789 = memref.load %arg3[%c3_973, %c31_974] : memref<4x39xf32, #tpu.memory_space<smem>>
    %1790 = vector.broadcast %1789 : f32 to vector<16x16xf32>
    %1791 = arith.mulf %1788, %1790 : vector<16x16xf32>
    %1792 = arith.addf %1779, %1791 : vector<16x16xf32>
    %c3_975 = arith.constant 3 : index
    %c15_976 = arith.constant 15 : index
    %1793 = memref.load %arg3[%c3_975, %c15_976] : memref<4x39xf32, #tpu.memory_space<smem>>
    %1794 = vector.broadcast %1793 : f32 to vector<16x16xf32>
    %1795 = arith.mulf %1788, %1794 : vector<16x16xf32>
    %1796 = arith.addf %1783, %1795 : vector<16x16xf32>
    %c3_977 = arith.constant 3 : index
    %c6_978 = arith.constant 6 : index
    %1797 = memref.load %arg3[%c3_977, %c6_978] : memref<4x39xf32, #tpu.memory_space<smem>>
    %1798 = vector.broadcast %1797 : f32 to vector<16x16xf32>
    %1799 = arith.mulf %1788, %1798 : vector<16x16xf32>
    %1800 = arith.addf %1787, %1799 : vector<16x16xf32>
    %1801 = vector.extract_strided_slice %1540 {offsets = [2, 14], sizes = [16, 16], strides = [1, 1]} : vector<20x36xf32> to vector<16x16xf32>
    %c3_979 = arith.constant 3 : index
    %c32_980 = arith.constant 32 : index
    %1802 = memref.load %arg3[%c3_979, %c32_980] : memref<4x39xf32, #tpu.memory_space<smem>>
    %1803 = vector.broadcast %1802 : f32 to vector<16x16xf32>
    %1804 = arith.mulf %1801, %1803 : vector<16x16xf32>
    %1805 = arith.addf %1792, %1804 : vector<16x16xf32>
    %c3_981 = arith.constant 3 : index
    %c16_982 = arith.constant 16 : index
    %1806 = memref.load %arg3[%c3_981, %c16_982] : memref<4x39xf32, #tpu.memory_space<smem>>
    %1807 = vector.broadcast %1806 : f32 to vector<16x16xf32>
    %1808 = arith.mulf %1801, %1807 : vector<16x16xf32>
    %1809 = arith.addf %1796, %1808 : vector<16x16xf32>
    %1810 = vector.extract_strided_slice %1540 {offsets = [2, 15], sizes = [16, 16], strides = [1, 1]} : vector<20x36xf32> to vector<16x16xf32>
    %c3_983 = arith.constant 3 : index
    %c33_984 = arith.constant 33 : index
    %1811 = memref.load %arg3[%c3_983, %c33_984] : memref<4x39xf32, #tpu.memory_space<smem>>
    %1812 = vector.broadcast %1811 : f32 to vector<16x16xf32>
    %1813 = arith.mulf %1810, %1812 : vector<16x16xf32>
    %1814 = arith.addf %1805, %1813 : vector<16x16xf32>
    %c3_985 = arith.constant 3 : index
    %c17_986 = arith.constant 17 : index
    %1815 = memref.load %arg3[%c3_985, %c17_986] : memref<4x39xf32, #tpu.memory_space<smem>>
    %1816 = vector.broadcast %1815 : f32 to vector<16x16xf32>
    %1817 = arith.mulf %1810, %1816 : vector<16x16xf32>
    %1818 = arith.addf %1809, %1817 : vector<16x16xf32>
    %1819 = vector.extract_strided_slice %1540 {offsets = [2, 16], sizes = [16, 16], strides = [1, 1]} : vector<20x36xf32> to vector<16x16xf32>
    %c3_987 = arith.constant 3 : index
    %c34_988 = arith.constant 34 : index
    %1820 = memref.load %arg3[%c3_987, %c34_988] : memref<4x39xf32, #tpu.memory_space<smem>>
    %1821 = vector.broadcast %1820 : f32 to vector<16x16xf32>
    %1822 = arith.mulf %1819, %1821 : vector<16x16xf32>
    %1823 = arith.addf %1814, %1822 : vector<16x16xf32>
    %1824 = vector.extract_strided_slice %1540 {offsets = [2, 17], sizes = [16, 16], strides = [1, 1]} : vector<20x36xf32> to vector<16x16xf32>
    %c3_989 = arith.constant 3 : index
    %c35_990 = arith.constant 35 : index
    %1825 = memref.load %arg3[%c3_989, %c35_990] : memref<4x39xf32, #tpu.memory_space<smem>>
    %1826 = vector.broadcast %1825 : f32 to vector<16x16xf32>
    %1827 = arith.mulf %1824, %1826 : vector<16x16xf32>
    %1828 = arith.addf %1823, %1827 : vector<16x16xf32>
    %1829 = vector.extract_strided_slice %1540 {offsets = [2, 18], sizes = [16, 16], strides = [1, 1]} : vector<20x36xf32> to vector<16x16xf32>
    %c3_991 = arith.constant 3 : index
    %c36_992 = arith.constant 36 : index
    %1830 = memref.load %arg3[%c3_991, %c36_992] : memref<4x39xf32, #tpu.memory_space<smem>>
    %1831 = vector.broadcast %1830 : f32 to vector<16x16xf32>
    %1832 = arith.mulf %1829, %1831 : vector<16x16xf32>
    %1833 = arith.addf %1828, %1832 : vector<16x16xf32>
    %1834 = vector.extract_strided_slice %1540 {offsets = [2, 19], sizes = [16, 16], strides = [1, 1]} : vector<20x36xf32> to vector<16x16xf32>
    %c3_993 = arith.constant 3 : index
    %c37_994 = arith.constant 37 : index
    %1835 = memref.load %arg3[%c3_993, %c37_994] : memref<4x39xf32, #tpu.memory_space<smem>>
    %1836 = vector.broadcast %1835 : f32 to vector<16x16xf32>
    %1837 = arith.mulf %1834, %1836 : vector<16x16xf32>
    %1838 = arith.addf %1833, %1837 : vector<16x16xf32>
    %1839 = vector.extract_strided_slice %1540 {offsets = [2, 20], sizes = [16, 16], strides = [1, 1]} : vector<20x36xf32> to vector<16x16xf32>
    %c3_995 = arith.constant 3 : index
    %c38_996 = arith.constant 38 : index
    %1840 = memref.load %arg3[%c3_995, %c38_996] : memref<4x39xf32, #tpu.memory_space<smem>>
    %1841 = vector.broadcast %1840 : f32 to vector<16x16xf32>
    %1842 = arith.mulf %1839, %1841 : vector<16x16xf32>
    %1843 = arith.addf %1838, %1842 : vector<16x16xf32>
    %c3_997 = arith.constant 3 : index
    %c0_998 = arith.constant 0 : index
    %1844 = memref.load %arg6[%c3_997, %c0_998] : memref<4x4xf32, #tpu.memory_space<smem>>
    %1845 = vector.broadcast %1844 : f32 to vector<16x16xf32>
    %1846 = arith.addf %1800, %1845 : vector<16x16xf32>
    %c3_999 = arith.constant 3 : index
    %c1_1000 = arith.constant 1 : index
    %1847 = memref.load %arg6[%c3_999, %c1_1000] : memref<4x4xf32, #tpu.memory_space<smem>>
    %1848 = vector.broadcast %1847 : f32 to vector<16x16xf32>
    %1849 = arith.addf %1818, %1848 : vector<16x16xf32>
    %c3_1001 = arith.constant 3 : index
    %c2_1002 = arith.constant 2 : index
    %1850 = memref.load %arg6[%c3_1001, %c2_1002] : memref<4x4xf32, #tpu.memory_space<smem>>
    %1851 = vector.broadcast %1850 : f32 to vector<16x16xf32>
    %1852 = arith.addf %1843, %1851 : vector<16x16xf32>
    %c10_1003 = arith.constant 10 : index
    %c0_1004 = arith.constant 0 : index
    %1853 = vector.load %arg8[%c10_1003, %c0_1004] : memref<36x16xf32, #tpu.memory_space<vmem>>, vector<16x16xf32>
    tpu.vector_store %arg8[%c10_1003, %c0_1004], %1846 {strides = array<i32>} : memref<36x16xf32, #tpu.memory_space<vmem>>, vector<16x16xf32>,
    %c7_1005 = arith.constant 7 : index
    %c0_1006 = arith.constant 0 : index
    %1854 = vector.load %arg8[%c7_1005, %c0_1006] : memref<36x16xf32, #tpu.memory_space<vmem>>, vector<16x16xf32>
    %c3_1007 = arith.constant 3 : index
    %c0_1008 = arith.constant 0 : index
    %1855 = memref.load %arg4[%c3_1007, %c0_1008] : memref<4x39xf32, #tpu.memory_space<smem>>
    %1856 = vector.broadcast %1855 : f32 to vector<16x16xf32>
    %1857 = arith.mulf %1854, %1856 : vector<16x16xf32>
    %1858 = arith.addf %1669, %1857 : vector<16x16xf32>
    %c8_1009 = arith.constant 8 : index
    %c0_1010 = arith.constant 0 : index
    %1859 = vector.load %arg8[%c8_1009, %c0_1010] : memref<36x16xf32, #tpu.memory_space<vmem>>, vector<16x16xf32>
    %c3_1011 = arith.constant 3 : index
    %c1_1012 = arith.constant 1 : index
    %1860 = memref.load %arg4[%c3_1011, %c1_1012] : memref<4x39xf32, #tpu.memory_space<smem>>
    %1861 = vector.broadcast %1860 : f32 to vector<16x16xf32>
    %1862 = arith.mulf %1859, %1861 : vector<16x16xf32>
    %1863 = arith.addf %1858, %1862 : vector<16x16xf32>
    %c9_1013 = arith.constant 9 : index
    %c0_1014 = arith.constant 0 : index
    %1864 = vector.load %arg8[%c9_1013, %c0_1014] : memref<36x16xf32, #tpu.memory_space<vmem>>, vector<16x16xf32>
    %c3_1015 = arith.constant 3 : index
    %c2_1016 = arith.constant 2 : index
    %1865 = memref.load %arg4[%c3_1015, %c2_1016] : memref<4x39xf32, #tpu.memory_space<smem>>
    %1866 = vector.broadcast %1865 : f32 to vector<16x16xf32>
    %1867 = arith.mulf %1864, %1866 : vector<16x16xf32>
    %1868 = arith.addf %1863, %1867 : vector<16x16xf32>
    %c10_1017 = arith.constant 10 : index
    %c0_1018 = arith.constant 0 : index
    %1869 = vector.load %arg8[%c10_1017, %c0_1018] : memref<36x16xf32, #tpu.memory_space<vmem>>, vector<16x16xf32>
    %c3_1019 = arith.constant 3 : index
    %c3_1020 = arith.constant 3 : index
    %1870 = memref.load %arg4[%c3_1019, %c3_1020] : memref<4x39xf32, #tpu.memory_space<smem>>
    %1871 = vector.broadcast %1870 : f32 to vector<16x16xf32>
    %1872 = arith.mulf %1869, %1871 : vector<16x16xf32>
    %1873 = arith.addf %1868, %1872 : vector<16x16xf32>
    %c11_1021 = arith.constant 11 : index
    %c0_1022 = arith.constant 0 : index
    %1874 = vector.load %arg8[%c11_1021, %c0_1022] : memref<36x16xf32, #tpu.memory_space<vmem>>, vector<16x16xf32>
    %c3_1023 = arith.constant 3 : index
    %c4_1024 = arith.constant 4 : index
    %1875 = memref.load %arg4[%c3_1023, %c4_1024] : memref<4x39xf32, #tpu.memory_space<smem>>
    %1876 = vector.broadcast %1875 : f32 to vector<16x16xf32>
    %1877 = arith.mulf %1874, %1876 : vector<16x16xf32>
    %1878 = arith.addf %1873, %1877 : vector<16x16xf32>
    %c12_1025 = arith.constant 12 : index
    %c0_1026 = arith.constant 0 : index
    %1879 = vector.load %arg8[%c12_1025, %c0_1026] : memref<36x16xf32, #tpu.memory_space<vmem>>, vector<16x16xf32>
    %c3_1027 = arith.constant 3 : index
    %c5_1028 = arith.constant 5 : index
    %1880 = memref.load %arg4[%c3_1027, %c5_1028] : memref<4x39xf32, #tpu.memory_space<smem>>
    %1881 = vector.broadcast %1880 : f32 to vector<16x16xf32>
    %1882 = arith.mulf %1879, %1881 : vector<16x16xf32>
    %1883 = arith.addf %1878, %1882 : vector<16x16xf32>
    %c13_1029 = arith.constant 13 : index
    %c0_1030 = arith.constant 0 : index
    %1884 = vector.load %arg8[%c13_1029, %c0_1030] : memref<36x16xf32, #tpu.memory_space<vmem>>, vector<16x16xf32>
    %c3_1031 = arith.constant 3 : index
    %c6_1032 = arith.constant 6 : index
    %1885 = memref.load %arg4[%c3_1031, %c6_1032] : memref<4x39xf32, #tpu.memory_space<smem>>
    %1886 = vector.broadcast %1885 : f32 to vector<16x16xf32>
    %1887 = arith.mulf %1884, %1886 : vector<16x16xf32>
    %1888 = arith.addf %1883, %1887 : vector<16x16xf32>
    %c10_1033 = arith.constant 10 : index
    %c0_1034 = arith.constant 0 : index
    %1889 = vector.load %arg8[%c10_1033, %c0_1034] : memref<36x16xf32, #tpu.memory_space<vmem>>, vector<16x16xf32>
    tpu.vector_store %arg8[%c10_1033, %c0_1034], %1849 {strides = array<i32>} : memref<36x16xf32, #tpu.memory_space<vmem>>, vector<16x16xf32>,
    %c5_1035 = arith.constant 5 : index
    %c0_1036 = arith.constant 0 : index
    %1890 = vector.load %arg8[%c5_1035, %c0_1036] : memref<36x16xf32, #tpu.memory_space<vmem>>, vector<16x16xf32>
    %c3_1037 = arith.constant 3 : index
    %c7_1038 = arith.constant 7 : index
    %1891 = memref.load %arg4[%c3_1037, %c7_1038] : memref<4x39xf32, #tpu.memory_space<smem>>
    %1892 = vector.broadcast %1891 : f32 to vector<16x16xf32>
    %1893 = arith.mulf %1890, %1892 : vector<16x16xf32>
    %1894 = arith.addf %1888, %1893 : vector<16x16xf32>
    %c6_1039 = arith.constant 6 : index
    %c0_1040 = arith.constant 0 : index
    %1895 = vector.load %arg8[%c6_1039, %c0_1040] : memref<36x16xf32, #tpu.memory_space<vmem>>, vector<16x16xf32>
    %c3_1041 = arith.constant 3 : index
    %c8_1042 = arith.constant 8 : index
    %1896 = memref.load %arg4[%c3_1041, %c8_1042] : memref<4x39xf32, #tpu.memory_space<smem>>
    %1897 = vector.broadcast %1896 : f32 to vector<16x16xf32>
    %1898 = arith.mulf %1895, %1897 : vector<16x16xf32>
    %1899 = arith.addf %1894, %1898 : vector<16x16xf32>
    %c7_1043 = arith.constant 7 : index
    %c0_1044 = arith.constant 0 : index
    %1900 = vector.load %arg8[%c7_1043, %c0_1044] : memref<36x16xf32, #tpu.memory_space<vmem>>, vector<16x16xf32>
    %c3_1045 = arith.constant 3 : index
    %c9_1046 = arith.constant 9 : index
    %1901 = memref.load %arg4[%c3_1045, %c9_1046] : memref<4x39xf32, #tpu.memory_space<smem>>
    %1902 = vector.broadcast %1901 : f32 to vector<16x16xf32>
    %1903 = arith.mulf %1900, %1902 : vector<16x16xf32>
    %1904 = arith.addf %1899, %1903 : vector<16x16xf32>
    %c8_1047 = arith.constant 8 : index
    %c0_1048 = arith.constant 0 : index
    %1905 = vector.load %arg8[%c8_1047, %c0_1048] : memref<36x16xf32, #tpu.memory_space<vmem>>, vector<16x16xf32>
    %c3_1049 = arith.constant 3 : index
    %c10_1050 = arith.constant 10 : index
    %1906 = memref.load %arg4[%c3_1049, %c10_1050] : memref<4x39xf32, #tpu.memory_space<smem>>
    %1907 = vector.broadcast %1906 : f32 to vector<16x16xf32>
    %1908 = arith.mulf %1905, %1907 : vector<16x16xf32>
    %1909 = arith.addf %1904, %1908 : vector<16x16xf32>
    %c9_1051 = arith.constant 9 : index
    %c0_1052 = arith.constant 0 : index
    %1910 = vector.load %arg8[%c9_1051, %c0_1052] : memref<36x16xf32, #tpu.memory_space<vmem>>, vector<16x16xf32>
    %c3_1053 = arith.constant 3 : index
    %c11_1054 = arith.constant 11 : index
    %1911 = memref.load %arg4[%c3_1053, %c11_1054] : memref<4x39xf32, #tpu.memory_space<smem>>
    %1912 = vector.broadcast %1911 : f32 to vector<16x16xf32>
    %1913 = arith.mulf %1910, %1912 : vector<16x16xf32>
    %1914 = arith.addf %1909, %1913 : vector<16x16xf32>
    %c10_1055 = arith.constant 10 : index
    %c0_1056 = arith.constant 0 : index
    %1915 = vector.load %arg8[%c10_1055, %c0_1056] : memref<36x16xf32, #tpu.memory_space<vmem>>, vector<16x16xf32>
    %c3_1057 = arith.constant 3 : index
    %c12_1058 = arith.constant 12 : index
    %1916 = memref.load %arg4[%c3_1057, %c12_1058] : memref<4x39xf32, #tpu.memory_space<smem>>
    %1917 = vector.broadcast %1916 : f32 to vector<16x16xf32>
    %1918 = arith.mulf %1915, %1917 : vector<16x16xf32>
    %1919 = arith.addf %1914, %1918 : vector<16x16xf32>
    %c11_1059 = arith.constant 11 : index
    %c0_1060 = arith.constant 0 : index
    %1920 = vector.load %arg8[%c11_1059, %c0_1060] : memref<36x16xf32, #tpu.memory_space<vmem>>, vector<16x16xf32>
    %c3_1061 = arith.constant 3 : index
    %c13_1062 = arith.constant 13 : index
    %1921 = memref.load %arg4[%c3_1061, %c13_1062] : memref<4x39xf32, #tpu.memory_space<smem>>
    %1922 = vector.broadcast %1921 : f32 to vector<16x16xf32>
    %1923 = arith.mulf %1920, %1922 : vector<16x16xf32>
    %1924 = arith.addf %1919, %1923 : vector<16x16xf32>
    %c12_1063 = arith.constant 12 : index
    %c0_1064 = arith.constant 0 : index
    %1925 = vector.load %arg8[%c12_1063, %c0_1064] : memref<36x16xf32, #tpu.memory_space<vmem>>, vector<16x16xf32>
    %c3_1065 = arith.constant 3 : index
    %c14_1066 = arith.constant 14 : index
    %1926 = memref.load %arg4[%c3_1065, %c14_1066] : memref<4x39xf32, #tpu.memory_space<smem>>
    %1927 = vector.broadcast %1926 : f32 to vector<16x16xf32>
    %1928 = arith.mulf %1925, %1927 : vector<16x16xf32>
    %1929 = arith.addf %1924, %1928 : vector<16x16xf32>
    %c13_1067 = arith.constant 13 : index
    %c0_1068 = arith.constant 0 : index
    %1930 = vector.load %arg8[%c13_1067, %c0_1068] : memref<36x16xf32, #tpu.memory_space<vmem>>, vector<16x16xf32>
    %c3_1069 = arith.constant 3 : index
    %c15_1070 = arith.constant 15 : index
    %1931 = memref.load %arg4[%c3_1069, %c15_1070] : memref<4x39xf32, #tpu.memory_space<smem>>
    %1932 = vector.broadcast %1931 : f32 to vector<16x16xf32>
    %1933 = arith.mulf %1930, %1932 : vector<16x16xf32>
    %1934 = arith.addf %1929, %1933 : vector<16x16xf32>
    %c14_1071 = arith.constant 14 : index
    %c0_1072 = arith.constant 0 : index
    %1935 = vector.load %arg8[%c14_1071, %c0_1072] : memref<36x16xf32, #tpu.memory_space<vmem>>, vector<16x16xf32>
    %c3_1073 = arith.constant 3 : index
    %c16_1074 = arith.constant 16 : index
    %1936 = memref.load %arg4[%c3_1073, %c16_1074] : memref<4x39xf32, #tpu.memory_space<smem>>
    %1937 = vector.broadcast %1936 : f32 to vector<16x16xf32>
    %1938 = arith.mulf %1935, %1937 : vector<16x16xf32>
    %1939 = arith.addf %1934, %1938 : vector<16x16xf32>
    %c15_1075 = arith.constant 15 : index
    %c0_1076 = arith.constant 0 : index
    %1940 = vector.load %arg8[%c15_1075, %c0_1076] : memref<36x16xf32, #tpu.memory_space<vmem>>, vector<16x16xf32>
    %c3_1077 = arith.constant 3 : index
    %c17_1078 = arith.constant 17 : index
    %1941 = memref.load %arg4[%c3_1077, %c17_1078] : memref<4x39xf32, #tpu.memory_space<smem>>
    %1942 = vector.broadcast %1941 : f32 to vector<16x16xf32>
    %1943 = arith.mulf %1940, %1942 : vector<16x16xf32>
    %1944 = arith.addf %1939, %1943 : vector<16x16xf32>
    %c10_1079 = arith.constant 10 : index
    %c0_1080 = arith.constant 0 : index
    %1945 = vector.load %arg8[%c10_1079, %c0_1080] : memref<36x16xf32, #tpu.memory_space<vmem>>, vector<16x16xf32>
    tpu.vector_store %arg8[%c10_1079, %c0_1080], %1852 {strides = array<i32>} : memref<36x16xf32, #tpu.memory_space<vmem>>, vector<16x16xf32>,
    %c0_1081 = arith.constant 0 : index
    %c0_1082 = arith.constant 0 : index
    %1946 = vector.load %arg8[%c0_1081, %c0_1082] : memref<36x16xf32, #tpu.memory_space<vmem>>, vector<16x16xf32>
    %c3_1083 = arith.constant 3 : index
    %c18_1084 = arith.constant 18 : index
    %1947 = memref.load %arg4[%c3_1083, %c18_1084] : memref<4x39xf32, #tpu.memory_space<smem>>
    %1948 = vector.broadcast %1947 : f32 to vector<16x16xf32>
    %1949 = arith.mulf %1946, %1948 : vector<16x16xf32>
    %1950 = arith.addf %1944, %1949 : vector<16x16xf32>
    %c1_1085 = arith.constant 1 : index
    %c0_1086 = arith.constant 0 : index
    %1951 = vector.load %arg8[%c1_1085, %c0_1086] : memref<36x16xf32, #tpu.memory_space<vmem>>, vector<16x16xf32>
    %c3_1087 = arith.constant 3 : index
    %c19_1088 = arith.constant 19 : index
    %1952 = memref.load %arg4[%c3_1087, %c19_1088] : memref<4x39xf32, #tpu.memory_space<smem>>
    %1953 = vector.broadcast %1952 : f32 to vector<16x16xf32>
    %1954 = arith.mulf %1951, %1953 : vector<16x16xf32>
    %1955 = arith.addf %1950, %1954 : vector<16x16xf32>
    %c2_1089 = arith.constant 2 : index
    %c0_1090 = arith.constant 0 : index
    %1956 = vector.load %arg8[%c2_1089, %c0_1090] : memref<36x16xf32, #tpu.memory_space<vmem>>, vector<16x16xf32>
    %c3_1091 = arith.constant 3 : index
    %c20_1092 = arith.constant 20 : index
    %1957 = memref.load %arg4[%c3_1091, %c20_1092] : memref<4x39xf32, #tpu.memory_space<smem>>
    %1958 = vector.broadcast %1957 : f32 to vector<16x16xf32>
    %1959 = arith.mulf %1956, %1958 : vector<16x16xf32>
    %1960 = arith.addf %1955, %1959 : vector<16x16xf32>
    %c3_1093 = arith.constant 3 : index
    %c0_1094 = arith.constant 0 : index
    %1961 = vector.load %arg8[%c3_1093, %c0_1094] : memref<36x16xf32, #tpu.memory_space<vmem>>, vector<16x16xf32>
    %c3_1095 = arith.constant 3 : index
    %c21_1096 = arith.constant 21 : index
    %1962 = memref.load %arg4[%c3_1095, %c21_1096] : memref<4x39xf32, #tpu.memory_space<smem>>
    %1963 = vector.broadcast %1962 : f32 to vector<16x16xf32>
    %1964 = arith.mulf %1961, %1963 : vector<16x16xf32>
    %1965 = arith.addf %1960, %1964 : vector<16x16xf32>
    %c4_1097 = arith.constant 4 : index
    %c0_1098 = arith.constant 0 : index
    %1966 = vector.load %arg8[%c4_1097, %c0_1098] : memref<36x16xf32, #tpu.memory_space<vmem>>, vector<16x16xf32>
    %c3_1099 = arith.constant 3 : index
    %c22_1100 = arith.constant 22 : index
    %1967 = memref.load %arg4[%c3_1099, %c22_1100] : memref<4x39xf32, #tpu.memory_space<smem>>
    %1968 = vector.broadcast %1967 : f32 to vector<16x16xf32>
    %1969 = arith.mulf %1966, %1968 : vector<16x16xf32>
    %1970 = arith.addf %1965, %1969 : vector<16x16xf32>
    %c5_1101 = arith.constant 5 : index
    %c0_1102 = arith.constant 0 : index
    %1971 = vector.load %arg8[%c5_1101, %c0_1102] : memref<36x16xf32, #tpu.memory_space<vmem>>, vector<16x16xf32>
    %c3_1103 = arith.constant 3 : index
    %c23_1104 = arith.constant 23 : index
    %1972 = memref.load %arg4[%c3_1103, %c23_1104] : memref<4x39xf32, #tpu.memory_space<smem>>
    %1973 = vector.broadcast %1972 : f32 to vector<16x16xf32>
    %1974 = arith.mulf %1971, %1973 : vector<16x16xf32>
    %1975 = arith.addf %1970, %1974 : vector<16x16xf32>
    %c6_1105 = arith.constant 6 : index
    %c0_1106 = arith.constant 0 : index
    %1976 = vector.load %arg8[%c6_1105, %c0_1106] : memref<36x16xf32, #tpu.memory_space<vmem>>, vector<16x16xf32>
    %c3_1107 = arith.constant 3 : index
    %c24_1108 = arith.constant 24 : index
    %1977 = memref.load %arg4[%c3_1107, %c24_1108] : memref<4x39xf32, #tpu.memory_space<smem>>
    %1978 = vector.broadcast %1977 : f32 to vector<16x16xf32>
    %1979 = arith.mulf %1976, %1978 : vector<16x16xf32>
    %1980 = arith.addf %1975, %1979 : vector<16x16xf32>
    %c7_1109 = arith.constant 7 : index
    %c0_1110 = arith.constant 0 : index
    %1981 = vector.load %arg8[%c7_1109, %c0_1110] : memref<36x16xf32, #tpu.memory_space<vmem>>, vector<16x16xf32>
    %c3_1111 = arith.constant 3 : index
    %c25_1112 = arith.constant 25 : index
    %1982 = memref.load %arg4[%c3_1111, %c25_1112] : memref<4x39xf32, #tpu.memory_space<smem>>
    %1983 = vector.broadcast %1982 : f32 to vector<16x16xf32>
    %1984 = arith.mulf %1981, %1983 : vector<16x16xf32>
    %1985 = arith.addf %1980, %1984 : vector<16x16xf32>
    %c8_1113 = arith.constant 8 : index
    %c0_1114 = arith.constant 0 : index
    %1986 = vector.load %arg8[%c8_1113, %c0_1114] : memref<36x16xf32, #tpu.memory_space<vmem>>, vector<16x16xf32>
    %c3_1115 = arith.constant 3 : index
    %c26_1116 = arith.constant 26 : index
    %1987 = memref.load %arg4[%c3_1115, %c26_1116] : memref<4x39xf32, #tpu.memory_space<smem>>
    %1988 = vector.broadcast %1987 : f32 to vector<16x16xf32>
    %1989 = arith.mulf %1986, %1988 : vector<16x16xf32>
    %1990 = arith.addf %1985, %1989 : vector<16x16xf32>
    %c9_1117 = arith.constant 9 : index
    %c0_1118 = arith.constant 0 : index
    %1991 = vector.load %arg8[%c9_1117, %c0_1118] : memref<36x16xf32, #tpu.memory_space<vmem>>, vector<16x16xf32>
    %c3_1119 = arith.constant 3 : index
    %c27_1120 = arith.constant 27 : index
    %1992 = memref.load %arg4[%c3_1119, %c27_1120] : memref<4x39xf32, #tpu.memory_space<smem>>
    %1993 = vector.broadcast %1992 : f32 to vector<16x16xf32>
    %1994 = arith.mulf %1991, %1993 : vector<16x16xf32>
    %1995 = arith.addf %1990, %1994 : vector<16x16xf32>
    %c10_1121 = arith.constant 10 : index
    %c0_1122 = arith.constant 0 : index
    %1996 = vector.load %arg8[%c10_1121, %c0_1122] : memref<36x16xf32, #tpu.memory_space<vmem>>, vector<16x16xf32>
    %c3_1123 = arith.constant 3 : index
    %c28_1124 = arith.constant 28 : index
    %1997 = memref.load %arg4[%c3_1123, %c28_1124] : memref<4x39xf32, #tpu.memory_space<smem>>
    %1998 = vector.broadcast %1997 : f32 to vector<16x16xf32>
    %1999 = arith.mulf %1996, %1998 : vector<16x16xf32>
    %2000 = arith.addf %1995, %1999 : vector<16x16xf32>
    %c11_1125 = arith.constant 11 : index
    %c0_1126 = arith.constant 0 : index
    %2001 = vector.load %arg8[%c11_1125, %c0_1126] : memref<36x16xf32, #tpu.memory_space<vmem>>, vector<16x16xf32>
    %c3_1127 = arith.constant 3 : index
    %c29_1128 = arith.constant 29 : index
    %2002 = memref.load %arg4[%c3_1127, %c29_1128] : memref<4x39xf32, #tpu.memory_space<smem>>
    %2003 = vector.broadcast %2002 : f32 to vector<16x16xf32>
    %2004 = arith.mulf %2001, %2003 : vector<16x16xf32>
    %2005 = arith.addf %2000, %2004 : vector<16x16xf32>
    %c12_1129 = arith.constant 12 : index
    %c0_1130 = arith.constant 0 : index
    %2006 = vector.load %arg8[%c12_1129, %c0_1130] : memref<36x16xf32, #tpu.memory_space<vmem>>, vector<16x16xf32>
    %c3_1131 = arith.constant 3 : index
    %c30_1132 = arith.constant 30 : index
    %2007 = memref.load %arg4[%c3_1131, %c30_1132] : memref<4x39xf32, #tpu.memory_space<smem>>
    %2008 = vector.broadcast %2007 : f32 to vector<16x16xf32>
    %2009 = arith.mulf %2006, %2008 : vector<16x16xf32>
    %2010 = arith.addf %2005, %2009 : vector<16x16xf32>
    %c13_1133 = arith.constant 13 : index
    %c0_1134 = arith.constant 0 : index
    %2011 = vector.load %arg8[%c13_1133, %c0_1134] : memref<36x16xf32, #tpu.memory_space<vmem>>, vector<16x16xf32>
    %c3_1135 = arith.constant 3 : index
    %c31_1136 = arith.constant 31 : index
    %2012 = memref.load %arg4[%c3_1135, %c31_1136] : memref<4x39xf32, #tpu.memory_space<smem>>
    %2013 = vector.broadcast %2012 : f32 to vector<16x16xf32>
    %2014 = arith.mulf %2011, %2013 : vector<16x16xf32>
    %2015 = arith.addf %2010, %2014 : vector<16x16xf32>
    %c14_1137 = arith.constant 14 : index
    %c0_1138 = arith.constant 0 : index
    %2016 = vector.load %arg8[%c14_1137, %c0_1138] : memref<36x16xf32, #tpu.memory_space<vmem>>, vector<16x16xf32>
    %c3_1139 = arith.constant 3 : index
    %c32_1140 = arith.constant 32 : index
    %2017 = memref.load %arg4[%c3_1139, %c32_1140] : memref<4x39xf32, #tpu.memory_space<smem>>
    %2018 = vector.broadcast %2017 : f32 to vector<16x16xf32>
    %2019 = arith.mulf %2016, %2018 : vector<16x16xf32>
    %2020 = arith.addf %2015, %2019 : vector<16x16xf32>
    %c15_1141 = arith.constant 15 : index
    %c0_1142 = arith.constant 0 : index
    %2021 = vector.load %arg8[%c15_1141, %c0_1142] : memref<36x16xf32, #tpu.memory_space<vmem>>, vector<16x16xf32>
    %c3_1143 = arith.constant 3 : index
    %c33_1144 = arith.constant 33 : index
    %2022 = memref.load %arg4[%c3_1143, %c33_1144] : memref<4x39xf32, #tpu.memory_space<smem>>
    %2023 = vector.broadcast %2022 : f32 to vector<16x16xf32>
    %2024 = arith.mulf %2021, %2023 : vector<16x16xf32>
    %2025 = arith.addf %2020, %2024 : vector<16x16xf32>
    %c16_1145 = arith.constant 16 : index
    %c0_1146 = arith.constant 0 : index
    %2026 = vector.load %arg8[%c16_1145, %c0_1146] : memref<36x16xf32, #tpu.memory_space<vmem>>, vector<16x16xf32>
    %c3_1147 = arith.constant 3 : index
    %c34_1148 = arith.constant 34 : index
    %2027 = memref.load %arg4[%c3_1147, %c34_1148] : memref<4x39xf32, #tpu.memory_space<smem>>
    %2028 = vector.broadcast %2027 : f32 to vector<16x16xf32>
    %2029 = arith.mulf %2026, %2028 : vector<16x16xf32>
    %2030 = arith.addf %2025, %2029 : vector<16x16xf32>
    %c17_1149 = arith.constant 17 : index
    %c0_1150 = arith.constant 0 : index
    %2031 = vector.load %arg8[%c17_1149, %c0_1150] : memref<36x16xf32, #tpu.memory_space<vmem>>, vector<16x16xf32>
    %c3_1151 = arith.constant 3 : index
    %c35_1152 = arith.constant 35 : index
    %2032 = memref.load %arg4[%c3_1151, %c35_1152] : memref<4x39xf32, #tpu.memory_space<smem>>
    %2033 = vector.broadcast %2032 : f32 to vector<16x16xf32>
    %2034 = arith.mulf %2031, %2033 : vector<16x16xf32>
    %2035 = arith.addf %2030, %2034 : vector<16x16xf32>
    %c18_1153 = arith.constant 18 : index
    %c0_1154 = arith.constant 0 : index
    %2036 = vector.load %arg8[%c18_1153, %c0_1154] : memref<36x16xf32, #tpu.memory_space<vmem>>, vector<16x16xf32>
    %c3_1155 = arith.constant 3 : index
    %c36_1156 = arith.constant 36 : index
    %2037 = memref.load %arg4[%c3_1155, %c36_1156] : memref<4x39xf32, #tpu.memory_space<smem>>
    %2038 = vector.broadcast %2037 : f32 to vector<16x16xf32>
    %2039 = arith.mulf %2036, %2038 : vector<16x16xf32>
    %2040 = arith.addf %2035, %2039 : vector<16x16xf32>
    %c19_1157 = arith.constant 19 : index
    %c0_1158 = arith.constant 0 : index
    %2041 = vector.load %arg8[%c19_1157, %c0_1158] : memref<36x16xf32, #tpu.memory_space<vmem>>, vector<16x16xf32>
    %c3_1159 = arith.constant 3 : index
    %c37_1160 = arith.constant 37 : index
    %2042 = memref.load %arg4[%c3_1159, %c37_1160] : memref<4x39xf32, #tpu.memory_space<smem>>
    %2043 = vector.broadcast %2042 : f32 to vector<16x16xf32>
    %2044 = arith.mulf %2041, %2043 : vector<16x16xf32>
    %2045 = arith.addf %2040, %2044 : vector<16x16xf32>
    %c20_1161 = arith.constant 20 : index
    %c0_1162 = arith.constant 0 : index
    %2046 = vector.load %arg8[%c20_1161, %c0_1162] : memref<36x16xf32, #tpu.memory_space<vmem>>, vector<16x16xf32>
    %c3_1163 = arith.constant 3 : index
    %c38_1164 = arith.constant 38 : index
    %2047 = memref.load %arg4[%c3_1163, %c38_1164] : memref<4x39xf32, #tpu.memory_space<smem>>
    %2048 = vector.broadcast %2047 : f32 to vector<16x16xf32>
    %2049 = arith.mulf %2046, %2048 : vector<16x16xf32>
    %2050 = arith.addf %2045, %2049 : vector<16x16xf32>
    %c0_1165 = arith.constant 0 : index
    %c0_1166 = arith.constant 0 : index
    %2051 = memref.load %arg5[%c0_1165, %c0_1166] : memref<4x4xf32, #tpu.memory_space<smem>>
    %2052 = vector.broadcast %2051 : f32 to vector<16x16xf32>
    %2053 = arith.mulf %514, %2052 : vector<16x16xf32>
    %c0_1167 = arith.constant 0 : index
    %c1_1168 = arith.constant 1 : index
    %2054 = memref.load %arg5[%c0_1167, %c1_1168] : memref<4x4xf32, #tpu.memory_space<smem>>
    %2055 = vector.broadcast %2054 : f32 to vector<16x16xf32>
    %2056 = arith.mulf %1026, %2055 : vector<16x16xf32>
    %2057 = arith.addf %2053, %2056 : vector<16x16xf32>
    %c0_1169 = arith.constant 0 : index
    %c2_1170 = arith.constant 2 : index
    %2058 = memref.load %arg5[%c0_1169, %c2_1170] : memref<4x4xf32, #tpu.memory_space<smem>>
    %2059 = vector.broadcast %2058 : f32 to vector<16x16xf32>
    %2060 = arith.mulf %1538, %2059 : vector<16x16xf32>
    %2061 = arith.addf %2057, %2060 : vector<16x16xf32>
    %c0_1171 = arith.constant 0 : index
    %c3_1172 = arith.constant 3 : index
    %2062 = memref.load %arg5[%c0_1171, %c3_1172] : memref<4x4xf32, #tpu.memory_space<smem>>
    %2063 = vector.broadcast %2062 : f32 to vector<16x16xf32>
    %2064 = arith.mulf %2050, %2063 : vector<16x16xf32>
    %2065 = arith.addf %2061, %2064 : vector<16x16xf32>
    %c0_1173 = arith.constant 0 : index
    %c3_1174 = arith.constant 3 : index
    %2066 = memref.load %arg6[%c0_1173, %c3_1174] : memref<4x4xf32, #tpu.memory_space<smem>>
    %2067 = vector.broadcast %2066 : f32 to vector<16x16xf32>
    %2068 = arith.addf %2065, %2067 : vector<16x16xf32>
    %c0_1175 = arith.constant 0 : index
    %c0_1176 = arith.constant 0 : index
    %c2_1177 = arith.constant 2 : index
    %c10_1178 = arith.constant 10 : index
    %2069 = vector.load %arg1[%c0_1175, %c0_1176, %c2_1177, %c10_1178] : memref<1x4x20x36xf32, #tpu.memory_space<vmem>>, vector<1x1x16x16xf32>
    %2070 = vector.shape_cast %2069 : vector<1x1x16x16xf32> to vector<16x16xf32>
    %2071 = arith.mulf %2068, %2070 : vector<16x16xf32>
    %c0_1179 = arith.constant 0 : index
    %c0_1180 = arith.constant 0 : index
    %c0_1181 = arith.constant 0 : index
    %c0_1182 = arith.constant 0 : index
    %2072 = vector.load %arg7[%c0_1179, %c0_1180, %c0_1181, %c0_1182] : memref<1x4x16x16xf32, #tpu.memory_space<vmem>>, vector<1x1x16x16xf32>
    %2073 = vector.shape_cast %2072 : vector<1x1x16x16xf32> to vector<16x16xf32>
    %2074 = vector.shape_cast %2071 : vector<16x16xf32> to vector<1x1x16x16xf32>
    tpu.vector_store %arg7[%c0_1179, %c0_1180, %c0_1181, %c0_1182], %2074 {strides = array<i32>} : memref<1x4x16x16xf32, #tpu.memory_space<vmem>>, vector<1x1x16x16xf32>,
    %c1_1183 = arith.constant 1 : index
    %c0_1184 = arith.constant 0 : index
    %2075 = memref.load %arg5[%c1_1183, %c0_1184] : memref<4x4xf32, #tpu.memory_space<smem>>
    %2076 = vector.broadcast %2075 : f32 to vector<16x16xf32>
    %2077 = arith.mulf %514, %2076 : vector<16x16xf32>
    %c1_1185 = arith.constant 1 : index
    %c1_1186 = arith.constant 1 : index
    %2078 = memref.load %arg5[%c1_1185, %c1_1186] : memref<4x4xf32, #tpu.memory_space<smem>>
    %2079 = vector.broadcast %2078 : f32 to vector<16x16xf32>
    %2080 = arith.mulf %1026, %2079 : vector<16x16xf32>
    %2081 = arith.addf %2077, %2080 : vector<16x16xf32>
    %c1_1187 = arith.constant 1 : index
    %c2_1188 = arith.constant 2 : index
    %2082 = memref.load %arg5[%c1_1187, %c2_1188] : memref<4x4xf32, #tpu.memory_space<smem>>
    %2083 = vector.broadcast %2082 : f32 to vector<16x16xf32>
    %2084 = arith.mulf %1538, %2083 : vector<16x16xf32>
    %2085 = arith.addf %2081, %2084 : vector<16x16xf32>
    %c1_1189 = arith.constant 1 : index
    %c3_1190 = arith.constant 3 : index
    %2086 = memref.load %arg5[%c1_1189, %c3_1190] : memref<4x4xf32, #tpu.memory_space<smem>>
    %2087 = vector.broadcast %2086 : f32 to vector<16x16xf32>
    %2088 = arith.mulf %2050, %2087 : vector<16x16xf32>
    %2089 = arith.addf %2085, %2088 : vector<16x16xf32>
    %c1_1191 = arith.constant 1 : index
    %c3_1192 = arith.constant 3 : index
    %2090 = memref.load %arg6[%c1_1191, %c3_1192] : memref<4x4xf32, #tpu.memory_space<smem>>
    %2091 = vector.broadcast %2090 : f32 to vector<16x16xf32>
    %2092 = arith.addf %2089, %2091 : vector<16x16xf32>
    %c0_1193 = arith.constant 0 : index
    %c1_1194 = arith.constant 1 : index
    %c2_1195 = arith.constant 2 : index
    %c10_1196 = arith.constant 10 : index
    %2093 = vector.load %arg1[%c0_1193, %c1_1194, %c2_1195, %c10_1196] : memref<1x4x20x36xf32, #tpu.memory_space<vmem>>, vector<1x1x16x16xf32>
    %2094 = vector.shape_cast %2093 : vector<1x1x16x16xf32> to vector<16x16xf32>
    %2095 = arith.mulf %2092, %2094 : vector<16x16xf32>
    %c0_1197 = arith.constant 0 : index
    %c1_1198 = arith.constant 1 : index
    %c0_1199 = arith.constant 0 : index
    %c0_1200 = arith.constant 0 : index
    %2096 = vector.load %arg7[%c0_1197, %c1_1198, %c0_1199, %c0_1200] : memref<1x4x16x16xf32, #tpu.memory_space<vmem>>, vector<1x1x16x16xf32>
    %2097 = vector.shape_cast %2096 : vector<1x1x16x16xf32> to vector<16x16xf32>
    %2098 = vector.shape_cast %2095 : vector<16x16xf32> to vector<1x1x16x16xf32>
    tpu.vector_store %arg7[%c0_1197, %c1_1198, %c0_1199, %c0_1200], %2098 {strides = array<i32>} : memref<1x4x16x16xf32, #tpu.memory_space<vmem>>, vector<1x1x16x16xf32>,
    %c2_1201 = arith.constant 2 : index
    %c0_1202 = arith.constant 0 : index
    %2099 = memref.load %arg5[%c2_1201, %c0_1202] : memref<4x4xf32, #tpu.memory_space<smem>>
    %2100 = vector.broadcast %2099 : f32 to vector<16x16xf32>
    %2101 = arith.mulf %514, %2100 : vector<16x16xf32>
    %c2_1203 = arith.constant 2 : index
    %c1_1204 = arith.constant 1 : index
    %2102 = memref.load %arg5[%c2_1203, %c1_1204] : memref<4x4xf32, #tpu.memory_space<smem>>
    %2103 = vector.broadcast %2102 : f32 to vector<16x16xf32>
    %2104 = arith.mulf %1026, %2103 : vector<16x16xf32>
    %2105 = arith.addf %2101, %2104 : vector<16x16xf32>
    %c2_1205 = arith.constant 2 : index
    %c2_1206 = arith.constant 2 : index
    %2106 = memref.load %arg5[%c2_1205, %c2_1206] : memref<4x4xf32, #tpu.memory_space<smem>>
    %2107 = vector.broadcast %2106 : f32 to vector<16x16xf32>
    %2108 = arith.mulf %1538, %2107 : vector<16x16xf32>
    %2109 = arith.addf %2105, %2108 : vector<16x16xf32>
    %c2_1207 = arith.constant 2 : index
    %c3_1208 = arith.constant 3 : index
    %2110 = memref.load %arg5[%c2_1207, %c3_1208] : memref<4x4xf32, #tpu.memory_space<smem>>
    %2111 = vector.broadcast %2110 : f32 to vector<16x16xf32>
    %2112 = arith.mulf %2050, %2111 : vector<16x16xf32>
    %2113 = arith.addf %2109, %2112 : vector<16x16xf32>
    %c2_1209 = arith.constant 2 : index
    %c3_1210 = arith.constant 3 : index
    %2114 = memref.load %arg6[%c2_1209, %c3_1210] : memref<4x4xf32, #tpu.memory_space<smem>>
    %2115 = vector.broadcast %2114 : f32 to vector<16x16xf32>
    %2116 = arith.addf %2113, %2115 : vector<16x16xf32>
    %c0_1211 = arith.constant 0 : index
    %c2_1212 = arith.constant 2 : index
    %c2_1213 = arith.constant 2 : index
    %c10_1214 = arith.constant 10 : index
    %2117 = vector.load %arg1[%c0_1211, %c2_1212, %c2_1213, %c10_1214] : memref<1x4x20x36xf32, #tpu.memory_space<vmem>>, vector<1x1x16x16xf32>
    %2118 = vector.shape_cast %2117 : vector<1x1x16x16xf32> to vector<16x16xf32>
    %2119 = arith.mulf %2116, %2118 : vector<16x16xf32>
    %c0_1215 = arith.constant 0 : index
    %c2_1216 = arith.constant 2 : index
    %c0_1217 = arith.constant 0 : index
    %c0_1218 = arith.constant 0 : index
    %2120 = vector.load %arg7[%c0_1215, %c2_1216, %c0_1217, %c0_1218] : memref<1x4x16x16xf32, #tpu.memory_space<vmem>>, vector<1x1x16x16xf32>
    %2121 = vector.shape_cast %2120 : vector<1x1x16x16xf32> to vector<16x16xf32>
    %2122 = vector.shape_cast %2119 : vector<16x16xf32> to vector<1x1x16x16xf32>
    tpu.vector_store %arg7[%c0_1215, %c2_1216, %c0_1217, %c0_1218], %2122 {strides = array<i32>} : memref<1x4x16x16xf32, #tpu.memory_space<vmem>>, vector<1x1x16x16xf32>,
    %c3_1219 = arith.constant 3 : index
    %c0_1220 = arith.constant 0 : index
    %2123 = memref.load %arg5[%c3_1219, %c0_1220] : memref<4x4xf32, #tpu.memory_space<smem>>
    %2124 = vector.broadcast %2123 : f32 to vector<16x16xf32>
    %2125 = arith.mulf %514, %2124 : vector<16x16xf32>
    %c3_1221 = arith.constant 3 : index
    %c1_1222 = arith.constant 1 : index
    %2126 = memref.load %arg5[%c3_1221, %c1_1222] : memref<4x4xf32, #tpu.memory_space<smem>>
    %2127 = vector.broadcast %2126 : f32 to vector<16x16xf32>
    %2128 = arith.mulf %1026, %2127 : vector<16x16xf32>
    %2129 = arith.addf %2125, %2128 : vector<16x16xf32>
    %c3_1223 = arith.constant 3 : index
    %c2_1224 = arith.constant 2 : index
    %2130 = memref.load %arg5[%c3_1223, %c2_1224] : memref<4x4xf32, #tpu.memory_space<smem>>
    %2131 = vector.broadcast %2130 : f32 to vector<16x16xf32>
    %2132 = arith.mulf %1538, %2131 : vector<16x16xf32>
    %2133 = arith.addf %2129, %2132 : vector<16x16xf32>
    %c3_1225 = arith.constant 3 : index
    %c3_1226 = arith.constant 3 : index
    %2134 = memref.load %arg5[%c3_1225, %c3_1226] : memref<4x4xf32, #tpu.memory_space<smem>>
    %2135 = vector.broadcast %2134 : f32 to vector<16x16xf32>
    %2136 = arith.mulf %2050, %2135 : vector<16x16xf32>
    %2137 = arith.addf %2133, %2136 : vector<16x16xf32>
    %c3_1227 = arith.constant 3 : index
    %c3_1228 = arith.constant 3 : index
    %2138 = memref.load %arg6[%c3_1227, %c3_1228] : memref<4x4xf32, #tpu.memory_space<smem>>
    %2139 = vector.broadcast %2138 : f32 to vector<16x16xf32>
    %2140 = arith.addf %2137, %2139 : vector<16x16xf32>
    %c0_1229 = arith.constant 0 : index
    %c3_1230 = arith.constant 3 : index
    %c2_1231 = arith.constant 2 : index
    %c10_1232 = arith.constant 10 : index
    %2141 = vector.load %arg1[%c0_1229, %c3_1230, %c2_1231, %c10_1232] : memref<1x4x20x36xf32, #tpu.memory_space<vmem>>, vector<1x1x16x16xf32>
    %2142 = vector.shape_cast %2141 : vector<1x1x16x16xf32> to vector<16x16xf32>
    %2143 = arith.mulf %2140, %2142 : vector<16x16xf32>
    %c0_1233 = arith.constant 0 : index
    %c3_1234 = arith.constant 3 : index
    %c0_1235 = arith.constant 0 : index
    %c0_1236 = arith.constant 0 : index
    %2144 = vector.load %arg7[%c0_1233, %c3_1234, %c0_1235, %c0_1236] : memref<1x4x16x16xf32, #tpu.memory_space<vmem>>, vector<1x1x16x16xf32>
    %2145 = vector.shape_cast %2144 : vector<1x1x16x16xf32> to vector<16x16xf32>
    %2146 = vector.shape_cast %2143 : vector<16x16xf32> to vector<1x1x16x16xf32>
    tpu.vector_store %arg7[%c0_1233, %c3_1234, %c0_1235, %c0_1236], %2146 {strides = array<i32>} : memref<1x4x16x16xf32, #tpu.memory_space<vmem>>, vector<1x1x16x16xf32>,
    return
  }
  func.func @transform_0(%arg0: i32) -> (i32, i32, i32, i32) {
    %c0_i32 = arith.constant 0 : i32
    %c0_i32_0 = arith.constant 0 : i32
    %c0_i32_1 = arith.constant 0 : i32
    %c0_i32_2 = arith.constant 0 : i32
    return %arg0, %c0_i32, %c0_i32_0, %c0_i32_1 : i32, i32, i32, i32
  }
  func.func @transform_1(%arg0: i32) -> (i32, i32) {
    %c0_i32 = arith.constant 0 : i32
    %c0_i32_0 = arith.constant 0 : i32
    %c0_i32_1 = arith.constant 0 : i32
    return %c0_i32, %c0_i32_0 : i32, i32
  }
  func.func @transform_2(%arg0: i32) -> (i32, i32) {
    %c0_i32 = arith.constant 0 : i32
    %c0_i32_0 = arith.constant 0 : i32
    %c0_i32_1 = arith.constant 0 : i32
    return %c0_i32, %c0_i32_0 : i32, i32
  }
  func.func @transform_3(%arg0: i32) -> (i32, i32) {
    %c0_i32 = arith.constant 0 : i32
    %c0_i32_0 = arith.constant 0 : i32
    %c0_i32_1 = arith.constant 0 : i32
    return %c0_i32, %c0_i32_0 : i32, i32
  }
  func.func @transform_4(%arg0: i32) -> (i32, i32) {
    %c0_i32 = arith.constant 0 : i32
    %c0_i32_0 = arith.constant 0 : i32
    %c0_i32_1 = arith.constant 0 : i32
    return %c0_i32, %c0_i32_0 : i32, i32
  }
  func.func @transform_5(%arg0: i32) -> (i32, i32) {
    %c0_i32 = arith.constant 0 : i32
    %c0_i32_0 = arith.constant 0 : i32
    %c0_i32_1 = arith.constant 0 : i32
    return %c0_i32, %c0_i32_0 : i32, i32
  }
  func.func @transform_6(%arg0: i32) -> (i32, i32, i32, i32) {
    %c0_i32 = arith.constant 0 : i32
    %c0_i32_0 = arith.constant 0 : i32
    %c0_i32_1 = arith.constant 0 : i32
    %c0_i32_2 = arith.constant 0 : i32
    return %arg0, %c0_i32, %c0_i32_0, %c0_i32_1 : i32, i32, i32, i32
  }
}

</mosaic_0001>

<llo_original>
// kernel: tpu_custom_call.1
$region0: #{tpu_custom_call.1}
  #allocation0 [shape = 'u32[]', space=smem, size = 0x4, offset = 0x4, fixed_abs, tag = 'smem constant byte address 0x4 - core index']
  #allocation1 [shape = 'u32[72,128]{1,0:T(1,128)}', space=vmem, size = 0x9000, scoped, tag = 'internal scratch']
  #allocation2 [shape = 'f32[36,16]{1,0:T(8,128)}', space=vmem, size = 0x5000, scoped, tag = 'scratch operand']
  %s0 = inlined_call_operand.vmem [shape: f32[2,4,20,36], index: 0, kind: input, shape index: {}]
  %s1 = inlined_call_operand.vmem [shape: f32[4,25], index: 1, kind: input, shape index: {}]
  %s2 = inlined_call_operand.vmem [shape: f32[4,39], index: 2, kind: input, shape index: {}]
  %s3 = inlined_call_operand.vmem [shape: f32[4,39], index: 3, kind: input, shape index: {}]
  %s4 = inlined_call_operand.vmem [shape: f32[4,4], index: 4, kind: input, shape index: {}]
  %s5 = inlined_call_operand.vmem [shape: f32[4,4], index: 5, kind: input, shape index: {}]
  %s6 = inlined_call_operand.hbm [shape: f32[2,4,16,16], index: 6, kind: output, shape index: {}]
  %s7 = sld [smem:[#allocation0]]
  $region77: #{tpu_custom_call.1} parent=0
    _
  %s9 = ssub.s32 1, %s7
  %s10 = scalar_select 0, %s9, %s7
  $region1: #{tpu_custom_call.1} parent=0
    #allocation3 [shape = 'u8[2048]{0}', space=smem, size = 0x800, scoped, tag = 'input window, operand 1, single buffered']
    #allocation4 [shape = 's32[2]{0}', space=sflag, size = 0x8, scoped, tag = 'scoped memory for tpu_custom_call.1']
    #allocation5 [shape = 's32[2]{0}', space=sflag, size = 0x8, scoped, tag = 'scoped memory for tpu_custom_call.1']
    #allocation6 [shape = 'u8[2048]{0}', space=smem, size = 0x800, scoped, tag = 'input window, operand 2, single buffered']
    #allocation7 [shape = 's32[1]{0}', space=sflag, size = 0x4, scoped, tag = 'scoped memory for tpu_custom_call.1']
    #allocation8 [shape = 'u8[2048]{0}', space=smem, size = 0x800, scoped, tag = 'input window, operand 3, single buffered']
    #allocation9 [shape = 'u8[2048]{0}', space=smem, size = 0x800, scoped, tag = 'input window, operand 4, single buffered']
    #allocation10 [shape = 's32[1]{0}', space=sflag, size = 0x4, scoped, tag = 'scoped memory for tpu_custom_call.1']
    #allocation11 [shape = 'u8[2048]{0}', space=smem, size = 0x800, scoped, tag = 'input window, operand 5, single buffered']
    #allocation12 [shape = 'u8[65536]{0}', space=vmem, size = 0x10000, scoped, tag = 'output window, operand 0']
    %11 = vsyncpa [#allocation5], 0
    %12 = vsyncpa [#allocation7], 0
    %13 = vsyncpa [#allocation10], 0
    %14 = vsyncpa [#allocation4], 0
    %s15 = scalar_lea.sflag [#allocation4], 1
    %16 = vsyncpa %s15, 0
    loop: start=0, step=1, limit=4
    $region2: #{tpu_custom_call.1} parent=1 // loop_pre_header
      _
    $region3: #{tpu_custom_call.1} parent=1 // loop_header
      %s18 = sphi 0, %s22
      %p19 = scmp.ge.s32.totalorder %s18, 4
      %s28 = sphi 0, %s30
      %s31 = sphi 0, %s28
      %s32 = sphi 0, %s31
      %s48 = sphi 0, %s32
      %s52 = sphi 0, %s52
      %s54 = sphi 0, %s52
      %s55 = sphi 0, %s54
      %s69 = sphi 0, %s55
      %s73 = sphi 0, %s73
      %s75 = sphi 0, %s73
      %s76 = sphi 0, %s75
      %s90 = sphi 0, %s76
      %s94 = sphi 0, %s94
      %s96 = sphi 0, %s94
      %s97 = sphi 0, %s96
      %s111 = sphi 0, %s97
      %s115 = sphi 0, %s115
      %s117 = sphi 0, %s115
      %s118 = sphi 0, %s117
      %s132 = sphi 0, %s118
      %s136 = sphi 0, %s136
      %s138 = sphi 0, %s136
      %s139 = sphi 0, %s138
      %s153 = sphi 0, %s139
      %s159 = sphi 0, %s161
      %s162 = sphi 0, %s159
      %s163 = sphi 0, %s162
      %s179 = sphi 0, %s163
    $region4: #{tpu_custom_call.1} parent=1 // loop_header_branch
      %21 = sbr.rel (%p19) target = $region8
    $region5: #{tpu_custom_call.1} parent=1 // loop_body
      %s23 = ssub.s32 %s18, 1
      %s24 = ssub.s32 %s18, 2
      %s25 = sadd.s32 %s18, 1
      %s26 = ssub.s32 %s18, %s25
      %p27 = scmp.eq.s32.totalorder %s26, 0
      %s29 = sadd.s32 %s28, 1
      %s30 = scalar_select %p27, %s28, %s29
      %p33 = pneg %p27
      %p34 = scmp.eq.s32.totalorder %s18, 1
      %p35 = por %p33, %p34
      %p36 = scmp.ne.s32.totalorder %s28, %s31
      %p37 = scmp.eq.s32.totalorder %s18, 0
      %p38 = por %p36, %p37
      %p39 = scmp.ne.s32.totalorder %s28, %s31
      %p40 = scmp.eq.s32.totalorder %s23, 1
      %p41 = por %p39, %p40
      %p42 = scmp.ne.s32.totalorder %s31, %s32
      %p43 = scmp.eq.s32.totalorder %s23, 0
      %p44 = por %p42, %p43
      %p45 = scmp.ne.s32.totalorder %s31, %s32
      %p46 = scmp.eq.s32.totalorder %s24, 1
      %p47 = por %p45, %p46
      %p49 = scmp.ne.s32.totalorder %s32, %s48
      %p50 = scmp.eq.s32.totalorder %s24, 0
      %p51 = por %p49, %p50
      %s53 = sadd.s32 %s52, 1
      %p56 = scmp.eq.s32.totalorder %s18, 1
      %p57 = scmp.ne.s32.totalorder %s52, %s54
      %p58 = scmp.eq.s32.totalorder %s18, 0
      %p59 = por %p57, %p58
      %p60 = scmp.ne.s32.totalorder %s52, %s54
      %p61 = scmp.eq.s32.totalorder %s23, 1
      %p62 = por %p60, %p61
      %p63 = scmp.ne.s32.totalorder %s54, %s55
      %p64 = scmp.eq.s32.totalorder %s23, 0
      %p65 = por %p63, %p64
      %p66 = scmp.ne.s32.totalorder %s54, %s55
      %p67 = scmp.eq.s32.totalorder %s24, 1
      %p68 = por %p66, %p67
      %p70 = scmp.ne.s32.totalorder %s55, %s69
      %p71 = scmp.eq.s32.totalorder %s24, 0
      %p72 = por %p70, %p71
      %s74 = sadd.s32 %s73, 1
      %p77 = scmp.eq.s32.totalorder %s18, 1
      %p78 = scmp.ne.s32.totalorder %s73, %s75
      %p79 = scmp.eq.s32.totalorder %s18, 0
      %p80 = por %p78, %p79
      %p81 = scmp.ne.s32.totalorder %s73, %s75
      %p82 = scmp.eq.s32.totalorder %s23, 1
      %p83 = por %p81, %p82
      %p84 = scmp.ne.s32.totalorder %s75, %s76
      %p85 = scmp.eq.s32.totalorder %s23, 0
      %p86 = por %p84, %p85
      %p87 = scmp.ne.s32.totalorder %s75, %s76
      %p88 = scmp.eq.s32.totalorder %s24, 1
      %p89 = por %p87, %p88
      %p91 = scmp.ne.s32.totalorder %s76, %s90
      %p92 = scmp.eq.s32.totalorder %s24, 0
      %p93 = por %p91, %p92
      %s95 = sadd.s32 %s94, 1
      %p98 = scmp.eq.s32.totalorder %s18, 1
      %p99 = scmp.ne.s32.totalorder %s94, %s96
      %p100 = scmp.eq.s32.totalorder %s18, 0
      %p101 = por %p99, %p100
      %p102 = scmp.ne.s32.totalorder %s94, %s96
      %p103 = scmp.eq.s32.totalorder %s23, 1
      %p104 = por %p102, %p103
      %p105 = scmp.ne.s32.totalorder %s96, %s97
      %p106 = scmp.eq.s32.totalorder %s23, 0
      %p107 = por %p105, %p106
      %p108 = scmp.ne.s32.totalorder %s96, %s97
      %p109 = scmp.eq.s32.totalorder %s24, 1
      %p110 = por %p108, %p109
      %p112 = scmp.ne.s32.totalorder %s97, %s111
      %p113 = scmp.eq.s32.totalorder %s24, 0
      %p114 = por %p112, %p113
      %s116 = sadd.s32 %s115, 1
      %p119 = scmp.eq.s32.totalorder %s18, 1
      %p120 = scmp.ne.s32.totalorder %s115, %s117
      %p121 = scmp.eq.s32.totalorder %s18, 0
      %p122 = por %p120, %p121
      %p123 = scmp.ne.s32.totalorder %s115, %s117
      %p124 = scmp.eq.s32.totalorder %s23, 1
      %p125 = por %p123, %p124
      %p126 = scmp.ne.s32.totalorder %s117, %s118
      %p127 = scmp.eq.s32.totalorder %s23, 0
      %p128 = por %p126, %p127
      %p129 = scmp.ne.s32.totalorder %s117, %s118
      %p130 = scmp.eq.s32.totalorder %s24, 1
      %p131 = por %p129, %p130
      %p133 = scmp.ne.s32.totalorder %s118, %s132
      %p134 = scmp.eq.s32.totalorder %s24, 0
      %p135 = por %p133, %p134
      %s137 = sadd.s32 %s136, 1
      %p140 = scmp.eq.s32.totalorder %s18, 1
      %p141 = scmp.ne.s32.totalorder %s136, %s138
      %p142 = scmp.eq.s32.totalorder %s18, 0
      %p143 = por %p141, %p142
      %p144 = scmp.ne.s32.totalorder %s136, %s138
      %p145 = scmp.eq.s32.totalorder %s23, 1
      %p146 = por %p144, %p145
      %p147 = scmp.ne.s32.totalorder %s138, %s139
      %p148 = scmp.eq.s32.totalorder %s23, 0
      %p149 = por %p147, %p148
      %p150 = scmp.ne.s32.totalorder %s138, %s139
      %p151 = scmp.eq.s32.totalorder %s24, 1
      %p152 = por %p150, %p151
      %p154 = scmp.ne.s32.totalorder %s139, %s153
      %p155 = scmp.eq.s32.totalorder %s24, 0
      %p156 = por %p154, %p155
      %s157 = ssub.s32 %s18, %s25
      %p158 = scmp.eq.s32.totalorder %s157, 0
      %s160 = sadd.s32 %s159, 1
      %s161 = scalar_select %p158, %s159, %s160
      %p164 = pneg %p158
      %p165 = scmp.eq.s32.totalorder %s18, 1
      %p166 = por %p164, %p165
      %p167 = scmp.ne.s32.totalorder %s159, %s162
      %p168 = scmp.eq.s32.totalorder %s18, 0
      %p169 = por %p167, %p168
      %p170 = scmp.ne.s32.totalorder %s159, %s162
      %p171 = scmp.eq.s32.totalorder %s23, 1
      %p172 = por %p170, %p171
      %p173 = scmp.ne.s32.totalorder %s162, %s163
      %p174 = scmp.eq.s32.totalorder %s23, 0
      %p175 = por %p173, %p174
      %p176 = scmp.ne.s32.totalorder %s162, %s163
      %p177 = scmp.eq.s32.totalorder %s24, 1
      %p178 = por %p176, %p177
      %p180 = scmp.ne.s32.totalorder %s163, %s179
      %p181 = scmp.eq.s32.totalorder %s24, 0
      %p182 = por %p180, %p181
      %p183 = scmp.le.s32.totalorder 1, %s18
      %p184 = scmp.lt.s32.totalorder %s18, 3
      %p185 = pnand %p183, %p184
      %p186 = pneg %p185
      // Predicated region
      $region9: #{tpu_custom_call.1} parent=5 // pred_check
        _
      $region10: #{tpu_custom_call.1} parent=5 // pred_check_branch
        %188 = sbr.rel (%p185) target = $region12
      $region11: #{tpu_custom_call.1} parent=5 // pred_region
        %s189 = ssub.s32 %s18, 1
        // Predicated region
        $region13: #{tpu_custom_call.1} parent=11 // pred_check
          %p190 = pneg %p65
        $region14: #{tpu_custom_call.1} parent=11 // pred_check_branch
          %192 = sbr.rel (%p190) target = $region16
        $region15: #{tpu_custom_call.1} parent=11 // pred_region
          %194 = vsyncadd [#allocation5], 0
          %s196 = sshll.u32 %s1, 4
          %s197 = int_to_ptr.vmem [resolvable:$true] %s196
          %199 = dma.vmem_to_smem %s197, 64, [#allocation3], [#allocation5]
        $region16: #{tpu_custom_call.1} parent=11 // pred_fallthru
          _
        // Predicated region
        $region17: #{tpu_custom_call.1} parent=11 // pred_check
          %p200 = pneg %p86
        $region18: #{tpu_custom_call.1} parent=11 // pred_check_branch
          %202 = sbr.rel (%p200) target = $region20
        $region19: #{tpu_custom_call.1} parent=11 // pred_region
          %204 = vsyncadd [#allocation7], 0
          %s206 = sshll.u32 %s2, 4
          %s207 = int_to_ptr.vmem [resolvable:$true] %s206
          %209 = dma.vmem_to_smem %s207, 64, [#allocation6], [#allocation7]
        $region20: #{tpu_custom_call.1} parent=11 // pred_fallthru
          _
        // Predicated region
        $region21: #{tpu_custom_call.1} parent=11 // pred_check
          %p210 = pneg %p107
        $region22: #{tpu_custom_call.1} parent=11 // pred_check_branch
          %212 = sbr.rel (%p210) target = $region24
        $region23: #{tpu_custom_call.1} parent=11 // pred_region
          %214 = vsyncadd [#allocation7], 0
          %s216 = sshll.u32 %s3, 4
          %s217 = int_to_ptr.vmem [resolvable:$true] %s216
          %219 = dma.vmem_to_smem %s217, 64, [#allocation8], [#allocation7]
        $region24: #{tpu_custom_call.1} parent=11 // pred_fallthru
          _
        // Predicated region
        $region25: #{tpu_custom_call.1} parent=11 // pred_check
          %p220 = pneg %p128
        $region26: #{tpu_custom_call.1} parent=11 // pred_check_branch
          %222 = sbr.rel (%p220) target = $region28
        $region27: #{tpu_custom_call.1} parent=11 // pred_region
          %224 = vsyncadd [#allocation10], 0
          %s226 = sshll.u32 %s4, 4
          %s227 = int_to_ptr.vmem [resolvable:$true] %s226
          %229 = dma.vmem_to_smem %s227, 64, [#allocation9], [#allocation10]
        $region28: #{tpu_custom_call.1} parent=11 // pred_fallthru
          _
        // Predicated region
        $region29: #{tpu_custom_call.1} parent=11 // pred_check
          %p230 = pneg %p149
        $region30: #{tpu_custom_call.1} parent=11 // pred_check_branch
          %232 = sbr.rel (%p230) target = $region32
        $region31: #{tpu_custom_call.1} parent=11 // pred_region
          %234 = vsyncadd [#allocation10], 0
          %s236 = sshll.u32 %s5, 4
          %s237 = int_to_ptr.vmem [resolvable:$true] %s236
          %239 = dma.vmem_to_smem %s237, 64, [#allocation11], [#allocation10]
        $region32: #{tpu_custom_call.1} parent=11 // pred_fallthru
          _
      $region12: #{tpu_custom_call.1} parent=5 // pred_fallthru
        _
      %p240 = scmp.lt.s32.totalorder %s18, 2
      // Predicated region
      $region33: #{tpu_custom_call.1} parent=5 // pred_check
        %p241 = pneg %p240
      $region34: #{tpu_custom_call.1} parent=5 // pred_check_branch
        %243 = sbr.rel (%p241) target = $region36
      $region35: #{tpu_custom_call.1} parent=5 // pred_region
        // Predicated region
        $region37: #{tpu_custom_call.1} parent=35 // pred_check
          %p244 = pneg %p38
        $region38: #{tpu_custom_call.1} parent=35 // pred_check_branch
          %246 = sbr.rel (%p244) target = $region40
        $region39: #{tpu_custom_call.1} parent=35 // pred_region
          %p247 = scmp.lt.s32.totalorder %s18, 1
          %s248 = scalar_select %p247, %s18, 1
          %s249 = smul.addr %s248, 12
          %s250 = smul.addr %s249, 8
          %s251 = scalar_lea.vmem %s0, %s250
        $region40: #{tpu_custom_call.1} parent=35 // pred_fallthru
          _
      $region36: #{tpu_custom_call.1} parent=5 // pred_fallthru
        _
      %p252 = scmp.le.s32.totalorder 1, %s18
      %p253 = scmp.lt.s32.totalorder %s18, 3
      %p254 = pnand %p252, %p253
      %p255 = pneg %p254
      // Predicated region
      $region41: #{tpu_custom_call.1} parent=5 // pred_check
        _
      $region42: #{tpu_custom_call.1} parent=5 // pred_check_branch
        %257 = sbr.rel (%p254) target = $region44
      $region43: #{tpu_custom_call.1} parent=5 // pred_region
        %s258 = ssub.s32 %s18, 1
        // Predicated region
        $region45: #{tpu_custom_call.1} parent=43 // pred_check
          %p259 = pneg %p65
        $region46: #{tpu_custom_call.1} parent=43 // pred_check_branch
          %261 = sbr.rel (%p259) target = $region48
        $region47: #{tpu_custom_call.1} parent=43 // pred_region
          %263 = dma.done [#allocation5], 64
        $region48: #{tpu_custom_call.1} parent=43 // pred_fallthru
          _
        // Predicated region
        $region49: #{tpu_custom_call.1} parent=43 // pred_check
          %p264 = pneg %p86
        $region50: #{tpu_custom_call.1} parent=43 // pred_check_branch
          %266 = sbr.rel (%p264) target = $region52
        $region51: #{tpu_custom_call.1} parent=43 // pred_region
          %268 = dma.done [#allocation7], 64
        $region52: #{tpu_custom_call.1} parent=43 // pred_fallthru
          _
        // Predicated region
        $region53: #{tpu_custom_call.1} parent=43 // pred_check
          %p269 = pneg %p107
        $region54: #{tpu_custom_call.1} parent=43 // pred_check_branch
          %271 = sbr.rel (%p269) target = $region56
        $region55: #{tpu_custom_call.1} parent=43 // pred_region
          %273 = dma.done [#allocation7], 64
        $region56: #{tpu_custom_call.1} parent=43 // pred_fallthru
          _
        // Predicated region
        $region57: #{tpu_custom_call.1} parent=43 // pred_check
          %p274 = pneg %p128
        $region58: #{tpu_custom_call.1} parent=43 // pred_check_branch
          %276 = sbr.rel (%p274) target = $region60
        $region59: #{tpu_custom_call.1} parent=43 // pred_region
          %278 = dma.done [#allocation10], 64
        $region60: #{tpu_custom_call.1} parent=43 // pred_fallthru
          _
        // Predicated region
        $region61: #{tpu_custom_call.1} parent=43 // pred_check
          %p279 = pneg %p149
        $region62: #{tpu_custom_call.1} parent=43 // pred_check_branch
          %281 = sbr.rel (%p279) target = $region64
        $region63: #{tpu_custom_call.1} parent=43 // pred_region
          %283 = dma.done [#allocation10], 64
        $region64: #{tpu_custom_call.1} parent=43 // pred_fallthru
          _
        %284 = sfence
        %p285 = scmp.lt.s32.totalorder %s23, 1
        %s286 = scalar_select %p285, %s23, 1
        %s287 = smul.addr %s286, 12
        %s288 = smul.addr %s287, 8
        %s289 = scalar_lea.vmem %s0, %s288
        %p290 = pneg %p44
        %p291 = pneg %p41
        %p292 = pneg %p65
        %p293 = pneg %p62
        %p294 = pneg %p86
        %p295 = pneg %p83
        %p296 = pneg %p107
        %p297 = pneg %p104
        %p298 = pneg %p128
        %p299 = pneg %p125
        %p300 = pneg %p149
        %p301 = pneg %p146
        %p302 = pneg %p175
        %p303 = pneg %p172
        %s304 = sand.u32 %s162, 1
        %s305 = scalar_lea.sflag [#allocation4], %s304
        %s306 = sand.u32 %s162, 1
        %s307 = smul.addr %s306, 64
        %s308 = scalar_lea.vmem [#allocation12], %s307
        %p309 = scmp.lt.s32.totalorder %s23, 1
        %s310 = scalar_select %p309, %s23, 1
        %s311 = smul.addr %s310, 12
        %s312 = smul.addr %s311, 8
        %s313 = scalar_lea.vmem %s0, %s312
        %vm314 = vcmask 130048
        %315 = vst.msk [vmem:[#allocation2] sm:$0xff] %vm314, 0.0
        %vm316 = vcmask 123904
        %317 = vst.msk [vmem:[#allocation2 + $0x8] sm:$0x3] %vm316, 0.0
        %318 = vst.msk [vmem:[#allocation2 + $0x1a] sm:$0xff] %vm314, 0.0
        %319 = vst.msk [vmem:[#allocation2 + $0x22] sm:$0x3] %vm316, 0.0
        %v320 = vld [vmem:[%s313] sm:$0xff]
        %v321 = vld [vmem:[%s313 + $0x8] sm:$0xff]
        %v322 = vld [vmem:[%s313 + $0x10] sm:$0xf]
        %s323 = sld [smem:[#allocation3]]
        %v324 = vstv %s323
        %v325 = vmul.f32 %v320, %v324
        %v326 = vmul.f32 %v321, %v324
        %s327 = sld [smem:[#allocation3 + $0x5]]
        %v328 = vstv %s327
        %v329 = vmul.f32 %v320, %v328
        %v330 = vmul.f32 %v321, %v328
        %v331 = vmul.f32 %v322, %v328
        %vm335 = vcmask 1046528
        %v336 = vrot.slane %v329, 1
        %v337 = vrot.slane %v330, 1
        %v338 = vsel %vm335, %v336, %v337
        %v339 = vrot.slane %v331, 1
        %v340 = vsel %vm335, %v337, %v339
        %v343 = vadd.f32 %v325, %v338
        %v344 = vadd.f32 %v326, %v340
        %s345 = sld [smem:[#allocation3 + $0xa]]
        %v346 = vstv %s345
        %v347 = vmul.f32 %v320, %v346
        %v348 = vmul.f32 %v321, %v346
        %v349 = vmul.f32 %v322, %v346
        %vm353 = vcmask 1045504
        %v354 = vrot.slane %v347, 2
        %v355 = vrot.slane %v348, 2
        %v356 = vsel %vm353, %v354, %v355
        %v357 = vrot.slane %v349, 2
        %v358 = vsel %vm353, %v355, %v357
        %v361 = vadd.f32 %v343, %v356
        %v362 = vadd.f32 %v344, %v358
        %s363 = sld [smem:[#allocation3 + $0xf]]
        %v364 = vstv %s363
        %v365 = vmul.f32 %v320, %v364
        %v366 = vmul.f32 %v321, %v364
        %v367 = vmul.f32 %v322, %v364
        %vm371 = vcmask 1044480
        %v372 = vrot.slane %v365, 3
        %v373 = vrot.slane %v366, 3
        %v374 = vsel %vm371, %v372, %v373
        %v375 = vrot.slane %v367, 3
        %v376 = vsel %vm371, %v373, %v375
        %v379 = vadd.f32 %v361, %v374
        %v380 = vadd.f32 %v362, %v376
        %s381 = sld [smem:[#allocation3 + $0x14]]
        %v382 = vstv %s381
        %v383 = vmul.f32 %v320, %v382
        %v384 = vmul.f32 %v321, %v382
        %v385 = vmul.f32 %v322, %v382
        %vm389 = vcmask 1043456
        %v390 = vrot.slane %v383, 4
        %v391 = vrot.slane %v384, 4
        %v392 = vsel %vm389, %v390, %v391
        %v393 = vrot.slane %v385, 4
        %v394 = vsel %vm389, %v391, %v393
        %v397 = vadd.f32 %v379, %v392
        %v398 = vadd.f32 %v380, %v394
        %s399 = sld [smem:[#allocation3 + $0x1]]
        %v400 = vstv %s399
        %v401 = vmul.f32 %v320, %v400
        %v402 = vmul.f32 %v321, %v400
        %405 = vrot.lane.b32.xlu0 %v401, 127
        %v406 = vpop.permute.xlu0 %405
        %407 = vrot.lane.b32.xlu0 %v402, 127
        %v408 = vpop.permute.xlu0 %407
        %v411 = vadd.f32 %v397, %v406
        %v412 = vadd.f32 %v398, %v408
        %s413 = sld [smem:[#allocation3 + $0x6]]
        %v414 = vstv %s413
        %v415 = vmul.f32 %v320, %v414
        %v416 = vmul.f32 %v321, %v414
        %v417 = vmul.f32 %v322, %v414
        %v421 = vrot.slane %v415, 1
        %v422 = vrot.slane %v416, 1
        %v423 = vsel %vm335, %v421, %v422
        %v424 = vrot.slane %v417, 1
        %v425 = vsel %vm335, %v422, %v424
        %426 = vrot.lane.b32.xlu0 %v423, 127
        %v427 = vpop.permute.xlu0 %426
        %428 = vrot.lane.b32.xlu0 %v425, 127
        %v429 = vpop.permute.xlu0 %428
        %v432 = vadd.f32 %v411, %v427
        %v433 = vadd.f32 %v412, %v429
        %s434 = sld [smem:[#allocation3 + $0xb]]
        %v435 = vstv %s434
        %v436 = vmul.f32 %v320, %v435
        %v437 = vmul.f32 %v321, %v435
        %v438 = vmul.f32 %v322, %v435
        %v442 = vrot.slane %v436, 2
        %v443 = vrot.slane %v437, 2
        %v444 = vsel %vm353, %v442, %v443
        %v445 = vrot.slane %v438, 2
        %v446 = vsel %vm353, %v443, %v445
        %447 = vrot.lane.b32.xlu0 %v444, 127
        %v448 = vpop.permute.xlu0 %447
        %449 = vrot.lane.b32.xlu0 %v446, 127
        %v450 = vpop.permute.xlu0 %449
        %v453 = vadd.f32 %v432, %v448
        %v454 = vadd.f32 %v433, %v450
        %s455 = sld [smem:[#allocation3 + $0x10]]
        %v456 = vstv %s455
        %v457 = vmul.f32 %v320, %v456
        %v458 = vmul.f32 %v321, %v456
        %v459 = vmul.f32 %v322, %v456
        %v463 = vrot.slane %v457, 3
        %v464 = vrot.slane %v458, 3
        %v465 = vsel %vm371, %v463, %v464
        %v466 = vrot.slane %v459, 3
        %v467 = vsel %vm371, %v464, %v466
        %468 = vrot.lane.b32.xlu0 %v465, 127
        %v469 = vpop.permute.xlu0 %468
        %470 = vrot.lane.b32.xlu0 %v467, 127
        %v471 = vpop.permute.xlu0 %470
        %v474 = vadd.f32 %v453, %v469
        %v475 = vadd.f32 %v454, %v471
        %s476 = sld [smem:[#allocation3 + $0x15]]
        %v477 = vstv %s476
        %v478 = vmul.f32 %v320, %v477
        %v479 = vmul.f32 %v321, %v477
        %v480 = vmul.f32 %v322, %v477
        %v484 = vrot.slane %v478, 4
        %v485 = vrot.slane %v479, 4
        %v486 = vsel %vm389, %v484, %v485
        %v487 = vrot.slane %v480, 4
        %v488 = vsel %vm389, %v485, %v487
        %489 = vrot.lane.b32.xlu0 %v486, 127
        %v490 = vpop.permute.xlu0 %489
        %491 = vrot.lane.b32.xlu0 %v488, 127
        %v492 = vpop.permute.xlu0 %491
        %v495 = vadd.f32 %v474, %v490
        %v496 = vadd.f32 %v475, %v492
        %s497 = sld [smem:[#allocation3 + $0x2]]
        %v498 = vstv %s497
        %v499 = vmul.f32 %v320, %v498
        %v500 = vmul.f32 %v321, %v498
        %503 = vrot.lane.b32.xlu0 %v499, 126
        %v504 = vpop.permute.xlu0 %503
        %505 = vrot.lane.b32.xlu0 %v500, 126
        %v506 = vpop.permute.xlu0 %505
        %v509 = vadd.f32 %v495, %v504
        %v510 = vadd.f32 %v496, %v506
        %s511 = sld [smem:[#allocation3 + $0x7]]
        %v512 = vstv %s511
        %v513 = vmul.f32 %v320, %v512
        %v514 = vmul.f32 %v321, %v512
        %v515 = vmul.f32 %v322, %v512
        %v519 = vrot.slane %v513, 1
        %v520 = vrot.slane %v514, 1
        %v521 = vsel %vm335, %v519, %v520
        %v522 = vrot.slane %v515, 1
        %v523 = vsel %vm335, %v520, %v522
        %524 = vrot.lane.b32.xlu0 %v521, 126
        %v525 = vpop.permute.xlu0 %524
        %526 = vrot.lane.b32.xlu0 %v523, 126
        %v527 = vpop.permute.xlu0 %526
        %v530 = vadd.f32 %v509, %v525
        %v531 = vadd.f32 %v510, %v527
        %s532 = sld [smem:[#allocation3 + $0xc]]
        %v533 = vstv %s532
        %v534 = vmul.f32 %v320, %v533
        %v535 = vmul.f32 %v321, %v533
        %v536 = vmul.f32 %v322, %v533
        %v540 = vrot.slane %v534, 2
        %v541 = vrot.slane %v535, 2
        %v542 = vsel %vm353, %v540, %v541
        %v543 = vrot.slane %v536, 2
        %v544 = vsel %vm353, %v541, %v543
        %545 = vrot.lane.b32.xlu0 %v542, 126
        %v546 = vpop.permute.xlu0 %545
        %547 = vrot.lane.b32.xlu0 %v544, 126
        %v548 = vpop.permute.xlu0 %547
        %v551 = vadd.f32 %v530, %v546
        %v552 = vadd.f32 %v531, %v548
        %s553 = sld [smem:[#allocation3 + $0x11]]
        %v554 = vstv %s553
        %v555 = vmul.f32 %v320, %v554
        %v556 = vmul.f32 %v321, %v554
        %v557 = vmul.f32 %v322, %v554
        %v561 = vrot.slane %v555, 3
        %v562 = vrot.slane %v556, 3
        %v563 = vsel %vm371, %v561, %v562
        %v564 = vrot.slane %v557, 3
        %v565 = vsel %vm371, %v562, %v564
        %566 = vrot.lane.b32.xlu0 %v563, 126
        %v567 = vpop.permute.xlu0 %566
        %568 = vrot.lane.b32.xlu0 %v565, 126
        %v569 = vpop.permute.xlu0 %568
        %v572 = vadd.f32 %v551, %v567
        %v573 = vadd.f32 %v552, %v569
        %s574 = sld [smem:[#allocation3 + $0x16]]
        %v575 = vstv %s574
        %v576 = vmul.f32 %v320, %v575
        %v577 = vmul.f32 %v321, %v575
        %v578 = vmul.f32 %v322, %v575
        %v582 = vrot.slane %v576, 4
        %v583 = vrot.slane %v577, 4
        %v584 = vsel %vm389, %v582, %v583
        %v585 = vrot.slane %v578, 4
        %v586 = vsel %vm389, %v583, %v585
        %587 = vrot.lane.b32.xlu0 %v584, 126
        %v588 = vpop.permute.xlu0 %587
        %589 = vrot.lane.b32.xlu0 %v586, 126
        %v590 = vpop.permute.xlu0 %589
        %v593 = vadd.f32 %v572, %v588
        %v594 = vadd.f32 %v573, %v590
        %s595 = sld [smem:[#allocation3 + $0x3]]
        %v596 = vstv %s595
        %v597 = vmul.f32 %v320, %v596
        %v598 = vmul.f32 %v321, %v596
        %601 = vrot.lane.b32.xlu0 %v597, 125
        %v602 = vpop.permute.xlu0 %601
        %603 = vrot.lane.b32.xlu0 %v598, 125
        %v604 = vpop.permute.xlu0 %603
        %v607 = vadd.f32 %v593, %v602
        %v608 = vadd.f32 %v594, %v604
        %s609 = sld [smem:[#allocation3 + $0x8]]
        %v610 = vstv %s609
        %v611 = vmul.f32 %v320, %v610
        %v612 = vmul.f32 %v321, %v610
        %v613 = vmul.f32 %v322, %v610
        %v617 = vrot.slane %v611, 1
        %v618 = vrot.slane %v612, 1
        %v619 = vsel %vm335, %v617, %v618
        %v620 = vrot.slane %v613, 1
        %v621 = vsel %vm335, %v618, %v620
        %622 = vrot.lane.b32.xlu0 %v619, 125
        %v623 = vpop.permute.xlu0 %622
        %624 = vrot.lane.b32.xlu0 %v621, 125
        %v625 = vpop.permute.xlu0 %624
        %v628 = vadd.f32 %v607, %v623
        %v629 = vadd.f32 %v608, %v625
        %s630 = sld [smem:[#allocation3 + $0xd]]
        %v631 = vstv %s630
        %v632 = vmul.f32 %v320, %v631
        %v633 = vmul.f32 %v321, %v631
        %v634 = vmul.f32 %v322, %v631
        %v638 = vrot.slane %v632, 2
        %v639 = vrot.slane %v633, 2
        %v640 = vsel %vm353, %v638, %v639
        %v641 = vrot.slane %v634, 2
        %v642 = vsel %vm353, %v639, %v641
        %643 = vrot.lane.b32.xlu0 %v640, 125
        %v644 = vpop.permute.xlu0 %643
        %645 = vrot.lane.b32.xlu0 %v642, 125
        %v646 = vpop.permute.xlu0 %645
        %v649 = vadd.f32 %v628, %v644
        %v650 = vadd.f32 %v629, %v646
        %s651 = sld [smem:[#allocation3 + $0x12]]
        %v652 = vstv %s651
        %v653 = vmul.f32 %v320, %v652
        %v654 = vmul.f32 %v321, %v652
        %v655 = vmul.f32 %v322, %v652
        %v659 = vrot.slane %v653, 3
        %v660 = vrot.slane %v654, 3
        %v661 = vsel %vm371, %v659, %v660
        %v662 = vrot.slane %v655, 3
        %v663 = vsel %vm371, %v660, %v662
        %664 = vrot.lane.b32.xlu0 %v661, 125
        %v665 = vpop.permute.xlu0 %664
        %666 = vrot.lane.b32.xlu0 %v663, 125
        %v667 = vpop.permute.xlu0 %666
        %v670 = vadd.f32 %v649, %v665
        %v671 = vadd.f32 %v650, %v667
        %s672 = sld [smem:[#allocation3 + $0x17]]
        %v673 = vstv %s672
        %v674 = vmul.f32 %v320, %v673
        %v675 = vmul.f32 %v321, %v673
        %v676 = vmul.f32 %v322, %v673
        %v680 = vrot.slane %v674, 4
        %v681 = vrot.slane %v675, 4
        %v682 = vsel %vm389, %v680, %v681
        %v683 = vrot.slane %v676, 4
        %v684 = vsel %vm389, %v681, %v683
        %685 = vrot.lane.b32.xlu0 %v682, 125
        %v686 = vpop.permute.xlu0 %685
        %687 = vrot.lane.b32.xlu0 %v684, 125
        %v688 = vpop.permute.xlu0 %687
        %v691 = vadd.f32 %v670, %v686
        %v692 = vadd.f32 %v671, %v688
        %s693 = sld [smem:[#allocation3 + $0x4]]
        %v694 = vstv %s693
        %v695 = vmul.f32 %v320, %v694
        %v696 = vmul.f32 %v321, %v694
        %699 = vrot.lane.b32.xlu0 %v695, 124
        %v700 = vpop.permute.xlu0 %699
        %701 = vrot.lane.b32.xlu0 %v696, 124
        %v702 = vpop.permute.xlu0 %701
        %v705 = vadd.f32 %v691, %v700
        %v706 = vadd.f32 %v692, %v702
        %s707 = sld [smem:[#allocation3 + $0x9]]
        %v708 = vstv %s707
        %v709 = vmul.f32 %v320, %v708
        %v710 = vmul.f32 %v321, %v708
        %v711 = vmul.f32 %v322, %v708
        %v715 = vrot.slane %v709, 1
        %v716 = vrot.slane %v710, 1
        %v717 = vsel %vm335, %v715, %v716
        %v718 = vrot.slane %v711, 1
        %v719 = vsel %vm335, %v716, %v718
        %720 = vrot.lane.b32.xlu0 %v717, 124
        %v721 = vpop.permute.xlu0 %720
        %722 = vrot.lane.b32.xlu0 %v719, 124
        %v723 = vpop.permute.xlu0 %722
        %v726 = vadd.f32 %v705, %v721
        %v727 = vadd.f32 %v706, %v723
        %s728 = sld [smem:[#allocation3 + $0xe]]
        %v729 = vstv %s728
        %v730 = vmul.f32 %v320, %v729
        %v731 = vmul.f32 %v321, %v729
        %v732 = vmul.f32 %v322, %v729
        %v736 = vrot.slane %v730, 2
        %v737 = vrot.slane %v731, 2
        %v738 = vsel %vm353, %v736, %v737
        %v739 = vrot.slane %v732, 2
        %v740 = vsel %vm353, %v737, %v739
        %741 = vrot.lane.b32.xlu0 %v738, 124
        %v742 = vpop.permute.xlu0 %741
        %743 = vrot.lane.b32.xlu0 %v740, 124
        %v744 = vpop.permute.xlu0 %743
        %v747 = vadd.f32 %v726, %v742
        %v748 = vadd.f32 %v727, %v744
        %s749 = sld [smem:[#allocation3 + $0x13]]
        %v750 = vstv %s749
        %v751 = vmul.f32 %v320, %v750
        %v752 = vmul.f32 %v321, %v750
        %v753 = vmul.f32 %v322, %v750
        %v757 = vrot.slane %v751, 3
        %v758 = vrot.slane %v752, 3
        %v759 = vsel %vm371, %v757, %v758
        %v760 = vrot.slane %v753, 3
        %v761 = vsel %vm371, %v758, %v760
        %762 = vrot.lane.b32.xlu0 %v759, 124
        %v763 = vpop.permute.xlu0 %762
        %764 = vrot.lane.b32.xlu0 %v761, 124
        %v765 = vpop.permute.xlu0 %764
        %v768 = vadd.f32 %v747, %v763
        %v769 = vadd.f32 %v748, %v765
        %s770 = sld [smem:[#allocation3 + $0x18]]
        %v771 = vstv %s770
        %v772 = vmul.f32 %v320, %v771
        %v773 = vmul.f32 %v321, %v771
        %v774 = vmul.f32 %v322, %v771
        %v778 = vrot.slane %v772, 4
        %v779 = vrot.slane %v773, 4
        %v780 = vsel %vm389, %v778, %v779
        %v781 = vrot.slane %v774, 4
        %v782 = vsel %vm389, %v779, %v781
        %783 = vrot.lane.b32.xlu0 %v780, 124
        %v784 = vpop.permute.xlu0 %783
        %785 = vrot.lane.b32.xlu0 %v782, 124
        %v786 = vpop.permute.xlu0 %785
        %v789 = vadd.f32 %v768, %v784
        %v790 = vadd.f32 %v769, %v786
        %s791 = sld [smem:[#allocation6 + $0x12]]
        %v792 = vstv %s791
        %v793 = vmul.f32 %v320, %v792
        %v794 = vmul.f32 %v321, %v792
        %v795 = vmul.f32 %v322, %v792
        %s796 = sld [smem:[#allocation6 + $0x13]]
        %v797 = vstv %s796
        %v798 = vmul.f32 %v320, %v797
        %v799 = vmul.f32 %v321, %v797
        %v800 = vmul.f32 %v322, %v797
        %804 = vrot.lane.b32.xlu0 %v798, 127
        %v805 = vpop.permute.xlu0 %804
        %806 = vrot.lane.b32.xlu0 %v799, 127
        %v807 = vpop.permute.xlu0 %806
        %808 = vrot.lane.b32.xlu0 %v800, 127
        %v809 = vpop.permute.xlu0 %808
        %v813 = vadd.f32 %v793, %v805
        %v814 = vadd.f32 %v794, %v807
        %v815 = vadd.f32 %v795, %v809
        %s816 = sld [smem:[#allocation6 + $0x14]]
        %v817 = vstv %s816
        %v818 = vmul.f32 %v320, %v817
        %v819 = vmul.f32 %v321, %v817
        %v820 = vmul.f32 %v322, %v817
        %824 = vrot.lane.b32.xlu0 %v818, 126
        %v825 = vpop.permute.xlu0 %824
        %826 = vrot.lane.b32.xlu0 %v819, 126
        %v827 = vpop.permute.xlu0 %826
        %828 = vrot.lane.b32.xlu0 %v820, 126
        %v829 = vpop.permute.xlu0 %828
        %v833 = vadd.f32 %v813, %v825
        %v834 = vadd.f32 %v814, %v827
        %v835 = vadd.f32 %v815, %v829
        %s836 = sld [smem:[#allocation6 + $0x15]]
        %v837 = vstv %s836
        %v838 = vmul.f32 %v320, %v837
        %v839 = vmul.f32 %v321, %v837
        %v840 = vmul.f32 %v322, %v837
        %844 = vrot.lane.b32.xlu0 %v838, 125
        %v845 = vpop.permute.xlu0 %844
        %846 = vrot.lane.b32.xlu0 %v839, 125
        %v847 = vpop.permute.xlu0 %846
        %848 = vrot.lane.b32.xlu0 %v840, 125
        %v849 = vpop.permute.xlu0 %848
        %v853 = vadd.f32 %v833, %v845
        %v854 = vadd.f32 %v834, %v847
        %v855 = vadd.f32 %v835, %v849
        %s856 = sld [smem:[#allocation6 + $0x16]]
        %v857 = vstv %s856
        %v858 = vmul.f32 %v320, %v857
        %v859 = vmul.f32 %v321, %v857
        %v860 = vmul.f32 %v322, %v857
        %864 = vrot.lane.b32.xlu0 %v858, 124
        %v865 = vpop.permute.xlu0 %864
        %866 = vrot.lane.b32.xlu0 %v859, 124
        %v867 = vpop.permute.xlu0 %866
        %868 = vrot.lane.b32.xlu0 %v860, 124
        %v869 = vpop.permute.xlu0 %868
        %v873 = vadd.f32 %v853, %v865
        %v874 = vadd.f32 %v854, %v867
        %v875 = vadd.f32 %v855, %v869
        %s876 = sld [smem:[#allocation6 + $0x17]]
        %v877 = vstv %s876
        %v878 = vmul.f32 %v320, %v877
        %v879 = vmul.f32 %v321, %v877
        %v880 = vmul.f32 %v322, %v877
        %884 = vrot.lane.b32.xlu0 %v878, 123
        %v885 = vpop.permute.xlu0 %884
        %886 = vrot.lane.b32.xlu0 %v879, 123
        %v887 = vpop.permute.xlu0 %886
        %888 = vrot.lane.b32.xlu0 %v880, 123
        %v889 = vpop.permute.xlu0 %888
        %v893 = vadd.f32 %v873, %v885
        %v894 = vadd.f32 %v874, %v887
        %v895 = vadd.f32 %v875, %v889
        %s896 = sld [smem:[#allocation6 + $0x7]]
        %v897 = vstv %s896
        %v898 = vmul.f32 %v320, %v897
        %v899 = vmul.f32 %v321, %v897
        %v900 = vmul.f32 %v322, %v897
        %s901 = sld [smem:[#allocation6 + $0x18]]
        %v902 = vstv %s901
        %v903 = vmul.f32 %v320, %v902
        %v904 = vmul.f32 %v321, %v902
        %v905 = vmul.f32 %v322, %v902
        %909 = vrot.lane.b32.xlu0 %v903, 122
        %v910 = vpop.permute.xlu0 %909
        %911 = vrot.lane.b32.xlu0 %v904, 122
        %v912 = vpop.permute.xlu0 %911
        %913 = vrot.lane.b32.xlu0 %v905, 122
        %v914 = vpop.permute.xlu0 %913
        %v918 = vadd.f32 %v893, %v910
        %v919 = vadd.f32 %v894, %v912
        %v920 = vadd.f32 %v895, %v914
        %s921 = sld [smem:[#allocation6 + $0x8]]
        %v922 = vstv %s921
        %v923 = vmul.f32 %v320, %v922
        %v924 = vmul.f32 %v321, %v922
        %v925 = vmul.f32 %v322, %v922
        %929 = vrot.lane.b32.xlu0 %v923, 127
        %v930 = vpop.permute.xlu0 %929
        %931 = vrot.lane.b32.xlu0 %v924, 127
        %v932 = vpop.permute.xlu0 %931
        %933 = vrot.lane.b32.xlu0 %v925, 127
        %v934 = vpop.permute.xlu0 %933
        %v938 = vadd.f32 %v898, %v930
        %v939 = vadd.f32 %v899, %v932
        %v940 = vadd.f32 %v900, %v934
        %s941 = sld [smem:[#allocation6 + $0x19]]
        %v942 = vstv %s941
        %v943 = vmul.f32 %v320, %v942
        %v944 = vmul.f32 %v321, %v942
        %v945 = vmul.f32 %v322, %v942
        %949 = vrot.lane.b32.xlu0 %v943, 121
        %v950 = vpop.permute.xlu0 %949
        %951 = vrot.lane.b32.xlu0 %v944, 121
        %v952 = vpop.permute.xlu0 %951
        %953 = vrot.lane.b32.xlu0 %v945, 121
        %v954 = vpop.permute.xlu0 %953
        %v958 = vadd.f32 %v918, %v950
        %v959 = vadd.f32 %v919, %v952
        %v960 = vadd.f32 %v920, %v954
        %s961 = sld [smem:[#allocation6 + $0x9]]
        %v962 = vstv %s961
        %v963 = vmul.f32 %v320, %v962
        %v964 = vmul.f32 %v321, %v962
        %v965 = vmul.f32 %v322, %v962
        %969 = vrot.lane.b32.xlu0 %v963, 126
        %v970 = vpop.permute.xlu0 %969
        %971 = vrot.lane.b32.xlu0 %v964, 126
        %v972 = vpop.permute.xlu0 %971
        %973 = vrot.lane.b32.xlu0 %v965, 126
        %v974 = vpop.permute.xlu0 %973
        %v978 = vadd.f32 %v938, %v970
        %v979 = vadd.f32 %v939, %v972
        %v980 = vadd.f32 %v940, %v974
        %s981 = sld [smem:[#allocation6]]
        %v982 = vstv %s981
        %v983 = vmul.f32 %v320, %v982
        %v984 = vmul.f32 %v321, %v982
        %v985 = vmul.f32 %v322, %v982
        %s986 = sld [smem:[#allocation6 + $0x1a]]
        %v987 = vstv %s986
        %v988 = vmul.f32 %v320, %v987
        %v989 = vmul.f32 %v321, %v987
        %v990 = vmul.f32 %v322, %v987
        %994 = vrot.lane.b32.xlu0 %v988, 120
        %v995 = vpop.permute.xlu0 %994
        %996 = vrot.lane.b32.xlu0 %v989, 120
        %v997 = vpop.permute.xlu0 %996
        %998 = vrot.lane.b32.xlu0 %v990, 120
        %v999 = vpop.permute.xlu0 %998
        %v1003 = vadd.f32 %v958, %v995
        %v1004 = vadd.f32 %v959, %v997
        %v1005 = vadd.f32 %v960, %v999
        %s1006 = sld [smem:[#allocation6 + $0xa]]
        %v1007 = vstv %s1006
        %v1008 = vmul.f32 %v320, %v1007
        %v1009 = vmul.f32 %v321, %v1007
        %v1010 = vmul.f32 %v322, %v1007
        %1014 = vrot.lane.b32.xlu0 %v1008, 125
        %v1015 = vpop.permute.xlu0 %1014
        %1016 = vrot.lane.b32.xlu0 %v1009, 125
        %v1017 = vpop.permute.xlu0 %1016
        %1018 = vrot.lane.b32.xlu0 %v1010, 125
        %v1019 = vpop.permute.xlu0 %1018
        %v1023 = vadd.f32 %v978, %v1015
        %v1024 = vadd.f32 %v979, %v1017
        %v1025 = vadd.f32 %v980, %v1019
        %s1026 = sld [smem:[#allocation6 + $0x1]]
        %v1027 = vstv %s1026
        %v1028 = vmul.f32 %v320, %v1027
        %v1029 = vmul.f32 %v321, %v1027
        %v1030 = vmul.f32 %v322, %v1027
        %1034 = vrot.lane.b32.xlu0 %v1028, 127
        %v1035 = vpop.permute.xlu0 %1034
        %1036 = vrot.lane.b32.xlu0 %v1029, 127
        %v1037 = vpop.permute.xlu0 %1036
        %1038 = vrot.lane.b32.xlu0 %v1030, 127
        %v1039 = vpop.permute.xlu0 %1038
        %v1043 = vadd.f32 %v983, %v1035
        %v1044 = vadd.f32 %v984, %v1037
        %v1045 = vadd.f32 %v985, %v1039
        %s1046 = sld [smem:[#allocation6 + $0x1b]]
        %v1047 = vstv %s1046
        %v1048 = vmul.f32 %v320, %v1047
        %v1049 = vmul.f32 %v321, %v1047
        %v1050 = vmul.f32 %v322, %v1047
        %1054 = vrot.lane.b32.xlu0 %v1048, 119
        %v1055 = vpop.permute.xlu0 %1054
        %1056 = vrot.lane.b32.xlu0 %v1049, 119
        %v1057 = vpop.permute.xlu0 %1056
        %1058 = vrot.lane.b32.xlu0 %v1050, 119
        %v1059 = vpop.permute.xlu0 %1058
        %v1063 = vadd.f32 %v1003, %v1055
        %v1064 = vadd.f32 %v1004, %v1057
        %v1065 = vadd.f32 %v1005, %v1059
        %s1066 = sld [smem:[#allocation6 + $0xb]]
        %v1067 = vstv %s1066
        %v1068 = vmul.f32 %v320, %v1067
        %v1069 = vmul.f32 %v321, %v1067
        %v1070 = vmul.f32 %v322, %v1067
        %1074 = vrot.lane.b32.xlu0 %v1068, 124
        %v1075 = vpop.permute.xlu0 %1074
        %1076 = vrot.lane.b32.xlu0 %v1069, 124
        %v1077 = vpop.permute.xlu0 %1076
        %1078 = vrot.lane.b32.xlu0 %v1070, 124
        %v1079 = vpop.permute.xlu0 %1078
        %v1083 = vadd.f32 %v1023, %v1075
        %v1084 = vadd.f32 %v1024, %v1077
        %v1085 = vadd.f32 %v1025, %v1079
        %s1086 = sld [smem:[#allocation6 + $0x2]]
        %v1087 = vstv %s1086
        %v1088 = vmul.f32 %v320, %v1087
        %v1089 = vmul.f32 %v321, %v1087
        %v1090 = vmul.f32 %v322, %v1087
        %1094 = vrot.lane.b32.xlu0 %v1088, 126
        %v1095 = vpop.permute.xlu0 %1094
        %1096 = vrot.lane.b32.xlu0 %v1089, 126
        %v1097 = vpop.permute.xlu0 %1096
        %1098 = vrot.lane.b32.xlu0 %v1090, 126
        %v1099 = vpop.permute.xlu0 %1098
        %v1103 = vadd.f32 %v1043, %v1095
        %v1104 = vadd.f32 %v1044, %v1097
        %v1105 = vadd.f32 %v1045, %v1099
        %s1106 = sld [smem:[#allocation6 + $0x1c]]
        %v1107 = vstv %s1106
        %v1108 = vmul.f32 %v320, %v1107
        %v1109 = vmul.f32 %v321, %v1107
        %v1110 = vmul.f32 %v322, %v1107
        %1114 = vrot.lane.b32.xlu0 %v1108, 118
        %v1115 = vpop.permute.xlu0 %1114
        %1116 = vrot.lane.b32.xlu0 %v1109, 118
        %v1117 = vpop.permute.xlu0 %1116
        %1118 = vrot.lane.b32.xlu0 %v1110, 118
        %v1119 = vpop.permute.xlu0 %1118
        %v1123 = vadd.f32 %v1063, %v1115
        %v1124 = vadd.f32 %v1064, %v1117
        %v1125 = vadd.f32 %v1065, %v1119
        %s1126 = sld [smem:[#allocation6 + $0xc]]
        %v1127 = vstv %s1126
        %v1128 = vmul.f32 %v320, %v1127
        %v1129 = vmul.f32 %v321, %v1127
        %v1130 = vmul.f32 %v322, %v1127
        %1134 = vrot.lane.b32.xlu0 %v1128, 123
        %v1135 = vpop.permute.xlu0 %1134
        %1136 = vrot.lane.b32.xlu0 %v1129, 123
        %v1137 = vpop.permute.xlu0 %1136
        %1138 = vrot.lane.b32.xlu0 %v1130, 123
        %v1139 = vpop.permute.xlu0 %1138
        %v1143 = vadd.f32 %v1083, %v1135
        %v1144 = vadd.f32 %v1084, %v1137
        %v1145 = vadd.f32 %v1085, %v1139
        %s1146 = sld [smem:[#allocation6 + $0x3]]
        %v1147 = vstv %s1146
        %v1148 = vmul.f32 %v320, %v1147
        %v1149 = vmul.f32 %v321, %v1147
        %v1150 = vmul.f32 %v322, %v1147
        %1154 = vrot.lane.b32.xlu0 %v1148, 125
        %v1155 = vpop.permute.xlu0 %1154
        %1156 = vrot.lane.b32.xlu0 %v1149, 125
        %v1157 = vpop.permute.xlu0 %1156
        %1158 = vrot.lane.b32.xlu0 %v1150, 125
        %v1159 = vpop.permute.xlu0 %1158
        %v1163 = vadd.f32 %v1103, %v1155
        %v1164 = vadd.f32 %v1104, %v1157
        %v1165 = vadd.f32 %v1105, %v1159
        %s1166 = sld [smem:[#allocation6 + $0x1d]]
        %v1167 = vstv %s1166
        %v1168 = vmul.f32 %v320, %v1167
        %v1169 = vmul.f32 %v321, %v1167
        %v1170 = vmul.f32 %v322, %v1167
        %1174 = vrot.lane.b32.xlu0 %v1168, 117
        %v1175 = vpop.permute.xlu0 %1174
        %1176 = vrot.lane.b32.xlu0 %v1169, 117
        %v1177 = vpop.permute.xlu0 %1176
        %1178 = vrot.lane.b32.xlu0 %v1170, 117
        %v1179 = vpop.permute.xlu0 %1178
        %v1183 = vadd.f32 %v1123, %v1175
        %v1184 = vadd.f32 %v1124, %v1177
        %v1185 = vadd.f32 %v1125, %v1179
        %s1186 = sld [smem:[#allocation6 + $0xd]]
        %v1187 = vstv %s1186
        %v1188 = vmul.f32 %v320, %v1187
        %v1189 = vmul.f32 %v321, %v1187
        %v1190 = vmul.f32 %v322, %v1187
        %1194 = vrot.lane.b32.xlu0 %v1188, 122
        %v1195 = vpop.permute.xlu0 %1194
        %1196 = vrot.lane.b32.xlu0 %v1189, 122
        %v1197 = vpop.permute.xlu0 %1196
        %1198 = vrot.lane.b32.xlu0 %v1190, 122
        %v1199 = vpop.permute.xlu0 %1198
        %v1203 = vadd.f32 %v1143, %v1195
        %v1204 = vadd.f32 %v1144, %v1197
        %v1205 = vadd.f32 %v1145, %v1199
        %s1206 = sld [smem:[#allocation6 + $0x4]]
        %v1207 = vstv %s1206
        %v1208 = vmul.f32 %v320, %v1207
        %v1209 = vmul.f32 %v321, %v1207
        %v1210 = vmul.f32 %v322, %v1207
        %1214 = vrot.lane.b32.xlu0 %v1208, 124
        %v1215 = vpop.permute.xlu0 %1214
        %1216 = vrot.lane.b32.xlu0 %v1209, 124
        %v1217 = vpop.permute.xlu0 %1216
        %1218 = vrot.lane.b32.xlu0 %v1210, 124
        %v1219 = vpop.permute.xlu0 %1218
        %v1223 = vadd.f32 %v1163, %v1215
        %v1224 = vadd.f32 %v1164, %v1217
        %v1225 = vadd.f32 %v1165, %v1219
        %s1226 = sld [smem:[#allocation6 + $0x1e]]
        %v1227 = vstv %s1226
        %v1228 = vmul.f32 %v320, %v1227
        %v1229 = vmul.f32 %v321, %v1227
        %v1230 = vmul.f32 %v322, %v1227
        %1234 = vrot.lane.b32.xlu0 %v1228, 116
        %v1235 = vpop.permute.xlu0 %1234
        %1236 = vrot.lane.b32.xlu0 %v1229, 116
        %v1237 = vpop.permute.xlu0 %1236
        %1238 = vrot.lane.b32.xlu0 %v1230, 116
        %v1239 = vpop.permute.xlu0 %1238
        %v1243 = vadd.f32 %v1183, %v1235
        %v1244 = vadd.f32 %v1184, %v1237
        %v1245 = vadd.f32 %v1185, %v1239
        %s1246 = sld [smem:[#allocation6 + $0xe]]
        %v1247 = vstv %s1246
        %v1248 = vmul.f32 %v320, %v1247
        %v1249 = vmul.f32 %v321, %v1247
        %v1250 = vmul.f32 %v322, %v1247
        %1254 = vrot.lane.b32.xlu0 %v1248, 121
        %v1255 = vpop.permute.xlu0 %1254
        %1256 = vrot.lane.b32.xlu0 %v1249, 121
        %v1257 = vpop.permute.xlu0 %1256
        %1258 = vrot.lane.b32.xlu0 %v1250, 121
        %v1259 = vpop.permute.xlu0 %1258
        %v1263 = vadd.f32 %v1203, %v1255
        %v1264 = vadd.f32 %v1204, %v1257
        %v1265 = vadd.f32 %v1205, %v1259
        %s1266 = sld [smem:[#allocation6 + $0x5]]
        %v1267 = vstv %s1266
        %v1268 = vmul.f32 %v320, %v1267
        %v1269 = vmul.f32 %v321, %v1267
        %v1270 = vmul.f32 %v322, %v1267
        %1274 = vrot.lane.b32.xlu0 %v1268, 123
        %v1275 = vpop.permute.xlu0 %1274
        %1276 = vrot.lane.b32.xlu0 %v1269, 123
        %v1277 = vpop.permute.xlu0 %1276
        %1278 = vrot.lane.b32.xlu0 %v1270, 123
        %v1279 = vpop.permute.xlu0 %1278
        %v1283 = vadd.f32 %v1223, %v1275
        %v1284 = vadd.f32 %v1224, %v1277
        %v1285 = vadd.f32 %v1225, %v1279
        %s1286 = sld [smem:[#allocation6 + $0x1f]]
        %v1287 = vstv %s1286
        %v1288 = vmul.f32 %v320, %v1287
        %v1289 = vmul.f32 %v321, %v1287
        %v1290 = vmul.f32 %v322, %v1287
        %1294 = vrot.lane.b32.xlu0 %v1288, 115
        %v1295 = vpop.permute.xlu0 %1294
        %1296 = vrot.lane.b32.xlu0 %v1289, 115
        %v1297 = vpop.permute.xlu0 %1296
        %1298 = vrot.lane.b32.xlu0 %v1290, 115
        %v1299 = vpop.permute.xlu0 %1298
        %v1303 = vadd.f32 %v1243, %v1295
        %v1304 = vadd.f32 %v1244, %v1297
        %v1305 = vadd.f32 %v1245, %v1299
        %s1306 = sld [smem:[#allocation6 + $0xf]]
        %v1307 = vstv %s1306
        %v1308 = vmul.f32 %v320, %v1307
        %v1309 = vmul.f32 %v321, %v1307
        %v1310 = vmul.f32 %v322, %v1307
        %1314 = vrot.lane.b32.xlu0 %v1308, 120
        %v1315 = vpop.permute.xlu0 %1314
        %1316 = vrot.lane.b32.xlu0 %v1309, 120
        %v1317 = vpop.permute.xlu0 %1316
        %1318 = vrot.lane.b32.xlu0 %v1310, 120
        %v1319 = vpop.permute.xlu0 %1318
        %v1323 = vadd.f32 %v1263, %v1315
        %v1324 = vadd.f32 %v1264, %v1317
        %v1325 = vadd.f32 %v1265, %v1319
        %s1326 = sld [smem:[#allocation6 + $0x6]]
        %v1327 = vstv %s1326
        %v1328 = vmul.f32 %v320, %v1327
        %v1329 = vmul.f32 %v321, %v1327
        %v1330 = vmul.f32 %v322, %v1327
        %1334 = vrot.lane.b32.xlu0 %v1328, 122
        %v1335 = vpop.permute.xlu0 %1334
        %1336 = vrot.lane.b32.xlu0 %v1329, 122
        %v1337 = vpop.permute.xlu0 %1336
        %1338 = vrot.lane.b32.xlu0 %v1330, 122
        %v1339 = vpop.permute.xlu0 %1338
        %v1343 = vadd.f32 %v1283, %v1335
        %v1344 = vadd.f32 %v1284, %v1337
        %v1345 = vadd.f32 %v1285, %v1339
        %s1346 = sld [smem:[#allocation6 + $0x20]]
        %v1347 = vstv %s1346
        %v1348 = vmul.f32 %v320, %v1347
        %v1349 = vmul.f32 %v321, %v1347
        %v1350 = vmul.f32 %v322, %v1347
        %1354 = vrot.lane.b32.xlu0 %v1348, 114
        %v1355 = vpop.permute.xlu0 %1354
        %1356 = vrot.lane.b32.xlu0 %v1349, 114
        %v1357 = vpop.permute.xlu0 %1356
        %1358 = vrot.lane.b32.xlu0 %v1350, 114
        %v1359 = vpop.permute.xlu0 %1358
        %v1363 = vadd.f32 %v1303, %v1355
        %v1364 = vadd.f32 %v1304, %v1357
        %v1365 = vadd.f32 %v1305, %v1359
        %s1366 = sld [smem:[#allocation6 + $0x10]]
        %v1367 = vstv %s1366
        %v1368 = vmul.f32 %v320, %v1367
        %v1369 = vmul.f32 %v321, %v1367
        %v1370 = vmul.f32 %v322, %v1367
        %1374 = vrot.lane.b32.xlu0 %v1368, 119
        %v1375 = vpop.permute.xlu0 %1374
        %1376 = vrot.lane.b32.xlu0 %v1369, 119
        %v1377 = vpop.permute.xlu0 %1376
        %1378 = vrot.lane.b32.xlu0 %v1370, 119
        %v1379 = vpop.permute.xlu0 %1378
        %v1383 = vadd.f32 %v1323, %v1375
        %v1384 = vadd.f32 %v1324, %v1377
        %v1385 = vadd.f32 %v1325, %v1379
        %s1386 = sld [smem:[#allocation6 + $0x21]]
        %v1387 = vstv %s1386
        %v1388 = vmul.f32 %v320, %v1387
        %v1389 = vmul.f32 %v321, %v1387
        %v1390 = vmul.f32 %v322, %v1387
        %1394 = vrot.lane.b32.xlu0 %v1388, 113
        %v1395 = vpop.permute.xlu0 %1394
        %1396 = vrot.lane.b32.xlu0 %v1389, 113
        %v1397 = vpop.permute.xlu0 %1396
        %1398 = vrot.lane.b32.xlu0 %v1390, 113
        %v1399 = vpop.permute.xlu0 %1398
        %v1403 = vadd.f32 %v1363, %v1395
        %v1404 = vadd.f32 %v1364, %v1397
        %v1405 = vadd.f32 %v1365, %v1399
        %s1406 = sld [smem:[#allocation6 + $0x11]]
        %v1407 = vstv %s1406
        %v1408 = vmul.f32 %v320, %v1407
        %v1409 = vmul.f32 %v321, %v1407
        %v1410 = vmul.f32 %v322, %v1407
        %1414 = vrot.lane.b32.xlu0 %v1408, 118
        %v1415 = vpop.permute.xlu0 %1414
        %1416 = vrot.lane.b32.xlu0 %v1409, 118
        %v1417 = vpop.permute.xlu0 %1416
        %1418 = vrot.lane.b32.xlu0 %v1410, 118
        %v1419 = vpop.permute.xlu0 %1418
        %v1423 = vadd.f32 %v1383, %v1415
        %v1424 = vadd.f32 %v1384, %v1417
        %v1425 = vadd.f32 %v1385, %v1419
        %s1426 = sld [smem:[#allocation6 + $0x22]]
        %v1427 = vstv %s1426
        %v1428 = vmul.f32 %v320, %v1427
        %v1429 = vmul.f32 %v321, %v1427
        %v1430 = vmul.f32 %v322, %v1427
        %1434 = vrot.lane.b32.xlu0 %v1428, 112
        %v1435 = vpop.permute.xlu0 %1434
        %1436 = vrot.lane.b32.xlu0 %v1429, 112
        %v1437 = vpop.permute.xlu0 %1436
        %1438 = vrot.lane.b32.xlu0 %v1430, 112
        %v1439 = vpop.permute.xlu0 %1438
        %v1443 = vadd.f32 %v1403, %v1435
        %v1444 = vadd.f32 %v1404, %v1437
        %v1445 = vadd.f32 %v1405, %v1439
        %s1446 = sld [smem:[#allocation6 + $0x23]]
        %v1447 = vstv %s1446
        %v1448 = vmul.f32 %v320, %v1447
        %v1449 = vmul.f32 %v321, %v1447
        %v1450 = vmul.f32 %v322, %v1447
        %1454 = vrot.lane.b32.xlu0 %v1448, 111
        %v1455 = vpop.permute.xlu0 %1454
        %1456 = vrot.lane.b32.xlu0 %v1449, 111
        %v1457 = vpop.permute.xlu0 %1456
        %1458 = vrot.lane.b32.xlu0 %v1450, 111
        %v1459 = vpop.permute.xlu0 %1458
        %v1463 = vadd.f32 %v1443, %v1455
        %v1464 = vadd.f32 %v1444, %v1457
        %v1465 = vadd.f32 %v1445, %v1459
        %s1466 = sld [smem:[#allocation6 + $0x24]]
        %v1467 = vstv %s1466
        %v1468 = vmul.f32 %v320, %v1467
        %v1469 = vmul.f32 %v321, %v1467
        %v1470 = vmul.f32 %v322, %v1467
        %1474 = vrot.lane.b32.xlu0 %v1468, 110
        %v1475 = vpop.permute.xlu0 %1474
        %1476 = vrot.lane.b32.xlu0 %v1469, 110
        %v1477 = vpop.permute.xlu0 %1476
        %1478 = vrot.lane.b32.xlu0 %v1470, 110
        %v1479 = vpop.permute.xlu0 %1478
        %v1483 = vadd.f32 %v1463, %v1475
        %v1484 = vadd.f32 %v1464, %v1477
        %v1485 = vadd.f32 %v1465, %v1479
        %s1486 = sld [smem:[#allocation6 + $0x25]]
        %v1487 = vstv %s1486
        %v1488 = vmul.f32 %v320, %v1487
        %v1489 = vmul.f32 %v321, %v1487
        %v1490 = vmul.f32 %v322, %v1487
        %1494 = vrot.lane.b32.xlu0 %v1488, 109
        %v1495 = vpop.permute.xlu0 %1494
        %1496 = vrot.lane.b32.xlu0 %v1489, 109
        %v1497 = vpop.permute.xlu0 %1496
        %1498 = vrot.lane.b32.xlu0 %v1490, 109
        %v1499 = vpop.permute.xlu0 %1498
        %v1503 = vadd.f32 %v1483, %v1495
        %v1504 = vadd.f32 %v1484, %v1497
        %v1505 = vadd.f32 %v1485, %v1499
        %s1506 = sld [smem:[#allocation6 + $0x26]]
        %v1507 = vstv %s1506
        %v1508 = vmul.f32 %v320, %v1507
        %v1509 = vmul.f32 %v321, %v1507
        %v1510 = vmul.f32 %v322, %v1507
        %1514 = vrot.lane.b32.xlu0 %v1508, 108
        %v1515 = vpop.permute.xlu0 %1514
        %1516 = vrot.lane.b32.xlu0 %v1509, 108
        %v1517 = vpop.permute.xlu0 %1516
        %1518 = vrot.lane.b32.xlu0 %v1510, 108
        %v1519 = vpop.permute.xlu0 %1518
        %v1523 = vadd.f32 %v1503, %v1515
        %v1524 = vadd.f32 %v1504, %v1517
        %v1525 = vadd.f32 %v1505, %v1519
        %s1526 = sld [smem:[#allocation11]]
        %v1527 = vstv %s1526
        %v1528 = vadd.f32 %v1343, %v1527
        %v1529 = vadd.f32 %v1344, %v1527
        %v1530 = vadd.f32 %v1345, %v1527
        %s1531 = sld [smem:[#allocation11 + $0x1]]
        %v1532 = vstv %s1531
        %v1533 = vadd.f32 %v1423, %v1532
        %v1534 = vadd.f32 %v1424, %v1532
        %v1535 = vadd.f32 %v1425, %v1532
        %s1536 = sld [smem:[#allocation11 + $0x2]]
        %v1537 = vstv %s1536
        %v1538 = vadd.f32 %v1523, %v1537
        %v1539 = vadd.f32 %v1524, %v1537
        %v1540 = vadd.f32 %v1525, %v1537
        %1544 = vrot.lane.b32.xlu0 %v1528, 121
        %v1545 = vpop.permute.xlu0 %1544
        %1546 = vrot.lane.b32.xlu0 %v1529, 121
        %v1547 = vpop.permute.xlu0 %1546
        %1548 = vrot.lane.b32.xlu0 %v1530, 121
        %v1549 = vpop.permute.xlu0 %1548
        %vm1553 = vcmask 130050
        %1554 = vst.msk [vmem:[#allocation2 + $0x8] sm:$0xfc] %vm1553, %v1545
        %1555 = vst.msk [vmem:[#allocation2 + $0x10] sm:$0xff] %vm314, %v1547
        %1556 = vst.msk [vmem:[#allocation2 + $0x18] sm:$0x3] %vm316, %v1549
        %v1557 = vld [vmem:[#allocation2 + $0x7] sm:$0xff]
        %v1558 = vld [vmem:[#allocation2 + $0xf] sm:$0xff]
        %s1559 = sld [smem:[#allocation8]]
        %v1560 = vstv %s1559
        %v1561 = vmul.f32 %v1557, %v1560
        %v1562 = vmul.f32 %v1558, %v1560
        %1565 = vrot.lane.b32.xlu0 %v1561, 8
        %v1566 = vpop.permute.xlu0 %1565
        %1567 = vrot.lane.b32.xlu0 %v1562, 8
        %v1568 = vpop.permute.xlu0 %1567
        %v1571 = vadd.f32 %v789, %v1566
        %v1572 = vadd.f32 %v790, %v1568
        %v1573 = vld [vmem:[#allocation2 + $0x8] sm:$0xff]
        %v1574 = vld [vmem:[#allocation2 + $0x10] sm:$0xff]
        %s1575 = sld [smem:[#allocation8 + $0x1]]
        %v1576 = vstv %s1575
        %v1577 = vmul.f32 %v1573, %v1576
        %v1578 = vmul.f32 %v1574, %v1576
        %1581 = vrot.lane.b32.xlu0 %v1577, 8
        %v1582 = vpop.permute.xlu0 %1581
        %1583 = vrot.lane.b32.xlu0 %v1578, 8
        %v1584 = vpop.permute.xlu0 %1583
        %v1587 = vadd.f32 %v1571, %v1582
        %v1588 = vadd.f32 %v1572, %v1584
        %v1589 = vld [vmem:[#allocation2 + $0x9] sm:$0xff]
        %v1590 = vld [vmem:[#allocation2 + $0x11] sm:$0xff]
        %s1591 = sld [smem:[#allocation8 + $0x2]]
        %v1592 = vstv %s1591
        %v1593 = vmul.f32 %v1589, %v1592
        %v1594 = vmul.f32 %v1590, %v1592
        %1597 = vrot.lane.b32.xlu0 %v1593, 8
        %v1598 = vpop.permute.xlu0 %1597
        %1599 = vrot.lane.b32.xlu0 %v1594, 8
        %v1600 = vpop.permute.xlu0 %1599
        %v1603 = vadd.f32 %v1587, %v1598
        %v1604 = vadd.f32 %v1588, %v1600
        %v1605 = vld [vmem:[#allocation2 + $0xa] sm:$0xff]
        %v1606 = vld [vmem:[#allocation2 + $0x12] sm:$0xff]
        %s1607 = sld [smem:[#allocation8 + $0x3]]
        %v1608 = vstv %s1607
        %v1609 = vmul.f32 %v1605, %v1608
        %v1610 = vmul.f32 %v1606, %v1608
        %1613 = vrot.lane.b32.xlu0 %v1609, 8
        %v1614 = vpop.permute.xlu0 %1613
        %1615 = vrot.lane.b32.xlu0 %v1610, 8
        %v1616 = vpop.permute.xlu0 %1615
        %v1619 = vadd.f32 %v1603, %v1614
        %v1620 = vadd.f32 %v1604, %v1616
        %v1621 = vld [vmem:[#allocation2 + $0xb] sm:$0xff]
        %v1622 = vld [vmem:[#allocation2 + $0x13] sm:$0xff]
        %s1623 = sld [smem:[#allocation8 + $0x4]]
        %v1624 = vstv %s1623
        %v1625 = vmul.f32 %v1621, %v1624
        %v1626 = vmul.f32 %v1622, %v1624
        %1629 = vrot.lane.b32.xlu0 %v1625, 8
        %v1630 = vpop.permute.xlu0 %1629
        %1631 = vrot.lane.b32.xlu0 %v1626, 8
        %v1632 = vpop.permute.xlu0 %1631
        %v1635 = vadd.f32 %v1619, %v1630
        %v1636 = vadd.f32 %v1620, %v1632
        %v1637 = vld [vmem:[#allocation2 + $0xc] sm:$0xff]
        %v1638 = vld [vmem:[#allocation2 + $0x14] sm:$0xff]
        %s1639 = sld [smem:[#allocation8 + $0x5]]
        %v1640 = vstv %s1639
        %v1641 = vmul.f32 %v1637, %v1640
        %v1642 = vmul.f32 %v1638, %v1640
        %1645 = vrot.lane.b32.xlu0 %v1641, 8
        %v1646 = vpop.permute.xlu0 %1645
        %1647 = vrot.lane.b32.xlu0 %v1642, 8
        %v1648 = vpop.permute.xlu0 %1647
        %v1651 = vadd.f32 %v1635, %v1646
        %v1652 = vadd.f32 %v1636, %v1648
        %v1653 = vld [vmem:[#allocation2 + $0xd] sm:$0xff]
        %v1654 = vld [vmem:[#allocation2 + $0x15] sm:$0xff]
        %s1655 = sld [smem:[#allocation8 + $0x6]]
        %v1656 = vstv %s1655
        %v1657 = vmul.f32 %v1653, %v1656
        %v1658 = vmul.f32 %v1654, %v1656
        %1661 = vrot.lane.b32.xlu0 %v1657, 8
        %v1662 = vpop.permute.xlu0 %1661
        %1663 = vrot.lane.b32.xlu0 %v1658, 8
        %v1664 = vpop.permute.xlu0 %1663
        %v1667 = vadd.f32 %v1651, %v1662
        %v1668 = vadd.f32 %v1652, %v1664
        %1672 = vrot.lane.b32.xlu0 %v1533, 123
        %v1673 = vpop.permute.xlu0 %1672
        %1674 = vrot.lane.b32.xlu0 %v1534, 123
        %v1675 = vpop.permute.xlu0 %1674
        %1676 = vrot.lane.b32.xlu0 %v1535, 123
        %v1677 = vpop.permute.xlu0 %1676
        %1681 = vst.msk [vmem:[#allocation2 + $0x8] sm:$0xfc] %vm1553, %v1673
        %1682 = vst.msk [vmem:[#allocation2 + $0x10] sm:$0xff] %vm314, %v1675
        %1683 = vst.msk [vmem:[#allocation2 + $0x18] sm:$0x3] %vm316, %v1677
        %v1684 = vld [vmem:[#allocation2 + $0x5] sm:$0xff]
        %v1685 = vld [vmem:[#allocation2 + $0xd] sm:$0xff]
        %s1686 = sld [smem:[#allocation8 + $0x7]]
        %v1687 = vstv %s1686
        %v1688 = vmul.f32 %v1684, %v1687
        %v1689 = vmul.f32 %v1685, %v1687
        %1692 = vrot.lane.b32.xlu0 %v1688, 8
        %v1693 = vpop.permute.xlu0 %1692
        %1694 = vrot.lane.b32.xlu0 %v1689, 8
        %v1695 = vpop.permute.xlu0 %1694
        %v1698 = vadd.f32 %v1667, %v1693
        %v1699 = vadd.f32 %v1668, %v1695
        %v1700 = vld [vmem:[#allocation2 + $0x6] sm:$0xff]
        %v1701 = vld [vmem:[#allocation2 + $0xe] sm:$0xff]
        %s1702 = sld [smem:[#allocation8 + $0x8]]
        %v1703 = vstv %s1702
        %v1704 = vmul.f32 %v1700, %v1703
        %v1705 = vmul.f32 %v1701, %v1703
        %1708 = vrot.lane.b32.xlu0 %v1704, 8
        %v1709 = vpop.permute.xlu0 %1708
        %1710 = vrot.lane.b32.xlu0 %v1705, 8
        %v1711 = vpop.permute.xlu0 %1710
        %v1714 = vadd.f32 %v1698, %v1709
        %v1715 = vadd.f32 %v1699, %v1711
        %v1716 = vld [vmem:[#allocation2 + $0x7] sm:$0xff]
        %v1717 = vld [vmem:[#allocation2 + $0xf] sm:$0xff]
        %s1718 = sld [smem:[#allocation8 + $0x9]]
        %v1719 = vstv %s1718
        %v1720 = vmul.f32 %v1716, %v1719
        %v1721 = vmul.f32 %v1717, %v1719
        %1724 = vrot.lane.b32.xlu0 %v1720, 8
        %v1725 = vpop.permute.xlu0 %1724
        %1726 = vrot.lane.b32.xlu0 %v1721, 8
        %v1727 = vpop.permute.xlu0 %1726
        %v1730 = vadd.f32 %v1714, %v1725
        %v1731 = vadd.f32 %v1715, %v1727
        %v1732 = vld [vmem:[#allocation2 + $0x8] sm:$0xff]
        %v1733 = vld [vmem:[#allocation2 + $0x10] sm:$0xff]
        %s1734 = sld [smem:[#allocation8 + $0xa]]
        %v1735 = vstv %s1734
        %v1736 = vmul.f32 %v1732, %v1735
        %v1737 = vmul.f32 %v1733, %v1735
        %1740 = vrot.lane.b32.xlu0 %v1736, 8
        %v1741 = vpop.permute.xlu0 %1740
        %1742 = vrot.lane.b32.xlu0 %v1737, 8
        %v1743 = vpop.permute.xlu0 %1742
        %v1746 = vadd.f32 %v1730, %v1741
        %v1747 = vadd.f32 %v1731, %v1743
        %v1748 = vld [vmem:[#allocation2 + $0x9] sm:$0xff]
        %v1749 = vld [vmem:[#allocation2 + $0x11] sm:$0xff]
        %s1750 = sld [smem:[#allocation8 + $0xb]]
        %v1751 = vstv %s1750
        %v1752 = vmul.f32 %v1748, %v1751
        %v1753 = vmul.f32 %v1749, %v1751
        %1756 = vrot.lane.b32.xlu0 %v1752, 8
        %v1757 = vpop.permute.xlu0 %1756
        %1758 = vrot.lane.b32.xlu0 %v1753, 8
        %v1759 = vpop.permute.xlu0 %1758
        %v1762 = vadd.f32 %v1746, %v1757
        %v1763 = vadd.f32 %v1747, %v1759
        %v1764 = vld [vmem:[#allocation2 + $0xa] sm:$0xff]
        %v1765 = vld [vmem:[#allocation2 + $0x12] sm:$0xff]
        %s1766 = sld [smem:[#allocation8 + $0xc]]
        %v1767 = vstv %s1766
        %v1768 = vmul.f32 %v1764, %v1767
        %v1769 = vmul.f32 %v1765, %v1767
        %1772 = vrot.lane.b32.xlu0 %v1768, 8
        %v1773 = vpop.permute.xlu0 %1772
        %1774 = vrot.lane.b32.xlu0 %v1769, 8
        %v1775 = vpop.permute.xlu0 %1774
        %v1778 = vadd.f32 %v1762, %v1773
        %v1779 = vadd.f32 %v1763, %v1775
        %v1780 = vld [vmem:[#allocation2 + $0xb] sm:$0xff]
        %v1781 = vld [vmem:[#allocation2 + $0x13] sm:$0xff]
        %s1782 = sld [smem:[#allocation8 + $0xd]]
        %v1783 = vstv %s1782
        %v1784 = vmul.f32 %v1780, %v1783
        %v1785 = vmul.f32 %v1781, %v1783
        %1788 = vrot.lane.b32.xlu0 %v1784, 8
        %v1789 = vpop.permute.xlu0 %1788
        %1790 = vrot.lane.b32.xlu0 %v1785, 8
        %v1791 = vpop.permute.xlu0 %1790
        %v1794 = vadd.f32 %v1778, %v1789
        %v1795 = vadd.f32 %v1779, %v1791
        %v1796 = vld [vmem:[#allocation2 + $0xc] sm:$0xff]
        %v1797 = vld [vmem:[#allocation2 + $0x14] sm:$0xff]
        %s1798 = sld [smem:[#allocation8 + $0xe]]
        %v1799 = vstv %s1798
        %v1800 = vmul.f32 %v1796, %v1799
        %v1801 = vmul.f32 %v1797, %v1799
        %1804 = vrot.lane.b32.xlu0 %v1800, 8
        %v1805 = vpop.permute.xlu0 %1804
        %1806 = vrot.lane.b32.xlu0 %v1801, 8
        %v1807 = vpop.permute.xlu0 %1806
        %v1810 = vadd.f32 %v1794, %v1805
        %v1811 = vadd.f32 %v1795, %v1807
        %v1812 = vld [vmem:[#allocation2 + $0xd] sm:$0xff]
        %v1813 = vld [vmem:[#allocation2 + $0x15] sm:$0xff]
        %s1814 = sld [smem:[#allocation8 + $0xf]]
        %v1815 = vstv %s1814
        %v1816 = vmul.f32 %v1812, %v1815
        %v1817 = vmul.f32 %v1813, %v1815
        %1820 = vrot.lane.b32.xlu0 %v1816, 8
        %v1821 = vpop.permute.xlu0 %1820
        %1822 = vrot.lane.b32.xlu0 %v1817, 8
        %v1823 = vpop.permute.xlu0 %1822
        %v1826 = vadd.f32 %v1810, %v1821
        %v1827 = vadd.f32 %v1811, %v1823
        %v1828 = vld [vmem:[#allocation2 + $0xe] sm:$0xff]
        %v1829 = vld [vmem:[#allocation2 + $0x16] sm:$0xff]
        %s1830 = sld [smem:[#allocation8 + $0x10]]
        %v1831 = vstv %s1830
        %v1832 = vmul.f32 %v1828, %v1831
        %v1833 = vmul.f32 %v1829, %v1831
        %1836 = vrot.lane.b32.xlu0 %v1832, 8
        %v1837 = vpop.permute.xlu0 %1836
        %1838 = vrot.lane.b32.xlu0 %v1833, 8
        %v1839 = vpop.permute.xlu0 %1838
        %v1842 = vadd.f32 %v1826, %v1837
        %v1843 = vadd.f32 %v1827, %v1839
        %v1844 = vld [vmem:[#allocation2 + $0xf] sm:$0xff]
        %v1845 = vld [vmem:[#allocation2 + $0x17] sm:$0xff]
        %s1846 = sld [smem:[#allocation8 + $0x11]]
        %v1847 = vstv %s1846
        %v1848 = vmul.f32 %v1844, %v1847
        %v1849 = vmul.f32 %v1845, %v1847
        %1852 = vrot.lane.b32.xlu0 %v1848, 8
        %v1853 = vpop.permute.xlu0 %1852
        %1854 = vrot.lane.b32.xlu0 %v1849, 8
        %v1855 = vpop.permute.xlu0 %1854
        %v1858 = vadd.f32 %v1842, %v1853
        %v1859 = vadd.f32 %v1843, %v1855
        %1860 = vst.msk [vmem:[#allocation2 + $0x8] sm:$0xfc] %vm1553, %v1538
        %1861 = vst.msk [vmem:[#allocation2 + $0x10] sm:$0xff] %vm314, %v1539
        %1862 = vst.msk [vmem:[#allocation2 + $0x18] sm:$0x3] %vm316, %v1540
        %v1863 = vld [vmem:[#allocation2] sm:$0xff]
        %v1864 = vld [vmem:[#allocation2 + $0x8] sm:$0xff]
        %s1865 = sld [smem:[#allocation8 + $0x12]]
        %v1866 = vstv %s1865
        %v1867 = vmul.f32 %v1863, %v1866
        %v1868 = vmul.f32 %v1864, %v1866
        %1871 = vrot.lane.b32.xlu0 %v1867, 8
        %v1872 = vpop.permute.xlu0 %1871
        %1873 = vrot.lane.b32.xlu0 %v1868, 8
        %v1874 = vpop.permute.xlu0 %1873
        %v1877 = vadd.f32 %v1858, %v1872
        %v1878 = vadd.f32 %v1859, %v1874
        %v1879 = vld [vmem:[#allocation2 + $0x1] sm:$0xff]
        %v1880 = vld [vmem:[#allocation2 + $0x9] sm:$0xff]
        %s1881 = sld [smem:[#allocation8 + $0x13]]
        %v1882 = vstv %s1881
        %v1883 = vmul.f32 %v1879, %v1882
        %v1884 = vmul.f32 %v1880, %v1882
        %1887 = vrot.lane.b32.xlu0 %v1883, 8
        %v1888 = vpop.permute.xlu0 %1887
        %1889 = vrot.lane.b32.xlu0 %v1884, 8
        %v1890 = vpop.permute.xlu0 %1889
        %v1893 = vadd.f32 %v1877, %v1888
        %v1894 = vadd.f32 %v1878, %v1890
        %v1895 = vld [vmem:[#allocation2 + $0x2] sm:$0xff]
        %v1896 = vld [vmem:[#allocation2 + $0xa] sm:$0xff]
        %s1897 = sld [smem:[#allocation8 + $0x14]]
        %v1898 = vstv %s1897
        %v1899 = vmul.f32 %v1895, %v1898
        %v1900 = vmul.f32 %v1896, %v1898
        %1903 = vrot.lane.b32.xlu0 %v1899, 8
        %v1904 = vpop.permute.xlu0 %1903
        %1905 = vrot.lane.b32.xlu0 %v1900, 8
        %v1906 = vpop.permute.xlu0 %1905
        %v1909 = vadd.f32 %v1893, %v1904
        %v1910 = vadd.f32 %v1894, %v1906
        %v1911 = vld [vmem:[#allocation2 + $0x3] sm:$0xff]
        %v1912 = vld [vmem:[#allocation2 + $0xb] sm:$0xff]
        %s1913 = sld [smem:[#allocation8 + $0x15]]
        %v1914 = vstv %s1913
        %v1915 = vmul.f32 %v1911, %v1914
        %v1916 = vmul.f32 %v1912, %v1914
        %1919 = vrot.lane.b32.xlu0 %v1915, 8
        %v1920 = vpop.permute.xlu0 %1919
        %1921 = vrot.lane.b32.xlu0 %v1916, 8
        %v1922 = vpop.permute.xlu0 %1921
        %v1925 = vadd.f32 %v1909, %v1920
        %v1926 = vadd.f32 %v1910, %v1922
        %v1927 = vld [vmem:[#allocation2 + $0x4] sm:$0xff]
        %v1928 = vld [vmem:[#allocation2 + $0xc] sm:$0xff]
        %s1929 = sld [smem:[#allocation8 + $0x16]]
        %v1930 = vstv %s1929
        %v1931 = vmul.f32 %v1927, %v1930
        %v1932 = vmul.f32 %v1928, %v1930
        %1935 = vrot.lane.b32.xlu0 %v1931, 8
        %v1936 = vpop.permute.xlu0 %1935
        %1937 = vrot.lane.b32.xlu0 %v1932, 8
        %v1938 = vpop.permute.xlu0 %1937
        %v1941 = vadd.f32 %v1925, %v1936
        %v1942 = vadd.f32 %v1926, %v1938
        %v1943 = vld [vmem:[#allocation2 + $0x5] sm:$0xff]
        %v1944 = vld [vmem:[#allocation2 + $0xd] sm:$0xff]
        %s1945 = sld [smem:[#allocation8 + $0x17]]
        %v1946 = vstv %s1945
        %v1947 = vmul.f32 %v1943, %v1946
        %v1948 = vmul.f32 %v1944, %v1946
        %1951 = vrot.lane.b32.xlu0 %v1947, 8
        %v1952 = vpop.permute.xlu0 %1951
        %1953 = vrot.lane.b32.xlu0 %v1948, 8
        %v1954 = vpop.permute.xlu0 %1953
        %v1957 = vadd.f32 %v1941, %v1952
        %v1958 = vadd.f32 %v1942, %v1954
        %v1959 = vld [vmem:[#allocation2 + $0x6] sm:$0xff]
        %v1960 = vld [vmem:[#allocation2 + $0xe] sm:$0xff]
        %s1961 = sld [smem:[#allocation8 + $0x18]]
        %v1962 = vstv %s1961
        %v1963 = vmul.f32 %v1959, %v1962
        %v1964 = vmul.f32 %v1960, %v1962
        %1967 = vrot.lane.b32.xlu0 %v1963, 8
        %v1968 = vpop.permute.xlu0 %1967
        %1969 = vrot.lane.b32.xlu0 %v1964, 8
        %v1970 = vpop.permute.xlu0 %1969
        %v1973 = vadd.f32 %v1957, %v1968
        %v1974 = vadd.f32 %v1958, %v1970
        %v1975 = vld [vmem:[#allocation2 + $0x7] sm:$0xff]
        %v1976 = vld [vmem:[#allocation2 + $0xf] sm:$0xff]
        %s1977 = sld [smem:[#allocation8 + $0x19]]
        %v1978 = vstv %s1977
        %v1979 = vmul.f32 %v1975, %v1978
        %v1980 = vmul.f32 %v1976, %v1978
        %1983 = vrot.lane.b32.xlu0 %v1979, 8
        %v1984 = vpop.permute.xlu0 %1983
        %1985 = vrot.lane.b32.xlu0 %v1980, 8
        %v1986 = vpop.permute.xlu0 %1985
        %v1989 = vadd.f32 %v1973, %v1984
        %v1990 = vadd.f32 %v1974, %v1986
        %v1991 = vld [vmem:[#allocation2 + $0x8] sm:$0xff]
        %v1992 = vld [vmem:[#allocation2 + $0x10] sm:$0xff]
        %s1993 = sld [smem:[#allocation8 + $0x1a]]
        %v1994 = vstv %s1993
        %v1995 = vmul.f32 %v1991, %v1994
        %v1996 = vmul.f32 %v1992, %v1994
        %1999 = vrot.lane.b32.xlu0 %v1995, 8
        %v2000 = vpop.permute.xlu0 %1999
        %2001 = vrot.lane.b32.xlu0 %v1996, 8
        %v2002 = vpop.permute.xlu0 %2001
        %v2005 = vadd.f32 %v1989, %v2000
        %v2006 = vadd.f32 %v1990, %v2002
        %v2007 = vld [vmem:[#allocation2 + $0x9] sm:$0xff]
        %v2008 = vld [vmem:[#allocation2 + $0x11] sm:$0xff]
        %s2009 = sld [smem:[#allocation8 + $0x1b]]
        %v2010 = vstv %s2009
        %v2011 = vmul.f32 %v2007, %v2010
        %v2012 = vmul.f32 %v2008, %v2010
        %2015 = vrot.lane.b32.xlu0 %v2011, 8
        %v2016 = vpop.permute.xlu0 %2015
        %2017 = vrot.lane.b32.xlu0 %v2012, 8
        %v2018 = vpop.permute.xlu0 %2017
        %v2021 = vadd.f32 %v2005, %v2016
        %v2022 = vadd.f32 %v2006, %v2018
        %v2023 = vld [vmem:[#allocation2 + $0xa] sm:$0xff]
        %v2024 = vld [vmem:[#allocation2 + $0x12] sm:$0xff]
        %s2025 = sld [smem:[#allocation8 + $0x1c]]
        %v2026 = vstv %s2025
        %v2027 = vmul.f32 %v2023, %v2026
        %v2028 = vmul.f32 %v2024, %v2026
        %2031 = vrot.lane.b32.xlu0 %v2027, 8
        %v2032 = vpop.permute.xlu0 %2031
        %2033 = vrot.lane.b32.xlu0 %v2028, 8
        %v2034 = vpop.permute.xlu0 %2033
        %v2037 = vadd.f32 %v2021, %v2032
        %v2038 = vadd.f32 %v2022, %v2034
        %v2039 = vld [vmem:[#allocation2 + $0xb] sm:$0xff]
        %v2040 = vld [vmem:[#allocation2 + $0x13] sm:$0xff]
        %s2041 = sld [smem:[#allocation8 + $0x1d]]
        %v2042 = vstv %s2041
        %v2043 = vmul.f32 %v2039, %v2042
        %v2044 = vmul.f32 %v2040, %v2042
        %2047 = vrot.lane.b32.xlu0 %v2043, 8
        %v2048 = vpop.permute.xlu0 %2047
        %2049 = vrot.lane.b32.xlu0 %v2044, 8
        %v2050 = vpop.permute.xlu0 %2049
        %v2053 = vadd.f32 %v2037, %v2048
        %v2054 = vadd.f32 %v2038, %v2050
        %v2055 = vld [vmem:[#allocation2 + $0xc] sm:$0xff]
        %v2056 = vld [vmem:[#allocation2 + $0x14] sm:$0xff]
        %s2057 = sld [smem:[#allocation8 + $0x1e]]
        %v2058 = vstv %s2057
        %v2059 = vmul.f32 %v2055, %v2058
        %v2060 = vmul.f32 %v2056, %v2058
        %2063 = vrot.lane.b32.xlu0 %v2059, 8
        %v2064 = vpop.permute.xlu0 %2063
        %2065 = vrot.lane.b32.xlu0 %v2060, 8
        %v2066 = vpop.permute.xlu0 %2065
        %v2069 = vadd.f32 %v2053, %v2064
        %v2070 = vadd.f32 %v2054, %v2066
        %v2071 = vld [vmem:[#allocation2 + $0xd] sm:$0xff]
        %v2072 = vld [vmem:[#allocation2 + $0x15] sm:$0xff]
        %s2073 = sld [smem:[#allocation8 + $0x1f]]
        %v2074 = vstv %s2073
        %v2075 = vmul.f32 %v2071, %v2074
        %v2076 = vmul.f32 %v2072, %v2074
        %2079 = vrot.lane.b32.xlu0 %v2075, 8
        %v2080 = vpop.permute.xlu0 %2079
        %2081 = vrot.lane.b32.xlu0 %v2076, 8
        %v2082 = vpop.permute.xlu0 %2081
        %v2085 = vadd.f32 %v2069, %v2080
        %v2086 = vadd.f32 %v2070, %v2082
        %v2087 = vld [vmem:[#allocation2 + $0xe] sm:$0xff]
        %v2088 = vld [vmem:[#allocation2 + $0x16] sm:$0xff]
        %s2089 = sld [smem:[#allocation8 + $0x20]]
        %v2090 = vstv %s2089
        %v2091 = vmul.f32 %v2087, %v2090
        %v2092 = vmul.f32 %v2088, %v2090
        %2095 = vrot.lane.b32.xlu0 %v2091, 8
        %v2096 = vpop.permute.xlu0 %2095
        %2097 = vrot.lane.b32.xlu0 %v2092, 8
        %v2098 = vpop.permute.xlu0 %2097
        %v2101 = vadd.f32 %v2085, %v2096
        %v2102 = vadd.f32 %v2086, %v2098
        %v2103 = vld [vmem:[#allocation2 + $0xf] sm:$0xff]
        %v2104 = vld [vmem:[#allocation2 + $0x17] sm:$0xff]
        %s2105 = sld [smem:[#allocation8 + $0x21]]
        %v2106 = vstv %s2105
        %v2107 = vmul.f32 %v2103, %v2106
        %v2108 = vmul.f32 %v2104, %v2106
        %2111 = vrot.lane.b32.xlu0 %v2107, 8
        %v2112 = vpop.permute.xlu0 %2111
        %2113 = vrot.lane.b32.xlu0 %v2108, 8
        %v2114 = vpop.permute.xlu0 %2113
        %v2117 = vadd.f32 %v2101, %v2112
        %v2118 = vadd.f32 %v2102, %v2114
        %v2119 = vld [vmem:[#allocation2 + $0x10] sm:$0xff]
        %v2120 = vld [vmem:[#allocation2 + $0x18] sm:$0xff]
        %s2121 = sld [smem:[#allocation8 + $0x22]]
        %v2122 = vstv %s2121
        %v2123 = vmul.f32 %v2119, %v2122
        %v2124 = vmul.f32 %v2120, %v2122
        %2127 = vrot.lane.b32.xlu0 %v2123, 8
        %v2128 = vpop.permute.xlu0 %2127
        %2129 = vrot.lane.b32.xlu0 %v2124, 8
        %v2130 = vpop.permute.xlu0 %2129
        %v2133 = vadd.f32 %v2117, %v2128
        %v2134 = vadd.f32 %v2118, %v2130
        %v2135 = vld [vmem:[#allocation2 + $0x11] sm:$0xff]
        %v2136 = vld [vmem:[#allocation2 + $0x19] sm:$0xff]
        %s2137 = sld [smem:[#allocation8 + $0x23]]
        %v2138 = vstv %s2137
        %v2139 = vmul.f32 %v2135, %v2138
        %v2140 = vmul.f32 %v2136, %v2138
        %2143 = vrot.lane.b32.xlu0 %v2139, 8
        %v2144 = vpop.permute.xlu0 %2143
        %2145 = vrot.lane.b32.xlu0 %v2140, 8
        %v2146 = vpop.permute.xlu0 %2145
        %v2149 = vadd.f32 %v2133, %v2144
        %v2150 = vadd.f32 %v2134, %v2146
        %v2151 = vld [vmem:[#allocation2 + $0x12] sm:$0xff]
        %v2152 = vld [vmem:[#allocation2 + $0x1a] sm:$0xff]
        %s2153 = sld [smem:[#allocation8 + $0x24]]
        %v2154 = vstv %s2153
        %v2155 = vmul.f32 %v2151, %v2154
        %v2156 = vmul.f32 %v2152, %v2154
        %2159 = vrot.lane.b32.xlu0 %v2155, 8
        %v2160 = vpop.permute.xlu0 %2159
        %2161 = vrot.lane.b32.xlu0 %v2156, 8
        %v2162 = vpop.permute.xlu0 %2161
        %v2165 = vadd.f32 %v2149, %v2160
        %v2166 = vadd.f32 %v2150, %v2162
        %v2167 = vld [vmem:[#allocation2 + $0x13] sm:$0xff]
        %v2168 = vld [vmem:[#allocation2 + $0x1b] sm:$0xff]
        %s2169 = sld [smem:[#allocation8 + $0x25]]
        %v2170 = vstv %s2169
        %v2171 = vmul.f32 %v2167, %v2170
        %v2172 = vmul.f32 %v2168, %v2170
        %2175 = vrot.lane.b32.xlu0 %v2171, 8
        %v2176 = vpop.permute.xlu0 %2175
        %2177 = vrot.lane.b32.xlu0 %v2172, 8
        %v2178 = vpop.permute.xlu0 %2177
        %v2181 = vadd.f32 %v2165, %v2176
        %v2182 = vadd.f32 %v2166, %v2178
        %v2183 = vld [vmem:[#allocation2 + $0x14] sm:$0xff]
        %v2184 = vld [vmem:[#allocation2 + $0x1c] sm:$0xff]
        %s2185 = sld [smem:[#allocation8 + $0x26]]
        %v2186 = vstv %s2185
        %v2187 = vmul.f32 %v2183, %v2186
        %v2188 = vmul.f32 %v2184, %v2186
        %2191 = vrot.lane.b32.xlu0 %v2187, 8
        %v2192 = vpop.permute.xlu0 %2191
        %2193 = vrot.lane.b32.xlu0 %v2188, 8
        %v2194 = vpop.permute.xlu0 %2193
        %v2197 = vadd.f32 %v2181, %v2192
        %v2198 = vadd.f32 %v2182, %v2194
        %s2199 = scalar_lea.vmem %s313, 24
        %v2200 = vld [vmem:[%s2199] sm:$0xff]
        %v2201 = vld [vmem:[%s2199 + $0x8] sm:$0xff]
        %v2202 = vld [vmem:[%s2199 + $0x10] sm:$0xf]
        %s2203 = sld [smem:[#allocation3 + $0x80]]
        %v2204 = vstv %s2203
        %v2205 = vmul.f32 %v2200, %v2204
        %v2206 = vmul.f32 %v2201, %v2204
        %s2207 = sld [smem:[#allocation3 + $0x85]]
        %v2208 = vstv %s2207
        %v2209 = vmul.f32 %v2200, %v2208
        %v2210 = vmul.f32 %v2201, %v2208
        %v2211 = vmul.f32 %v2202, %v2208
        %v2215 = vrot.slane %v2209, 1
        %v2216 = vrot.slane %v2210, 1
        %v2217 = vsel %vm335, %v2215, %v2216
        %v2218 = vrot.slane %v2211, 1
        %v2219 = vsel %vm335, %v2216, %v2218
        %v2222 = vadd.f32 %v2205, %v2217
        %v2223 = vadd.f32 %v2206, %v2219
        %s2224 = sld [smem:[#allocation3 + $0x8a]]
        %v2225 = vstv %s2224
        %v2226 = vmul.f32 %v2200, %v2225
        %v2227 = vmul.f32 %v2201, %v2225
        %v2228 = vmul.f32 %v2202, %v2225
        %v2232 = vrot.slane %v2226, 2
        %v2233 = vrot.slane %v2227, 2
        %v2234 = vsel %vm353, %v2232, %v2233
        %v2235 = vrot.slane %v2228, 2
        %v2236 = vsel %vm353, %v2233, %v2235
        %v2239 = vadd.f32 %v2222, %v2234
        %v2240 = vadd.f32 %v2223, %v2236
        %s2241 = sld [smem:[#allocation3 + $0x8f]]
        %v2242 = vstv %s2241
        %v2243 = vmul.f32 %v2200, %v2242
        %v2244 = vmul.f32 %v2201, %v2242
        %v2245 = vmul.f32 %v2202, %v2242
        %v2249 = vrot.slane %v2243, 3
        %v2250 = vrot.slane %v2244, 3
        %v2251 = vsel %vm371, %v2249, %v2250
        %v2252 = vrot.slane %v2245, 3
        %v2253 = vsel %vm371, %v2250, %v2252
        %v2256 = vadd.f32 %v2239, %v2251
        %v2257 = vadd.f32 %v2240, %v2253
        %s2258 = sld [smem:[#allocation3 + $0x94]]
        %v2259 = vstv %s2258
        %v2260 = vmul.f32 %v2200, %v2259
        %v2261 = vmul.f32 %v2201, %v2259
        %v2262 = vmul.f32 %v2202, %v2259
        %v2266 = vrot.slane %v2260, 4
        %v2267 = vrot.slane %v2261, 4
        %v2268 = vsel %vm389, %v2266, %v2267
        %v2269 = vrot.slane %v2262, 4
        %v2270 = vsel %vm389, %v2267, %v2269
        %v2273 = vadd.f32 %v2256, %v2268
        %v2274 = vadd.f32 %v2257, %v2270
        %s2275 = sld [smem:[#allocation3 + $0x81]]
        %v2276 = vstv %s2275
        %v2277 = vmul.f32 %v2200, %v2276
        %v2278 = vmul.f32 %v2201, %v2276
        %2281 = vrot.lane.b32.xlu0 %v2277, 127
        %v2282 = vpop.permute.xlu0 %2281
        %2283 = vrot.lane.b32.xlu0 %v2278, 127
        %v2284 = vpop.permute.xlu0 %2283
        %v2287 = vadd.f32 %v2273, %v2282
        %v2288 = vadd.f32 %v2274, %v2284
        %s2289 = sld [smem:[#allocation3 + $0x86]]
        %v2290 = vstv %s2289
        %v2291 = vmul.f32 %v2200, %v2290
        %v2292 = vmul.f32 %v2201, %v2290
        %v2293 = vmul.f32 %v2202, %v2290
        %v2297 = vrot.slane %v2291, 1
        %v2298 = vrot.slane %v2292, 1
        %v2299 = vsel %vm335, %v2297, %v2298
        %v2300 = vrot.slane %v2293, 1
        %v2301 = vsel %vm335, %v2298, %v2300
        %2302 = vrot.lane.b32.xlu0 %v2299, 127
        %v2303 = vpop.permute.xlu0 %2302
        %2304 = vrot.lane.b32.xlu0 %v2301, 127
        %v2305 = vpop.permute.xlu0 %2304
        %v2308 = vadd.f32 %v2287, %v2303
        %v2309 = vadd.f32 %v2288, %v2305
        %s2310 = sld [smem:[#allocation3 + $0x8b]]
        %v2311 = vstv %s2310
        %v2312 = vmul.f32 %v2200, %v2311
        %v2313 = vmul.f32 %v2201, %v2311
        %v2314 = vmul.f32 %v2202, %v2311
        %v2318 = vrot.slane %v2312, 2
        %v2319 = vrot.slane %v2313, 2
        %v2320 = vsel %vm353, %v2318, %v2319
        %v2321 = vrot.slane %v2314, 2
        %v2322 = vsel %vm353, %v2319, %v2321
        %2323 = vrot.lane.b32.xlu0 %v2320, 127
        %v2324 = vpop.permute.xlu0 %2323
        %2325 = vrot.lane.b32.xlu0 %v2322, 127
        %v2326 = vpop.permute.xlu0 %2325
        %v2329 = vadd.f32 %v2308, %v2324
        %v2330 = vadd.f32 %v2309, %v2326
        %s2331 = sld [smem:[#allocation3 + $0x90]]
        %v2332 = vstv %s2331
        %v2333 = vmul.f32 %v2200, %v2332
        %v2334 = vmul.f32 %v2201, %v2332
        %v2335 = vmul.f32 %v2202, %v2332
        %v2339 = vrot.slane %v2333, 3
        %v2340 = vrot.slane %v2334, 3
        %v2341 = vsel %vm371, %v2339, %v2340
        %v2342 = vrot.slane %v2335, 3
        %v2343 = vsel %vm371, %v2340, %v2342
        %2344 = vrot.lane.b32.xlu0 %v2341, 127
        %v2345 = vpop.permute.xlu0 %2344
        %2346 = vrot.lane.b32.xlu0 %v2343, 127
        %v2347 = vpop.permute.xlu0 %2346
        %v2350 = vadd.f32 %v2329, %v2345
        %v2351 = vadd.f32 %v2330, %v2347
        %s2352 = sld [smem:[#allocation3 + $0x95]]
        %v2353 = vstv %s2352
        %v2354 = vmul.f32 %v2200, %v2353
        %v2355 = vmul.f32 %v2201, %v2353
        %v2356 = vmul.f32 %v2202, %v2353
        %v2360 = vrot.slane %v2354, 4
        %v2361 = vrot.slane %v2355, 4
        %v2362 = vsel %vm389, %v2360, %v2361
        %v2363 = vrot.slane %v2356, 4
        %v2364 = vsel %vm389, %v2361, %v2363
        %2365 = vrot.lane.b32.xlu0 %v2362, 127
        %v2366 = vpop.permute.xlu0 %2365
        %2367 = vrot.lane.b32.xlu0 %v2364, 127
        %v2368 = vpop.permute.xlu0 %2367
        %v2371 = vadd.f32 %v2350, %v2366
        %v2372 = vadd.f32 %v2351, %v2368
        %s2373 = sld [smem:[#allocation3 + $0x82]]
        %v2374 = vstv %s2373
        %v2375 = vmul.f32 %v2200, %v2374
        %v2376 = vmul.f32 %v2201, %v2374
        %2379 = vrot.lane.b32.xlu0 %v2375, 126
        %v2380 = vpop.permute.xlu0 %2379
        %2381 = vrot.lane.b32.xlu0 %v2376, 126
        %v2382 = vpop.permute.xlu0 %2381
        %v2385 = vadd.f32 %v2371, %v2380
        %v2386 = vadd.f32 %v2372, %v2382
        %s2387 = sld [smem:[#allocation3 + $0x87]]
        %v2388 = vstv %s2387
        %v2389 = vmul.f32 %v2200, %v2388
        %v2390 = vmul.f32 %v2201, %v2388
        %v2391 = vmul.f32 %v2202, %v2388
        %v2395 = vrot.slane %v2389, 1
        %v2396 = vrot.slane %v2390, 1
        %v2397 = vsel %vm335, %v2395, %v2396
        %v2398 = vrot.slane %v2391, 1
        %v2399 = vsel %vm335, %v2396, %v2398
        %2400 = vrot.lane.b32.xlu0 %v2397, 126
        %v2401 = vpop.permute.xlu0 %2400
        %2402 = vrot.lane.b32.xlu0 %v2399, 126
        %v2403 = vpop.permute.xlu0 %2402
        %v2406 = vadd.f32 %v2385, %v2401
        %v2407 = vadd.f32 %v2386, %v2403
        %s2408 = sld [smem:[#allocation3 + $0x8c]]
        %v2409 = vstv %s2408
        %v2410 = vmul.f32 %v2200, %v2409
        %v2411 = vmul.f32 %v2201, %v2409
        %v2412 = vmul.f32 %v2202, %v2409
        %v2416 = vrot.slane %v2410, 2
        %v2417 = vrot.slane %v2411, 2
        %v2418 = vsel %vm353, %v2416, %v2417
        %v2419 = vrot.slane %v2412, 2
        %v2420 = vsel %vm353, %v2417, %v2419
        %2421 = vrot.lane.b32.xlu0 %v2418, 126
        %v2422 = vpop.permute.xlu0 %2421
        %2423 = vrot.lane.b32.xlu0 %v2420, 126
        %v2424 = vpop.permute.xlu0 %2423
        %v2427 = vadd.f32 %v2406, %v2422
        %v2428 = vadd.f32 %v2407, %v2424
        %s2429 = sld [smem:[#allocation3 + $0x91]]
        %v2430 = vstv %s2429
        %v2431 = vmul.f32 %v2200, %v2430
        %v2432 = vmul.f32 %v2201, %v2430
        %v2433 = vmul.f32 %v2202, %v2430
        %v2437 = vrot.slane %v2431, 3
        %v2438 = vrot.slane %v2432, 3
        %v2439 = vsel %vm371, %v2437, %v2438
        %v2440 = vrot.slane %v2433, 3
        %v2441 = vsel %vm371, %v2438, %v2440
        %2442 = vrot.lane.b32.xlu0 %v2439, 126
        %v2443 = vpop.permute.xlu0 %2442
        %2444 = vrot.lane.b32.xlu0 %v2441, 126
        %v2445 = vpop.permute.xlu0 %2444
        %v2448 = vadd.f32 %v2427, %v2443
        %v2449 = vadd.f32 %v2428, %v2445
        %s2450 = sld [smem:[#allocation3 + $0x96]]
        %v2451 = vstv %s2450
        %v2452 = vmul.f32 %v2200, %v2451
        %v2453 = vmul.f32 %v2201, %v2451
        %v2454 = vmul.f32 %v2202, %v2451
        %v2458 = vrot.slane %v2452, 4
        %v2459 = vrot.slane %v2453, 4
        %v2460 = vsel %vm389, %v2458, %v2459
        %v2461 = vrot.slane %v2454, 4
        %v2462 = vsel %vm389, %v2459, %v2461
        %2463 = vrot.lane.b32.xlu0 %v2460, 126
        %v2464 = vpop.permute.xlu0 %2463
        %2465 = vrot.lane.b32.xlu0 %v2462, 126
        %v2466 = vpop.permute.xlu0 %2465
        %v2469 = vadd.f32 %v2448, %v2464
        %v2470 = vadd.f32 %v2449, %v2466
        %s2471 = sld [smem:[#allocation3 + $0x83]]
        %v2472 = vstv %s2471
        %v2473 = vmul.f32 %v2200, %v2472
        %v2474 = vmul.f32 %v2201, %v2472
        %2477 = vrot.lane.b32.xlu0 %v2473, 125
        %v2478 = vpop.permute.xlu0 %2477
        %2479 = vrot.lane.b32.xlu0 %v2474, 125
        %v2480 = vpop.permute.xlu0 %2479
        %v2483 = vadd.f32 %v2469, %v2478
        %v2484 = vadd.f32 %v2470, %v2480
        %s2485 = sld [smem:[#allocation3 + $0x88]]
        %v2486 = vstv %s2485
        %v2487 = vmul.f32 %v2200, %v2486
        %v2488 = vmul.f32 %v2201, %v2486
        %v2489 = vmul.f32 %v2202, %v2486
        %v2493 = vrot.slane %v2487, 1
        %v2494 = vrot.slane %v2488, 1
        %v2495 = vsel %vm335, %v2493, %v2494
        %v2496 = vrot.slane %v2489, 1
        %v2497 = vsel %vm335, %v2494, %v2496
        %2498 = vrot.lane.b32.xlu0 %v2495, 125
        %v2499 = vpop.permute.xlu0 %2498
        %2500 = vrot.lane.b32.xlu0 %v2497, 125
        %v2501 = vpop.permute.xlu0 %2500
        %v2504 = vadd.f32 %v2483, %v2499
        %v2505 = vadd.f32 %v2484, %v2501
        %s2506 = sld [smem:[#allocation3 + $0x8d]]
        %v2507 = vstv %s2506
        %v2508 = vmul.f32 %v2200, %v2507
        %v2509 = vmul.f32 %v2201, %v2507
        %v2510 = vmul.f32 %v2202, %v2507
        %v2514 = vrot.slane %v2508, 2
        %v2515 = vrot.slane %v2509, 2
        %v2516 = vsel %vm353, %v2514, %v2515
        %v2517 = vrot.slane %v2510, 2
        %v2518 = vsel %vm353, %v2515, %v2517
        %2519 = vrot.lane.b32.xlu0 %v2516, 125
        %v2520 = vpop.permute.xlu0 %2519
        %2521 = vrot.lane.b32.xlu0 %v2518, 125
        %v2522 = vpop.permute.xlu0 %2521
        %v2525 = vadd.f32 %v2504, %v2520
        %v2526 = vadd.f32 %v2505, %v2522
        %s2527 = sld [smem:[#allocation3 + $0x92]]
        %v2528 = vstv %s2527
        %v2529 = vmul.f32 %v2200, %v2528
        %v2530 = vmul.f32 %v2201, %v2528
        %v2531 = vmul.f32 %v2202, %v2528
        %v2535 = vrot.slane %v2529, 3
        %v2536 = vrot.slane %v2530, 3
        %v2537 = vsel %vm371, %v2535, %v2536
        %v2538 = vrot.slane %v2531, 3
        %v2539 = vsel %vm371, %v2536, %v2538
        %2540 = vrot.lane.b32.xlu0 %v2537, 125
        %v2541 = vpop.permute.xlu0 %2540
        %2542 = vrot.lane.b32.xlu0 %v2539, 125
        %v2543 = vpop.permute.xlu0 %2542
        %v2546 = vadd.f32 %v2525, %v2541
        %v2547 = vadd.f32 %v2526, %v2543
        %s2548 = sld [smem:[#allocation3 + $0x97]]
        %v2549 = vstv %s2548
        %v2550 = vmul.f32 %v2200, %v2549
        %v2551 = vmul.f32 %v2201, %v2549
        %v2552 = vmul.f32 %v2202, %v2549
        %v2556 = vrot.slane %v2550, 4
        %v2557 = vrot.slane %v2551, 4
        %v2558 = vsel %vm389, %v2556, %v2557
        %v2559 = vrot.slane %v2552, 4
        %v2560 = vsel %vm389, %v2557, %v2559
        %2561 = vrot.lane.b32.xlu0 %v2558, 125
        %v2562 = vpop.permute.xlu0 %2561
        %2563 = vrot.lane.b32.xlu0 %v2560, 125
        %v2564 = vpop.permute.xlu0 %2563
        %v2567 = vadd.f32 %v2546, %v2562
        %v2568 = vadd.f32 %v2547, %v2564
        %s2569 = sld [smem:[#allocation3 + $0x84]]
        %v2570 = vstv %s2569
        %v2571 = vmul.f32 %v2200, %v2570
        %v2572 = vmul.f32 %v2201, %v2570
        %2575 = vrot.lane.b32.xlu0 %v2571, 124
        %v2576 = vpop.permute.xlu0 %2575
        %2577 = vrot.lane.b32.xlu0 %v2572, 124
        %v2578 = vpop.permute.xlu0 %2577
        %v2581 = vadd.f32 %v2567, %v2576
        %v2582 = vadd.f32 %v2568, %v2578
        %s2583 = sld [smem:[#allocation3 + $0x89]]
        %v2584 = vstv %s2583
        %v2585 = vmul.f32 %v2200, %v2584
        %v2586 = vmul.f32 %v2201, %v2584
        %v2587 = vmul.f32 %v2202, %v2584
        %v2591 = vrot.slane %v2585, 1
        %v2592 = vrot.slane %v2586, 1
        %v2593 = vsel %vm335, %v2591, %v2592
        %v2594 = vrot.slane %v2587, 1
        %v2595 = vsel %vm335, %v2592, %v2594
        %2596 = vrot.lane.b32.xlu0 %v2593, 124
        %v2597 = vpop.permute.xlu0 %2596
        %2598 = vrot.lane.b32.xlu0 %v2595, 124
        %v2599 = vpop.permute.xlu0 %2598
        %v2602 = vadd.f32 %v2581, %v2597
        %v2603 = vadd.f32 %v2582, %v2599
        %s2604 = sld [smem:[#allocation3 + $0x8e]]
        %v2605 = vstv %s2604
        %v2606 = vmul.f32 %v2200, %v2605
        %v2607 = vmul.f32 %v2201, %v2605
        %v2608 = vmul.f32 %v2202, %v2605
        %v2612 = vrot.slane %v2606, 2
        %v2613 = vrot.slane %v2607, 2
        %v2614 = vsel %vm353, %v2612, %v2613
        %v2615 = vrot.slane %v2608, 2
        %v2616 = vsel %vm353, %v2613, %v2615
        %2617 = vrot.lane.b32.xlu0 %v2614, 124
        %v2618 = vpop.permute.xlu0 %2617
        %2619 = vrot.lane.b32.xlu0 %v2616, 124
        %v2620 = vpop.permute.xlu0 %2619
        %v2623 = vadd.f32 %v2602, %v2618
        %v2624 = vadd.f32 %v2603, %v2620
        %s2625 = sld [smem:[#allocation3 + $0x93]]
        %v2626 = vstv %s2625
        %v2627 = vmul.f32 %v2200, %v2626
        %v2628 = vmul.f32 %v2201, %v2626
        %v2629 = vmul.f32 %v2202, %v2626
        %v2633 = vrot.slane %v2627, 3
        %v2634 = vrot.slane %v2628, 3
        %v2635 = vsel %vm371, %v2633, %v2634
        %v2636 = vrot.slane %v2629, 3
        %v2637 = vsel %vm371, %v2634, %v2636
        %2638 = vrot.lane.b32.xlu0 %v2635, 124
        %v2639 = vpop.permute.xlu0 %2638
        %2640 = vrot.lane.b32.xlu0 %v2637, 124
        %v2641 = vpop.permute.xlu0 %2640
        %v2644 = vadd.f32 %v2623, %v2639
        %v2645 = vadd.f32 %v2624, %v2641
        %s2646 = sld [smem:[#allocation3 + $0x98]]
        %v2647 = vstv %s2646
        %v2648 = vmul.f32 %v2200, %v2647
        %v2649 = vmul.f32 %v2201, %v2647
        %v2650 = vmul.f32 %v2202, %v2647
        %v2654 = vrot.slane %v2648, 4
        %v2655 = vrot.slane %v2649, 4
        %v2656 = vsel %vm389, %v2654, %v2655
        %v2657 = vrot.slane %v2650, 4
        %v2658 = vsel %vm389, %v2655, %v2657
        %2659 = vrot.lane.b32.xlu0 %v2656, 124
        %v2660 = vpop.permute.xlu0 %2659
        %2661 = vrot.lane.b32.xlu0 %v2658, 124
        %v2662 = vpop.permute.xlu0 %2661
        %v2665 = vadd.f32 %v2644, %v2660
        %v2666 = vadd.f32 %v2645, %v2662
        %s2667 = sld [smem:[#allocation6 + $0x92]]
        %v2668 = vstv %s2667
        %v2669 = vmul.f32 %v2200, %v2668
        %v2670 = vmul.f32 %v2201, %v2668
        %v2671 = vmul.f32 %v2202, %v2668
        %s2672 = sld [smem:[#allocation6 + $0x93]]
        %v2673 = vstv %s2672
        %v2674 = vmul.f32 %v2200, %v2673
        %v2675 = vmul.f32 %v2201, %v2673
        %v2676 = vmul.f32 %v2202, %v2673
        %2680 = vrot.lane.b32.xlu0 %v2674, 127
        %v2681 = vpop.permute.xlu0 %2680
        %2682 = vrot.lane.b32.xlu0 %v2675, 127
        %v2683 = vpop.permute.xlu0 %2682
        %2684 = vrot.lane.b32.xlu0 %v2676, 127
        %v2685 = vpop.permute.xlu0 %2684
        %v2689 = vadd.f32 %v2669, %v2681
        %v2690 = vadd.f32 %v2670, %v2683
        %v2691 = vadd.f32 %v2671, %v2685
        %s2692 = sld [smem:[#allocation6 + $0x94]]
        %v2693 = vstv %s2692
        %v2694 = vmul.f32 %v2200, %v2693
        %v2695 = vmul.f32 %v2201, %v2693
        %v2696 = vmul.f32 %v2202, %v2693
        %2700 = vrot.lane.b32.xlu0 %v2694, 126
        %v2701 = vpop.permute.xlu0 %2700
        %2702 = vrot.lane.b32.xlu0 %v2695, 126
        %v2703 = vpop.permute.xlu0 %2702
        %2704 = vrot.lane.b32.xlu0 %v2696, 126
        %v2705 = vpop.permute.xlu0 %2704
        %v2709 = vadd.f32 %v2689, %v2701
        %v2710 = vadd.f32 %v2690, %v2703
        %v2711 = vadd.f32 %v2691, %v2705
        %s2712 = sld [smem:[#allocation6 + $0x95]]
        %v2713 = vstv %s2712
        %v2714 = vmul.f32 %v2200, %v2713
        %v2715 = vmul.f32 %v2201, %v2713
        %v2716 = vmul.f32 %v2202, %v2713
        %2720 = vrot.lane.b32.xlu0 %v2714, 125
        %v2721 = vpop.permute.xlu0 %2720
        %2722 = vrot.lane.b32.xlu0 %v2715, 125
        %v2723 = vpop.permute.xlu0 %2722
        %2724 = vrot.lane.b32.xlu0 %v2716, 125
        %v2725 = vpop.permute.xlu0 %2724
        %v2729 = vadd.f32 %v2709, %v2721
        %v2730 = vadd.f32 %v2710, %v2723
        %v2731 = vadd.f32 %v2711, %v2725
        %s2732 = sld [smem:[#allocation6 + $0x96]]
        %v2733 = vstv %s2732
        %v2734 = vmul.f32 %v2200, %v2733
        %v2735 = vmul.f32 %v2201, %v2733
        %v2736 = vmul.f32 %v2202, %v2733
        %2740 = vrot.lane.b32.xlu0 %v2734, 124
        %v2741 = vpop.permute.xlu0 %2740
        %2742 = vrot.lane.b32.xlu0 %v2735, 124
        %v2743 = vpop.permute.xlu0 %2742
        %2744 = vrot.lane.b32.xlu0 %v2736, 124
        %v2745 = vpop.permute.xlu0 %2744
        %v2749 = vadd.f32 %v2729, %v2741
        %v2750 = vadd.f32 %v2730, %v2743
        %v2751 = vadd.f32 %v2731, %v2745
        %s2752 = sld [smem:[#allocation6 + $0x97]]
        %v2753 = vstv %s2752
        %v2754 = vmul.f32 %v2200, %v2753
        %v2755 = vmul.f32 %v2201, %v2753
        %v2756 = vmul.f32 %v2202, %v2753
        %2760 = vrot.lane.b32.xlu0 %v2754, 123
        %v2761 = vpop.permute.xlu0 %2760
        %2762 = vrot.lane.b32.xlu0 %v2755, 123
        %v2763 = vpop.permute.xlu0 %2762
        %2764 = vrot.lane.b32.xlu0 %v2756, 123
        %v2765 = vpop.permute.xlu0 %2764
        %v2769 = vadd.f32 %v2749, %v2761
        %v2770 = vadd.f32 %v2750, %v2763
        %v2771 = vadd.f32 %v2751, %v2765
        %s2772 = sld [smem:[#allocation6 + $0x87]]
        %v2773 = vstv %s2772
        %v2774 = vmul.f32 %v2200, %v2773
        %v2775 = vmul.f32 %v2201, %v2773
        %v2776 = vmul.f32 %v2202, %v2773
        %s2777 = sld [smem:[#allocation6 + $0x98]]
        %v2778 = vstv %s2777
        %v2779 = vmul.f32 %v2200, %v2778
        %v2780 = vmul.f32 %v2201, %v2778
        %v2781 = vmul.f32 %v2202, %v2778
        %2785 = vrot.lane.b32.xlu0 %v2779, 122
        %v2786 = vpop.permute.xlu0 %2785
        %2787 = vrot.lane.b32.xlu0 %v2780, 122
        %v2788 = vpop.permute.xlu0 %2787
        %2789 = vrot.lane.b32.xlu0 %v2781, 122
        %v2790 = vpop.permute.xlu0 %2789
        %v2794 = vadd.f32 %v2769, %v2786
        %v2795 = vadd.f32 %v2770, %v2788
        %v2796 = vadd.f32 %v2771, %v2790
        %s2797 = sld [smem:[#allocation6 + $0x88]]
        %v2798 = vstv %s2797
        %v2799 = vmul.f32 %v2200, %v2798
        %v2800 = vmul.f32 %v2201, %v2798
        %v2801 = vmul.f32 %v2202, %v2798
        %2805 = vrot.lane.b32.xlu0 %v2799, 127
        %v2806 = vpop.permute.xlu0 %2805
        %2807 = vrot.lane.b32.xlu0 %v2800, 127
        %v2808 = vpop.permute.xlu0 %2807
        %2809 = vrot.lane.b32.xlu0 %v2801, 127
        %v2810 = vpop.permute.xlu0 %2809
        %v2814 = vadd.f32 %v2774, %v2806
        %v2815 = vadd.f32 %v2775, %v2808
        %v2816 = vadd.f32 %v2776, %v2810
        %s2817 = sld [smem:[#allocation6 + $0x99]]
        %v2818 = vstv %s2817
        %v2819 = vmul.f32 %v2200, %v2818
        %v2820 = vmul.f32 %v2201, %v2818
        %v2821 = vmul.f32 %v2202, %v2818
        %2825 = vrot.lane.b32.xlu0 %v2819, 121
        %v2826 = vpop.permute.xlu0 %2825
        %2827 = vrot.lane.b32.xlu0 %v2820, 121
        %v2828 = vpop.permute.xlu0 %2827
        %2829 = vrot.lane.b32.xlu0 %v2821, 121
        %v2830 = vpop.permute.xlu0 %2829
        %v2834 = vadd.f32 %v2794, %v2826
        %v2835 = vadd.f32 %v2795, %v2828
        %v2836 = vadd.f32 %v2796, %v2830
        %s2837 = sld [smem:[#allocation6 + $0x89]]
        %v2838 = vstv %s2837
        %v2839 = vmul.f32 %v2200, %v2838
        %v2840 = vmul.f32 %v2201, %v2838
        %v2841 = vmul.f32 %v2202, %v2838
        %2845 = vrot.lane.b32.xlu0 %v2839, 126
        %v2846 = vpop.permute.xlu0 %2845
        %2847 = vrot.lane.b32.xlu0 %v2840, 126
        %v2848 = vpop.permute.xlu0 %2847
        %2849 = vrot.lane.b32.xlu0 %v2841, 126
        %v2850 = vpop.permute.xlu0 %2849
        %v2854 = vadd.f32 %v2814, %v2846
        %v2855 = vadd.f32 %v2815, %v2848
        %v2856 = vadd.f32 %v2816, %v2850
        %s2857 = sld [smem:[#allocation6 + $0x80]]
        %v2858 = vstv %s2857
        %v2859 = vmul.f32 %v2200, %v2858
        %v2860 = vmul.f32 %v2201, %v2858
        %v2861 = vmul.f32 %v2202, %v2858
        %s2862 = sld [smem:[#allocation6 + $0x9a]]
        %v2863 = vstv %s2862
        %v2864 = vmul.f32 %v2200, %v2863
        %v2865 = vmul.f32 %v2201, %v2863
        %v2866 = vmul.f32 %v2202, %v2863
        %2870 = vrot.lane.b32.xlu0 %v2864, 120
        %v2871 = vpop.permute.xlu0 %2870
        %2872 = vrot.lane.b32.xlu0 %v2865, 120
        %v2873 = vpop.permute.xlu0 %2872
        %2874 = vrot.lane.b32.xlu0 %v2866, 120
        %v2875 = vpop.permute.xlu0 %2874
        %v2879 = vadd.f32 %v2834, %v2871
        %v2880 = vadd.f32 %v2835, %v2873
        %v2881 = vadd.f32 %v2836, %v2875
        %s2882 = sld [smem:[#allocation6 + $0x8a]]
        %v2883 = vstv %s2882
        %v2884 = vmul.f32 %v2200, %v2883
        %v2885 = vmul.f32 %v2201, %v2883
        %v2886 = vmul.f32 %v2202, %v2883
        %2890 = vrot.lane.b32.xlu0 %v2884, 125
        %v2891 = vpop.permute.xlu0 %2890
        %2892 = vrot.lane.b32.xlu0 %v2885, 125
        %v2893 = vpop.permute.xlu0 %2892
        %2894 = vrot.lane.b32.xlu0 %v2886, 125
        %v2895 = vpop.permute.xlu0 %2894
        %v2899 = vadd.f32 %v2854, %v2891
        %v2900 = vadd.f32 %v2855, %v2893
        %v2901 = vadd.f32 %v2856, %v2895
        %s2902 = sld [smem:[#allocation6 + $0x81]]
        %v2903 = vstv %s2902
        %v2904 = vmul.f32 %v2200, %v2903
        %v2905 = vmul.f32 %v2201, %v2903
        %v2906 = vmul.f32 %v2202, %v2903
        %2910 = vrot.lane.b32.xlu0 %v2904, 127
        %v2911 = vpop.permute.xlu0 %2910
        %2912 = vrot.lane.b32.xlu0 %v2905, 127
        %v2913 = vpop.permute.xlu0 %2912
        %2914 = vrot.lane.b32.xlu0 %v2906, 127
        %v2915 = vpop.permute.xlu0 %2914
        %v2919 = vadd.f32 %v2859, %v2911
        %v2920 = vadd.f32 %v2860, %v2913
        %v2921 = vadd.f32 %v2861, %v2915
        %s2922 = sld [smem:[#allocation6 + $0x9b]]
        %v2923 = vstv %s2922
        %v2924 = vmul.f32 %v2200, %v2923
        %v2925 = vmul.f32 %v2201, %v2923
        %v2926 = vmul.f32 %v2202, %v2923
        %2930 = vrot.lane.b32.xlu0 %v2924, 119
        %v2931 = vpop.permute.xlu0 %2930
        %2932 = vrot.lane.b32.xlu0 %v2925, 119
        %v2933 = vpop.permute.xlu0 %2932
        %2934 = vrot.lane.b32.xlu0 %v2926, 119
        %v2935 = vpop.permute.xlu0 %2934
        %v2939 = vadd.f32 %v2879, %v2931
        %v2940 = vadd.f32 %v2880, %v2933
        %v2941 = vadd.f32 %v2881, %v2935
        %s2942 = sld [smem:[#allocation6 + $0x8b]]
        %v2943 = vstv %s2942
        %v2944 = vmul.f32 %v2200, %v2943
        %v2945 = vmul.f32 %v2201, %v2943
        %v2946 = vmul.f32 %v2202, %v2943
        %2950 = vrot.lane.b32.xlu0 %v2944, 124
        %v2951 = vpop.permute.xlu0 %2950
        %2952 = vrot.lane.b32.xlu0 %v2945, 124
        %v2953 = vpop.permute.xlu0 %2952
        %2954 = vrot.lane.b32.xlu0 %v2946, 124
        %v2955 = vpop.permute.xlu0 %2954
        %v2959 = vadd.f32 %v2899, %v2951
        %v2960 = vadd.f32 %v2900, %v2953
        %v2961 = vadd.f32 %v2901, %v2955
        %s2962 = sld [smem:[#allocation6 + $0x82]]
        %v2963 = vstv %s2962
        %v2964 = vmul.f32 %v2200, %v2963
        %v2965 = vmul.f32 %v2201, %v2963
        %v2966 = vmul.f32 %v2202, %v2963
        %2970 = vrot.lane.b32.xlu0 %v2964, 126
        %v2971 = vpop.permute.xlu0 %2970
        %2972 = vrot.lane.b32.xlu0 %v2965, 126
        %v2973 = vpop.permute.xlu0 %2972
        %2974 = vrot.lane.b32.xlu0 %v2966, 126
        %v2975 = vpop.permute.xlu0 %2974
        %v2979 = vadd.f32 %v2919, %v2971
        %v2980 = vadd.f32 %v2920, %v2973
        %v2981 = vadd.f32 %v2921, %v2975
        %s2982 = sld [smem:[#allocation6 + $0x9c]]
        %v2983 = vstv %s2982
        %v2984 = vmul.f32 %v2200, %v2983
        %v2985 = vmul.f32 %v2201, %v2983
        %v2986 = vmul.f32 %v2202, %v2983
        %2990 = vrot.lane.b32.xlu0 %v2984, 118
        %v2991 = vpop.permute.xlu0 %2990
        %2992 = vrot.lane.b32.xlu0 %v2985, 118
        %v2993 = vpop.permute.xlu0 %2992
        %2994 = vrot.lane.b32.xlu0 %v2986, 118
        %v2995 = vpop.permute.xlu0 %2994
        %v2999 = vadd.f32 %v2939, %v2991
        %v3000 = vadd.f32 %v2940, %v2993
        %v3001 = vadd.f32 %v2941, %v2995
        %s3002 = sld [smem:[#allocation6 + $0x8c]]
        %v3003 = vstv %s3002
        %v3004 = vmul.f32 %v2200, %v3003
        %v3005 = vmul.f32 %v2201, %v3003
        %v3006 = vmul.f32 %v2202, %v3003
        %3010 = vrot.lane.b32.xlu0 %v3004, 123
        %v3011 = vpop.permute.xlu0 %3010
        %3012 = vrot.lane.b32.xlu0 %v3005, 123
        %v3013 = vpop.permute.xlu0 %3012
        %3014 = vrot.lane.b32.xlu0 %v3006, 123
        %v3015 = vpop.permute.xlu0 %3014
        %v3019 = vadd.f32 %v2959, %v3011
        %v3020 = vadd.f32 %v2960, %v3013
        %v3021 = vadd.f32 %v2961, %v3015
        %s3022 = sld [smem:[#allocation6 + $0x83]]
        %v3023 = vstv %s3022
        %v3024 = vmul.f32 %v2200, %v3023
        %v3025 = vmul.f32 %v2201, %v3023
        %v3026 = vmul.f32 %v2202, %v3023
        %3030 = vrot.lane.b32.xlu0 %v3024, 125
        %v3031 = vpop.permute.xlu0 %3030
        %3032 = vrot.lane.b32.xlu0 %v3025, 125
        %v3033 = vpop.permute.xlu0 %3032
        %3034 = vrot.lane.b32.xlu0 %v3026, 125
        %v3035 = vpop.permute.xlu0 %3034
        %v3039 = vadd.f32 %v2979, %v3031
        %v3040 = vadd.f32 %v2980, %v3033
        %v3041 = vadd.f32 %v2981, %v3035
        %s3042 = sld [smem:[#allocation6 + $0x9d]]
        %v3043 = vstv %s3042
        %v3044 = vmul.f32 %v2200, %v3043
        %v3045 = vmul.f32 %v2201, %v3043
        %v3046 = vmul.f32 %v2202, %v3043
        %3050 = vrot.lane.b32.xlu0 %v3044, 117
        %v3051 = vpop.permute.xlu0 %3050
        %3052 = vrot.lane.b32.xlu0 %v3045, 117
        %v3053 = vpop.permute.xlu0 %3052
        %3054 = vrot.lane.b32.xlu0 %v3046, 117
        %v3055 = vpop.permute.xlu0 %3054
        %v3059 = vadd.f32 %v2999, %v3051
        %v3060 = vadd.f32 %v3000, %v3053
        %v3061 = vadd.f32 %v3001, %v3055
        %s3062 = sld [smem:[#allocation6 + $0x8d]]
        %v3063 = vstv %s3062
        %v3064 = vmul.f32 %v2200, %v3063
        %v3065 = vmul.f32 %v2201, %v3063
        %v3066 = vmul.f32 %v2202, %v3063
        %3070 = vrot.lane.b32.xlu0 %v3064, 122
        %v3071 = vpop.permute.xlu0 %3070
        %3072 = vrot.lane.b32.xlu0 %v3065, 122
        %v3073 = vpop.permute.xlu0 %3072
        %3074 = vrot.lane.b32.xlu0 %v3066, 122
        %v3075 = vpop.permute.xlu0 %3074
        %v3079 = vadd.f32 %v3019, %v3071
        %v3080 = vadd.f32 %v3020, %v3073
        %v3081 = vadd.f32 %v3021, %v3075
        %s3082 = sld [smem:[#allocation6 + $0x84]]
        %v3083 = vstv %s3082
        %v3084 = vmul.f32 %v2200, %v3083
        %v3085 = vmul.f32 %v2201, %v3083
        %v3086 = vmul.f32 %v2202, %v3083
        %3090 = vrot.lane.b32.xlu0 %v3084, 124
        %v3091 = vpop.permute.xlu0 %3090
        %3092 = vrot.lane.b32.xlu0 %v3085, 124
        %v3093 = vpop.permute.xlu0 %3092
        %3094 = vrot.lane.b32.xlu0 %v3086, 124
        %v3095 = vpop.permute.xlu0 %3094
        %v3099 = vadd.f32 %v3039, %v3091
        %v3100 = vadd.f32 %v3040, %v3093
        %v3101 = vadd.f32 %v3041, %v3095
        %s3102 = sld [smem:[#allocation6 + $0x9e]]
        %v3103 = vstv %s3102
        %v3104 = vmul.f32 %v2200, %v3103
        %v3105 = vmul.f32 %v2201, %v3103
        %v3106 = vmul.f32 %v2202, %v3103
        %3110 = vrot.lane.b32.xlu0 %v3104, 116
        %v3111 = vpop.permute.xlu0 %3110
        %3112 = vrot.lane.b32.xlu0 %v3105, 116
        %v3113 = vpop.permute.xlu0 %3112
        %3114 = vrot.lane.b32.xlu0 %v3106, 116
        %v3115 = vpop.permute.xlu0 %3114
        %v3119 = vadd.f32 %v3059, %v3111
        %v3120 = vadd.f32 %v3060, %v3113
        %v3121 = vadd.f32 %v3061, %v3115
        %s3122 = sld [smem:[#allocation6 + $0x8e]]
        %v3123 = vstv %s3122
        %v3124 = vmul.f32 %v2200, %v3123
        %v3125 = vmul.f32 %v2201, %v3123
        %v3126 = vmul.f32 %v2202, %v3123
        %3130 = vrot.lane.b32.xlu0 %v3124, 121
        %v3131 = vpop.permute.xlu0 %3130
        %3132 = vrot.lane.b32.xlu0 %v3125, 121
        %v3133 = vpop.permute.xlu0 %3132
        %3134 = vrot.lane.b32.xlu0 %v3126, 121
        %v3135 = vpop.permute.xlu0 %3134
        %v3139 = vadd.f32 %v3079, %v3131
        %v3140 = vadd.f32 %v3080, %v3133
        %v3141 = vadd.f32 %v3081, %v3135
        %s3142 = sld [smem:[#allocation6 + $0x85]]
        %v3143 = vstv %s3142
        %v3144 = vmul.f32 %v2200, %v3143
        %v3145 = vmul.f32 %v2201, %v3143
        %v3146 = vmul.f32 %v2202, %v3143
        %3150 = vrot.lane.b32.xlu0 %v3144, 123
        %v3151 = vpop.permute.xlu0 %3150
        %3152 = vrot.lane.b32.xlu0 %v3145, 123
        %v3153 = vpop.permute.xlu0 %3152
        %3154 = vrot.lane.b32.xlu0 %v3146, 123
        %v3155 = vpop.permute.xlu0 %3154
        %v3159 = vadd.f32 %v3099, %v3151
        %v3160 = vadd.f32 %v3100, %v3153
        %v3161 = vadd.f32 %v3101, %v3155
        %s3162 = sld [smem:[#allocation6 + $0x9f]]
        %v3163 = vstv %s3162
        %v3164 = vmul.f32 %v2200, %v3163
        %v3165 = vmul.f32 %v2201, %v3163
        %v3166 = vmul.f32 %v2202, %v3163
        %3170 = vrot.lane.b32.xlu0 %v3164, 115
        %v3171 = vpop.permute.xlu0 %3170
        %3172 = vrot.lane.b32.xlu0 %v3165, 115
        %v3173 = vpop.permute.xlu0 %3172
        %3174 = vrot.lane.b32.xlu0 %v3166, 115
        %v3175 = vpop.permute.xlu0 %3174
        %v3179 = vadd.f32 %v3119, %v3171
        %v3180 = vadd.f32 %v3120, %v3173
        %v3181 = vadd.f32 %v3121, %v3175
        %s3182 = sld [smem:[#allocation6 + $0x8f]]
        %v3183 = vstv %s3182
        %v3184 = vmul.f32 %v2200, %v3183
        %v3185 = vmul.f32 %v2201, %v3183
        %v3186 = vmul.f32 %v2202, %v3183
        %3190 = vrot.lane.b32.xlu0 %v3184, 120
        %v3191 = vpop.permute.xlu0 %3190
        %3192 = vrot.lane.b32.xlu0 %v3185, 120
        %v3193 = vpop.permute.xlu0 %3192
        %3194 = vrot.lane.b32.xlu0 %v3186, 120
        %v3195 = vpop.permute.xlu0 %3194
        %v3199 = vadd.f32 %v3139, %v3191
        %v3200 = vadd.f32 %v3140, %v3193
        %v3201 = vadd.f32 %v3141, %v3195
        %s3202 = sld [smem:[#allocation6 + $0x86]]
        %v3203 = vstv %s3202
        %v3204 = vmul.f32 %v2200, %v3203
        %v3205 = vmul.f32 %v2201, %v3203
        %v3206 = vmul.f32 %v2202, %v3203
        %3210 = vrot.lane.b32.xlu0 %v3204, 122
        %v3211 = vpop.permute.xlu0 %3210
        %3212 = vrot.lane.b32.xlu0 %v3205, 122
        %v3213 = vpop.permute.xlu0 %3212
        %3214 = vrot.lane.b32.xlu0 %v3206, 122
        %v3215 = vpop.permute.xlu0 %3214
        %v3219 = vadd.f32 %v3159, %v3211
        %v3220 = vadd.f32 %v3160, %v3213
        %v3221 = vadd.f32 %v3161, %v3215
        %s3222 = sld [smem:[#allocation6 + $0xa0]]
        %v3223 = vstv %s3222
        %v3224 = vmul.f32 %v2200, %v3223
        %v3225 = vmul.f32 %v2201, %v3223
        %v3226 = vmul.f32 %v2202, %v3223
        %3230 = vrot.lane.b32.xlu0 %v3224, 114
        %v3231 = vpop.permute.xlu0 %3230
        %3232 = vrot.lane.b32.xlu0 %v3225, 114
        %v3233 = vpop.permute.xlu0 %3232
        %3234 = vrot.lane.b32.xlu0 %v3226, 114
        %v3235 = vpop.permute.xlu0 %3234
        %v3239 = vadd.f32 %v3179, %v3231
        %v3240 = vadd.f32 %v3180, %v3233
        %v3241 = vadd.f32 %v3181, %v3235
        %s3242 = sld [smem:[#allocation6 + $0x90]]
        %v3243 = vstv %s3242
        %v3244 = vmul.f32 %v2200, %v3243
        %v3245 = vmul.f32 %v2201, %v3243
        %v3246 = vmul.f32 %v2202, %v3243
        %3250 = vrot.lane.b32.xlu0 %v3244, 119
        %v3251 = vpop.permute.xlu0 %3250
        %3252 = vrot.lane.b32.xlu0 %v3245, 119
        %v3253 = vpop.permute.xlu0 %3252
        %3254 = vrot.lane.b32.xlu0 %v3246, 119
        %v3255 = vpop.permute.xlu0 %3254
        %v3259 = vadd.f32 %v3199, %v3251
        %v3260 = vadd.f32 %v3200, %v3253
        %v3261 = vadd.f32 %v3201, %v3255
        %s3262 = sld [smem:[#allocation6 + $0xa1]]
        %v3263 = vstv %s3262
        %v3264 = vmul.f32 %v2200, %v3263
        %v3265 = vmul.f32 %v2201, %v3263
        %v3266 = vmul.f32 %v2202, %v3263
        %3270 = vrot.lane.b32.xlu0 %v3264, 113
        %v3271 = vpop.permute.xlu0 %3270
        %3272 = vrot.lane.b32.xlu0 %v3265, 113
        %v3273 = vpop.permute.xlu0 %3272
        %3274 = vrot.lane.b32.xlu0 %v3266, 113
        %v3275 = vpop.permute.xlu0 %3274
        %v3279 = vadd.f32 %v3239, %v3271
        %v3280 = vadd.f32 %v3240, %v3273
        %v3281 = vadd.f32 %v3241, %v3275
        %s3282 = sld [smem:[#allocation6 + $0x91]]
        %v3283 = vstv %s3282
        %v3284 = vmul.f32 %v2200, %v3283
        %v3285 = vmul.f32 %v2201, %v3283
        %v3286 = vmul.f32 %v2202, %v3283
        %3290 = vrot.lane.b32.xlu0 %v3284, 118
        %v3291 = vpop.permute.xlu0 %3290
        %3292 = vrot.lane.b32.xlu0 %v3285, 118
        %v3293 = vpop.permute.xlu0 %3292
        %3294 = vrot.lane.b32.xlu0 %v3286, 118
        %v3295 = vpop.permute.xlu0 %3294
        %v3299 = vadd.f32 %v3259, %v3291
        %v3300 = vadd.f32 %v3260, %v3293
        %v3301 = vadd.f32 %v3261, %v3295
        %s3302 = sld [smem:[#allocation6 + $0xa2]]
        %v3303 = vstv %s3302
        %v3304 = vmul.f32 %v2200, %v3303
        %v3305 = vmul.f32 %v2201, %v3303
        %v3306 = vmul.f32 %v2202, %v3303
        %3310 = vrot.lane.b32.xlu0 %v3304, 112
        %v3311 = vpop.permute.xlu0 %3310
        %3312 = vrot.lane.b32.xlu0 %v3305, 112
        %v3313 = vpop.permute.xlu0 %3312
        %3314 = vrot.lane.b32.xlu0 %v3306, 112
        %v3315 = vpop.permute.xlu0 %3314
        %v3319 = vadd.f32 %v3279, %v3311
        %v3320 = vadd.f32 %v3280, %v3313
        %v3321 = vadd.f32 %v3281, %v3315
        %s3322 = sld [smem:[#allocation6 + $0xa3]]
        %v3323 = vstv %s3322
        %v3324 = vmul.f32 %v2200, %v3323
        %v3325 = vmul.f32 %v2201, %v3323
        %v3326 = vmul.f32 %v2202, %v3323
        %3330 = vrot.lane.b32.xlu0 %v3324, 111
        %v3331 = vpop.permute.xlu0 %3330
        %3332 = vrot.lane.b32.xlu0 %v3325, 111
        %v3333 = vpop.permute.xlu0 %3332
        %3334 = vrot.lane.b32.xlu0 %v3326, 111
        %v3335 = vpop.permute.xlu0 %3334
        %v3339 = vadd.f32 %v3319, %v3331
        %v3340 = vadd.f32 %v3320, %v3333
        %v3341 = vadd.f32 %v3321, %v3335
        %s3342 = sld [smem:[#allocation6 + $0xa4]]
        %v3343 = vstv %s3342
        %v3344 = vmul.f32 %v2200, %v3343
        %v3345 = vmul.f32 %v2201, %v3343
        %v3346 = vmul.f32 %v2202, %v3343
        %3350 = vrot.lane.b32.xlu0 %v3344, 110
        %v3351 = vpop.permute.xlu0 %3350
        %3352 = vrot.lane.b32.xlu0 %v3345, 110
        %v3353 = vpop.permute.xlu0 %3352
        %3354 = vrot.lane.b32.xlu0 %v3346, 110
        %v3355 = vpop.permute.xlu0 %3354
        %v3359 = vadd.f32 %v3339, %v3351
        %v3360 = vadd.f32 %v3340, %v3353
        %v3361 = vadd.f32 %v3341, %v3355
        %s3362 = sld [smem:[#allocation6 + $0xa5]]
        %v3363 = vstv %s3362
        %v3364 = vmul.f32 %v2200, %v3363
        %v3365 = vmul.f32 %v2201, %v3363
        %v3366 = vmul.f32 %v2202, %v3363
        %3370 = vrot.lane.b32.xlu0 %v3364, 109
        %v3371 = vpop.permute.xlu0 %3370
        %3372 = vrot.lane.b32.xlu0 %v3365, 109
        %v3373 = vpop.permute.xlu0 %3372
        %3374 = vrot.lane.b32.xlu0 %v3366, 109
        %v3375 = vpop.permute.xlu0 %3374
        %v3379 = vadd.f32 %v3359, %v3371
        %v3380 = vadd.f32 %v3360, %v3373
        %v3381 = vadd.f32 %v3361, %v3375
        %s3382 = sld [smem:[#allocation6 + $0xa6]]
        %v3383 = vstv %s3382
        %v3384 = vmul.f32 %v2200, %v3383
        %v3385 = vmul.f32 %v2201, %v3383
        %v3386 = vmul.f32 %v2202, %v3383
        %3390 = vrot.lane.b32.xlu0 %v3384, 108
        %v3391 = vpop.permute.xlu0 %3390
        %3392 = vrot.lane.b32.xlu0 %v3385, 108
        %v3393 = vpop.permute.xlu0 %3392
        %3394 = vrot.lane.b32.xlu0 %v3386, 108
        %v3395 = vpop.permute.xlu0 %3394
        %v3399 = vadd.f32 %v3379, %v3391
        %v3400 = vadd.f32 %v3380, %v3393
        %v3401 = vadd.f32 %v3381, %v3395
        %s3402 = sld [smem:[#allocation11 + $0x80]]
        %v3403 = vstv %s3402
        %v3404 = vadd.f32 %v3219, %v3403
        %v3405 = vadd.f32 %v3220, %v3403
        %v3406 = vadd.f32 %v3221, %v3403
        %s3407 = sld [smem:[#allocation11 + $0x81]]
        %v3408 = vstv %s3407
        %v3409 = vadd.f32 %v3299, %v3408
        %v3410 = vadd.f32 %v3300, %v3408
        %v3411 = vadd.f32 %v3301, %v3408
        %s3412 = sld [smem:[#allocation11 + $0x82]]
        %v3413 = vstv %s3412
        %v3414 = vadd.f32 %v3399, %v3413
        %v3415 = vadd.f32 %v3400, %v3413
        %v3416 = vadd.f32 %v3401, %v3413
        %3420 = vrot.lane.b32.xlu0 %v3404, 121
        %v3421 = vpop.permute.xlu0 %3420
        %3422 = vrot.lane.b32.xlu0 %v3405, 121
        %v3423 = vpop.permute.xlu0 %3422
        %3424 = vrot.lane.b32.xlu0 %v3406, 121
        %v3425 = vpop.permute.xlu0 %3424
        %3429 = vst.msk [vmem:[#allocation2 + $0x8] sm:$0xfc] %vm1553, %v3421
        %3430 = vst.msk [vmem:[#allocation2 + $0x10] sm:$0xff] %vm314, %v3423
        %3431 = vst.msk [vmem:[#allocation2 + $0x18] sm:$0x3] %vm316, %v3425
        %v3432 = vld [vmem:[#allocation2 + $0x7] sm:$0xff]
        %v3433 = vld [vmem:[#allocation2 + $0xf] sm:$0xff]
        %s3434 = sld [smem:[#allocation8 + $0x80]]
        %v3435 = vstv %s3434
        %v3436 = vmul.f32 %v3432, %v3435
        %v3437 = vmul.f32 %v3433, %v3435
        %3440 = vrot.lane.b32.xlu0 %v3436, 8
        %v3441 = vpop.permute.xlu0 %3440
        %3442 = vrot.lane.b32.xlu0 %v3437, 8
        %v3443 = vpop.permute.xlu0 %3442
        %v3446 = vadd.f32 %v2665, %v3441
        %v3447 = vadd.f32 %v2666, %v3443
        %v3448 = vld [vmem:[#allocation2 + $0x8] sm:$0xff]
        %v3449 = vld [vmem:[#allocation2 + $0x10] sm:$0xff]
        %s3450 = sld [smem:[#allocation8 + $0x81]]
        %v3451 = vstv %s3450
        %v3452 = vmul.f32 %v3448, %v3451
        %v3453 = vmul.f32 %v3449, %v3451
        %3456 = vrot.lane.b32.xlu0 %v3452, 8
        %v3457 = vpop.permute.xlu0 %3456
        %3458 = vrot.lane.b32.xlu0 %v3453, 8
        %v3459 = vpop.permute.xlu0 %3458
        %v3462 = vadd.f32 %v3446, %v3457
        %v3463 = vadd.f32 %v3447, %v3459
        %v3464 = vld [vmem:[#allocation2 + $0x9] sm:$0xff]
        %v3465 = vld [vmem:[#allocation2 + $0x11] sm:$0xff]
        %s3466 = sld [smem:[#allocation8 + $0x82]]
        %v3467 = vstv %s3466
        %v3468 = vmul.f32 %v3464, %v3467
        %v3469 = vmul.f32 %v3465, %v3467
        %3472 = vrot.lane.b32.xlu0 %v3468, 8
        %v3473 = vpop.permute.xlu0 %3472
        %3474 = vrot.lane.b32.xlu0 %v3469, 8
        %v3475 = vpop.permute.xlu0 %3474
        %v3478 = vadd.f32 %v3462, %v3473
        %v3479 = vadd.f32 %v3463, %v3475
        %v3480 = vld [vmem:[#allocation2 + $0xa] sm:$0xff]
        %v3481 = vld [vmem:[#allocation2 + $0x12] sm:$0xff]
        %s3482 = sld [smem:[#allocation8 + $0x83]]
        %v3483 = vstv %s3482
        %v3484 = vmul.f32 %v3480, %v3483
        %v3485 = vmul.f32 %v3481, %v3483
        %3488 = vrot.lane.b32.xlu0 %v3484, 8
        %v3489 = vpop.permute.xlu0 %3488
        %3490 = vrot.lane.b32.xlu0 %v3485, 8
        %v3491 = vpop.permute.xlu0 %3490
        %v3494 = vadd.f32 %v3478, %v3489
        %v3495 = vadd.f32 %v3479, %v3491
        %v3496 = vld [vmem:[#allocation2 + $0xb] sm:$0xff]
        %v3497 = vld [vmem:[#allocation2 + $0x13] sm:$0xff]
        %s3498 = sld [smem:[#allocation8 + $0x84]]
        %v3499 = vstv %s3498
        %v3500 = vmul.f32 %v3496, %v3499
        %v3501 = vmul.f32 %v3497, %v3499
        %3504 = vrot.lane.b32.xlu0 %v3500, 8
        %v3505 = vpop.permute.xlu0 %3504
        %3506 = vrot.lane.b32.xlu0 %v3501, 8
        %v3507 = vpop.permute.xlu0 %3506
        %v3510 = vadd.f32 %v3494, %v3505
        %v3511 = vadd.f32 %v3495, %v3507
        %v3512 = vld [vmem:[#allocation2 + $0xc] sm:$0xff]
        %v3513 = vld [vmem:[#allocation2 + $0x14] sm:$0xff]
        %s3514 = sld [smem:[#allocation8 + $0x85]]
        %v3515 = vstv %s3514
        %v3516 = vmul.f32 %v3512, %v3515
        %v3517 = vmul.f32 %v3513, %v3515
        %3520 = vrot.lane.b32.xlu0 %v3516, 8
        %v3521 = vpop.permute.xlu0 %3520
        %3522 = vrot.lane.b32.xlu0 %v3517, 8
        %v3523 = vpop.permute.xlu0 %3522
        %v3526 = vadd.f32 %v3510, %v3521
        %v3527 = vadd.f32 %v3511, %v3523
        %v3528 = vld [vmem:[#allocation2 + $0xd] sm:$0xff]
        %v3529 = vld [vmem:[#allocation2 + $0x15] sm:$0xff]
        %s3530 = sld [smem:[#allocation8 + $0x86]]
        %v3531 = vstv %s3530
        %v3532 = vmul.f32 %v3528, %v3531
        %v3533 = vmul.f32 %v3529, %v3531
        %3536 = vrot.lane.b32.xlu0 %v3532, 8
        %v3537 = vpop.permute.xlu0 %3536
        %3538 = vrot.lane.b32.xlu0 %v3533, 8
        %v3539 = vpop.permute.xlu0 %3538
        %v3542 = vadd.f32 %v3526, %v3537
        %v3543 = vadd.f32 %v3527, %v3539
        %3547 = vrot.lane.b32.xlu0 %v3409, 123
        %v3548 = vpop.permute.xlu0 %3547
        %3549 = vrot.lane.b32.xlu0 %v3410, 123
        %v3550 = vpop.permute.xlu0 %3549
        %3551 = vrot.lane.b32.xlu0 %v3411, 123
        %v3552 = vpop.permute.xlu0 %3551
        %3556 = vst.msk [vmem:[#allocation2 + $0x8] sm:$0xfc] %vm1553, %v3548
        %3557 = vst.msk [vmem:[#allocation2 + $0x10] sm:$0xff] %vm314, %v3550
        %3558 = vst.msk [vmem:[#allocation2 + $0x18] sm:$0x3] %vm316, %v3552
        %v3559 = vld [vmem:[#allocation2 + $0x5] sm:$0xff]
        %v3560 = vld [vmem:[#allocation2 + $0xd] sm:$0xff]
        %s3561 = sld [smem:[#allocation8 + $0x87]]
        %v3562 = vstv %s3561
        %v3563 = vmul.f32 %v3559, %v3562
        %v3564 = vmul.f32 %v3560, %v3562
        %3567 = vrot.lane.b32.xlu0 %v3563, 8
        %v3568 = vpop.permute.xlu0 %3567
        %3569 = vrot.lane.b32.xlu0 %v3564, 8
        %v3570 = vpop.permute.xlu0 %3569
        %v3573 = vadd.f32 %v3542, %v3568
        %v3574 = vadd.f32 %v3543, %v3570
        %v3575 = vld [vmem:[#allocation2 + $0x6] sm:$0xff]
        %v3576 = vld [vmem:[#allocation2 + $0xe] sm:$0xff]
        %s3577 = sld [smem:[#allocation8 + $0x88]]
        %v3578 = vstv %s3577
        %v3579 = vmul.f32 %v3575, %v3578
        %v3580 = vmul.f32 %v3576, %v3578
        %3583 = vrot.lane.b32.xlu0 %v3579, 8
        %v3584 = vpop.permute.xlu0 %3583
        %3585 = vrot.lane.b32.xlu0 %v3580, 8
        %v3586 = vpop.permute.xlu0 %3585
        %v3589 = vadd.f32 %v3573, %v3584
        %v3590 = vadd.f32 %v3574, %v3586
        %v3591 = vld [vmem:[#allocation2 + $0x7] sm:$0xff]
        %v3592 = vld [vmem:[#allocation2 + $0xf] sm:$0xff]
        %s3593 = sld [smem:[#allocation8 + $0x89]]
        %v3594 = vstv %s3593
        %v3595 = vmul.f32 %v3591, %v3594
        %v3596 = vmul.f32 %v3592, %v3594
        %3599 = vrot.lane.b32.xlu0 %v3595, 8
        %v3600 = vpop.permute.xlu0 %3599
        %3601 = vrot.lane.b32.xlu0 %v3596, 8
        %v3602 = vpop.permute.xlu0 %3601
        %v3605 = vadd.f32 %v3589, %v3600
        %v3606 = vadd.f32 %v3590, %v3602
        %v3607 = vld [vmem:[#allocation2 + $0x8] sm:$0xff]
        %v3608 = vld [vmem:[#allocation2 + $0x10] sm:$0xff]
        %s3609 = sld [smem:[#allocation8 + $0x8a]]
        %v3610 = vstv %s3609
        %v3611 = vmul.f32 %v3607, %v3610
        %v3612 = vmul.f32 %v3608, %v3610
        %3615 = vrot.lane.b32.xlu0 %v3611, 8
        %v3616 = vpop.permute.xlu0 %3615
        %3617 = vrot.lane.b32.xlu0 %v3612, 8
        %v3618 = vpop.permute.xlu0 %3617
        %v3621 = vadd.f32 %v3605, %v3616
        %v3622 = vadd.f32 %v3606, %v3618
        %v3623 = vld [vmem:[#allocation2 + $0x9] sm:$0xff]
        %v3624 = vld [vmem:[#allocation2 + $0x11] sm:$0xff]
        %s3625 = sld [smem:[#allocation8 + $0x8b]]
        %v3626 = vstv %s3625
        %v3627 = vmul.f32 %v3623, %v3626
        %v3628 = vmul.f32 %v3624, %v3626
        %3631 = vrot.lane.b32.xlu0 %v3627, 8
        %v3632 = vpop.permute.xlu0 %3631
        %3633 = vrot.lane.b32.xlu0 %v3628, 8
        %v3634 = vpop.permute.xlu0 %3633
        %v3637 = vadd.f32 %v3621, %v3632
        %v3638 = vadd.f32 %v3622, %v3634
        %v3639 = vld [vmem:[#allocation2 + $0xa] sm:$0xff]
        %v3640 = vld [vmem:[#allocation2 + $0x12] sm:$0xff]
        %s3641 = sld [smem:[#allocation8 + $0x8c]]
        %v3642 = vstv %s3641
        %v3643 = vmul.f32 %v3639, %v3642
        %v3644 = vmul.f32 %v3640, %v3642
        %3647 = vrot.lane.b32.xlu0 %v3643, 8
        %v3648 = vpop.permute.xlu0 %3647
        %3649 = vrot.lane.b32.xlu0 %v3644, 8
        %v3650 = vpop.permute.xlu0 %3649
        %v3653 = vadd.f32 %v3637, %v3648
        %v3654 = vadd.f32 %v3638, %v3650
        %v3655 = vld [vmem:[#allocation2 + $0xb] sm:$0xff]
        %v3656 = vld [vmem:[#allocation2 + $0x13] sm:$0xff]
        %s3657 = sld [smem:[#allocation8 + $0x8d]]
        %v3658 = vstv %s3657
        %v3659 = vmul.f32 %v3655, %v3658
        %v3660 = vmul.f32 %v3656, %v3658
        %3663 = vrot.lane.b32.xlu0 %v3659, 8
        %v3664 = vpop.permute.xlu0 %3663
        %3665 = vrot.lane.b32.xlu0 %v3660, 8
        %v3666 = vpop.permute.xlu0 %3665
        %v3669 = vadd.f32 %v3653, %v3664
        %v3670 = vadd.f32 %v3654, %v3666
        %v3671 = vld [vmem:[#allocation2 + $0xc] sm:$0xff]
        %v3672 = vld [vmem:[#allocation2 + $0x14] sm:$0xff]
        %s3673 = sld [smem:[#allocation8 + $0x8e]]
        %v3674 = vstv %s3673
        %v3675 = vmul.f32 %v3671, %v3674
        %v3676 = vmul.f32 %v3672, %v3674
        %3679 = vrot.lane.b32.xlu0 %v3675, 8
        %v3680 = vpop.permute.xlu0 %3679
        %3681 = vrot.lane.b32.xlu0 %v3676, 8
        %v3682 = vpop.permute.xlu0 %3681
        %v3685 = vadd.f32 %v3669, %v3680
        %v3686 = vadd.f32 %v3670, %v3682
        %v3687 = vld [vmem:[#allocation2 + $0xd] sm:$0xff]
        %v3688 = vld [vmem:[#allocation2 + $0x15] sm:$0xff]
        %s3689 = sld [smem:[#allocation8 + $0x8f]]
        %v3690 = vstv %s3689
        %v3691 = vmul.f32 %v3687, %v3690
        %v3692 = vmul.f32 %v3688, %v3690
        %3695 = vrot.lane.b32.xlu0 %v3691, 8
        %v3696 = vpop.permute.xlu0 %3695
        %3697 = vrot.lane.b32.xlu0 %v3692, 8
        %v3698 = vpop.permute.xlu0 %3697
        %v3701 = vadd.f32 %v3685, %v3696
        %v3702 = vadd.f32 %v3686, %v3698
        %v3703 = vld [vmem:[#allocation2 + $0xe] sm:$0xff]
        %v3704 = vld [vmem:[#allocation2 + $0x16] sm:$0xff]
        %s3705 = sld [smem:[#allocation8 + $0x90]]
        %v3706 = vstv %s3705
        %v3707 = vmul.f32 %v3703, %v3706
        %v3708 = vmul.f32 %v3704, %v3706
        %3711 = vrot.lane.b32.xlu0 %v3707, 8
        %v3712 = vpop.permute.xlu0 %3711
        %3713 = vrot.lane.b32.xlu0 %v3708, 8
        %v3714 = vpop.permute.xlu0 %3713
        %v3717 = vadd.f32 %v3701, %v3712
        %v3718 = vadd.f32 %v3702, %v3714
        %v3719 = vld [vmem:[#allocation2 + $0xf] sm:$0xff]
        %v3720 = vld [vmem:[#allocation2 + $0x17] sm:$0xff]
        %s3721 = sld [smem:[#allocation8 + $0x91]]
        %v3722 = vstv %s3721
        %v3723 = vmul.f32 %v3719, %v3722
        %v3724 = vmul.f32 %v3720, %v3722
        %3727 = vrot.lane.b32.xlu0 %v3723, 8
        %v3728 = vpop.permute.xlu0 %3727
        %3729 = vrot.lane.b32.xlu0 %v3724, 8
        %v3730 = vpop.permute.xlu0 %3729
        %v3733 = vadd.f32 %v3717, %v3728
        %v3734 = vadd.f32 %v3718, %v3730
        %3735 = vst.msk [vmem:[#allocation2 + $0x8] sm:$0xfc] %vm1553, %v3414
        %3736 = vst.msk [vmem:[#allocation2 + $0x10] sm:$0xff] %vm314, %v3415
        %3737 = vst.msk [vmem:[#allocation2 + $0x18] sm:$0x3] %vm316, %v3416
        %v3738 = vld [vmem:[#allocation2] sm:$0xff]
        %v3739 = vld [vmem:[#allocation2 + $0x8] sm:$0xff]
        %s3740 = sld [smem:[#allocation8 + $0x92]]
        %v3741 = vstv %s3740
        %v3742 = vmul.f32 %v3738, %v3741
        %v3743 = vmul.f32 %v3739, %v3741
        %3746 = vrot.lane.b32.xlu0 %v3742, 8
        %v3747 = vpop.permute.xlu0 %3746
        %3748 = vrot.lane.b32.xlu0 %v3743, 8
        %v3749 = vpop.permute.xlu0 %3748
        %v3752 = vadd.f32 %v3733, %v3747
        %v3753 = vadd.f32 %v3734, %v3749
        %v3754 = vld [vmem:[#allocation2 + $0x1] sm:$0xff]
        %v3755 = vld [vmem:[#allocation2 + $0x9] sm:$0xff]
        %s3756 = sld [smem:[#allocation8 + $0x93]]
        %v3757 = vstv %s3756
        %v3758 = vmul.f32 %v3754, %v3757
        %v3759 = vmul.f32 %v3755, %v3757
        %3762 = vrot.lane.b32.xlu0 %v3758, 8
        %v3763 = vpop.permute.xlu0 %3762
        %3764 = vrot.lane.b32.xlu0 %v3759, 8
        %v3765 = vpop.permute.xlu0 %3764
        %v3768 = vadd.f32 %v3752, %v3763
        %v3769 = vadd.f32 %v3753, %v3765
        %v3770 = vld [vmem:[#allocation2 + $0x2] sm:$0xff]
        %v3771 = vld [vmem:[#allocation2 + $0xa] sm:$0xff]
        %s3772 = sld [smem:[#allocation8 + $0x94]]
        %v3773 = vstv %s3772
        %v3774 = vmul.f32 %v3770, %v3773
        %v3775 = vmul.f32 %v3771, %v3773
        %3778 = vrot.lane.b32.xlu0 %v3774, 8
        %v3779 = vpop.permute.xlu0 %3778
        %3780 = vrot.lane.b32.xlu0 %v3775, 8
        %v3781 = vpop.permute.xlu0 %3780
        %v3784 = vadd.f32 %v3768, %v3779
        %v3785 = vadd.f32 %v3769, %v3781
        %v3786 = vld [vmem:[#allocation2 + $0x3] sm:$0xff]
        %v3787 = vld [vmem:[#allocation2 + $0xb] sm:$0xff]
        %s3788 = sld [smem:[#allocation8 + $0x95]]
        %v3789 = vstv %s3788
        %v3790 = vmul.f32 %v3786, %v3789
        %v3791 = vmul.f32 %v3787, %v3789
        %3794 = vrot.lane.b32.xlu0 %v3790, 8
        %v3795 = vpop.permute.xlu0 %3794
        %3796 = vrot.lane.b32.xlu0 %v3791, 8
        %v3797 = vpop.permute.xlu0 %3796
        %v3800 = vadd.f32 %v3784, %v3795
        %v3801 = vadd.f32 %v3785, %v3797
        %v3802 = vld [vmem:[#allocation2 + $0x4] sm:$0xff]
        %v3803 = vld [vmem:[#allocation2 + $0xc] sm:$0xff]
        %s3804 = sld [smem:[#allocation8 + $0x96]]
        %v3805 = vstv %s3804
        %v3806 = vmul.f32 %v3802, %v3805
        %v3807 = vmul.f32 %v3803, %v3805
        %3810 = vrot.lane.b32.xlu0 %v3806, 8
        %v3811 = vpop.permute.xlu0 %3810
        %3812 = vrot.lane.b32.xlu0 %v3807, 8
        %v3813 = vpop.permute.xlu0 %3812
        %v3816 = vadd.f32 %v3800, %v3811
        %v3817 = vadd.f32 %v3801, %v3813
        %v3818 = vld [vmem:[#allocation2 + $0x5] sm:$0xff]
        %v3819 = vld [vmem:[#allocation2 + $0xd] sm:$0xff]
        %s3820 = sld [smem:[#allocation8 + $0x97]]
        %v3821 = vstv %s3820
        %v3822 = vmul.f32 %v3818, %v3821
        %v3823 = vmul.f32 %v3819, %v3821
        %3826 = vrot.lane.b32.xlu0 %v3822, 8
        %v3827 = vpop.permute.xlu0 %3826
        %3828 = vrot.lane.b32.xlu0 %v3823, 8
        %v3829 = vpop.permute.xlu0 %3828
        %v3832 = vadd.f32 %v3816, %v3827
        %v3833 = vadd.f32 %v3817, %v3829
        %v3834 = vld [vmem:[#allocation2 + $0x6] sm:$0xff]
        %v3835 = vld [vmem:[#allocation2 + $0xe] sm:$0xff]
        %s3836 = sld [smem:[#allocation8 + $0x98]]
        %v3837 = vstv %s3836
        %v3838 = vmul.f32 %v3834, %v3837
        %v3839 = vmul.f32 %v3835, %v3837
        %3842 = vrot.lane.b32.xlu0 %v3838, 8
        %v3843 = vpop.permute.xlu0 %3842
        %3844 = vrot.lane.b32.xlu0 %v3839, 8
        %v3845 = vpop.permute.xlu0 %3844
        %v3848 = vadd.f32 %v3832, %v3843
        %v3849 = vadd.f32 %v3833, %v3845
        %v3850 = vld [vmem:[#allocation2 + $0x7] sm:$0xff]
        %v3851 = vld [vmem:[#allocation2 + $0xf] sm:$0xff]
        %s3852 = sld [smem:[#allocation8 + $0x99]]
        %v3853 = vstv %s3852
        %v3854 = vmul.f32 %v3850, %v3853
        %v3855 = vmul.f32 %v3851, %v3853
        %3858 = vrot.lane.b32.xlu0 %v3854, 8
        %v3859 = vpop.permute.xlu0 %3858
        %3860 = vrot.lane.b32.xlu0 %v3855, 8
        %v3861 = vpop.permute.xlu0 %3860
        %v3864 = vadd.f32 %v3848, %v3859
        %v3865 = vadd.f32 %v3849, %v3861
        %v3866 = vld [vmem:[#allocation2 + $0x8] sm:$0xff]
        %v3867 = vld [vmem:[#allocation2 + $0x10] sm:$0xff]
        %s3868 = sld [smem:[#allocation8 + $0x9a]]
        %v3869 = vstv %s3868
        %v3870 = vmul.f32 %v3866, %v3869
        %v3871 = vmul.f32 %v3867, %v3869
        %3874 = vrot.lane.b32.xlu0 %v3870, 8
        %v3875 = vpop.permute.xlu0 %3874
        %3876 = vrot.lane.b32.xlu0 %v3871, 8
        %v3877 = vpop.permute.xlu0 %3876
        %v3880 = vadd.f32 %v3864, %v3875
        %v3881 = vadd.f32 %v3865, %v3877
        %v3882 = vld [vmem:[#allocation2 + $0x9] sm:$0xff]
        %v3883 = vld [vmem:[#allocation2 + $0x11] sm:$0xff]
        %s3884 = sld [smem:[#allocation8 + $0x9b]]
        %v3885 = vstv %s3884
        %v3886 = vmul.f32 %v3882, %v3885
        %v3887 = vmul.f32 %v3883, %v3885
        %3890 = vrot.lane.b32.xlu0 %v3886, 8
        %v3891 = vpop.permute.xlu0 %3890
        %3892 = vrot.lane.b32.xlu0 %v3887, 8
        %v3893 = vpop.permute.xlu0 %3892
        %v3896 = vadd.f32 %v3880, %v3891
        %v3897 = vadd.f32 %v3881, %v3893
        %v3898 = vld [vmem:[#allocation2 + $0xa] sm:$0xff]
        %v3899 = vld [vmem:[#allocation2 + $0x12] sm:$0xff]
        %s3900 = sld [smem:[#allocation8 + $0x9c]]
        %v3901 = vstv %s3900
        %v3902 = vmul.f32 %v3898, %v3901
        %v3903 = vmul.f32 %v3899, %v3901
        %3906 = vrot.lane.b32.xlu0 %v3902, 8
        %v3907 = vpop.permute.xlu0 %3906
        %3908 = vrot.lane.b32.xlu0 %v3903, 8
        %v3909 = vpop.permute.xlu0 %3908
        %v3912 = vadd.f32 %v3896, %v3907
        %v3913 = vadd.f32 %v3897, %v3909
        %v3914 = vld [vmem:[#allocation2 + $0xb] sm:$0xff]
        %v3915 = vld [vmem:[#allocation2 + $0x13] sm:$0xff]
        %s3916 = sld [smem:[#allocation8 + $0x9d]]
        %v3917 = vstv %s3916
        %v3918 = vmul.f32 %v3914, %v3917
        %v3919 = vmul.f32 %v3915, %v3917
        %3922 = vrot.lane.b32.xlu0 %v3918, 8
        %v3923 = vpop.permute.xlu0 %3922
        %3924 = vrot.lane.b32.xlu0 %v3919, 8
        %v3925 = vpop.permute.xlu0 %3924
        %v3928 = vadd.f32 %v3912, %v3923
        %v3929 = vadd.f32 %v3913, %v3925
        %v3930 = vld [vmem:[#allocation2 + $0xc] sm:$0xff]
        %v3931 = vld [vmem:[#allocation2 + $0x14] sm:$0xff]
        %s3932 = sld [smem:[#allocation8 + $0x9e]]
        %v3933 = vstv %s3932
        %v3934 = vmul.f32 %v3930, %v3933
        %v3935 = vmul.f32 %v3931, %v3933
        %3938 = vrot.lane.b32.xlu0 %v3934, 8
        %v3939 = vpop.permute.xlu0 %3938
        %3940 = vrot.lane.b32.xlu0 %v3935, 8
        %v3941 = vpop.permute.xlu0 %3940
        %v3944 = vadd.f32 %v3928, %v3939
        %v3945 = vadd.f32 %v3929, %v3941
        %v3946 = vld [vmem:[#allocation2 + $0xd] sm:$0xff]
        %v3947 = vld [vmem:[#allocation2 + $0x15] sm:$0xff]
        %s3948 = sld [smem:[#allocation8 + $0x9f]]
        %v3949 = vstv %s3948
        %v3950 = vmul.f32 %v3946, %v3949
        %v3951 = vmul.f32 %v3947, %v3949
        %3954 = vrot.lane.b32.xlu0 %v3950, 8
        %v3955 = vpop.permute.xlu0 %3954
        %3956 = vrot.lane.b32.xlu0 %v3951, 8
        %v3957 = vpop.permute.xlu0 %3956
        %v3960 = vadd.f32 %v3944, %v3955
        %v3961 = vadd.f32 %v3945, %v3957
        %v3962 = vld [vmem:[#allocation2 + $0xe] sm:$0xff]
        %v3963 = vld [vmem:[#allocation2 + $0x16] sm:$0xff]
        %s3964 = sld [smem:[#allocation8 + $0xa0]]
        %v3965 = vstv %s3964
        %v3966 = vmul.f32 %v3962, %v3965
        %v3967 = vmul.f32 %v3963, %v3965
        %3970 = vrot.lane.b32.xlu0 %v3966, 8
        %v3971 = vpop.permute.xlu0 %3970
        %3972 = vrot.lane.b32.xlu0 %v3967, 8
        %v3973 = vpop.permute.xlu0 %3972
        %v3976 = vadd.f32 %v3960, %v3971
        %v3977 = vadd.f32 %v3961, %v3973
        %v3978 = vld [vmem:[#allocation2 + $0xf] sm:$0xff]
        %v3979 = vld [vmem:[#allocation2 + $0x17] sm:$0xff]
        %s3980 = sld [smem:[#allocation8 + $0xa1]]
        %v3981 = vstv %s3980
        %v3982 = vmul.f32 %v3978, %v3981
        %v3983 = vmul.f32 %v3979, %v3981
        %3986 = vrot.lane.b32.xlu0 %v3982, 8
        %v3987 = vpop.permute.xlu0 %3986
        %3988 = vrot.lane.b32.xlu0 %v3983, 8
        %v3989 = vpop.permute.xlu0 %3988
        %v3992 = vadd.f32 %v3976, %v3987
        %v3993 = vadd.f32 %v3977, %v3989
        %v3994 = vld [vmem:[#allocation2 + $0x10] sm:$0xff]
        %v3995 = vld [vmem:[#allocation2 + $0x18] sm:$0xff]
        %s3996 = sld [smem:[#allocation8 + $0xa2]]
        %v3997 = vstv %s3996
        %v3998 = vmul.f32 %v3994, %v3997
        %v3999 = vmul.f32 %v3995, %v3997
        %4002 = vrot.lane.b32.xlu0 %v3998, 8
        %v4003 = vpop.permute.xlu0 %4002
        %4004 = vrot.lane.b32.xlu0 %v3999, 8
        %v4005 = vpop.permute.xlu0 %4004
        %v4008 = vadd.f32 %v3992, %v4003
        %v4009 = vadd.f32 %v3993, %v4005
        %v4010 = vld [vmem:[#allocation2 + $0x11] sm:$0xff]
        %v4011 = vld [vmem:[#allocation2 + $0x19] sm:$0xff]
        %s4012 = sld [smem:[#allocation8 + $0xa3]]
        %v4013 = vstv %s4012
        %v4014 = vmul.f32 %v4010, %v4013
        %v4015 = vmul.f32 %v4011, %v4013
        %4018 = vrot.lane.b32.xlu0 %v4014, 8
        %v4019 = vpop.permute.xlu0 %4018
        %4020 = vrot.lane.b32.xlu0 %v4015, 8
        %v4021 = vpop.permute.xlu0 %4020
        %v4024 = vadd.f32 %v4008, %v4019
        %v4025 = vadd.f32 %v4009, %v4021
        %v4026 = vld [vmem:[#allocation2 + $0x12] sm:$0xff]
        %v4027 = vld [vmem:[#allocation2 + $0x1a] sm:$0xff]
        %s4028 = sld [smem:[#allocation8 + $0xa4]]
        %v4029 = vstv %s4028
        %v4030 = vmul.f32 %v4026, %v4029
        %v4031 = vmul.f32 %v4027, %v4029
        %4034 = vrot.lane.b32.xlu0 %v4030, 8
        %v4035 = vpop.permute.xlu0 %4034
        %4036 = vrot.lane.b32.xlu0 %v4031, 8
        %v4037 = vpop.permute.xlu0 %4036
        %v4040 = vadd.f32 %v4024, %v4035
        %v4041 = vadd.f32 %v4025, %v4037
        %v4042 = vld [vmem:[#allocation2 + $0x13] sm:$0xff]
        %v4043 = vld [vmem:[#allocation2 + $0x1b] sm:$0xff]
        %s4044 = sld [smem:[#allocation8 + $0xa5]]
        %v4045 = vstv %s4044
        %v4046 = vmul.f32 %v4042, %v4045
        %v4047 = vmul.f32 %v4043, %v4045
        %4050 = vrot.lane.b32.xlu0 %v4046, 8
        %v4051 = vpop.permute.xlu0 %4050
        %4052 = vrot.lane.b32.xlu0 %v4047, 8
        %v4053 = vpop.permute.xlu0 %4052
        %v4056 = vadd.f32 %v4040, %v4051
        %v4057 = vadd.f32 %v4041, %v4053
        %v4058 = vld [vmem:[#allocation2 + $0x14] sm:$0xff]
        %v4059 = vld [vmem:[#allocation2 + $0x1c] sm:$0xff]
        %s4060 = sld [smem:[#allocation8 + $0xa6]]
        %v4061 = vstv %s4060
        %v4062 = vmul.f32 %v4058, %v4061
        %v4063 = vmul.f32 %v4059, %v4061
        %4066 = vrot.lane.b32.xlu0 %v4062, 8
        %v4067 = vpop.permute.xlu0 %4066
        %4068 = vrot.lane.b32.xlu0 %v4063, 8
        %v4069 = vpop.permute.xlu0 %4068
        %v4072 = vadd.f32 %v4056, %v4067
        %v4073 = vadd.f32 %v4057, %v4069
        %s4074 = scalar_lea.vmem %s313, 48
        %v4075 = vld [vmem:[%s4074] sm:$0xff]
        %v4076 = vld [vmem:[%s4074 + $0x8] sm:$0xff]
        %v4077 = vld [vmem:[%s4074 + $0x10] sm:$0xf]
        %s4078 = sld [smem:[#allocation3 + $0x100]]
        %v4079 = vstv %s4078
        %v4080 = vmul.f32 %v4075, %v4079
        %v4081 = vmul.f32 %v4076, %v4079
        %s4082 = sld [smem:[#allocation3 + $0x105]]
        %v4083 = vstv %s4082
        %v4084 = vmul.f32 %v4075, %v4083
        %v4085 = vmul.f32 %v4076, %v4083
        %v4086 = vmul.f32 %v4077, %v4083
        %v4090 = vrot.slane %v4084, 1
        %v4091 = vrot.slane %v4085, 1
        %v4092 = vsel %vm335, %v4090, %v4091
        %v4093 = vrot.slane %v4086, 1
        %v4094 = vsel %vm335, %v4091, %v4093
        %v4097 = vadd.f32 %v4080, %v4092
        %v4098 = vadd.f32 %v4081, %v4094
        %s4099 = sld [smem:[#allocation3 + $0x10a]]
        %v4100 = vstv %s4099
        %v4101 = vmul.f32 %v4075, %v4100
        %v4102 = vmul.f32 %v4076, %v4100
        %v4103 = vmul.f32 %v4077, %v4100
        %v4107 = vrot.slane %v4101, 2
        %v4108 = vrot.slane %v4102, 2
        %v4109 = vsel %vm353, %v4107, %v4108
        %v4110 = vrot.slane %v4103, 2
        %v4111 = vsel %vm353, %v4108, %v4110
        %v4114 = vadd.f32 %v4097, %v4109
        %v4115 = vadd.f32 %v4098, %v4111
        %s4116 = sld [smem:[#allocation3 + $0x10f]]
        %v4117 = vstv %s4116
        %v4118 = vmul.f32 %v4075, %v4117
        %v4119 = vmul.f32 %v4076, %v4117
        %v4120 = vmul.f32 %v4077, %v4117
        %v4124 = vrot.slane %v4118, 3
        %v4125 = vrot.slane %v4119, 3
        %v4126 = vsel %vm371, %v4124, %v4125
        %v4127 = vrot.slane %v4120, 3
        %v4128 = vsel %vm371, %v4125, %v4127
        %v4131 = vadd.f32 %v4114, %v4126
        %v4132 = vadd.f32 %v4115, %v4128
        %s4133 = sld [smem:[#allocation3 + $0x114]]
        %v4134 = vstv %s4133
        %v4135 = vmul.f32 %v4075, %v4134
        %v4136 = vmul.f32 %v4076, %v4134
        %v4137 = vmul.f32 %v4077, %v4134
        %v4141 = vrot.slane %v4135, 4
        %v4142 = vrot.slane %v4136, 4
        %v4143 = vsel %vm389, %v4141, %v4142
        %v4144 = vrot.slane %v4137, 4
        %v4145 = vsel %vm389, %v4142, %v4144
        %v4148 = vadd.f32 %v4131, %v4143
        %v4149 = vadd.f32 %v4132, %v4145
        %s4150 = sld [smem:[#allocation3 + $0x101]]
        %v4151 = vstv %s4150
        %v4152 = vmul.f32 %v4075, %v4151
        %v4153 = vmul.f32 %v4076, %v4151
        %4156 = vrot.lane.b32.xlu0 %v4152, 127
        %v4157 = vpop.permute.xlu0 %4156
        %4158 = vrot.lane.b32.xlu0 %v4153, 127
        %v4159 = vpop.permute.xlu0 %4158
        %v4162 = vadd.f32 %v4148, %v4157
        %v4163 = vadd.f32 %v4149, %v4159
        %s4164 = sld [smem:[#allocation3 + $0x106]]
        %v4165 = vstv %s4164
        %v4166 = vmul.f32 %v4075, %v4165
        %v4167 = vmul.f32 %v4076, %v4165
        %v4168 = vmul.f32 %v4077, %v4165
        %v4172 = vrot.slane %v4166, 1
        %v4173 = vrot.slane %v4167, 1
        %v4174 = vsel %vm335, %v4172, %v4173
        %v4175 = vrot.slane %v4168, 1
        %v4176 = vsel %vm335, %v4173, %v4175
        %4177 = vrot.lane.b32.xlu0 %v4174, 127
        %v4178 = vpop.permute.xlu0 %4177
        %4179 = vrot.lane.b32.xlu0 %v4176, 127
        %v4180 = vpop.permute.xlu0 %4179
        %v4183 = vadd.f32 %v4162, %v4178
        %v4184 = vadd.f32 %v4163, %v4180
        %s4185 = sld [smem:[#allocation3 + $0x10b]]
        %v4186 = vstv %s4185
        %v4187 = vmul.f32 %v4075, %v4186
        %v4188 = vmul.f32 %v4076, %v4186
        %v4189 = vmul.f32 %v4077, %v4186
        %v4193 = vrot.slane %v4187, 2
        %v4194 = vrot.slane %v4188, 2
        %v4195 = vsel %vm353, %v4193, %v4194
        %v4196 = vrot.slane %v4189, 2
        %v4197 = vsel %vm353, %v4194, %v4196
        %4198 = vrot.lane.b32.xlu0 %v4195, 127
        %v4199 = vpop.permute.xlu0 %4198
        %4200 = vrot.lane.b32.xlu0 %v4197, 127
        %v4201 = vpop.permute.xlu0 %4200
        %v4204 = vadd.f32 %v4183, %v4199
        %v4205 = vadd.f32 %v4184, %v4201
        %s4206 = sld [smem:[#allocation3 + $0x110]]
        %v4207 = vstv %s4206
        %v4208 = vmul.f32 %v4075, %v4207
        %v4209 = vmul.f32 %v4076, %v4207
        %v4210 = vmul.f32 %v4077, %v4207
        %v4214 = vrot.slane %v4208, 3
        %v4215 = vrot.slane %v4209, 3
        %v4216 = vsel %vm371, %v4214, %v4215
        %v4217 = vrot.slane %v4210, 3
        %v4218 = vsel %vm371, %v4215, %v4217
        %4219 = vrot.lane.b32.xlu0 %v4216, 127
        %v4220 = vpop.permute.xlu0 %4219
        %4221 = vrot.lane.b32.xlu0 %v4218, 127
        %v4222 = vpop.permute.xlu0 %4221
        %v4225 = vadd.f32 %v4204, %v4220
        %v4226 = vadd.f32 %v4205, %v4222
        %s4227 = sld [smem:[#allocation3 + $0x115]]
        %v4228 = vstv %s4227
        %v4229 = vmul.f32 %v4075, %v4228
        %v4230 = vmul.f32 %v4076, %v4228
        %v4231 = vmul.f32 %v4077, %v4228
        %v4235 = vrot.slane %v4229, 4
        %v4236 = vrot.slane %v4230, 4
        %v4237 = vsel %vm389, %v4235, %v4236
        %v4238 = vrot.slane %v4231, 4
        %v4239 = vsel %vm389, %v4236, %v4238
        %4240 = vrot.lane.b32.xlu0 %v4237, 127
        %v4241 = vpop.permute.xlu0 %4240
        %4242 = vrot.lane.b32.xlu0 %v4239, 127
        %v4243 = vpop.permute.xlu0 %4242
        %v4246 = vadd.f32 %v4225, %v4241
        %v4247 = vadd.f32 %v4226, %v4243
        %s4248 = sld [smem:[#allocation3 + $0x102]]
        %v4249 = vstv %s4248
        %v4250 = vmul.f32 %v4075, %v4249
        %v4251 = vmul.f32 %v4076, %v4249
        %4254 = vrot.lane.b32.xlu0 %v4250, 126
        %v4255 = vpop.permute.xlu0 %4254
        %4256 = vrot.lane.b32.xlu0 %v4251, 126
        %v4257 = vpop.permute.xlu0 %4256
        %v4260 = vadd.f32 %v4246, %v4255
        %v4261 = vadd.f32 %v4247, %v4257
        %s4262 = sld [smem:[#allocation3 + $0x107]]
        %v4263 = vstv %s4262
        %v4264 = vmul.f32 %v4075, %v4263
        %v4265 = vmul.f32 %v4076, %v4263
        %v4266 = vmul.f32 %v4077, %v4263
        %v4270 = vrot.slane %v4264, 1
        %v4271 = vrot.slane %v4265, 1
        %v4272 = vsel %vm335, %v4270, %v4271
        %v4273 = vrot.slane %v4266, 1
        %v4274 = vsel %vm335, %v4271, %v4273
        %4275 = vrot.lane.b32.xlu0 %v4272, 126
        %v4276 = vpop.permute.xlu0 %4275
        %4277 = vrot.lane.b32.xlu0 %v4274, 126
        %v4278 = vpop.permute.xlu0 %4277
        %v4281 = vadd.f32 %v4260, %v4276
        %v4282 = vadd.f32 %v4261, %v4278
        %s4283 = sld [smem:[#allocation3 + $0x10c]]
        %v4284 = vstv %s4283
        %v4285 = vmul.f32 %v4075, %v4284
        %v4286 = vmul.f32 %v4076, %v4284
        %v4287 = vmul.f32 %v4077, %v4284
        %v4291 = vrot.slane %v4285, 2
        %v4292 = vrot.slane %v4286, 2
        %v4293 = vsel %vm353, %v4291, %v4292
        %v4294 = vrot.slane %v4287, 2
        %v4295 = vsel %vm353, %v4292, %v4294
        %4296 = vrot.lane.b32.xlu0 %v4293, 126
        %v4297 = vpop.permute.xlu0 %4296
        %4298 = vrot.lane.b32.xlu0 %v4295, 126
        %v4299 = vpop.permute.xlu0 %4298
        %v4302 = vadd.f32 %v4281, %v4297
        %v4303 = vadd.f32 %v4282, %v4299
        %s4304 = sld [smem:[#allocation3 + $0x111]]
        %v4305 = vstv %s4304
        %v4306 = vmul.f32 %v4075, %v4305
        %v4307 = vmul.f32 %v4076, %v4305
        %v4308 = vmul.f32 %v4077, %v4305
        %v4312 = vrot.slane %v4306, 3
        %v4313 = vrot.slane %v4307, 3
        %v4314 = vsel %vm371, %v4312, %v4313
        %v4315 = vrot.slane %v4308, 3
        %v4316 = vsel %vm371, %v4313, %v4315
        %4317 = vrot.lane.b32.xlu0 %v4314, 126
        %v4318 = vpop.permute.xlu0 %4317
        %4319 = vrot.lane.b32.xlu0 %v4316, 126
        %v4320 = vpop.permute.xlu0 %4319
        %v4323 = vadd.f32 %v4302, %v4318
        %v4324 = vadd.f32 %v4303, %v4320
        %s4325 = sld [smem:[#allocation3 + $0x116]]
        %v4326 = vstv %s4325
        %v4327 = vmul.f32 %v4075, %v4326
        %v4328 = vmul.f32 %v4076, %v4326
        %v4329 = vmul.f32 %v4077, %v4326
        %v4333 = vrot.slane %v4327, 4
        %v4334 = vrot.slane %v4328, 4
        %v4335 = vsel %vm389, %v4333, %v4334
        %v4336 = vrot.slane %v4329, 4
        %v4337 = vsel %vm389, %v4334, %v4336
        %4338 = vrot.lane.b32.xlu0 %v4335, 126
        %v4339 = vpop.permute.xlu0 %4338
        %4340 = vrot.lane.b32.xlu0 %v4337, 126
        %v4341 = vpop.permute.xlu0 %4340
        %v4344 = vadd.f32 %v4323, %v4339
        %v4345 = vadd.f32 %v4324, %v4341
        %s4346 = sld [smem:[#allocation3 + $0x103]]
        %v4347 = vstv %s4346
        %v4348 = vmul.f32 %v4075, %v4347
        %v4349 = vmul.f32 %v4076, %v4347
        %4352 = vrot.lane.b32.xlu0 %v4348, 125
        %v4353 = vpop.permute.xlu0 %4352
        %4354 = vrot.lane.b32.xlu0 %v4349, 125
        %v4355 = vpop.permute.xlu0 %4354
        %v4358 = vadd.f32 %v4344, %v4353
        %v4359 = vadd.f32 %v4345, %v4355
        %s4360 = sld [smem:[#allocation3 + $0x108]]
        %v4361 = vstv %s4360
        %v4362 = vmul.f32 %v4075, %v4361
        %v4363 = vmul.f32 %v4076, %v4361
        %v4364 = vmul.f32 %v4077, %v4361
        %v4368 = vrot.slane %v4362, 1
        %v4369 = vrot.slane %v4363, 1
        %v4370 = vsel %vm335, %v4368, %v4369
        %v4371 = vrot.slane %v4364, 1
        %v4372 = vsel %vm335, %v4369, %v4371
        %4373 = vrot.lane.b32.xlu0 %v4370, 125
        %v4374 = vpop.permute.xlu0 %4373
        %4375 = vrot.lane.b32.xlu0 %v4372, 125
        %v4376 = vpop.permute.xlu0 %4375
        %v4379 = vadd.f32 %v4358, %v4374
        %v4380 = vadd.f32 %v4359, %v4376
        %s4381 = sld [smem:[#allocation3 + $0x10d]]
        %v4382 = vstv %s4381
        %v4383 = vmul.f32 %v4075, %v4382
        %v4384 = vmul.f32 %v4076, %v4382
        %v4385 = vmul.f32 %v4077, %v4382
        %v4389 = vrot.slane %v4383, 2
        %v4390 = vrot.slane %v4384, 2
        %v4391 = vsel %vm353, %v4389, %v4390
        %v4392 = vrot.slane %v4385, 2
        %v4393 = vsel %vm353, %v4390, %v4392
        %4394 = vrot.lane.b32.xlu0 %v4391, 125
        %v4395 = vpop.permute.xlu0 %4394
        %4396 = vrot.lane.b32.xlu0 %v4393, 125
        %v4397 = vpop.permute.xlu0 %4396
        %v4400 = vadd.f32 %v4379, %v4395
        %v4401 = vadd.f32 %v4380, %v4397
        %s4402 = sld [smem:[#allocation3 + $0x112]]
        %v4403 = vstv %s4402
        %v4404 = vmul.f32 %v4075, %v4403
        %v4405 = vmul.f32 %v4076, %v4403
        %v4406 = vmul.f32 %v4077, %v4403
        %v4410 = vrot.slane %v4404, 3
        %v4411 = vrot.slane %v4405, 3
        %v4412 = vsel %vm371, %v4410, %v4411
        %v4413 = vrot.slane %v4406, 3
        %v4414 = vsel %vm371, %v4411, %v4413
        %4415 = vrot.lane.b32.xlu0 %v4412, 125
        %v4416 = vpop.permute.xlu0 %4415
        %4417 = vrot.lane.b32.xlu0 %v4414, 125
        %v4418 = vpop.permute.xlu0 %4417
        %v4421 = vadd.f32 %v4400, %v4416
        %v4422 = vadd.f32 %v4401, %v4418
        %s4423 = sld [smem:[#allocation3 + $0x117]]
        %v4424 = vstv %s4423
        %v4425 = vmul.f32 %v4075, %v4424
        %v4426 = vmul.f32 %v4076, %v4424
        %v4427 = vmul.f32 %v4077, %v4424
        %v4431 = vrot.slane %v4425, 4
        %v4432 = vrot.slane %v4426, 4
        %v4433 = vsel %vm389, %v4431, %v4432
        %v4434 = vrot.slane %v4427, 4
        %v4435 = vsel %vm389, %v4432, %v4434
        %4436 = vrot.lane.b32.xlu0 %v4433, 125
        %v4437 = vpop.permute.xlu0 %4436
        %4438 = vrot.lane.b32.xlu0 %v4435, 125
        %v4439 = vpop.permute.xlu0 %4438
        %v4442 = vadd.f32 %v4421, %v4437
        %v4443 = vadd.f32 %v4422, %v4439
        %s4444 = sld [smem:[#allocation3 + $0x104]]
        %v4445 = vstv %s4444
        %v4446 = vmul.f32 %v4075, %v4445
        %v4447 = vmul.f32 %v4076, %v4445
        %4450 = vrot.lane.b32.xlu0 %v4446, 124
        %v4451 = vpop.permute.xlu0 %4450
        %4452 = vrot.lane.b32.xlu0 %v4447, 124
        %v4453 = vpop.permute.xlu0 %4452
        %v4456 = vadd.f32 %v4442, %v4451
        %v4457 = vadd.f32 %v4443, %v4453
        %s4458 = sld [smem:[#allocation3 + $0x109]]
        %v4459 = vstv %s4458
        %v4460 = vmul.f32 %v4075, %v4459
        %v4461 = vmul.f32 %v4076, %v4459
        %v4462 = vmul.f32 %v4077, %v4459
        %v4466 = vrot.slane %v4460, 1
        %v4467 = vrot.slane %v4461, 1
        %v4468 = vsel %vm335, %v4466, %v4467
        %v4469 = vrot.slane %v4462, 1
        %v4470 = vsel %vm335, %v4467, %v4469
        %4471 = vrot.lane.b32.xlu0 %v4468, 124
        %v4472 = vpop.permute.xlu0 %4471
        %4473 = vrot.lane.b32.xlu0 %v4470, 124
        %v4474 = vpop.permute.xlu0 %4473
        %v4477 = vadd.f32 %v4456, %v4472
        %v4478 = vadd.f32 %v4457, %v4474
        %s4479 = sld [smem:[#allocation3 + $0x10e]]
        %v4480 = vstv %s4479
        %v4481 = vmul.f32 %v4075, %v4480
        %v4482 = vmul.f32 %v4076, %v4480
        %v4483 = vmul.f32 %v4077, %v4480
        %v4487 = vrot.slane %v4481, 2
        %v4488 = vrot.slane %v4482, 2
        %v4489 = vsel %vm353, %v4487, %v4488
        %v4490 = vrot.slane %v4483, 2
        %v4491 = vsel %vm353, %v4488, %v4490
        %4492 = vrot.lane.b32.xlu0 %v4489, 124
        %v4493 = vpop.permute.xlu0 %4492
        %4494 = vrot.lane.b32.xlu0 %v4491, 124
        %v4495 = vpop.permute.xlu0 %4494
        %v4498 = vadd.f32 %v4477, %v4493
        %v4499 = vadd.f32 %v4478, %v4495
        %s4500 = sld [smem:[#allocation3 + $0x113]]
        %v4501 = vstv %s4500
        %v4502 = vmul.f32 %v4075, %v4501
        %v4503 = vmul.f32 %v4076, %v4501
        %v4504 = vmul.f32 %v4077, %v4501
        %v4508 = vrot.slane %v4502, 3
        %v4509 = vrot.slane %v4503, 3
        %v4510 = vsel %vm371, %v4508, %v4509
        %v4511 = vrot.slane %v4504, 3
        %v4512 = vsel %vm371, %v4509, %v4511
        %4513 = vrot.lane.b32.xlu0 %v4510, 124
        %v4514 = vpop.permute.xlu0 %4513
        %4515 = vrot.lane.b32.xlu0 %v4512, 124
        %v4516 = vpop.permute.xlu0 %4515
        %v4519 = vadd.f32 %v4498, %v4514
        %v4520 = vadd.f32 %v4499, %v4516
        %s4521 = sld [smem:[#allocation3 + $0x118]]
        %v4522 = vstv %s4521
        %v4523 = vmul.f32 %v4075, %v4522
        %v4524 = vmul.f32 %v4076, %v4522
        %v4525 = vmul.f32 %v4077, %v4522
        %v4529 = vrot.slane %v4523, 4
        %v4530 = vrot.slane %v4524, 4
        %v4531 = vsel %vm389, %v4529, %v4530
        %v4532 = vrot.slane %v4525, 4
        %v4533 = vsel %vm389, %v4530, %v4532
        %4534 = vrot.lane.b32.xlu0 %v4531, 124
        %v4535 = vpop.permute.xlu0 %4534
        %4536 = vrot.lane.b32.xlu0 %v4533, 124
        %v4537 = vpop.permute.xlu0 %4536
        %v4540 = vadd.f32 %v4519, %v4535
        %v4541 = vadd.f32 %v4520, %v4537
        %s4542 = sld [smem:[#allocation6 + $0x112]]
        %v4543 = vstv %s4542
        %v4544 = vmul.f32 %v4075, %v4543
        %v4545 = vmul.f32 %v4076, %v4543
        %v4546 = vmul.f32 %v4077, %v4543
        %s4547 = sld [smem:[#allocation6 + $0x113]]
        %v4548 = vstv %s4547
        %v4549 = vmul.f32 %v4075, %v4548
        %v4550 = vmul.f32 %v4076, %v4548
        %v4551 = vmul.f32 %v4077, %v4548
        %4555 = vrot.lane.b32.xlu0 %v4549, 127
        %v4556 = vpop.permute.xlu0 %4555
        %4557 = vrot.lane.b32.xlu0 %v4550, 127
        %v4558 = vpop.permute.xlu0 %4557
        %4559 = vrot.lane.b32.xlu0 %v4551, 127
        %v4560 = vpop.permute.xlu0 %4559
        %v4564 = vadd.f32 %v4544, %v4556
        %v4565 = vadd.f32 %v4545, %v4558
        %v4566 = vadd.f32 %v4546, %v4560
        %s4567 = sld [smem:[#allocation6 + $0x114]]
        %v4568 = vstv %s4567
        %v4569 = vmul.f32 %v4075, %v4568
        %v4570 = vmul.f32 %v4076, %v4568
        %v4571 = vmul.f32 %v4077, %v4568
        %4575 = vrot.lane.b32.xlu0 %v4569, 126
        %v4576 = vpop.permute.xlu0 %4575
        %4577 = vrot.lane.b32.xlu0 %v4570, 126
        %v4578 = vpop.permute.xlu0 %4577
        %4579 = vrot.lane.b32.xlu0 %v4571, 126
        %v4580 = vpop.permute.xlu0 %4579
        %v4584 = vadd.f32 %v4564, %v4576
        %v4585 = vadd.f32 %v4565, %v4578
        %v4586 = vadd.f32 %v4566, %v4580
        %s4587 = sld [smem:[#allocation6 + $0x115]]
        %v4588 = vstv %s4587
        %v4589 = vmul.f32 %v4075, %v4588
        %v4590 = vmul.f32 %v4076, %v4588
        %v4591 = vmul.f32 %v4077, %v4588
        %4595 = vrot.lane.b32.xlu0 %v4589, 125
        %v4596 = vpop.permute.xlu0 %4595
        %4597 = vrot.lane.b32.xlu0 %v4590, 125
        %v4598 = vpop.permute.xlu0 %4597
        %4599 = vrot.lane.b32.xlu0 %v4591, 125
        %v4600 = vpop.permute.xlu0 %4599
        %v4604 = vadd.f32 %v4584, %v4596
        %v4605 = vadd.f32 %v4585, %v4598
        %v4606 = vadd.f32 %v4586, %v4600
        %s4607 = sld [smem:[#allocation6 + $0x116]]
        %v4608 = vstv %s4607
        %v4609 = vmul.f32 %v4075, %v4608
        %v4610 = vmul.f32 %v4076, %v4608
        %v4611 = vmul.f32 %v4077, %v4608
        %4615 = vrot.lane.b32.xlu0 %v4609, 124
        %v4616 = vpop.permute.xlu0 %4615
        %4617 = vrot.lane.b32.xlu0 %v4610, 124
        %v4618 = vpop.permute.xlu0 %4617
        %4619 = vrot.lane.b32.xlu0 %v4611, 124
        %v4620 = vpop.permute.xlu0 %4619
        %v4624 = vadd.f32 %v4604, %v4616
        %v4625 = vadd.f32 %v4605, %v4618
        %v4626 = vadd.f32 %v4606, %v4620
        %s4627 = sld [smem:[#allocation6 + $0x117]]
        %v4628 = vstv %s4627
        %v4629 = vmul.f32 %v4075, %v4628
        %v4630 = vmul.f32 %v4076, %v4628
        %v4631 = vmul.f32 %v4077, %v4628
        %4635 = vrot.lane.b32.xlu0 %v4629, 123
        %v4636 = vpop.permute.xlu0 %4635
        %4637 = vrot.lane.b32.xlu0 %v4630, 123
        %v4638 = vpop.permute.xlu0 %4637
        %4639 = vrot.lane.b32.xlu0 %v4631, 123
        %v4640 = vpop.permute.xlu0 %4639
        %v4644 = vadd.f32 %v4624, %v4636
        %v4645 = vadd.f32 %v4625, %v4638
        %v4646 = vadd.f32 %v4626, %v4640
        %s4647 = sld [smem:[#allocation6 + $0x107]]
        %v4648 = vstv %s4647
        %v4649 = vmul.f32 %v4075, %v4648
        %v4650 = vmul.f32 %v4076, %v4648
        %v4651 = vmul.f32 %v4077, %v4648
        %s4652 = sld [smem:[#allocation6 + $0x118]]
        %v4653 = vstv %s4652
        %v4654 = vmul.f32 %v4075, %v4653
        %v4655 = vmul.f32 %v4076, %v4653
        %v4656 = vmul.f32 %v4077, %v4653
        %4660 = vrot.lane.b32.xlu0 %v4654, 122
        %v4661 = vpop.permute.xlu0 %4660
        %4662 = vrot.lane.b32.xlu0 %v4655, 122
        %v4663 = vpop.permute.xlu0 %4662
        %4664 = vrot.lane.b32.xlu0 %v4656, 122
        %v4665 = vpop.permute.xlu0 %4664
        %v4669 = vadd.f32 %v4644, %v4661
        %v4670 = vadd.f32 %v4645, %v4663
        %v4671 = vadd.f32 %v4646, %v4665
        %s4672 = sld [smem:[#allocation6 + $0x108]]
        %v4673 = vstv %s4672
        %v4674 = vmul.f32 %v4075, %v4673
        %v4675 = vmul.f32 %v4076, %v4673
        %v4676 = vmul.f32 %v4077, %v4673
        %4680 = vrot.lane.b32.xlu0 %v4674, 127
        %v4681 = vpop.permute.xlu0 %4680
        %4682 = vrot.lane.b32.xlu0 %v4675, 127
        %v4683 = vpop.permute.xlu0 %4682
        %4684 = vrot.lane.b32.xlu0 %v4676, 127
        %v4685 = vpop.permute.xlu0 %4684
        %v4689 = vadd.f32 %v4649, %v4681
        %v4690 = vadd.f32 %v4650, %v4683
        %v4691 = vadd.f32 %v4651, %v4685
        %s4692 = sld [smem:[#allocation6 + $0x119]]
        %v4693 = vstv %s4692
        %v4694 = vmul.f32 %v4075, %v4693
        %v4695 = vmul.f32 %v4076, %v4693
        %v4696 = vmul.f32 %v4077, %v4693
        %4700 = vrot.lane.b32.xlu0 %v4694, 121
        %v4701 = vpop.permute.xlu0 %4700
        %4702 = vrot.lane.b32.xlu0 %v4695, 121
        %v4703 = vpop.permute.xlu0 %4702
        %4704 = vrot.lane.b32.xlu0 %v4696, 121
        %v4705 = vpop.permute.xlu0 %4704
        %v4709 = vadd.f32 %v4669, %v4701
        %v4710 = vadd.f32 %v4670, %v4703
        %v4711 = vadd.f32 %v4671, %v4705
        %s4712 = sld [smem:[#allocation6 + $0x109]]
        %v4713 = vstv %s4712
        %v4714 = vmul.f32 %v4075, %v4713
        %v4715 = vmul.f32 %v4076, %v4713
        %v4716 = vmul.f32 %v4077, %v4713
        %4720 = vrot.lane.b32.xlu0 %v4714, 126
        %v4721 = vpop.permute.xlu0 %4720
        %4722 = vrot.lane.b32.xlu0 %v4715, 126
        %v4723 = vpop.permute.xlu0 %4722
        %4724 = vrot.lane.b32.xlu0 %v4716, 126
        %v4725 = vpop.permute.xlu0 %4724
        %v4729 = vadd.f32 %v4689, %v4721
        %v4730 = vadd.f32 %v4690, %v4723
        %v4731 = vadd.f32 %v4691, %v4725
        %s4732 = sld [smem:[#allocation6 + $0x100]]
        %v4733 = vstv %s4732
        %v4734 = vmul.f32 %v4075, %v4733
        %v4735 = vmul.f32 %v4076, %v4733
        %v4736 = vmul.f32 %v4077, %v4733
        %s4737 = sld [smem:[#allocation6 + $0x11a]]
        %v4738 = vstv %s4737
        %v4739 = vmul.f32 %v4075, %v4738
        %v4740 = vmul.f32 %v4076, %v4738
        %v4741 = vmul.f32 %v4077, %v4738
        %4745 = vrot.lane.b32.xlu0 %v4739, 120
        %v4746 = vpop.permute.xlu0 %4745
        %4747 = vrot.lane.b32.xlu0 %v4740, 120
        %v4748 = vpop.permute.xlu0 %4747
        %4749 = vrot.lane.b32.xlu0 %v4741, 120
        %v4750 = vpop.permute.xlu0 %4749
        %v4754 = vadd.f32 %v4709, %v4746
        %v4755 = vadd.f32 %v4710, %v4748
        %v4756 = vadd.f32 %v4711, %v4750
        %s4757 = sld [smem:[#allocation6 + $0x10a]]
        %v4758 = vstv %s4757
        %v4759 = vmul.f32 %v4075, %v4758
        %v4760 = vmul.f32 %v4076, %v4758
        %v4761 = vmul.f32 %v4077, %v4758
        %4765 = vrot.lane.b32.xlu0 %v4759, 125
        %v4766 = vpop.permute.xlu0 %4765
        %4767 = vrot.lane.b32.xlu0 %v4760, 125
        %v4768 = vpop.permute.xlu0 %4767
        %4769 = vrot.lane.b32.xlu0 %v4761, 125
        %v4770 = vpop.permute.xlu0 %4769
        %v4774 = vadd.f32 %v4729, %v4766
        %v4775 = vadd.f32 %v4730, %v4768
        %v4776 = vadd.f32 %v4731, %v4770
        %s4777 = sld [smem:[#allocation6 + $0x101]]
        %v4778 = vstv %s4777
        %v4779 = vmul.f32 %v4075, %v4778
        %v4780 = vmul.f32 %v4076, %v4778
        %v4781 = vmul.f32 %v4077, %v4778
        %4785 = vrot.lane.b32.xlu0 %v4779, 127
        %v4786 = vpop.permute.xlu0 %4785
        %4787 = vrot.lane.b32.xlu0 %v4780, 127
        %v4788 = vpop.permute.xlu0 %4787
        %4789 = vrot.lane.b32.xlu0 %v4781, 127
        %v4790 = vpop.permute.xlu0 %4789
        %v4794 = vadd.f32 %v4734, %v4786
        %v4795 = vadd.f32 %v4735, %v4788
        %v4796 = vadd.f32 %v4736, %v4790
        %s4797 = sld [smem:[#allocation6 + $0x11b]]
        %v4798 = vstv %s4797
        %v4799 = vmul.f32 %v4075, %v4798
        %v4800 = vmul.f32 %v4076, %v4798
        %v4801 = vmul.f32 %v4077, %v4798
        %4805 = vrot.lane.b32.xlu0 %v4799, 119
        %v4806 = vpop.permute.xlu0 %4805
        %4807 = vrot.lane.b32.xlu0 %v4800, 119
        %v4808 = vpop.permute.xlu0 %4807
        %4809 = vrot.lane.b32.xlu0 %v4801, 119
        %v4810 = vpop.permute.xlu0 %4809
        %v4814 = vadd.f32 %v4754, %v4806
        %v4815 = vadd.f32 %v4755, %v4808
        %v4816 = vadd.f32 %v4756, %v4810
        %s4817 = sld [smem:[#allocation6 + $0x10b]]
        %v4818 = vstv %s4817
        %v4819 = vmul.f32 %v4075, %v4818
        %v4820 = vmul.f32 %v4076, %v4818
        %v4821 = vmul.f32 %v4077, %v4818
        %4825 = vrot.lane.b32.xlu0 %v4819, 124
        %v4826 = vpop.permute.xlu0 %4825
        %4827 = vrot.lane.b32.xlu0 %v4820, 124
        %v4828 = vpop.permute.xlu0 %4827
        %4829 = vrot.lane.b32.xlu0 %v4821, 124
        %v4830 = vpop.permute.xlu0 %4829
        %v4834 = vadd.f32 %v4774, %v4826
        %v4835 = vadd.f32 %v4775, %v4828
        %v4836 = vadd.f32 %v4776, %v4830
        %s4837 = sld [smem:[#allocation6 + $0x102]]
        %v4838 = vstv %s4837
        %v4839 = vmul.f32 %v4075, %v4838
        %v4840 = vmul.f32 %v4076, %v4838
        %v4841 = vmul.f32 %v4077, %v4838
        %4845 = vrot.lane.b32.xlu0 %v4839, 126
        %v4846 = vpop.permute.xlu0 %4845
        %4847 = vrot.lane.b32.xlu0 %v4840, 126
        %v4848 = vpop.permute.xlu0 %4847
        %4849 = vrot.lane.b32.xlu0 %v4841, 126
        %v4850 = vpop.permute.xlu0 %4849
        %v4854 = vadd.f32 %v4794, %v4846
        %v4855 = vadd.f32 %v4795, %v4848
        %v4856 = vadd.f32 %v4796, %v4850
        %s4857 = sld [smem:[#allocation6 + $0x11c]]
        %v4858 = vstv %s4857
        %v4859 = vmul.f32 %v4075, %v4858
        %v4860 = vmul.f32 %v4076, %v4858
        %v4861 = vmul.f32 %v4077, %v4858
        %4865 = vrot.lane.b32.xlu0 %v4859, 118
        %v4866 = vpop.permute.xlu0 %4865
        %4867 = vrot.lane.b32.xlu0 %v4860, 118
        %v4868 = vpop.permute.xlu0 %4867
        %4869 = vrot.lane.b32.xlu0 %v4861, 118
        %v4870 = vpop.permute.xlu0 %4869
        %v4874 = vadd.f32 %v4814, %v4866
        %v4875 = vadd.f32 %v4815, %v4868
        %v4876 = vadd.f32 %v4816, %v4870
        %s4877 = sld [smem:[#allocation6 + $0x10c]]
        %v4878 = vstv %s4877
        %v4879 = vmul.f32 %v4075, %v4878
        %v4880 = vmul.f32 %v4076, %v4878
        %v4881 = vmul.f32 %v4077, %v4878
        %4885 = vrot.lane.b32.xlu0 %v4879, 123
        %v4886 = vpop.permute.xlu0 %4885
        %4887 = vrot.lane.b32.xlu0 %v4880, 123
        %v4888 = vpop.permute.xlu0 %4887
        %4889 = vrot.lane.b32.xlu0 %v4881, 123
        %v4890 = vpop.permute.xlu0 %4889
        %v4894 = vadd.f32 %v4834, %v4886
        %v4895 = vadd.f32 %v4835, %v4888
        %v4896 = vadd.f32 %v4836, %v4890
        %s4897 = sld [smem:[#allocation6 + $0x103]]
        %v4898 = vstv %s4897
        %v4899 = vmul.f32 %v4075, %v4898
        %v4900 = vmul.f32 %v4076, %v4898
        %v4901 = vmul.f32 %v4077, %v4898
        %4905 = vrot.lane.b32.xlu0 %v4899, 125
        %v4906 = vpop.permute.xlu0 %4905
        %4907 = vrot.lane.b32.xlu0 %v4900, 125
        %v4908 = vpop.permute.xlu0 %4907
        %4909 = vrot.lane.b32.xlu0 %v4901, 125
        %v4910 = vpop.permute.xlu0 %4909
        %v4914 = vadd.f32 %v4854, %v4906
        %v4915 = vadd.f32 %v4855, %v4908
        %v4916 = vadd.f32 %v4856, %v4910
        %s4917 = sld [smem:[#allocation6 + $0x11d]]
        %v4918 = vstv %s4917
        %v4919 = vmul.f32 %v4075, %v4918
        %v4920 = vmul.f32 %v4076, %v4918
        %v4921 = vmul.f32 %v4077, %v4918
        %4925 = vrot.lane.b32.xlu0 %v4919, 117
        %v4926 = vpop.permute.xlu0 %4925
        %4927 = vrot.lane.b32.xlu0 %v4920, 117
        %v4928 = vpop.permute.xlu0 %4927
        %4929 = vrot.lane.b32.xlu0 %v4921, 117
        %v4930 = vpop.permute.xlu0 %4929
        %v4934 = vadd.f32 %v4874, %v4926
        %v4935 = vadd.f32 %v4875, %v4928
        %v4936 = vadd.f32 %v4876, %v4930
        %s4937 = sld [smem:[#allocation6 + $0x10d]]
        %v4938 = vstv %s4937
        %v4939 = vmul.f32 %v4075, %v4938
        %v4940 = vmul.f32 %v4076, %v4938
        %v4941 = vmul.f32 %v4077, %v4938
        %4945 = vrot.lane.b32.xlu0 %v4939, 122
        %v4946 = vpop.permute.xlu0 %4945
        %4947 = vrot.lane.b32.xlu0 %v4940, 122
        %v4948 = vpop.permute.xlu0 %4947
        %4949 = vrot.lane.b32.xlu0 %v4941, 122
        %v4950 = vpop.permute.xlu0 %4949
        %v4954 = vadd.f32 %v4894, %v4946
        %v4955 = vadd.f32 %v4895, %v4948
        %v4956 = vadd.f32 %v4896, %v4950
        %s4957 = sld [smem:[#allocation6 + $0x104]]
        %v4958 = vstv %s4957
        %v4959 = vmul.f32 %v4075, %v4958
        %v4960 = vmul.f32 %v4076, %v4958
        %v4961 = vmul.f32 %v4077, %v4958
        %4965 = vrot.lane.b32.xlu0 %v4959, 124
        %v4966 = vpop.permute.xlu0 %4965
        %4967 = vrot.lane.b32.xlu0 %v4960, 124
        %v4968 = vpop.permute.xlu0 %4967
        %4969 = vrot.lane.b32.xlu0 %v4961, 124
        %v4970 = vpop.permute.xlu0 %4969
        %v4974 = vadd.f32 %v4914, %v4966
        %v4975 = vadd.f32 %v4915, %v4968
        %v4976 = vadd.f32 %v4916, %v4970
        %s4977 = sld [smem:[#allocation6 + $0x11e]]
        %v4978 = vstv %s4977
        %v4979 = vmul.f32 %v4075, %v4978
        %v4980 = vmul.f32 %v4076, %v4978
        %v4981 = vmul.f32 %v4077, %v4978
        %4985 = vrot.lane.b32.xlu0 %v4979, 116
        %v4986 = vpop.permute.xlu0 %4985
        %4987 = vrot.lane.b32.xlu0 %v4980, 116
        %v4988 = vpop.permute.xlu0 %4987
        %4989 = vrot.lane.b32.xlu0 %v4981, 116
        %v4990 = vpop.permute.xlu0 %4989
        %v4994 = vadd.f32 %v4934, %v4986
        %v4995 = vadd.f32 %v4935, %v4988
        %v4996 = vadd.f32 %v4936, %v4990
        %s4997 = sld [smem:[#allocation6 + $0x10e]]
        %v4998 = vstv %s4997
        %v4999 = vmul.f32 %v4075, %v4998
        %v5000 = vmul.f32 %v4076, %v4998
        %v5001 = vmul.f32 %v4077, %v4998
        %5005 = vrot.lane.b32.xlu0 %v4999, 121
        %v5006 = vpop.permute.xlu0 %5005
        %5007 = vrot.lane.b32.xlu0 %v5000, 121
        %v5008 = vpop.permute.xlu0 %5007
        %5009 = vrot.lane.b32.xlu0 %v5001, 121
        %v5010 = vpop.permute.xlu0 %5009
        %v5014 = vadd.f32 %v4954, %v5006
        %v5015 = vadd.f32 %v4955, %v5008
        %v5016 = vadd.f32 %v4956, %v5010
        %s5017 = sld [smem:[#allocation6 + $0x105]]
        %v5018 = vstv %s5017
        %v5019 = vmul.f32 %v4075, %v5018
        %v5020 = vmul.f32 %v4076, %v5018
        %v5021 = vmul.f32 %v4077, %v5018
        %5025 = vrot.lane.b32.xlu0 %v5019, 123
        %v5026 = vpop.permute.xlu0 %5025
        %5027 = vrot.lane.b32.xlu0 %v5020, 123
        %v5028 = vpop.permute.xlu0 %5027
        %5029 = vrot.lane.b32.xlu0 %v5021, 123
        %v5030 = vpop.permute.xlu0 %5029
        %v5034 = vadd.f32 %v4974, %v5026
        %v5035 = vadd.f32 %v4975, %v5028
        %v5036 = vadd.f32 %v4976, %v5030
        %s5037 = sld [smem:[#allocation6 + $0x11f]]
        %v5038 = vstv %s5037
        %v5039 = vmul.f32 %v4075, %v5038
        %v5040 = vmul.f32 %v4076, %v5038
        %v5041 = vmul.f32 %v4077, %v5038
        %5045 = vrot.lane.b32.xlu0 %v5039, 115
        %v5046 = vpop.permute.xlu0 %5045
        %5047 = vrot.lane.b32.xlu0 %v5040, 115
        %v5048 = vpop.permute.xlu0 %5047
        %5049 = vrot.lane.b32.xlu0 %v5041, 115
        %v5050 = vpop.permute.xlu0 %5049
        %v5054 = vadd.f32 %v4994, %v5046
        %v5055 = vadd.f32 %v4995, %v5048
        %v5056 = vadd.f32 %v4996, %v5050
        %s5057 = sld [smem:[#allocation6 + $0x10f]]
        %v5058 = vstv %s5057
        %v5059 = vmul.f32 %v4075, %v5058
        %v5060 = vmul.f32 %v4076, %v5058
        %v5061 = vmul.f32 %v4077, %v5058
        %5065 = vrot.lane.b32.xlu0 %v5059, 120
        %v5066 = vpop.permute.xlu0 %5065
        %5067 = vrot.lane.b32.xlu0 %v5060, 120
        %v5068 = vpop.permute.xlu0 %5067
        %5069 = vrot.lane.b32.xlu0 %v5061, 120
        %v5070 = vpop.permute.xlu0 %5069
        %v5074 = vadd.f32 %v5014, %v5066
        %v5075 = vadd.f32 %v5015, %v5068
        %v5076 = vadd.f32 %v5016, %v5070
        %s5077 = sld [smem:[#allocation6 + $0x106]]
        %v5078 = vstv %s5077
        %v5079 = vmul.f32 %v4075, %v5078
        %v5080 = vmul.f32 %v4076, %v5078
        %v5081 = vmul.f32 %v4077, %v5078
        %5085 = vrot.lane.b32.xlu0 %v5079, 122
        %v5086 = vpop.permute.xlu0 %5085
        %5087 = vrot.lane.b32.xlu0 %v5080, 122
        %v5088 = vpop.permute.xlu0 %5087
        %5089 = vrot.lane.b32.xlu0 %v5081, 122
        %v5090 = vpop.permute.xlu0 %5089
        %v5094 = vadd.f32 %v5034, %v5086
        %v5095 = vadd.f32 %v5035, %v5088
        %v5096 = vadd.f32 %v5036, %v5090
        %s5097 = sld [smem:[#allocation6 + $0x120]]
        %v5098 = vstv %s5097
        %v5099 = vmul.f32 %v4075, %v5098
        %v5100 = vmul.f32 %v4076, %v5098
        %v5101 = vmul.f32 %v4077, %v5098
        %5105 = vrot.lane.b32.xlu0 %v5099, 114
        %v5106 = vpop.permute.xlu0 %5105
        %5107 = vrot.lane.b32.xlu0 %v5100, 114
        %v5108 = vpop.permute.xlu0 %5107
        %5109 = vrot.lane.b32.xlu0 %v5101, 114
        %v5110 = vpop.permute.xlu0 %5109
        %v5114 = vadd.f32 %v5054, %v5106
        %v5115 = vadd.f32 %v5055, %v5108
        %v5116 = vadd.f32 %v5056, %v5110
        %s5117 = sld [smem:[#allocation6 + $0x110]]
        %v5118 = vstv %s5117
        %v5119 = vmul.f32 %v4075, %v5118
        %v5120 = vmul.f32 %v4076, %v5118
        %v5121 = vmul.f32 %v4077, %v5118
        %5125 = vrot.lane.b32.xlu0 %v5119, 119
        %v5126 = vpop.permute.xlu0 %5125
        %5127 = vrot.lane.b32.xlu0 %v5120, 119
        %v5128 = vpop.permute.xlu0 %5127
        %5129 = vrot.lane.b32.xlu0 %v5121, 119
        %v5130 = vpop.permute.xlu0 %5129
        %v5134 = vadd.f32 %v5074, %v5126
        %v5135 = vadd.f32 %v5075, %v5128
        %v5136 = vadd.f32 %v5076, %v5130
        %s5137 = sld [smem:[#allocation6 + $0x121]]
        %v5138 = vstv %s5137
        %v5139 = vmul.f32 %v4075, %v5138
        %v5140 = vmul.f32 %v4076, %v5138
        %v5141 = vmul.f32 %v4077, %v5138
        %5145 = vrot.lane.b32.xlu0 %v5139, 113
        %v5146 = vpop.permute.xlu0 %5145
        %5147 = vrot.lane.b32.xlu0 %v5140, 113
        %v5148 = vpop.permute.xlu0 %5147
        %5149 = vrot.lane.b32.xlu0 %v5141, 113
        %v5150 = vpop.permute.xlu0 %5149
        %v5154 = vadd.f32 %v5114, %v5146
        %v5155 = vadd.f32 %v5115, %v5148
        %v5156 = vadd.f32 %v5116, %v5150
        %s5157 = sld [smem:[#allocation6 + $0x111]]
        %v5158 = vstv %s5157
        %v5159 = vmul.f32 %v4075, %v5158
        %v5160 = vmul.f32 %v4076, %v5158
        %v5161 = vmul.f32 %v4077, %v5158
        %5165 = vrot.lane.b32.xlu0 %v5159, 118
        %v5166 = vpop.permute.xlu0 %5165
        %5167 = vrot.lane.b32.xlu0 %v5160, 118
        %v5168 = vpop.permute.xlu0 %5167
        %5169 = vrot.lane.b32.xlu0 %v5161, 118
        %v5170 = vpop.permute.xlu0 %5169
        %v5174 = vadd.f32 %v5134, %v5166
        %v5175 = vadd.f32 %v5135, %v5168
        %v5176 = vadd.f32 %v5136, %v5170
        %s5177 = sld [smem:[#allocation6 + $0x122]]
        %v5178 = vstv %s5177
        %v5179 = vmul.f32 %v4075, %v5178
        %v5180 = vmul.f32 %v4076, %v5178
        %v5181 = vmul.f32 %v4077, %v5178
        %5185 = vrot.lane.b32.xlu0 %v5179, 112
        %v5186 = vpop.permute.xlu0 %5185
        %5187 = vrot.lane.b32.xlu0 %v5180, 112
        %v5188 = vpop.permute.xlu0 %5187
        %5189 = vrot.lane.b32.xlu0 %v5181, 112
        %v5190 = vpop.permute.xlu0 %5189
        %v5194 = vadd.f32 %v5154, %v5186
        %v5195 = vadd.f32 %v5155, %v5188
        %v5196 = vadd.f32 %v5156, %v5190
        %s5197 = sld [smem:[#allocation6 + $0x123]]
        %v5198 = vstv %s5197
        %v5199 = vmul.f32 %v4075, %v5198
        %v5200 = vmul.f32 %v4076, %v5198
        %v5201 = vmul.f32 %v4077, %v5198
        %5205 = vrot.lane.b32.xlu0 %v5199, 111
        %v5206 = vpop.permute.xlu0 %5205
        %5207 = vrot.lane.b32.xlu0 %v5200, 111
        %v5208 = vpop.permute.xlu0 %5207
        %5209 = vrot.lane.b32.xlu0 %v5201, 111
        %v5210 = vpop.permute.xlu0 %5209
        %v5214 = vadd.f32 %v5194, %v5206
        %v5215 = vadd.f32 %v5195, %v5208
        %v5216 = vadd.f32 %v5196, %v5210
        %s5217 = sld [smem:[#allocation6 + $0x124]]
        %v5218 = vstv %s5217
        %v5219 = vmul.f32 %v4075, %v5218
        %v5220 = vmul.f32 %v4076, %v5218
        %v5221 = vmul.f32 %v4077, %v5218
        %5225 = vrot.lane.b32.xlu0 %v5219, 110
        %v5226 = vpop.permute.xlu0 %5225
        %5227 = vrot.lane.b32.xlu0 %v5220, 110
        %v5228 = vpop.permute.xlu0 %5227
        %5229 = vrot.lane.b32.xlu0 %v5221, 110
        %v5230 = vpop.permute.xlu0 %5229
        %v5234 = vadd.f32 %v5214, %v5226
        %v5235 = vadd.f32 %v5215, %v5228
        %v5236 = vadd.f32 %v5216, %v5230
        %s5237 = sld [smem:[#allocation6 + $0x125]]
        %v5238 = vstv %s5237
        %v5239 = vmul.f32 %v4075, %v5238
        %v5240 = vmul.f32 %v4076, %v5238
        %v5241 = vmul.f32 %v4077, %v5238
        %5245 = vrot.lane.b32.xlu0 %v5239, 109
        %v5246 = vpop.permute.xlu0 %5245
        %5247 = vrot.lane.b32.xlu0 %v5240, 109
        %v5248 = vpop.permute.xlu0 %5247
        %5249 = vrot.lane.b32.xlu0 %v5241, 109
        %v5250 = vpop.permute.xlu0 %5249
        %v5254 = vadd.f32 %v5234, %v5246
        %v5255 = vadd.f32 %v5235, %v5248
        %v5256 = vadd.f32 %v5236, %v5250
        %s5257 = sld [smem:[#allocation6 + $0x126]]
        %v5258 = vstv %s5257
        %v5259 = vmul.f32 %v4075, %v5258
        %v5260 = vmul.f32 %v4076, %v5258
        %v5261 = vmul.f32 %v4077, %v5258
        %5265 = vrot.lane.b32.xlu0 %v5259, 108
        %v5266 = vpop.permute.xlu0 %5265
        %5267 = vrot.lane.b32.xlu0 %v5260, 108
        %v5268 = vpop.permute.xlu0 %5267
        %5269 = vrot.lane.b32.xlu0 %v5261, 108
        %v5270 = vpop.permute.xlu0 %5269
        %v5274 = vadd.f32 %v5254, %v5266
        %v5275 = vadd.f32 %v5255, %v5268
        %v5276 = vadd.f32 %v5256, %v5270
        %s5277 = sld [smem:[#allocation11 + $0x100]]
        %v5278 = vstv %s5277
        %v5279 = vadd.f32 %v5094, %v5278
        %v5280 = vadd.f32 %v5095, %v5278
        %v5281 = vadd.f32 %v5096, %v5278
        %s5282 = sld [smem:[#allocation11 + $0x101]]
        %v5283 = vstv %s5282
        %v5284 = vadd.f32 %v5174, %v5283
        %v5285 = vadd.f32 %v5175, %v5283
        %v5286 = vadd.f32 %v5176, %v5283
        %s5287 = sld [smem:[#allocation11 + $0x102]]
        %v5288 = vstv %s5287
        %v5289 = vadd.f32 %v5274, %v5288
        %v5290 = vadd.f32 %v5275, %v5288
        %v5291 = vadd.f32 %v5276, %v5288
        %5295 = vrot.lane.b32.xlu0 %v5279, 121
        %v5296 = vpop.permute.xlu0 %5295
        %5297 = vrot.lane.b32.xlu0 %v5280, 121
        %v5298 = vpop.permute.xlu0 %5297
        %5299 = vrot.lane.b32.xlu0 %v5281, 121
        %v5300 = vpop.permute.xlu0 %5299
        %5304 = vst.msk [vmem:[#allocation2 + $0x8] sm:$0xfc] %vm1553, %v5296
        %5305 = vst.msk [vmem:[#allocation2 + $0x10] sm:$0xff] %vm314, %v5298
        %5306 = vst.msk [vmem:[#allocation2 + $0x18] sm:$0x3] %vm316, %v5300
        %v5307 = vld [vmem:[#allocation2 + $0x7] sm:$0xff]
        %v5308 = vld [vmem:[#allocation2 + $0xf] sm:$0xff]
        %s5309 = sld [smem:[#allocation8 + $0x100]]
        %v5310 = vstv %s5309
        %v5311 = vmul.f32 %v5307, %v5310
        %v5312 = vmul.f32 %v5308, %v5310
        %5315 = vrot.lane.b32.xlu0 %v5311, 8
        %v5316 = vpop.permute.xlu0 %5315
        %5317 = vrot.lane.b32.xlu0 %v5312, 8
        %v5318 = vpop.permute.xlu0 %5317
        %v5321 = vadd.f32 %v4540, %v5316
        %v5322 = vadd.f32 %v4541, %v5318
        %v5323 = vld [vmem:[#allocation2 + $0x8] sm:$0xff]
        %v5324 = vld [vmem:[#allocation2 + $0x10] sm:$0xff]
        %s5325 = sld [smem:[#allocation8 + $0x101]]
        %v5326 = vstv %s5325
        %v5327 = vmul.f32 %v5323, %v5326
        %v5328 = vmul.f32 %v5324, %v5326
        %5331 = vrot.lane.b32.xlu0 %v5327, 8
        %v5332 = vpop.permute.xlu0 %5331
        %5333 = vrot.lane.b32.xlu0 %v5328, 8
        %v5334 = vpop.permute.xlu0 %5333
        %v5337 = vadd.f32 %v5321, %v5332
        %v5338 = vadd.f32 %v5322, %v5334
        %v5339 = vld [vmem:[#allocation2 + $0x9] sm:$0xff]
        %v5340 = vld [vmem:[#allocation2 + $0x11] sm:$0xff]
        %s5341 = sld [smem:[#allocation8 + $0x102]]
        %v5342 = vstv %s5341
        %v5343 = vmul.f32 %v5339, %v5342
        %v5344 = vmul.f32 %v5340, %v5342
        %5347 = vrot.lane.b32.xlu0 %v5343, 8
        %v5348 = vpop.permute.xlu0 %5347
        %5349 = vrot.lane.b32.xlu0 %v5344, 8
        %v5350 = vpop.permute.xlu0 %5349
        %v5353 = vadd.f32 %v5337, %v5348
        %v5354 = vadd.f32 %v5338, %v5350
        %v5355 = vld [vmem:[#allocation2 + $0xa] sm:$0xff]
        %v5356 = vld [vmem:[#allocation2 + $0x12] sm:$0xff]
        %s5357 = sld [smem:[#allocation8 + $0x103]]
        %v5358 = vstv %s5357
        %v5359 = vmul.f32 %v5355, %v5358
        %v5360 = vmul.f32 %v5356, %v5358
        %5363 = vrot.lane.b32.xlu0 %v5359, 8
        %v5364 = vpop.permute.xlu0 %5363
        %5365 = vrot.lane.b32.xlu0 %v5360, 8
        %v5366 = vpop.permute.xlu0 %5365
        %v5369 = vadd.f32 %v5353, %v5364
        %v5370 = vadd.f32 %v5354, %v5366
        %v5371 = vld [vmem:[#allocation2 + $0xb] sm:$0xff]
        %v5372 = vld [vmem:[#allocation2 + $0x13] sm:$0xff]
        %s5373 = sld [smem:[#allocation8 + $0x104]]
        %v5374 = vstv %s5373
        %v5375 = vmul.f32 %v5371, %v5374
        %v5376 = vmul.f32 %v5372, %v5374
        %5379 = vrot.lane.b32.xlu0 %v5375, 8
        %v5380 = vpop.permute.xlu0 %5379
        %5381 = vrot.lane.b32.xlu0 %v5376, 8
        %v5382 = vpop.permute.xlu0 %5381
        %v5385 = vadd.f32 %v5369, %v5380
        %v5386 = vadd.f32 %v5370, %v5382
        %v5387 = vld [vmem:[#allocation2 + $0xc] sm:$0xff]
        %v5388 = vld [vmem:[#allocation2 + $0x14] sm:$0xff]
        %s5389 = sld [smem:[#allocation8 + $0x105]]
        %v5390 = vstv %s5389
        %v5391 = vmul.f32 %v5387, %v5390
        %v5392 = vmul.f32 %v5388, %v5390
        %5395 = vrot.lane.b32.xlu0 %v5391, 8
        %v5396 = vpop.permute.xlu0 %5395
        %5397 = vrot.lane.b32.xlu0 %v5392, 8
        %v5398 = vpop.permute.xlu0 %5397
        %v5401 = vadd.f32 %v5385, %v5396
        %v5402 = vadd.f32 %v5386, %v5398
        %v5403 = vld [vmem:[#allocation2 + $0xd] sm:$0xff]
        %v5404 = vld [vmem:[#allocation2 + $0x15] sm:$0xff]
        %s5405 = sld [smem:[#allocation8 + $0x106]]
        %v5406 = vstv %s5405
        %v5407 = vmul.f32 %v5403, %v5406
        %v5408 = vmul.f32 %v5404, %v5406
        %5411 = vrot.lane.b32.xlu0 %v5407, 8
        %v5412 = vpop.permute.xlu0 %5411
        %5413 = vrot.lane.b32.xlu0 %v5408, 8
        %v5414 = vpop.permute.xlu0 %5413
        %v5417 = vadd.f32 %v5401, %v5412
        %v5418 = vadd.f32 %v5402, %v5414
        %5422 = vrot.lane.b32.xlu0 %v5284, 123
        %v5423 = vpop.permute.xlu0 %5422
        %5424 = vrot.lane.b32.xlu0 %v5285, 123
        %v5425 = vpop.permute.xlu0 %5424
        %5426 = vrot.lane.b32.xlu0 %v5286, 123
        %v5427 = vpop.permute.xlu0 %5426
        %5431 = vst.msk [vmem:[#allocation2 + $0x8] sm:$0xfc] %vm1553, %v5423
        %5432 = vst.msk [vmem:[#allocation2 + $0x10] sm:$0xff] %vm314, %v5425
        %5433 = vst.msk [vmem:[#allocation2 + $0x18] sm:$0x3] %vm316, %v5427
        %v5434 = vld [vmem:[#allocation2 + $0x5] sm:$0xff]
        %v5435 = vld [vmem:[#allocation2 + $0xd] sm:$0xff]
        %s5436 = sld [smem:[#allocation8 + $0x107]]
        %v5437 = vstv %s5436
        %v5438 = vmul.f32 %v5434, %v5437
        %v5439 = vmul.f32 %v5435, %v5437
        %5442 = vrot.lane.b32.xlu0 %v5438, 8
        %v5443 = vpop.permute.xlu0 %5442
        %5444 = vrot.lane.b32.xlu0 %v5439, 8
        %v5445 = vpop.permute.xlu0 %5444
        %v5448 = vadd.f32 %v5417, %v5443
        %v5449 = vadd.f32 %v5418, %v5445
        %v5450 = vld [vmem:[#allocation2 + $0x6] sm:$0xff]
        %v5451 = vld [vmem:[#allocation2 + $0xe] sm:$0xff]
        %s5452 = sld [smem:[#allocation8 + $0x108]]
        %v5453 = vstv %s5452
        %v5454 = vmul.f32 %v5450, %v5453
        %v5455 = vmul.f32 %v5451, %v5453
        %5458 = vrot.lane.b32.xlu0 %v5454, 8
        %v5459 = vpop.permute.xlu0 %5458
        %5460 = vrot.lane.b32.xlu0 %v5455, 8
        %v5461 = vpop.permute.xlu0 %5460
        %v5464 = vadd.f32 %v5448, %v5459
        %v5465 = vadd.f32 %v5449, %v5461
        %v5466 = vld [vmem:[#allocation2 + $0x7] sm:$0xff]
        %v5467 = vld [vmem:[#allocation2 + $0xf] sm:$0xff]
        %s5468 = sld [smem:[#allocation8 + $0x109]]
        %v5469 = vstv %s5468
        %v5470 = vmul.f32 %v5466, %v5469
        %v5471 = vmul.f32 %v5467, %v5469
        %5474 = vrot.lane.b32.xlu0 %v5470, 8
        %v5475 = vpop.permute.xlu0 %5474
        %5476 = vrot.lane.b32.xlu0 %v5471, 8
        %v5477 = vpop.permute.xlu0 %5476
        %v5480 = vadd.f32 %v5464, %v5475
        %v5481 = vadd.f32 %v5465, %v5477
        %v5482 = vld [vmem:[#allocation2 + $0x8] sm:$0xff]
        %v5483 = vld [vmem:[#allocation2 + $0x10] sm:$0xff]
        %s5484 = sld [smem:[#allocation8 + $0x10a]]
        %v5485 = vstv %s5484
        %v5486 = vmul.f32 %v5482, %v5485
        %v5487 = vmul.f32 %v5483, %v5485
        %5490 = vrot.lane.b32.xlu0 %v5486, 8
        %v5491 = vpop.permute.xlu0 %5490
        %5492 = vrot.lane.b32.xlu0 %v5487, 8
        %v5493 = vpop.permute.xlu0 %5492
        %v5496 = vadd.f32 %v5480, %v5491
        %v5497 = vadd.f32 %v5481, %v5493
        %v5498 = vld [vmem:[#allocation2 + $0x9] sm:$0xff]
        %v5499 = vld [vmem:[#allocation2 + $0x11] sm:$0xff]
        %s5500 = sld [smem:[#allocation8 + $0x10b]]
        %v5501 = vstv %s5500
        %v5502 = vmul.f32 %v5498, %v5501
        %v5503 = vmul.f32 %v5499, %v5501
        %5506 = vrot.lane.b32.xlu0 %v5502, 8
        %v5507 = vpop.permute.xlu0 %5506
        %5508 = vrot.lane.b32.xlu0 %v5503, 8
        %v5509 = vpop.permute.xlu0 %5508
        %v5512 = vadd.f32 %v5496, %v5507
        %v5513 = vadd.f32 %v5497, %v5509
        %v5514 = vld [vmem:[#allocation2 + $0xa] sm:$0xff]
        %v5515 = vld [vmem:[#allocation2 + $0x12] sm:$0xff]
        %s5516 = sld [smem:[#allocation8 + $0x10c]]
        %v5517 = vstv %s5516
        %v5518 = vmul.f32 %v5514, %v5517
        %v5519 = vmul.f32 %v5515, %v5517
        %5522 = vrot.lane.b32.xlu0 %v5518, 8
        %v5523 = vpop.permute.xlu0 %5522
        %5524 = vrot.lane.b32.xlu0 %v5519, 8
        %v5525 = vpop.permute.xlu0 %5524
        %v5528 = vadd.f32 %v5512, %v5523
        %v5529 = vadd.f32 %v5513, %v5525
        %v5530 = vld [vmem:[#allocation2 + $0xb] sm:$0xff]
        %v5531 = vld [vmem:[#allocation2 + $0x13] sm:$0xff]
        %s5532 = sld [smem:[#allocation8 + $0x10d]]
        %v5533 = vstv %s5532
        %v5534 = vmul.f32 %v5530, %v5533
        %v5535 = vmul.f32 %v5531, %v5533
        %5538 = vrot.lane.b32.xlu0 %v5534, 8
        %v5539 = vpop.permute.xlu0 %5538
        %5540 = vrot.lane.b32.xlu0 %v5535, 8
        %v5541 = vpop.permute.xlu0 %5540
        %v5544 = vadd.f32 %v5528, %v5539
        %v5545 = vadd.f32 %v5529, %v5541
        %v5546 = vld [vmem:[#allocation2 + $0xc] sm:$0xff]
        %v5547 = vld [vmem:[#allocation2 + $0x14] sm:$0xff]
        %s5548 = sld [smem:[#allocation8 + $0x10e]]
        %v5549 = vstv %s5548
        %v5550 = vmul.f32 %v5546, %v5549
        %v5551 = vmul.f32 %v5547, %v5549
        %5554 = vrot.lane.b32.xlu0 %v5550, 8
        %v5555 = vpop.permute.xlu0 %5554
        %5556 = vrot.lane.b32.xlu0 %v5551, 8
        %v5557 = vpop.permute.xlu0 %5556
        %v5560 = vadd.f32 %v5544, %v5555
        %v5561 = vadd.f32 %v5545, %v5557
        %v5562 = vld [vmem:[#allocation2 + $0xd] sm:$0xff]
        %v5563 = vld [vmem:[#allocation2 + $0x15] sm:$0xff]
        %s5564 = sld [smem:[#allocation8 + $0x10f]]
        %v5565 = vstv %s5564
        %v5566 = vmul.f32 %v5562, %v5565
        %v5567 = vmul.f32 %v5563, %v5565
        %5570 = vrot.lane.b32.xlu0 %v5566, 8
        %v5571 = vpop.permute.xlu0 %5570
        %5572 = vrot.lane.b32.xlu0 %v5567, 8
        %v5573 = vpop.permute.xlu0 %5572
        %v5576 = vadd.f32 %v5560, %v5571
        %v5577 = vadd.f32 %v5561, %v5573
        %v5578 = vld [vmem:[#allocation2 + $0xe] sm:$0xff]
        %v5579 = vld [vmem:[#allocation2 + $0x16] sm:$0xff]
        %s5580 = sld [smem:[#allocation8 + $0x110]]
        %v5581 = vstv %s5580
        %v5582 = vmul.f32 %v5578, %v5581
        %v5583 = vmul.f32 %v5579, %v5581
        %5586 = vrot.lane.b32.xlu0 %v5582, 8
        %v5587 = vpop.permute.xlu0 %5586
        %5588 = vrot.lane.b32.xlu0 %v5583, 8
        %v5589 = vpop.permute.xlu0 %5588
        %v5592 = vadd.f32 %v5576, %v5587
        %v5593 = vadd.f32 %v5577, %v5589
        %v5594 = vld [vmem:[#allocation2 + $0xf] sm:$0xff]
        %v5595 = vld [vmem:[#allocation2 + $0x17] sm:$0xff]
        %s5596 = sld [smem:[#allocation8 + $0x111]]
        %v5597 = vstv %s5596
        %v5598 = vmul.f32 %v5594, %v5597
        %v5599 = vmul.f32 %v5595, %v5597
        %5602 = vrot.lane.b32.xlu0 %v5598, 8
        %v5603 = vpop.permute.xlu0 %5602
        %5604 = vrot.lane.b32.xlu0 %v5599, 8
        %v5605 = vpop.permute.xlu0 %5604
        %v5608 = vadd.f32 %v5592, %v5603
        %v5609 = vadd.f32 %v5593, %v5605
        %5610 = vst.msk [vmem:[#allocation2 + $0x8] sm:$0xfc] %vm1553, %v5289
        %5611 = vst.msk [vmem:[#allocation2 + $0x10] sm:$0xff] %vm314, %v5290
        %5612 = vst.msk [vmem:[#allocation2 + $0x18] sm:$0x3] %vm316, %v5291
        %v5613 = vld [vmem:[#allocation2] sm:$0xff]
        %v5614 = vld [vmem:[#allocation2 + $0x8] sm:$0xff]
        %s5615 = sld [smem:[#allocation8 + $0x112]]
        %v5616 = vstv %s5615
        %v5617 = vmul.f32 %v5613, %v5616
        %v5618 = vmul.f32 %v5614, %v5616
        %5621 = vrot.lane.b32.xlu0 %v5617, 8
        %v5622 = vpop.permute.xlu0 %5621
        %5623 = vrot.lane.b32.xlu0 %v5618, 8
        %v5624 = vpop.permute.xlu0 %5623
        %v5627 = vadd.f32 %v5608, %v5622
        %v5628 = vadd.f32 %v5609, %v5624
        %v5629 = vld [vmem:[#allocation2 + $0x1] sm:$0xff]
        %v5630 = vld [vmem:[#allocation2 + $0x9] sm:$0xff]
        %s5631 = sld [smem:[#allocation8 + $0x113]]
        %v5632 = vstv %s5631
        %v5633 = vmul.f32 %v5629, %v5632
        %v5634 = vmul.f32 %v5630, %v5632
        %5637 = vrot.lane.b32.xlu0 %v5633, 8
        %v5638 = vpop.permute.xlu0 %5637
        %5639 = vrot.lane.b32.xlu0 %v5634, 8
        %v5640 = vpop.permute.xlu0 %5639
        %v5643 = vadd.f32 %v5627, %v5638
        %v5644 = vadd.f32 %v5628, %v5640
        %v5645 = vld [vmem:[#allocation2 + $0x2] sm:$0xff]
        %v5646 = vld [vmem:[#allocation2 + $0xa] sm:$0xff]
        %s5647 = sld [smem:[#allocation8 + $0x114]]
        %v5648 = vstv %s5647
        %v5649 = vmul.f32 %v5645, %v5648
        %v5650 = vmul.f32 %v5646, %v5648
        %5653 = vrot.lane.b32.xlu0 %v5649, 8
        %v5654 = vpop.permute.xlu0 %5653
        %5655 = vrot.lane.b32.xlu0 %v5650, 8
        %v5656 = vpop.permute.xlu0 %5655
        %v5659 = vadd.f32 %v5643, %v5654
        %v5660 = vadd.f32 %v5644, %v5656
        %v5661 = vld [vmem:[#allocation2 + $0x3] sm:$0xff]
        %v5662 = vld [vmem:[#allocation2 + $0xb] sm:$0xff]
        %s5663 = sld [smem:[#allocation8 + $0x115]]
        %v5664 = vstv %s5663
        %v5665 = vmul.f32 %v5661, %v5664
        %v5666 = vmul.f32 %v5662, %v5664
        %5669 = vrot.lane.b32.xlu0 %v5665, 8
        %v5670 = vpop.permute.xlu0 %5669
        %5671 = vrot.lane.b32.xlu0 %v5666, 8
        %v5672 = vpop.permute.xlu0 %5671
        %v5675 = vadd.f32 %v5659, %v5670
        %v5676 = vadd.f32 %v5660, %v5672
        %v5677 = vld [vmem:[#allocation2 + $0x4] sm:$0xff]
        %v5678 = vld [vmem:[#allocation2 + $0xc] sm:$0xff]
        %s5679 = sld [smem:[#allocation8 + $0x116]]
        %v5680 = vstv %s5679
        %v5681 = vmul.f32 %v5677, %v5680
        %v5682 = vmul.f32 %v5678, %v5680
        %5685 = vrot.lane.b32.xlu0 %v5681, 8
        %v5686 = vpop.permute.xlu0 %5685
        %5687 = vrot.lane.b32.xlu0 %v5682, 8
        %v5688 = vpop.permute.xlu0 %5687
        %v5691 = vadd.f32 %v5675, %v5686
        %v5692 = vadd.f32 %v5676, %v5688
        %v5693 = vld [vmem:[#allocation2 + $0x5] sm:$0xff]
        %v5694 = vld [vmem:[#allocation2 + $0xd] sm:$0xff]
        %s5695 = sld [smem:[#allocation8 + $0x117]]
        %v5696 = vstv %s5695
        %v5697 = vmul.f32 %v5693, %v5696
        %v5698 = vmul.f32 %v5694, %v5696
        %5701 = vrot.lane.b32.xlu0 %v5697, 8
        %v5702 = vpop.permute.xlu0 %5701
        %5703 = vrot.lane.b32.xlu0 %v5698, 8
        %v5704 = vpop.permute.xlu0 %5703
        %v5707 = vadd.f32 %v5691, %v5702
        %v5708 = vadd.f32 %v5692, %v5704
        %v5709 = vld [vmem:[#allocation2 + $0x6] sm:$0xff]
        %v5710 = vld [vmem:[#allocation2 + $0xe] sm:$0xff]
        %s5711 = sld [smem:[#allocation8 + $0x118]]
        %v5712 = vstv %s5711
        %v5713 = vmul.f32 %v5709, %v5712
        %v5714 = vmul.f32 %v5710, %v5712
        %5717 = vrot.lane.b32.xlu0 %v5713, 8
        %v5718 = vpop.permute.xlu0 %5717
        %5719 = vrot.lane.b32.xlu0 %v5714, 8
        %v5720 = vpop.permute.xlu0 %5719
        %v5723 = vadd.f32 %v5707, %v5718
        %v5724 = vadd.f32 %v5708, %v5720
        %v5725 = vld [vmem:[#allocation2 + $0x7] sm:$0xff]
        %v5726 = vld [vmem:[#allocation2 + $0xf] sm:$0xff]
        %s5727 = sld [smem:[#allocation8 + $0x119]]
        %v5728 = vstv %s5727
        %v5729 = vmul.f32 %v5725, %v5728
        %v5730 = vmul.f32 %v5726, %v5728
        %5733 = vrot.lane.b32.xlu0 %v5729, 8
        %v5734 = vpop.permute.xlu0 %5733
        %5735 = vrot.lane.b32.xlu0 %v5730, 8
        %v5736 = vpop.permute.xlu0 %5735
        %v5739 = vadd.f32 %v5723, %v5734
        %v5740 = vadd.f32 %v5724, %v5736
        %v5741 = vld [vmem:[#allocation2 + $0x8] sm:$0xff]
        %v5742 = vld [vmem:[#allocation2 + $0x10] sm:$0xff]
        %s5743 = sld [smem:[#allocation8 + $0x11a]]
        %v5744 = vstv %s5743
        %v5745 = vmul.f32 %v5741, %v5744
        %v5746 = vmul.f32 %v5742, %v5744
        %5749 = vrot.lane.b32.xlu0 %v5745, 8
        %v5750 = vpop.permute.xlu0 %5749
        %5751 = vrot.lane.b32.xlu0 %v5746, 8
        %v5752 = vpop.permute.xlu0 %5751
        %v5755 = vadd.f32 %v5739, %v5750
        %v5756 = vadd.f32 %v5740, %v5752
        %v5757 = vld [vmem:[#allocation2 + $0x9] sm:$0xff]
        %v5758 = vld [vmem:[#allocation2 + $0x11] sm:$0xff]
        %s5759 = sld [smem:[#allocation8 + $0x11b]]
        %v5760 = vstv %s5759
        %v5761 = vmul.f32 %v5757, %v5760
        %v5762 = vmul.f32 %v5758, %v5760
        %5765 = vrot.lane.b32.xlu0 %v5761, 8
        %v5766 = vpop.permute.xlu0 %5765
        %5767 = vrot.lane.b32.xlu0 %v5762, 8
        %v5768 = vpop.permute.xlu0 %5767
        %v5771 = vadd.f32 %v5755, %v5766
        %v5772 = vadd.f32 %v5756, %v5768
        %v5773 = vld [vmem:[#allocation2 + $0xa] sm:$0xff]
        %v5774 = vld [vmem:[#allocation2 + $0x12] sm:$0xff]
        %s5775 = sld [smem:[#allocation8 + $0x11c]]
        %v5776 = vstv %s5775
        %v5777 = vmul.f32 %v5773, %v5776
        %v5778 = vmul.f32 %v5774, %v5776
        %5781 = vrot.lane.b32.xlu0 %v5777, 8
        %v5782 = vpop.permute.xlu0 %5781
        %5783 = vrot.lane.b32.xlu0 %v5778, 8
        %v5784 = vpop.permute.xlu0 %5783
        %v5787 = vadd.f32 %v5771, %v5782
        %v5788 = vadd.f32 %v5772, %v5784
        %v5789 = vld [vmem:[#allocation2 + $0xb] sm:$0xff]
        %v5790 = vld [vmem:[#allocation2 + $0x13] sm:$0xff]
        %s5791 = sld [smem:[#allocation8 + $0x11d]]
        %v5792 = vstv %s5791
        %v5793 = vmul.f32 %v5789, %v5792
        %v5794 = vmul.f32 %v5790, %v5792
        %5797 = vrot.lane.b32.xlu0 %v5793, 8
        %v5798 = vpop.permute.xlu0 %5797
        %5799 = vrot.lane.b32.xlu0 %v5794, 8
        %v5800 = vpop.permute.xlu0 %5799
        %v5803 = vadd.f32 %v5787, %v5798
        %v5804 = vadd.f32 %v5788, %v5800
        %v5805 = vld [vmem:[#allocation2 + $0xc] sm:$0xff]
        %v5806 = vld [vmem:[#allocation2 + $0x14] sm:$0xff]
        %s5807 = sld [smem:[#allocation8 + $0x11e]]
        %v5808 = vstv %s5807
        %v5809 = vmul.f32 %v5805, %v5808
        %v5810 = vmul.f32 %v5806, %v5808
        %5813 = vrot.lane.b32.xlu0 %v5809, 8
        %v5814 = vpop.permute.xlu0 %5813
        %5815 = vrot.lane.b32.xlu0 %v5810, 8
        %v5816 = vpop.permute.xlu0 %5815
        %v5819 = vadd.f32 %v5803, %v5814
        %v5820 = vadd.f32 %v5804, %v5816
        %v5821 = vld [vmem:[#allocation2 + $0xd] sm:$0xff]
        %v5822 = vld [vmem:[#allocation2 + $0x15] sm:$0xff]
        %s5823 = sld [smem:[#allocation8 + $0x11f]]
        %v5824 = vstv %s5823
        %v5825 = vmul.f32 %v5821, %v5824
        %v5826 = vmul.f32 %v5822, %v5824
        %5829 = vrot.lane.b32.xlu0 %v5825, 8
        %v5830 = vpop.permute.xlu0 %5829
        %5831 = vrot.lane.b32.xlu0 %v5826, 8
        %v5832 = vpop.permute.xlu0 %5831
        %v5835 = vadd.f32 %v5819, %v5830
        %v5836 = vadd.f32 %v5820, %v5832
        %v5837 = vld [vmem:[#allocation2 + $0xe] sm:$0xff]
        %v5838 = vld [vmem:[#allocation2 + $0x16] sm:$0xff]
        %s5839 = sld [smem:[#allocation8 + $0x120]]
        %v5840 = vstv %s5839
        %v5841 = vmul.f32 %v5837, %v5840
        %v5842 = vmul.f32 %v5838, %v5840
        %5845 = vrot.lane.b32.xlu0 %v5841, 8
        %v5846 = vpop.permute.xlu0 %5845
        %5847 = vrot.lane.b32.xlu0 %v5842, 8
        %v5848 = vpop.permute.xlu0 %5847
        %v5851 = vadd.f32 %v5835, %v5846
        %v5852 = vadd.f32 %v5836, %v5848
        %v5853 = vld [vmem:[#allocation2 + $0xf] sm:$0xff]
        %v5854 = vld [vmem:[#allocation2 + $0x17] sm:$0xff]
        %s5855 = sld [smem:[#allocation8 + $0x121]]
        %v5856 = vstv %s5855
        %v5857 = vmul.f32 %v5853, %v5856
        %v5858 = vmul.f32 %v5854, %v5856
        %5861 = vrot.lane.b32.xlu0 %v5857, 8
        %v5862 = vpop.permute.xlu0 %5861
        %5863 = vrot.lane.b32.xlu0 %v5858, 8
        %v5864 = vpop.permute.xlu0 %5863
        %v5867 = vadd.f32 %v5851, %v5862
        %v5868 = vadd.f32 %v5852, %v5864
        %v5869 = vld [vmem:[#allocation2 + $0x10] sm:$0xff]
        %v5870 = vld [vmem:[#allocation2 + $0x18] sm:$0xff]
        %s5871 = sld [smem:[#allocation8 + $0x122]]
        %v5872 = vstv %s5871
        %v5873 = vmul.f32 %v5869, %v5872
        %v5874 = vmul.f32 %v5870, %v5872
        %5877 = vrot.lane.b32.xlu0 %v5873, 8
        %v5878 = vpop.permute.xlu0 %5877
        %5879 = vrot.lane.b32.xlu0 %v5874, 8
        %v5880 = vpop.permute.xlu0 %5879
        %v5883 = vadd.f32 %v5867, %v5878
        %v5884 = vadd.f32 %v5868, %v5880
        %v5885 = vld [vmem:[#allocation2 + $0x11] sm:$0xff]
        %v5886 = vld [vmem:[#allocation2 + $0x19] sm:$0xff]
        %s5887 = sld [smem:[#allocation8 + $0x123]]
        %v5888 = vstv %s5887
        %v5889 = vmul.f32 %v5885, %v5888
        %v5890 = vmul.f32 %v5886, %v5888
        %5893 = vrot.lane.b32.xlu0 %v5889, 8
        %v5894 = vpop.permute.xlu0 %5893
        %5895 = vrot.lane.b32.xlu0 %v5890, 8
        %v5896 = vpop.permute.xlu0 %5895
        %v5899 = vadd.f32 %v5883, %v5894
        %v5900 = vadd.f32 %v5884, %v5896
        %v5901 = vld [vmem:[#allocation2 + $0x12] sm:$0xff]
        %v5902 = vld [vmem:[#allocation2 + $0x1a] sm:$0xff]
        %s5903 = sld [smem:[#allocation8 + $0x124]]
        %v5904 = vstv %s5903
        %v5905 = vmul.f32 %v5901, %v5904
        %v5906 = vmul.f32 %v5902, %v5904
        %5909 = vrot.lane.b32.xlu0 %v5905, 8
        %v5910 = vpop.permute.xlu0 %5909
        %5911 = vrot.lane.b32.xlu0 %v5906, 8
        %v5912 = vpop.permute.xlu0 %5911
        %v5915 = vadd.f32 %v5899, %v5910
        %v5916 = vadd.f32 %v5900, %v5912
        %v5917 = vld [vmem:[#allocation2 + $0x13] sm:$0xff]
        %v5918 = vld [vmem:[#allocation2 + $0x1b] sm:$0xff]
        %s5919 = sld [smem:[#allocation8 + $0x125]]
        %v5920 = vstv %s5919
        %v5921 = vmul.f32 %v5917, %v5920
        %v5922 = vmul.f32 %v5918, %v5920
        %5925 = vrot.lane.b32.xlu0 %v5921, 8
        %v5926 = vpop.permute.xlu0 %5925
        %5927 = vrot.lane.b32.xlu0 %v5922, 8
        %v5928 = vpop.permute.xlu0 %5927
        %v5931 = vadd.f32 %v5915, %v5926
        %v5932 = vadd.f32 %v5916, %v5928
        %v5933 = vld [vmem:[#allocation2 + $0x14] sm:$0xff]
        %v5934 = vld [vmem:[#allocation2 + $0x1c] sm:$0xff]
        %s5935 = sld [smem:[#allocation8 + $0x126]]
        %v5936 = vstv %s5935
        %v5937 = vmul.f32 %v5933, %v5936
        %v5938 = vmul.f32 %v5934, %v5936
        %5941 = vrot.lane.b32.xlu0 %v5937, 8
        %v5942 = vpop.permute.xlu0 %5941
        %5943 = vrot.lane.b32.xlu0 %v5938, 8
        %v5944 = vpop.permute.xlu0 %5943
        %v5947 = vadd.f32 %v5931, %v5942
        %v5948 = vadd.f32 %v5932, %v5944
        %s5949 = scalar_lea.vmem %s313, 72
        %v5950 = vld [vmem:[%s5949] sm:$0xff]
        %v5951 = vld [vmem:[%s5949 + $0x8] sm:$0xff]
        %v5952 = vld [vmem:[%s5949 + $0x10] sm:$0xf]
        %s5953 = sld [smem:[#allocation3 + $0x180]]
        %v5954 = vstv %s5953
        %v5955 = vmul.f32 %v5950, %v5954
        %v5956 = vmul.f32 %v5951, %v5954
        %s5957 = sld [smem:[#allocation3 + $0x185]]
        %v5958 = vstv %s5957
        %v5959 = vmul.f32 %v5950, %v5958
        %v5960 = vmul.f32 %v5951, %v5958
        %v5961 = vmul.f32 %v5952, %v5958
        %v5965 = vrot.slane %v5959, 1
        %v5966 = vrot.slane %v5960, 1
        %v5967 = vsel %vm335, %v5965, %v5966
        %v5968 = vrot.slane %v5961, 1
        %v5969 = vsel %vm335, %v5966, %v5968
        %v5972 = vadd.f32 %v5955, %v5967
        %v5973 = vadd.f32 %v5956, %v5969
        %s5974 = sld [smem:[#allocation3 + $0x18a]]
        %v5975 = vstv %s5974
        %v5976 = vmul.f32 %v5950, %v5975
        %v5977 = vmul.f32 %v5951, %v5975
        %v5978 = vmul.f32 %v5952, %v5975
        %v5982 = vrot.slane %v5976, 2
        %v5983 = vrot.slane %v5977, 2
        %v5984 = vsel %vm353, %v5982, %v5983
        %v5985 = vrot.slane %v5978, 2
        %v5986 = vsel %vm353, %v5983, %v5985
        %v5989 = vadd.f32 %v5972, %v5984
        %v5990 = vadd.f32 %v5973, %v5986
        %s5991 = sld [smem:[#allocation3 + $0x18f]]
        %v5992 = vstv %s5991
        %v5993 = vmul.f32 %v5950, %v5992
        %v5994 = vmul.f32 %v5951, %v5992
        %v5995 = vmul.f32 %v5952, %v5992
        %v5999 = vrot.slane %v5993, 3
        %v6000 = vrot.slane %v5994, 3
        %v6001 = vsel %vm371, %v5999, %v6000
        %v6002 = vrot.slane %v5995, 3
        %v6003 = vsel %vm371, %v6000, %v6002
        %v6006 = vadd.f32 %v5989, %v6001
        %v6007 = vadd.f32 %v5990, %v6003
        %s6008 = sld [smem:[#allocation3 + $0x194]]
        %v6009 = vstv %s6008
        %v6010 = vmul.f32 %v5950, %v6009
        %v6011 = vmul.f32 %v5951, %v6009
        %v6012 = vmul.f32 %v5952, %v6009
        %v6016 = vrot.slane %v6010, 4
        %v6017 = vrot.slane %v6011, 4
        %v6018 = vsel %vm389, %v6016, %v6017
        %v6019 = vrot.slane %v6012, 4
        %v6020 = vsel %vm389, %v6017, %v6019
        %v6023 = vadd.f32 %v6006, %v6018
        %v6024 = vadd.f32 %v6007, %v6020
        %s6025 = sld [smem:[#allocation3 + $0x181]]
        %v6026 = vstv %s6025
        %v6027 = vmul.f32 %v5950, %v6026
        %v6028 = vmul.f32 %v5951, %v6026
        %6031 = vrot.lane.b32.xlu0 %v6027, 127
        %v6032 = vpop.permute.xlu0 %6031
        %6033 = vrot.lane.b32.xlu0 %v6028, 127
        %v6034 = vpop.permute.xlu0 %6033
        %v6037 = vadd.f32 %v6023, %v6032
        %v6038 = vadd.f32 %v6024, %v6034
        %s6039 = sld [smem:[#allocation3 + $0x186]]
        %v6040 = vstv %s6039
        %v6041 = vmul.f32 %v5950, %v6040
        %v6042 = vmul.f32 %v5951, %v6040
        %v6043 = vmul.f32 %v5952, %v6040
        %v6047 = vrot.slane %v6041, 1
        %v6048 = vrot.slane %v6042, 1
        %v6049 = vsel %vm335, %v6047, %v6048
        %v6050 = vrot.slane %v6043, 1
        %v6051 = vsel %vm335, %v6048, %v6050
        %6052 = vrot.lane.b32.xlu0 %v6049, 127
        %v6053 = vpop.permute.xlu0 %6052
        %6054 = vrot.lane.b32.xlu0 %v6051, 127
        %v6055 = vpop.permute.xlu0 %6054
        %v6058 = vadd.f32 %v6037, %v6053
        %v6059 = vadd.f32 %v6038, %v6055
        %s6060 = sld [smem:[#allocation3 + $0x18b]]
        %v6061 = vstv %s6060
        %v6062 = vmul.f32 %v5950, %v6061
        %v6063 = vmul.f32 %v5951, %v6061
        %v6064 = vmul.f32 %v5952, %v6061
        %v6068 = vrot.slane %v6062, 2
        %v6069 = vrot.slane %v6063, 2
        %v6070 = vsel %vm353, %v6068, %v6069
        %v6071 = vrot.slane %v6064, 2
        %v6072 = vsel %vm353, %v6069, %v6071
        %6073 = vrot.lane.b32.xlu0 %v6070, 127
        %v6074 = vpop.permute.xlu0 %6073
        %6075 = vrot.lane.b32.xlu0 %v6072, 127
        %v6076 = vpop.permute.xlu0 %6075
        %v6079 = vadd.f32 %v6058, %v6074
        %v6080 = vadd.f32 %v6059, %v6076
        %s6081 = sld [smem:[#allocation3 + $0x190]]
        %v6082 = vstv %s6081
        %v6083 = vmul.f32 %v5950, %v6082
        %v6084 = vmul.f32 %v5951, %v6082
        %v6085 = vmul.f32 %v5952, %v6082
        %v6089 = vrot.slane %v6083, 3
        %v6090 = vrot.slane %v6084, 3
        %v6091 = vsel %vm371, %v6089, %v6090
        %v6092 = vrot.slane %v6085, 3
        %v6093 = vsel %vm371, %v6090, %v6092
        %6094 = vrot.lane.b32.xlu0 %v6091, 127
        %v6095 = vpop.permute.xlu0 %6094
        %6096 = vrot.lane.b32.xlu0 %v6093, 127
        %v6097 = vpop.permute.xlu0 %6096
        %v6100 = vadd.f32 %v6079, %v6095
        %v6101 = vadd.f32 %v6080, %v6097
        %s6102 = sld [smem:[#allocation3 + $0x195]]
        %v6103 = vstv %s6102
        %v6104 = vmul.f32 %v5950, %v6103
        %v6105 = vmul.f32 %v5951, %v6103
        %v6106 = vmul.f32 %v5952, %v6103
        %v6110 = vrot.slane %v6104, 4
        %v6111 = vrot.slane %v6105, 4
        %v6112 = vsel %vm389, %v6110, %v6111
        %v6113 = vrot.slane %v6106, 4
        %v6114 = vsel %vm389, %v6111, %v6113
        %6115 = vrot.lane.b32.xlu0 %v6112, 127
        %v6116 = vpop.permute.xlu0 %6115
        %6117 = vrot.lane.b32.xlu0 %v6114, 127
        %v6118 = vpop.permute.xlu0 %6117
        %v6121 = vadd.f32 %v6100, %v6116
        %v6122 = vadd.f32 %v6101, %v6118
        %s6123 = sld [smem:[#allocation3 + $0x182]]
        %v6124 = vstv %s6123
        %v6125 = vmul.f32 %v5950, %v6124
        %v6126 = vmul.f32 %v5951, %v6124
        %6129 = vrot.lane.b32.xlu0 %v6125, 126
        %v6130 = vpop.permute.xlu0 %6129
        %6131 = vrot.lane.b32.xlu0 %v6126, 126
        %v6132 = vpop.permute.xlu0 %6131
        %v6135 = vadd.f32 %v6121, %v6130
        %v6136 = vadd.f32 %v6122, %v6132
        %s6137 = sld [smem:[#allocation3 + $0x187]]
        %v6138 = vstv %s6137
        %v6139 = vmul.f32 %v5950, %v6138
        %v6140 = vmul.f32 %v5951, %v6138
        %v6141 = vmul.f32 %v5952, %v6138
        %v6145 = vrot.slane %v6139, 1
        %v6146 = vrot.slane %v6140, 1
        %v6147 = vsel %vm335, %v6145, %v6146
        %v6148 = vrot.slane %v6141, 1
        %v6149 = vsel %vm335, %v6146, %v6148
        %6150 = vrot.lane.b32.xlu0 %v6147, 126
        %v6151 = vpop.permute.xlu0 %6150
        %6152 = vrot.lane.b32.xlu0 %v6149, 126
        %v6153 = vpop.permute.xlu0 %6152
        %v6156 = vadd.f32 %v6135, %v6151
        %v6157 = vadd.f32 %v6136, %v6153
        %s6158 = sld [smem:[#allocation3 + $0x18c]]
        %v6159 = vstv %s6158
        %v6160 = vmul.f32 %v5950, %v6159
        %v6161 = vmul.f32 %v5951, %v6159
        %v6162 = vmul.f32 %v5952, %v6159
        %v6166 = vrot.slane %v6160, 2
        %v6167 = vrot.slane %v6161, 2
        %v6168 = vsel %vm353, %v6166, %v6167
        %v6169 = vrot.slane %v6162, 2
        %v6170 = vsel %vm353, %v6167, %v6169
        %6171 = vrot.lane.b32.xlu0 %v6168, 126
        %v6172 = vpop.permute.xlu0 %6171
        %6173 = vrot.lane.b32.xlu0 %v6170, 126
        %v6174 = vpop.permute.xlu0 %6173
        %v6177 = vadd.f32 %v6156, %v6172
        %v6178 = vadd.f32 %v6157, %v6174
        %s6179 = sld [smem:[#allocation3 + $0x191]]
        %v6180 = vstv %s6179
        %v6181 = vmul.f32 %v5950, %v6180
        %v6182 = vmul.f32 %v5951, %v6180
        %v6183 = vmul.f32 %v5952, %v6180
        %v6187 = vrot.slane %v6181, 3
        %v6188 = vrot.slane %v6182, 3
        %v6189 = vsel %vm371, %v6187, %v6188
        %v6190 = vrot.slane %v6183, 3
        %v6191 = vsel %vm371, %v6188, %v6190
        %6192 = vrot.lane.b32.xlu0 %v6189, 126
        %v6193 = vpop.permute.xlu0 %6192
        %6194 = vrot.lane.b32.xlu0 %v6191, 126
        %v6195 = vpop.permute.xlu0 %6194
        %v6198 = vadd.f32 %v6177, %v6193
        %v6199 = vadd.f32 %v6178, %v6195
        %s6200 = sld [smem:[#allocation3 + $0x196]]
        %v6201 = vstv %s6200
        %v6202 = vmul.f32 %v5950, %v6201
        %v6203 = vmul.f32 %v5951, %v6201
        %v6204 = vmul.f32 %v5952, %v6201
        %v6208 = vrot.slane %v6202, 4
        %v6209 = vrot.slane %v6203, 4
        %v6210 = vsel %vm389, %v6208, %v6209
        %v6211 = vrot.slane %v6204, 4
        %v6212 = vsel %vm389, %v6209, %v6211
        %6213 = vrot.lane.b32.xlu0 %v6210, 126
        %v6214 = vpop.permute.xlu0 %6213
        %6215 = vrot.lane.b32.xlu0 %v6212, 126
        %v6216 = vpop.permute.xlu0 %6215
        %v6219 = vadd.f32 %v6198, %v6214
        %v6220 = vadd.f32 %v6199, %v6216
        %s6221 = sld [smem:[#allocation3 + $0x183]]
        %v6222 = vstv %s6221
        %v6223 = vmul.f32 %v5950, %v6222
        %v6224 = vmul.f32 %v5951, %v6222
        %6227 = vrot.lane.b32.xlu0 %v6223, 125
        %v6228 = vpop.permute.xlu0 %6227
        %6229 = vrot.lane.b32.xlu0 %v6224, 125
        %v6230 = vpop.permute.xlu0 %6229
        %v6233 = vadd.f32 %v6219, %v6228
        %v6234 = vadd.f32 %v6220, %v6230
        %s6235 = sld [smem:[#allocation3 + $0x188]]
        %v6236 = vstv %s6235
        %v6237 = vmul.f32 %v5950, %v6236
        %v6238 = vmul.f32 %v5951, %v6236
        %v6239 = vmul.f32 %v5952, %v6236
        %v6243 = vrot.slane %v6237, 1
        %v6244 = vrot.slane %v6238, 1
        %v6245 = vsel %vm335, %v6243, %v6244
        %v6246 = vrot.slane %v6239, 1
        %v6247 = vsel %vm335, %v6244, %v6246
        %6248 = vrot.lane.b32.xlu0 %v6245, 125
        %v6249 = vpop.permute.xlu0 %6248
        %6250 = vrot.lane.b32.xlu0 %v6247, 125
        %v6251 = vpop.permute.xlu0 %6250
        %v6254 = vadd.f32 %v6233, %v6249
        %v6255 = vadd.f32 %v6234, %v6251
        %s6256 = sld [smem:[#allocation3 + $0x18d]]
        %v6257 = vstv %s6256
        %v6258 = vmul.f32 %v5950, %v6257
        %v6259 = vmul.f32 %v5951, %v6257
        %v6260 = vmul.f32 %v5952, %v6257
        %v6264 = vrot.slane %v6258, 2
        %v6265 = vrot.slane %v6259, 2
        %v6266 = vsel %vm353, %v6264, %v6265
        %v6267 = vrot.slane %v6260, 2
        %v6268 = vsel %vm353, %v6265, %v6267
        %6269 = vrot.lane.b32.xlu0 %v6266, 125
        %v6270 = vpop.permute.xlu0 %6269
        %6271 = vrot.lane.b32.xlu0 %v6268, 125
        %v6272 = vpop.permute.xlu0 %6271
        %v6275 = vadd.f32 %v6254, %v6270
        %v6276 = vadd.f32 %v6255, %v6272
        %s6277 = sld [smem:[#allocation3 + $0x192]]
        %v6278 = vstv %s6277
        %v6279 = vmul.f32 %v5950, %v6278
        %v6280 = vmul.f32 %v5951, %v6278
        %v6281 = vmul.f32 %v5952, %v6278
        %v6285 = vrot.slane %v6279, 3
        %v6286 = vrot.slane %v6280, 3
        %v6287 = vsel %vm371, %v6285, %v6286
        %v6288 = vrot.slane %v6281, 3
        %v6289 = vsel %vm371, %v6286, %v6288
        %6290 = vrot.lane.b32.xlu0 %v6287, 125
        %v6291 = vpop.permute.xlu0 %6290
        %6292 = vrot.lane.b32.xlu0 %v6289, 125
        %v6293 = vpop.permute.xlu0 %6292
        %v6296 = vadd.f32 %v6275, %v6291
        %v6297 = vadd.f32 %v6276, %v6293
        %s6298 = sld [smem:[#allocation3 + $0x197]]
        %v6299 = vstv %s6298
        %v6300 = vmul.f32 %v5950, %v6299
        %v6301 = vmul.f32 %v5951, %v6299
        %v6302 = vmul.f32 %v5952, %v6299
        %v6306 = vrot.slane %v6300, 4
        %v6307 = vrot.slane %v6301, 4
        %v6308 = vsel %vm389, %v6306, %v6307
        %v6309 = vrot.slane %v6302, 4
        %v6310 = vsel %vm389, %v6307, %v6309
        %6311 = vrot.lane.b32.xlu0 %v6308, 125
        %v6312 = vpop.permute.xlu0 %6311
        %6313 = vrot.lane.b32.xlu0 %v6310, 125
        %v6314 = vpop.permute.xlu0 %6313
        %v6317 = vadd.f32 %v6296, %v6312
        %v6318 = vadd.f32 %v6297, %v6314
        %s6319 = sld [smem:[#allocation3 + $0x184]]
        %v6320 = vstv %s6319
        %v6321 = vmul.f32 %v5950, %v6320
        %v6322 = vmul.f32 %v5951, %v6320
        %6325 = vrot.lane.b32.xlu0 %v6321, 124
        %v6326 = vpop.permute.xlu0 %6325
        %6327 = vrot.lane.b32.xlu0 %v6322, 124
        %v6328 = vpop.permute.xlu0 %6327
        %v6331 = vadd.f32 %v6317, %v6326
        %v6332 = vadd.f32 %v6318, %v6328
        %s6333 = sld [smem:[#allocation3 + $0x189]]
        %v6334 = vstv %s6333
        %v6335 = vmul.f32 %v5950, %v6334
        %v6336 = vmul.f32 %v5951, %v6334
        %v6337 = vmul.f32 %v5952, %v6334
        %v6341 = vrot.slane %v6335, 1
        %v6342 = vrot.slane %v6336, 1
        %v6343 = vsel %vm335, %v6341, %v6342
        %v6344 = vrot.slane %v6337, 1
        %v6345 = vsel %vm335, %v6342, %v6344
        %6346 = vrot.lane.b32.xlu0 %v6343, 124
        %v6347 = vpop.permute.xlu0 %6346
        %6348 = vrot.lane.b32.xlu0 %v6345, 124
        %v6349 = vpop.permute.xlu0 %6348
        %v6352 = vadd.f32 %v6331, %v6347
        %v6353 = vadd.f32 %v6332, %v6349
        %s6354 = sld [smem:[#allocation3 + $0x18e]]
        %v6355 = vstv %s6354
        %v6356 = vmul.f32 %v5950, %v6355
        %v6357 = vmul.f32 %v5951, %v6355
        %v6358 = vmul.f32 %v5952, %v6355
        %v6362 = vrot.slane %v6356, 2
        %v6363 = vrot.slane %v6357, 2
        %v6364 = vsel %vm353, %v6362, %v6363
        %v6365 = vrot.slane %v6358, 2
        %v6366 = vsel %vm353, %v6363, %v6365
        %6367 = vrot.lane.b32.xlu0 %v6364, 124
        %v6368 = vpop.permute.xlu0 %6367
        %6369 = vrot.lane.b32.xlu0 %v6366, 124
        %v6370 = vpop.permute.xlu0 %6369
        %v6373 = vadd.f32 %v6352, %v6368
        %v6374 = vadd.f32 %v6353, %v6370
        %s6375 = sld [smem:[#allocation3 + $0x193]]
        %v6376 = vstv %s6375
        %v6377 = vmul.f32 %v5950, %v6376
        %v6378 = vmul.f32 %v5951, %v6376
        %v6379 = vmul.f32 %v5952, %v6376
        %v6383 = vrot.slane %v6377, 3
        %v6384 = vrot.slane %v6378, 3
        %v6385 = vsel %vm371, %v6383, %v6384
        %v6386 = vrot.slane %v6379, 3
        %v6387 = vsel %vm371, %v6384, %v6386
        %6388 = vrot.lane.b32.xlu0 %v6385, 124
        %v6389 = vpop.permute.xlu0 %6388
        %6390 = vrot.lane.b32.xlu0 %v6387, 124
        %v6391 = vpop.permute.xlu0 %6390
        %v6394 = vadd.f32 %v6373, %v6389
        %v6395 = vadd.f32 %v6374, %v6391
        %s6396 = sld [smem:[#allocation3 + $0x198]]
        %v6397 = vstv %s6396
        %v6398 = vmul.f32 %v5950, %v6397
        %v6399 = vmul.f32 %v5951, %v6397
        %v6400 = vmul.f32 %v5952, %v6397
        %v6404 = vrot.slane %v6398, 4
        %v6405 = vrot.slane %v6399, 4
        %v6406 = vsel %vm389, %v6404, %v6405
        %v6407 = vrot.slane %v6400, 4
        %v6408 = vsel %vm389, %v6405, %v6407
        %6409 = vrot.lane.b32.xlu0 %v6406, 124
        %v6410 = vpop.permute.xlu0 %6409
        %6411 = vrot.lane.b32.xlu0 %v6408, 124
        %v6412 = vpop.permute.xlu0 %6411
        %v6415 = vadd.f32 %v6394, %v6410
        %v6416 = vadd.f32 %v6395, %v6412
        %s6417 = sld [smem:[#allocation6 + $0x192]]
        %v6418 = vstv %s6417
        %v6419 = vmul.f32 %v5950, %v6418
        %v6420 = vmul.f32 %v5951, %v6418
        %v6421 = vmul.f32 %v5952, %v6418
        %s6422 = sld [smem:[#allocation6 + $0x193]]
        %v6423 = vstv %s6422
        %v6424 = vmul.f32 %v5950, %v6423
        %v6425 = vmul.f32 %v5951, %v6423
        %v6426 = vmul.f32 %v5952, %v6423
        %6430 = vrot.lane.b32.xlu0 %v6424, 127
        %v6431 = vpop.permute.xlu0 %6430
        %6432 = vrot.lane.b32.xlu0 %v6425, 127
        %v6433 = vpop.permute.xlu0 %6432
        %6434 = vrot.lane.b32.xlu0 %v6426, 127
        %v6435 = vpop.permute.xlu0 %6434
        %v6439 = vadd.f32 %v6419, %v6431
        %v6440 = vadd.f32 %v6420, %v6433
        %v6441 = vadd.f32 %v6421, %v6435
        %s6442 = sld [smem:[#allocation6 + $0x194]]
        %v6443 = vstv %s6442
        %v6444 = vmul.f32 %v5950, %v6443
        %v6445 = vmul.f32 %v5951, %v6443
        %v6446 = vmul.f32 %v5952, %v6443
        %6450 = vrot.lane.b32.xlu0 %v6444, 126
        %v6451 = vpop.permute.xlu0 %6450
        %6452 = vrot.lane.b32.xlu0 %v6445, 126
        %v6453 = vpop.permute.xlu0 %6452
        %6454 = vrot.lane.b32.xlu0 %v6446, 126
        %v6455 = vpop.permute.xlu0 %6454
        %v6459 = vadd.f32 %v6439, %v6451
        %v6460 = vadd.f32 %v6440, %v6453
        %v6461 = vadd.f32 %v6441, %v6455
        %s6462 = sld [smem:[#allocation6 + $0x195]]
        %v6463 = vstv %s6462
        %v6464 = vmul.f32 %v5950, %v6463
        %v6465 = vmul.f32 %v5951, %v6463
        %v6466 = vmul.f32 %v5952, %v6463
        %6470 = vrot.lane.b32.xlu0 %v6464, 125
        %v6471 = vpop.permute.xlu0 %6470
        %6472 = vrot.lane.b32.xlu0 %v6465, 125
        %v6473 = vpop.permute.xlu0 %6472
        %6474 = vrot.lane.b32.xlu0 %v6466, 125
        %v6475 = vpop.permute.xlu0 %6474
        %v6479 = vadd.f32 %v6459, %v6471
        %v6480 = vadd.f32 %v6460, %v6473
        %v6481 = vadd.f32 %v6461, %v6475
        %s6482 = sld [smem:[#allocation6 + $0x196]]
        %v6483 = vstv %s6482
        %v6484 = vmul.f32 %v5950, %v6483
        %v6485 = vmul.f32 %v5951, %v6483
        %v6486 = vmul.f32 %v5952, %v6483
        %6490 = vrot.lane.b32.xlu0 %v6484, 124
        %v6491 = vpop.permute.xlu0 %6490
        %6492 = vrot.lane.b32.xlu0 %v6485, 124
        %v6493 = vpop.permute.xlu0 %6492
        %6494 = vrot.lane.b32.xlu0 %v6486, 124
        %v6495 = vpop.permute.xlu0 %6494
        %v6499 = vadd.f32 %v6479, %v6491
        %v6500 = vadd.f32 %v6480, %v6493
        %v6501 = vadd.f32 %v6481, %v6495
        %s6502 = sld [smem:[#allocation6 + $0x197]]
        %v6503 = vstv %s6502
        %v6504 = vmul.f32 %v5950, %v6503
        %v6505 = vmul.f32 %v5951, %v6503
        %v6506 = vmul.f32 %v5952, %v6503
        %6510 = vrot.lane.b32.xlu0 %v6504, 123
        %v6511 = vpop.permute.xlu0 %6510
        %6512 = vrot.lane.b32.xlu0 %v6505, 123
        %v6513 = vpop.permute.xlu0 %6512
        %6514 = vrot.lane.b32.xlu0 %v6506, 123
        %v6515 = vpop.permute.xlu0 %6514
        %v6519 = vadd.f32 %v6499, %v6511
        %v6520 = vadd.f32 %v6500, %v6513
        %v6521 = vadd.f32 %v6501, %v6515
        %s6522 = sld [smem:[#allocation6 + $0x187]]
        %v6523 = vstv %s6522
        %v6524 = vmul.f32 %v5950, %v6523
        %v6525 = vmul.f32 %v5951, %v6523
        %v6526 = vmul.f32 %v5952, %v6523
        %s6527 = sld [smem:[#allocation6 + $0x198]]
        %v6528 = vstv %s6527
        %v6529 = vmul.f32 %v5950, %v6528
        %v6530 = vmul.f32 %v5951, %v6528
        %v6531 = vmul.f32 %v5952, %v6528
        %6535 = vrot.lane.b32.xlu0 %v6529, 122
        %v6536 = vpop.permute.xlu0 %6535
        %6537 = vrot.lane.b32.xlu0 %v6530, 122
        %v6538 = vpop.permute.xlu0 %6537
        %6539 = vrot.lane.b32.xlu0 %v6531, 122
        %v6540 = vpop.permute.xlu0 %6539
        %v6544 = vadd.f32 %v6519, %v6536
        %v6545 = vadd.f32 %v6520, %v6538
        %v6546 = vadd.f32 %v6521, %v6540
        %s6547 = sld [smem:[#allocation6 + $0x188]]
        %v6548 = vstv %s6547
        %v6549 = vmul.f32 %v5950, %v6548
        %v6550 = vmul.f32 %v5951, %v6548
        %v6551 = vmul.f32 %v5952, %v6548
        %6555 = vrot.lane.b32.xlu0 %v6549, 127
        %v6556 = vpop.permute.xlu0 %6555
        %6557 = vrot.lane.b32.xlu0 %v6550, 127
        %v6558 = vpop.permute.xlu0 %6557
        %6559 = vrot.lane.b32.xlu0 %v6551, 127
        %v6560 = vpop.permute.xlu0 %6559
        %v6564 = vadd.f32 %v6524, %v6556
        %v6565 = vadd.f32 %v6525, %v6558
        %v6566 = vadd.f32 %v6526, %v6560
        %s6567 = sld [smem:[#allocation6 + $0x199]]
        %v6568 = vstv %s6567
        %v6569 = vmul.f32 %v5950, %v6568
        %v6570 = vmul.f32 %v5951, %v6568
        %v6571 = vmul.f32 %v5952, %v6568
        %6575 = vrot.lane.b32.xlu0 %v6569, 121
        %v6576 = vpop.permute.xlu0 %6575
        %6577 = vrot.lane.b32.xlu0 %v6570, 121
        %v6578 = vpop.permute.xlu0 %6577
        %6579 = vrot.lane.b32.xlu0 %v6571, 121
        %v6580 = vpop.permute.xlu0 %6579
        %v6584 = vadd.f32 %v6544, %v6576
        %v6585 = vadd.f32 %v6545, %v6578
        %v6586 = vadd.f32 %v6546, %v6580
        %s6587 = sld [smem:[#allocation6 + $0x189]]
        %v6588 = vstv %s6587
        %v6589 = vmul.f32 %v5950, %v6588
        %v6590 = vmul.f32 %v5951, %v6588
        %v6591 = vmul.f32 %v5952, %v6588
        %6595 = vrot.lane.b32.xlu0 %v6589, 126
        %v6596 = vpop.permute.xlu0 %6595
        %6597 = vrot.lane.b32.xlu0 %v6590, 126
        %v6598 = vpop.permute.xlu0 %6597
        %6599 = vrot.lane.b32.xlu0 %v6591, 126
        %v6600 = vpop.permute.xlu0 %6599
        %v6604 = vadd.f32 %v6564, %v6596
        %v6605 = vadd.f32 %v6565, %v6598
        %v6606 = vadd.f32 %v6566, %v6600
        %s6607 = sld [smem:[#allocation6 + $0x180]]
        %v6608 = vstv %s6607
        %v6609 = vmul.f32 %v5950, %v6608
        %v6610 = vmul.f32 %v5951, %v6608
        %v6611 = vmul.f32 %v5952, %v6608
        %s6612 = sld [smem:[#allocation6 + $0x19a]]
        %v6613 = vstv %s6612
        %v6614 = vmul.f32 %v5950, %v6613
        %v6615 = vmul.f32 %v5951, %v6613
        %v6616 = vmul.f32 %v5952, %v6613
        %6620 = vrot.lane.b32.xlu0 %v6614, 120
        %v6621 = vpop.permute.xlu0 %6620
        %6622 = vrot.lane.b32.xlu0 %v6615, 120
        %v6623 = vpop.permute.xlu0 %6622
        %6624 = vrot.lane.b32.xlu0 %v6616, 120
        %v6625 = vpop.permute.xlu0 %6624
        %v6629 = vadd.f32 %v6584, %v6621
        %v6630 = vadd.f32 %v6585, %v6623
        %v6631 = vadd.f32 %v6586, %v6625
        %s6632 = sld [smem:[#allocation6 + $0x18a]]
        %v6633 = vstv %s6632
        %v6634 = vmul.f32 %v5950, %v6633
        %v6635 = vmul.f32 %v5951, %v6633
        %v6636 = vmul.f32 %v5952, %v6633
        %6640 = vrot.lane.b32.xlu0 %v6634, 125
        %v6641 = vpop.permute.xlu0 %6640
        %6642 = vrot.lane.b32.xlu0 %v6635, 125
        %v6643 = vpop.permute.xlu0 %6642
        %6644 = vrot.lane.b32.xlu0 %v6636, 125
        %v6645 = vpop.permute.xlu0 %6644
        %v6649 = vadd.f32 %v6604, %v6641
        %v6650 = vadd.f32 %v6605, %v6643
        %v6651 = vadd.f32 %v6606, %v6645
        %s6652 = sld [smem:[#allocation6 + $0x181]]
        %v6653 = vstv %s6652
        %v6654 = vmul.f32 %v5950, %v6653
        %v6655 = vmul.f32 %v5951, %v6653
        %v6656 = vmul.f32 %v5952, %v6653
        %6660 = vrot.lane.b32.xlu0 %v6654, 127
        %v6661 = vpop.permute.xlu0 %6660
        %6662 = vrot.lane.b32.xlu0 %v6655, 127
        %v6663 = vpop.permute.xlu0 %6662
        %6664 = vrot.lane.b32.xlu0 %v6656, 127
        %v6665 = vpop.permute.xlu0 %6664
        %v6669 = vadd.f32 %v6609, %v6661
        %v6670 = vadd.f32 %v6610, %v6663
        %v6671 = vadd.f32 %v6611, %v6665
        %s6672 = sld [smem:[#allocation6 + $0x19b]]
        %v6673 = vstv %s6672
        %v6674 = vmul.f32 %v5950, %v6673
        %v6675 = vmul.f32 %v5951, %v6673
        %v6676 = vmul.f32 %v5952, %v6673
        %6680 = vrot.lane.b32.xlu0 %v6674, 119
        %v6681 = vpop.permute.xlu0 %6680
        %6682 = vrot.lane.b32.xlu0 %v6675, 119
        %v6683 = vpop.permute.xlu0 %6682
        %6684 = vrot.lane.b32.xlu0 %v6676, 119
        %v6685 = vpop.permute.xlu0 %6684
        %v6689 = vadd.f32 %v6629, %v6681
        %v6690 = vadd.f32 %v6630, %v6683
        %v6691 = vadd.f32 %v6631, %v6685
        %s6692 = sld [smem:[#allocation6 + $0x18b]]
        %v6693 = vstv %s6692
        %v6694 = vmul.f32 %v5950, %v6693
        %v6695 = vmul.f32 %v5951, %v6693
        %v6696 = vmul.f32 %v5952, %v6693
        %6700 = vrot.lane.b32.xlu0 %v6694, 124
        %v6701 = vpop.permute.xlu0 %6700
        %6702 = vrot.lane.b32.xlu0 %v6695, 124
        %v6703 = vpop.permute.xlu0 %6702
        %6704 = vrot.lane.b32.xlu0 %v6696, 124
        %v6705 = vpop.permute.xlu0 %6704
        %v6709 = vadd.f32 %v6649, %v6701
        %v6710 = vadd.f32 %v6650, %v6703
        %v6711 = vadd.f32 %v6651, %v6705
        %s6712 = sld [smem:[#allocation6 + $0x182]]
        %v6713 = vstv %s6712
        %v6714 = vmul.f32 %v5950, %v6713
        %v6715 = vmul.f32 %v5951, %v6713
        %v6716 = vmul.f32 %v5952, %v6713
        %6720 = vrot.lane.b32.xlu0 %v6714, 126
        %v6721 = vpop.permute.xlu0 %6720
        %6722 = vrot.lane.b32.xlu0 %v6715, 126
        %v6723 = vpop.permute.xlu0 %6722
        %6724 = vrot.lane.b32.xlu0 %v6716, 126
        %v6725 = vpop.permute.xlu0 %6724
        %v6729 = vadd.f32 %v6669, %v6721
        %v6730 = vadd.f32 %v6670, %v6723
        %v6731 = vadd.f32 %v6671, %v6725
        %s6732 = sld [smem:[#allocation6 + $0x19c]]
        %v6733 = vstv %s6732
        %v6734 = vmul.f32 %v5950, %v6733
        %v6735 = vmul.f32 %v5951, %v6733
        %v6736 = vmul.f32 %v5952, %v6733
        %6740 = vrot.lane.b32.xlu0 %v6734, 118
        %v6741 = vpop.permute.xlu0 %6740
        %6742 = vrot.lane.b32.xlu0 %v6735, 118
        %v6743 = vpop.permute.xlu0 %6742
        %6744 = vrot.lane.b32.xlu0 %v6736, 118
        %v6745 = vpop.permute.xlu0 %6744
        %v6749 = vadd.f32 %v6689, %v6741
        %v6750 = vadd.f32 %v6690, %v6743
        %v6751 = vadd.f32 %v6691, %v6745
        %s6752 = sld [smem:[#allocation6 + $0x18c]]
        %v6753 = vstv %s6752
        %v6754 = vmul.f32 %v5950, %v6753
        %v6755 = vmul.f32 %v5951, %v6753
        %v6756 = vmul.f32 %v5952, %v6753
        %6760 = vrot.lane.b32.xlu0 %v6754, 123
        %v6761 = vpop.permute.xlu0 %6760
        %6762 = vrot.lane.b32.xlu0 %v6755, 123
        %v6763 = vpop.permute.xlu0 %6762
        %6764 = vrot.lane.b32.xlu0 %v6756, 123
        %v6765 = vpop.permute.xlu0 %6764
        %v6769 = vadd.f32 %v6709, %v6761
        %v6770 = vadd.f32 %v6710, %v6763
        %v6771 = vadd.f32 %v6711, %v6765
        %s6772 = sld [smem:[#allocation6 + $0x183]]
        %v6773 = vstv %s6772
        %v6774 = vmul.f32 %v5950, %v6773
        %v6775 = vmul.f32 %v5951, %v6773
        %v6776 = vmul.f32 %v5952, %v6773
        %6780 = vrot.lane.b32.xlu0 %v6774, 125
        %v6781 = vpop.permute.xlu0 %6780
        %6782 = vrot.lane.b32.xlu0 %v6775, 125
        %v6783 = vpop.permute.xlu0 %6782
        %6784 = vrot.lane.b32.xlu0 %v6776, 125
        %v6785 = vpop.permute.xlu0 %6784
        %v6789 = vadd.f32 %v6729, %v6781
        %v6790 = vadd.f32 %v6730, %v6783
        %v6791 = vadd.f32 %v6731, %v6785
        %s6792 = sld [smem:[#allocation6 + $0x19d]]
        %v6793 = vstv %s6792
        %v6794 = vmul.f32 %v5950, %v6793
        %v6795 = vmul.f32 %v5951, %v6793
        %v6796 = vmul.f32 %v5952, %v6793
        %6800 = vrot.lane.b32.xlu0 %v6794, 117
        %v6801 = vpop.permute.xlu0 %6800
        %6802 = vrot.lane.b32.xlu0 %v6795, 117
        %v6803 = vpop.permute.xlu0 %6802
        %6804 = vrot.lane.b32.xlu0 %v6796, 117
        %v6805 = vpop.permute.xlu0 %6804
        %v6809 = vadd.f32 %v6749, %v6801
        %v6810 = vadd.f32 %v6750, %v6803
        %v6811 = vadd.f32 %v6751, %v6805
        %s6812 = sld [smem:[#allocation6 + $0x18d]]
        %v6813 = vstv %s6812
        %v6814 = vmul.f32 %v5950, %v6813
        %v6815 = vmul.f32 %v5951, %v6813
        %v6816 = vmul.f32 %v5952, %v6813
        %6820 = vrot.lane.b32.xlu0 %v6814, 122
        %v6821 = vpop.permute.xlu0 %6820
        %6822 = vrot.lane.b32.xlu0 %v6815, 122
        %v6823 = vpop.permute.xlu0 %6822
        %6824 = vrot.lane.b32.xlu0 %v6816, 122
        %v6825 = vpop.permute.xlu0 %6824
        %v6829 = vadd.f32 %v6769, %v6821
        %v6830 = vadd.f32 %v6770, %v6823
        %v6831 = vadd.f32 %v6771, %v6825
        %s6832 = sld [smem:[#allocation6 + $0x184]]
        %v6833 = vstv %s6832
        %v6834 = vmul.f32 %v5950, %v6833
        %v6835 = vmul.f32 %v5951, %v6833
        %v6836 = vmul.f32 %v5952, %v6833
        %6840 = vrot.lane.b32.xlu0 %v6834, 124
        %v6841 = vpop.permute.xlu0 %6840
        %6842 = vrot.lane.b32.xlu0 %v6835, 124
        %v6843 = vpop.permute.xlu0 %6842
        %6844 = vrot.lane.b32.xlu0 %v6836, 124
        %v6845 = vpop.permute.xlu0 %6844
        %v6849 = vadd.f32 %v6789, %v6841
        %v6850 = vadd.f32 %v6790, %v6843
        %v6851 = vadd.f32 %v6791, %v6845
        %s6852 = sld [smem:[#allocation6 + $0x19e]]
        %v6853 = vstv %s6852
        %v6854 = vmul.f32 %v5950, %v6853
        %v6855 = vmul.f32 %v5951, %v6853
        %v6856 = vmul.f32 %v5952, %v6853
        %6860 = vrot.lane.b32.xlu0 %v6854, 116
        %v6861 = vpop.permute.xlu0 %6860
        %6862 = vrot.lane.b32.xlu0 %v6855, 116
        %v6863 = vpop.permute.xlu0 %6862
        %6864 = vrot.lane.b32.xlu0 %v6856, 116
        %v6865 = vpop.permute.xlu0 %6864
        %v6869 = vadd.f32 %v6809, %v6861
        %v6870 = vadd.f32 %v6810, %v6863
        %v6871 = vadd.f32 %v6811, %v6865
        %s6872 = sld [smem:[#allocation6 + $0x18e]]
        %v6873 = vstv %s6872
        %v6874 = vmul.f32 %v5950, %v6873
        %v6875 = vmul.f32 %v5951, %v6873
        %v6876 = vmul.f32 %v5952, %v6873
        %6880 = vrot.lane.b32.xlu0 %v6874, 121
        %v6881 = vpop.permute.xlu0 %6880
        %6882 = vrot.lane.b32.xlu0 %v6875, 121
        %v6883 = vpop.permute.xlu0 %6882
        %6884 = vrot.lane.b32.xlu0 %v6876, 121
        %v6885 = vpop.permute.xlu0 %6884
        %v6889 = vadd.f32 %v6829, %v6881
        %v6890 = vadd.f32 %v6830, %v6883
        %v6891 = vadd.f32 %v6831, %v6885
        %s6892 = sld [smem:[#allocation6 + $0x185]]
        %v6893 = vstv %s6892
        %v6894 = vmul.f32 %v5950, %v6893
        %v6895 = vmul.f32 %v5951, %v6893
        %v6896 = vmul.f32 %v5952, %v6893
        %6900 = vrot.lane.b32.xlu0 %v6894, 123
        %v6901 = vpop.permute.xlu0 %6900
        %6902 = vrot.lane.b32.xlu0 %v6895, 123
        %v6903 = vpop.permute.xlu0 %6902
        %6904 = vrot.lane.b32.xlu0 %v6896, 123
        %v6905 = vpop.permute.xlu0 %6904
        %v6909 = vadd.f32 %v6849, %v6901
        %v6910 = vadd.f32 %v6850, %v6903
        %v6911 = vadd.f32 %v6851, %v6905
        %s6912 = sld [smem:[#allocation6 + $0x19f]]
        %v6913 = vstv %s6912
        %v6914 = vmul.f32 %v5950, %v6913
        %v6915 = vmul.f32 %v5951, %v6913
        %v6916 = vmul.f32 %v5952, %v6913
        %6920 = vrot.lane.b32.xlu0 %v6914, 115
        %v6921 = vpop.permute.xlu0 %6920
        %6922 = vrot.lane.b32.xlu0 %v6915, 115
        %v6923 = vpop.permute.xlu0 %6922
        %6924 = vrot.lane.b32.xlu0 %v6916, 115
        %v6925 = vpop.permute.xlu0 %6924
        %v6929 = vadd.f32 %v6869, %v6921
        %v6930 = vadd.f32 %v6870, %v6923
        %v6931 = vadd.f32 %v6871, %v6925
        %s6932 = sld [smem:[#allocation6 + $0x18f]]
        %v6933 = vstv %s6932
        %v6934 = vmul.f32 %v5950, %v6933
        %v6935 = vmul.f32 %v5951, %v6933
        %v6936 = vmul.f32 %v5952, %v6933
        %6940 = vrot.lane.b32.xlu0 %v6934, 120
        %v6941 = vpop.permute.xlu0 %6940
        %6942 = vrot.lane.b32.xlu0 %v6935, 120
        %v6943 = vpop.permute.xlu0 %6942
        %6944 = vrot.lane.b32.xlu0 %v6936, 120
        %v6945 = vpop.permute.xlu0 %6944
        %v6949 = vadd.f32 %v6889, %v6941
        %v6950 = vadd.f32 %v6890, %v6943
        %v6951 = vadd.f32 %v6891, %v6945
        %s6952 = sld [smem:[#allocation6 + $0x186]]
        %v6953 = vstv %s6952
        %v6954 = vmul.f32 %v5950, %v6953
        %v6955 = vmul.f32 %v5951, %v6953
        %v6956 = vmul.f32 %v5952, %v6953
        %6960 = vrot.lane.b32.xlu0 %v6954, 122
        %v6961 = vpop.permute.xlu0 %6960
        %6962 = vrot.lane.b32.xlu0 %v6955, 122
        %v6963 = vpop.permute.xlu0 %6962
        %6964 = vrot.lane.b32.xlu0 %v6956, 122
        %v6965 = vpop.permute.xlu0 %6964
        %v6969 = vadd.f32 %v6909, %v6961
        %v6970 = vadd.f32 %v6910, %v6963
        %v6971 = vadd.f32 %v6911, %v6965
        %s6972 = sld [smem:[#allocation6 + $0x1a0]]
        %v6973 = vstv %s6972
        %v6974 = vmul.f32 %v5950, %v6973
        %v6975 = vmul.f32 %v5951, %v6973
        %v6976 = vmul.f32 %v5952, %v6973
        %6980 = vrot.lane.b32.xlu0 %v6974, 114
        %v6981 = vpop.permute.xlu0 %6980
        %6982 = vrot.lane.b32.xlu0 %v6975, 114
        %v6983 = vpop.permute.xlu0 %6982
        %6984 = vrot.lane.b32.xlu0 %v6976, 114
        %v6985 = vpop.permute.xlu0 %6984
        %v6989 = vadd.f32 %v6929, %v6981
        %v6990 = vadd.f32 %v6930, %v6983
        %v6991 = vadd.f32 %v6931, %v6985
        %s6992 = sld [smem:[#allocation6 + $0x190]]
        %v6993 = vstv %s6992
        %v6994 = vmul.f32 %v5950, %v6993
        %v6995 = vmul.f32 %v5951, %v6993
        %v6996 = vmul.f32 %v5952, %v6993
        %7000 = vrot.lane.b32.xlu0 %v6994, 119
        %v7001 = vpop.permute.xlu0 %7000
        %7002 = vrot.lane.b32.xlu0 %v6995, 119
        %v7003 = vpop.permute.xlu0 %7002
        %7004 = vrot.lane.b32.xlu0 %v6996, 119
        %v7005 = vpop.permute.xlu0 %7004
        %v7009 = vadd.f32 %v6949, %v7001
        %v7010 = vadd.f32 %v6950, %v7003
        %v7011 = vadd.f32 %v6951, %v7005
        %s7012 = sld [smem:[#allocation6 + $0x1a1]]
        %v7013 = vstv %s7012
        %v7014 = vmul.f32 %v5950, %v7013
        %v7015 = vmul.f32 %v5951, %v7013
        %v7016 = vmul.f32 %v5952, %v7013
        %7020 = vrot.lane.b32.xlu0 %v7014, 113
        %v7021 = vpop.permute.xlu0 %7020
        %7022 = vrot.lane.b32.xlu0 %v7015, 113
        %v7023 = vpop.permute.xlu0 %7022
        %7024 = vrot.lane.b32.xlu0 %v7016, 113
        %v7025 = vpop.permute.xlu0 %7024
        %v7029 = vadd.f32 %v6989, %v7021
        %v7030 = vadd.f32 %v6990, %v7023
        %v7031 = vadd.f32 %v6991, %v7025
        %s7032 = sld [smem:[#allocation6 + $0x191]]
        %v7033 = vstv %s7032
        %v7034 = vmul.f32 %v5950, %v7033
        %v7035 = vmul.f32 %v5951, %v7033
        %v7036 = vmul.f32 %v5952, %v7033
        %7040 = vrot.lane.b32.xlu0 %v7034, 118
        %v7041 = vpop.permute.xlu0 %7040
        %7042 = vrot.lane.b32.xlu0 %v7035, 118
        %v7043 = vpop.permute.xlu0 %7042
        %7044 = vrot.lane.b32.xlu0 %v7036, 118
        %v7045 = vpop.permute.xlu0 %7044
        %v7049 = vadd.f32 %v7009, %v7041
        %v7050 = vadd.f32 %v7010, %v7043
        %v7051 = vadd.f32 %v7011, %v7045
        %s7052 = sld [smem:[#allocation6 + $0x1a2]]
        %v7053 = vstv %s7052
        %v7054 = vmul.f32 %v5950, %v7053
        %v7055 = vmul.f32 %v5951, %v7053
        %v7056 = vmul.f32 %v5952, %v7053
        %7060 = vrot.lane.b32.xlu0 %v7054, 112
        %v7061 = vpop.permute.xlu0 %7060
        %7062 = vrot.lane.b32.xlu0 %v7055, 112
        %v7063 = vpop.permute.xlu0 %7062
        %7064 = vrot.lane.b32.xlu0 %v7056, 112
        %v7065 = vpop.permute.xlu0 %7064
        %v7069 = vadd.f32 %v7029, %v7061
        %v7070 = vadd.f32 %v7030, %v7063
        %v7071 = vadd.f32 %v7031, %v7065
        %s7072 = sld [smem:[#allocation6 + $0x1a3]]
        %v7073 = vstv %s7072
        %v7074 = vmul.f32 %v5950, %v7073
        %v7075 = vmul.f32 %v5951, %v7073
        %v7076 = vmul.f32 %v5952, %v7073
        %7080 = vrot.lane.b32.xlu0 %v7074, 111
        %v7081 = vpop.permute.xlu0 %7080
        %7082 = vrot.lane.b32.xlu0 %v7075, 111
        %v7083 = vpop.permute.xlu0 %7082
        %7084 = vrot.lane.b32.xlu0 %v7076, 111
        %v7085 = vpop.permute.xlu0 %7084
        %v7089 = vadd.f32 %v7069, %v7081
        %v7090 = vadd.f32 %v7070, %v7083
        %v7091 = vadd.f32 %v7071, %v7085
        %s7092 = sld [smem:[#allocation6 + $0x1a4]]
        %v7093 = vstv %s7092
        %v7094 = vmul.f32 %v5950, %v7093
        %v7095 = vmul.f32 %v5951, %v7093
        %v7096 = vmul.f32 %v5952, %v7093
        %7100 = vrot.lane.b32.xlu0 %v7094, 110
        %v7101 = vpop.permute.xlu0 %7100
        %7102 = vrot.lane.b32.xlu0 %v7095, 110
        %v7103 = vpop.permute.xlu0 %7102
        %7104 = vrot.lane.b32.xlu0 %v7096, 110
        %v7105 = vpop.permute.xlu0 %7104
        %v7109 = vadd.f32 %v7089, %v7101
        %v7110 = vadd.f32 %v7090, %v7103
        %v7111 = vadd.f32 %v7091, %v7105
        %s7112 = sld [smem:[#allocation6 + $0x1a5]]
        %v7113 = vstv %s7112
        %v7114 = vmul.f32 %v5950, %v7113
        %v7115 = vmul.f32 %v5951, %v7113
        %v7116 = vmul.f32 %v5952, %v7113
        %7120 = vrot.lane.b32.xlu0 %v7114, 109
        %v7121 = vpop.permute.xlu0 %7120
        %7122 = vrot.lane.b32.xlu0 %v7115, 109
        %v7123 = vpop.permute.xlu0 %7122
        %7124 = vrot.lane.b32.xlu0 %v7116, 109
        %v7125 = vpop.permute.xlu0 %7124
        %v7129 = vadd.f32 %v7109, %v7121
        %v7130 = vadd.f32 %v7110, %v7123
        %v7131 = vadd.f32 %v7111, %v7125
        %s7132 = sld [smem:[#allocation6 + $0x1a6]]
        %v7133 = vstv %s7132
        %v7134 = vmul.f32 %v5950, %v7133
        %v7135 = vmul.f32 %v5951, %v7133
        %v7136 = vmul.f32 %v5952, %v7133
        %7140 = vrot.lane.b32.xlu0 %v7134, 108
        %v7141 = vpop.permute.xlu0 %7140
        %7142 = vrot.lane.b32.xlu0 %v7135, 108
        %v7143 = vpop.permute.xlu0 %7142
        %7144 = vrot.lane.b32.xlu0 %v7136, 108
        %v7145 = vpop.permute.xlu0 %7144
        %v7149 = vadd.f32 %v7129, %v7141
        %v7150 = vadd.f32 %v7130, %v7143
        %v7151 = vadd.f32 %v7131, %v7145
        %s7152 = sld [smem:[#allocation11 + $0x180]]
        %v7153 = vstv %s7152
        %v7154 = vadd.f32 %v6969, %v7153
        %v7155 = vadd.f32 %v6970, %v7153
        %v7156 = vadd.f32 %v6971, %v7153
        %s7157 = sld [smem:[#allocation11 + $0x181]]
        %v7158 = vstv %s7157
        %v7159 = vadd.f32 %v7049, %v7158
        %v7160 = vadd.f32 %v7050, %v7158
        %v7161 = vadd.f32 %v7051, %v7158
        %s7162 = sld [smem:[#allocation11 + $0x182]]
        %v7163 = vstv %s7162
        %v7164 = vadd.f32 %v7149, %v7163
        %v7165 = vadd.f32 %v7150, %v7163
        %v7166 = vadd.f32 %v7151, %v7163
        %7170 = vrot.lane.b32.xlu0 %v7154, 121
        %v7171 = vpop.permute.xlu0 %7170
        %7172 = vrot.lane.b32.xlu0 %v7155, 121
        %v7173 = vpop.permute.xlu0 %7172
        %7174 = vrot.lane.b32.xlu0 %v7156, 121
        %v7175 = vpop.permute.xlu0 %7174
        %7179 = vst.msk [vmem:[#allocation2 + $0x8] sm:$0xfc] %vm1553, %v7171
        %7180 = vst.msk [vmem:[#allocation2 + $0x10] sm:$0xff] %vm314, %v7173
        %7181 = vst.msk [vmem:[#allocation2 + $0x18] sm:$0x3] %vm316, %v7175
        %v7182 = vld [vmem:[#allocation2 + $0x7] sm:$0xff]
        %v7183 = vld [vmem:[#allocation2 + $0xf] sm:$0xff]
        %s7184 = sld [smem:[#allocation8 + $0x180]]
        %v7185 = vstv %s7184
        %v7186 = vmul.f32 %v7182, %v7185
        %v7187 = vmul.f32 %v7183, %v7185
        %7190 = vrot.lane.b32.xlu0 %v7186, 8
        %v7191 = vpop.permute.xlu0 %7190
        %7192 = vrot.lane.b32.xlu0 %v7187, 8
        %v7193 = vpop.permute.xlu0 %7192
        %v7196 = vadd.f32 %v6415, %v7191
        %v7197 = vadd.f32 %v6416, %v7193
        %v7198 = vld [vmem:[#allocation2 + $0x8] sm:$0xff]
        %v7199 = vld [vmem:[#allocation2 + $0x10] sm:$0xff]
        %s7200 = sld [smem:[#allocation8 + $0x181]]
        %v7201 = vstv %s7200
        %v7202 = vmul.f32 %v7198, %v7201
        %v7203 = vmul.f32 %v7199, %v7201
        %7206 = vrot.lane.b32.xlu0 %v7202, 8
        %v7207 = vpop.permute.xlu0 %7206
        %7208 = vrot.lane.b32.xlu0 %v7203, 8
        %v7209 = vpop.permute.xlu0 %7208
        %v7212 = vadd.f32 %v7196, %v7207
        %v7213 = vadd.f32 %v7197, %v7209
        %v7214 = vld [vmem:[#allocation2 + $0x9] sm:$0xff]
        %v7215 = vld [vmem:[#allocation2 + $0x11] sm:$0xff]
        %s7216 = sld [smem:[#allocation8 + $0x182]]
        %v7217 = vstv %s7216
        %v7218 = vmul.f32 %v7214, %v7217
        %v7219 = vmul.f32 %v7215, %v7217
        %7222 = vrot.lane.b32.xlu0 %v7218, 8
        %v7223 = vpop.permute.xlu0 %7222
        %7224 = vrot.lane.b32.xlu0 %v7219, 8
        %v7225 = vpop.permute.xlu0 %7224
        %v7228 = vadd.f32 %v7212, %v7223
        %v7229 = vadd.f32 %v7213, %v7225
        %v7230 = vld [vmem:[#allocation2 + $0xa] sm:$0xff]
        %v7231 = vld [vmem:[#allocation2 + $0x12] sm:$0xff]
        %s7232 = sld [smem:[#allocation8 + $0x183]]
        %v7233 = vstv %s7232
        %v7234 = vmul.f32 %v7230, %v7233
        %v7235 = vmul.f32 %v7231, %v7233
        %7238 = vrot.lane.b32.xlu0 %v7234, 8
        %v7239 = vpop.permute.xlu0 %7238
        %7240 = vrot.lane.b32.xlu0 %v7235, 8
        %v7241 = vpop.permute.xlu0 %7240
        %v7244 = vadd.f32 %v7228, %v7239
        %v7245 = vadd.f32 %v7229, %v7241
        %v7246 = vld [vmem:[#allocation2 + $0xb] sm:$0xff]
        %v7247 = vld [vmem:[#allocation2 + $0x13] sm:$0xff]
        %s7248 = sld [smem:[#allocation8 + $0x184]]
        %v7249 = vstv %s7248
        %v7250 = vmul.f32 %v7246, %v7249
        %v7251 = vmul.f32 %v7247, %v7249
        %7254 = vrot.lane.b32.xlu0 %v7250, 8
        %v7255 = vpop.permute.xlu0 %7254
        %7256 = vrot.lane.b32.xlu0 %v7251, 8
        %v7257 = vpop.permute.xlu0 %7256
        %v7260 = vadd.f32 %v7244, %v7255
        %v7261 = vadd.f32 %v7245, %v7257
        %v7262 = vld [vmem:[#allocation2 + $0xc] sm:$0xff]
        %v7263 = vld [vmem:[#allocation2 + $0x14] sm:$0xff]
        %s7264 = sld [smem:[#allocation8 + $0x185]]
        %v7265 = vstv %s7264
        %v7266 = vmul.f32 %v7262, %v7265
        %v7267 = vmul.f32 %v7263, %v7265
        %7270 = vrot.lane.b32.xlu0 %v7266, 8
        %v7271 = vpop.permute.xlu0 %7270
        %7272 = vrot.lane.b32.xlu0 %v7267, 8
        %v7273 = vpop.permute.xlu0 %7272
        %v7276 = vadd.f32 %v7260, %v7271
        %v7277 = vadd.f32 %v7261, %v7273
        %v7278 = vld [vmem:[#allocation2 + $0xd] sm:$0xff]
        %v7279 = vld [vmem:[#allocation2 + $0x15] sm:$0xff]
        %s7280 = sld [smem:[#allocation8 + $0x186]]
        %v7281 = vstv %s7280
        %v7282 = vmul.f32 %v7278, %v7281
        %v7283 = vmul.f32 %v7279, %v7281
        %7286 = vrot.lane.b32.xlu0 %v7282, 8
        %v7287 = vpop.permute.xlu0 %7286
        %7288 = vrot.lane.b32.xlu0 %v7283, 8
        %v7289 = vpop.permute.xlu0 %7288
        %v7292 = vadd.f32 %v7276, %v7287
        %v7293 = vadd.f32 %v7277, %v7289
        %7297 = vrot.lane.b32.xlu0 %v7159, 123
        %v7298 = vpop.permute.xlu0 %7297
        %7299 = vrot.lane.b32.xlu0 %v7160, 123
        %v7300 = vpop.permute.xlu0 %7299
        %7301 = vrot.lane.b32.xlu0 %v7161, 123
        %v7302 = vpop.permute.xlu0 %7301
        %7306 = vst.msk [vmem:[#allocation2 + $0x8] sm:$0xfc] %vm1553, %v7298
        %7307 = vst.msk [vmem:[#allocation2 + $0x10] sm:$0xff] %vm314, %v7300
        %7308 = vst.msk [vmem:[#allocation2 + $0x18] sm:$0x3] %vm316, %v7302
        %v7309 = vld [vmem:[#allocation2 + $0x5] sm:$0xff]
        %v7310 = vld [vmem:[#allocation2 + $0xd] sm:$0xff]
        %s7311 = sld [smem:[#allocation8 + $0x187]]
        %v7312 = vstv %s7311
        %v7313 = vmul.f32 %v7309, %v7312
        %v7314 = vmul.f32 %v7310, %v7312
        %7317 = vrot.lane.b32.xlu0 %v7313, 8
        %v7318 = vpop.permute.xlu0 %7317
        %7319 = vrot.lane.b32.xlu0 %v7314, 8
        %v7320 = vpop.permute.xlu0 %7319
        %v7323 = vadd.f32 %v7292, %v7318
        %v7324 = vadd.f32 %v7293, %v7320
        %v7325 = vld [vmem:[#allocation2 + $0x6] sm:$0xff]
        %v7326 = vld [vmem:[#allocation2 + $0xe] sm:$0xff]
        %s7327 = sld [smem:[#allocation8 + $0x188]]
        %v7328 = vstv %s7327
        %v7329 = vmul.f32 %v7325, %v7328
        %v7330 = vmul.f32 %v7326, %v7328
        %7333 = vrot.lane.b32.xlu0 %v7329, 8
        %v7334 = vpop.permute.xlu0 %7333
        %7335 = vrot.lane.b32.xlu0 %v7330, 8
        %v7336 = vpop.permute.xlu0 %7335
        %v7339 = vadd.f32 %v7323, %v7334
        %v7340 = vadd.f32 %v7324, %v7336
        %v7341 = vld [vmem:[#allocation2 + $0x7] sm:$0xff]
        %v7342 = vld [vmem:[#allocation2 + $0xf] sm:$0xff]
        %s7343 = sld [smem:[#allocation8 + $0x189]]
        %v7344 = vstv %s7343
        %v7345 = vmul.f32 %v7341, %v7344
        %v7346 = vmul.f32 %v7342, %v7344
        %7349 = vrot.lane.b32.xlu0 %v7345, 8
        %v7350 = vpop.permute.xlu0 %7349
        %7351 = vrot.lane.b32.xlu0 %v7346, 8
        %v7352 = vpop.permute.xlu0 %7351
        %v7355 = vadd.f32 %v7339, %v7350
        %v7356 = vadd.f32 %v7340, %v7352
        %v7357 = vld [vmem:[#allocation2 + $0x8] sm:$0xff]
        %v7358 = vld [vmem:[#allocation2 + $0x10] sm:$0xff]
        %s7359 = sld [smem:[#allocation8 + $0x18a]]
        %v7360 = vstv %s7359
        %v7361 = vmul.f32 %v7357, %v7360
        %v7362 = vmul.f32 %v7358, %v7360
        %7365 = vrot.lane.b32.xlu0 %v7361, 8
        %v7366 = vpop.permute.xlu0 %7365
        %7367 = vrot.lane.b32.xlu0 %v7362, 8
        %v7368 = vpop.permute.xlu0 %7367
        %v7371 = vadd.f32 %v7355, %v7366
        %v7372 = vadd.f32 %v7356, %v7368
        %v7373 = vld [vmem:[#allocation2 + $0x9] sm:$0xff]
        %v7374 = vld [vmem:[#allocation2 + $0x11] sm:$0xff]
        %s7375 = sld [smem:[#allocation8 + $0x18b]]
        %v7376 = vstv %s7375
        %v7377 = vmul.f32 %v7373, %v7376
        %v7378 = vmul.f32 %v7374, %v7376
        %7381 = vrot.lane.b32.xlu0 %v7377, 8
        %v7382 = vpop.permute.xlu0 %7381
        %7383 = vrot.lane.b32.xlu0 %v7378, 8
        %v7384 = vpop.permute.xlu0 %7383
        %v7387 = vadd.f32 %v7371, %v7382
        %v7388 = vadd.f32 %v7372, %v7384
        %v7389 = vld [vmem:[#allocation2 + $0xa] sm:$0xff]
        %v7390 = vld [vmem:[#allocation2 + $0x12] sm:$0xff]
        %s7391 = sld [smem:[#allocation8 + $0x18c]]
        %v7392 = vstv %s7391
        %v7393 = vmul.f32 %v7389, %v7392
        %v7394 = vmul.f32 %v7390, %v7392
        %7397 = vrot.lane.b32.xlu0 %v7393, 8
        %v7398 = vpop.permute.xlu0 %7397
        %7399 = vrot.lane.b32.xlu0 %v7394, 8
        %v7400 = vpop.permute.xlu0 %7399
        %v7403 = vadd.f32 %v7387, %v7398
        %v7404 = vadd.f32 %v7388, %v7400
        %v7405 = vld [vmem:[#allocation2 + $0xb] sm:$0xff]
        %v7406 = vld [vmem:[#allocation2 + $0x13] sm:$0xff]
        %s7407 = sld [smem:[#allocation8 + $0x18d]]
        %v7408 = vstv %s7407
        %v7409 = vmul.f32 %v7405, %v7408
        %v7410 = vmul.f32 %v7406, %v7408
        %7413 = vrot.lane.b32.xlu0 %v7409, 8
        %v7414 = vpop.permute.xlu0 %7413
        %7415 = vrot.lane.b32.xlu0 %v7410, 8
        %v7416 = vpop.permute.xlu0 %7415
        %v7419 = vadd.f32 %v7403, %v7414
        %v7420 = vadd.f32 %v7404, %v7416
        %v7421 = vld [vmem:[#allocation2 + $0xc] sm:$0xff]
        %v7422 = vld [vmem:[#allocation2 + $0x14] sm:$0xff]
        %s7423 = sld [smem:[#allocation8 + $0x18e]]
        %v7424 = vstv %s7423
        %v7425 = vmul.f32 %v7421, %v7424
        %v7426 = vmul.f32 %v7422, %v7424
        %7429 = vrot.lane.b32.xlu0 %v7425, 8
        %v7430 = vpop.permute.xlu0 %7429
        %7431 = vrot.lane.b32.xlu0 %v7426, 8
        %v7432 = vpop.permute.xlu0 %7431
        %v7435 = vadd.f32 %v7419, %v7430
        %v7436 = vadd.f32 %v7420, %v7432
        %v7437 = vld [vmem:[#allocation2 + $0xd] sm:$0xff]
        %v7438 = vld [vmem:[#allocation2 + $0x15] sm:$0xff]
        %s7439 = sld [smem:[#allocation8 + $0x18f]]
        %v7440 = vstv %s7439
        %v7441 = vmul.f32 %v7437, %v7440
        %v7442 = vmul.f32 %v7438, %v7440
        %7445 = vrot.lane.b32.xlu0 %v7441, 8
        %v7446 = vpop.permute.xlu0 %7445
        %7447 = vrot.lane.b32.xlu0 %v7442, 8
        %v7448 = vpop.permute.xlu0 %7447
        %v7451 = vadd.f32 %v7435, %v7446
        %v7452 = vadd.f32 %v7436, %v7448
        %v7453 = vld [vmem:[#allocation2 + $0xe] sm:$0xff]
        %v7454 = vld [vmem:[#allocation2 + $0x16] sm:$0xff]
        %s7455 = sld [smem:[#allocation8 + $0x190]]
        %v7456 = vstv %s7455
        %v7457 = vmul.f32 %v7453, %v7456
        %v7458 = vmul.f32 %v7454, %v7456
        %7461 = vrot.lane.b32.xlu0 %v7457, 8
        %v7462 = vpop.permute.xlu0 %7461
        %7463 = vrot.lane.b32.xlu0 %v7458, 8
        %v7464 = vpop.permute.xlu0 %7463
        %v7467 = vadd.f32 %v7451, %v7462
        %v7468 = vadd.f32 %v7452, %v7464
        %v7469 = vld [vmem:[#allocation2 + $0xf] sm:$0xff]
        %v7470 = vld [vmem:[#allocation2 + $0x17] sm:$0xff]
        %s7471 = sld [smem:[#allocation8 + $0x191]]
        %v7472 = vstv %s7471
        %v7473 = vmul.f32 %v7469, %v7472
        %v7474 = vmul.f32 %v7470, %v7472
        %7477 = vrot.lane.b32.xlu0 %v7473, 8
        %v7478 = vpop.permute.xlu0 %7477
        %7479 = vrot.lane.b32.xlu0 %v7474, 8
        %v7480 = vpop.permute.xlu0 %7479
        %v7483 = vadd.f32 %v7467, %v7478
        %v7484 = vadd.f32 %v7468, %v7480
        %7485 = vst.msk [vmem:[#allocation2 + $0x8] sm:$0xfc] %vm1553, %v7164
        %7486 = vst.msk [vmem:[#allocation2 + $0x10] sm:$0xff] %vm314, %v7165
        %7487 = vst.msk [vmem:[#allocation2 + $0x18] sm:$0x3] %vm316, %v7166
        %v7488 = vld [vmem:[#allocation2] sm:$0xff]
        %v7489 = vld [vmem:[#allocation2 + $0x8] sm:$0xff]
        %s7490 = sld [smem:[#allocation8 + $0x192]]
        %v7491 = vstv %s7490
        %v7492 = vmul.f32 %v7488, %v7491
        %v7493 = vmul.f32 %v7489, %v7491
        %7496 = vrot.lane.b32.xlu0 %v7492, 8
        %v7497 = vpop.permute.xlu0 %7496
        %7498 = vrot.lane.b32.xlu0 %v7493, 8
        %v7499 = vpop.permute.xlu0 %7498
        %v7502 = vadd.f32 %v7483, %v7497
        %v7503 = vadd.f32 %v7484, %v7499
        %v7504 = vld [vmem:[#allocation2 + $0x1] sm:$0xff]
        %v7505 = vld [vmem:[#allocation2 + $0x9] sm:$0xff]
        %s7506 = sld [smem:[#allocation8 + $0x193]]
        %v7507 = vstv %s7506
        %v7508 = vmul.f32 %v7504, %v7507
        %v7509 = vmul.f32 %v7505, %v7507
        %7512 = vrot.lane.b32.xlu0 %v7508, 8
        %v7513 = vpop.permute.xlu0 %7512
        %7514 = vrot.lane.b32.xlu0 %v7509, 8
        %v7515 = vpop.permute.xlu0 %7514
        %v7518 = vadd.f32 %v7502, %v7513
        %v7519 = vadd.f32 %v7503, %v7515
        %v7520 = vld [vmem:[#allocation2 + $0x2] sm:$0xff]
        %v7521 = vld [vmem:[#allocation2 + $0xa] sm:$0xff]
        %s7522 = sld [smem:[#allocation8 + $0x194]]
        %v7523 = vstv %s7522
        %v7524 = vmul.f32 %v7520, %v7523
        %v7525 = vmul.f32 %v7521, %v7523
        %7528 = vrot.lane.b32.xlu0 %v7524, 8
        %v7529 = vpop.permute.xlu0 %7528
        %7530 = vrot.lane.b32.xlu0 %v7525, 8
        %v7531 = vpop.permute.xlu0 %7530
        %v7534 = vadd.f32 %v7518, %v7529
        %v7535 = vadd.f32 %v7519, %v7531
        %v7536 = vld [vmem:[#allocation2 + $0x3] sm:$0xff]
        %v7537 = vld [vmem:[#allocation2 + $0xb] sm:$0xff]
        %s7538 = sld [smem:[#allocation8 + $0x195]]
        %v7539 = vstv %s7538
        %v7540 = vmul.f32 %v7536, %v7539
        %v7541 = vmul.f32 %v7537, %v7539
        %7544 = vrot.lane.b32.xlu0 %v7540, 8
        %v7545 = vpop.permute.xlu0 %7544
        %7546 = vrot.lane.b32.xlu0 %v7541, 8
        %v7547 = vpop.permute.xlu0 %7546
        %v7550 = vadd.f32 %v7534, %v7545
        %v7551 = vadd.f32 %v7535, %v7547
        %v7552 = vld [vmem:[#allocation2 + $0x4] sm:$0xff]
        %v7553 = vld [vmem:[#allocation2 + $0xc] sm:$0xff]
        %s7554 = sld [smem:[#allocation8 + $0x196]]
        %v7555 = vstv %s7554
        %v7556 = vmul.f32 %v7552, %v7555
        %v7557 = vmul.f32 %v7553, %v7555
        %7560 = vrot.lane.b32.xlu0 %v7556, 8
        %v7561 = vpop.permute.xlu0 %7560
        %7562 = vrot.lane.b32.xlu0 %v7557, 8
        %v7563 = vpop.permute.xlu0 %7562
        %v7566 = vadd.f32 %v7550, %v7561
        %v7567 = vadd.f32 %v7551, %v7563
        %v7568 = vld [vmem:[#allocation2 + $0x5] sm:$0xff]
        %v7569 = vld [vmem:[#allocation2 + $0xd] sm:$0xff]
        %s7570 = sld [smem:[#allocation8 + $0x197]]
        %v7571 = vstv %s7570
        %v7572 = vmul.f32 %v7568, %v7571
        %v7573 = vmul.f32 %v7569, %v7571
        %7576 = vrot.lane.b32.xlu0 %v7572, 8
        %v7577 = vpop.permute.xlu0 %7576
        %7578 = vrot.lane.b32.xlu0 %v7573, 8
        %v7579 = vpop.permute.xlu0 %7578
        %v7582 = vadd.f32 %v7566, %v7577
        %v7583 = vadd.f32 %v7567, %v7579
        %v7584 = vld [vmem:[#allocation2 + $0x6] sm:$0xff]
        %v7585 = vld [vmem:[#allocation2 + $0xe] sm:$0xff]
        %s7586 = sld [smem:[#allocation8 + $0x198]]
        %v7587 = vstv %s7586
        %v7588 = vmul.f32 %v7584, %v7587
        %v7589 = vmul.f32 %v7585, %v7587
        %7592 = vrot.lane.b32.xlu0 %v7588, 8
        %v7593 = vpop.permute.xlu0 %7592
        %7594 = vrot.lane.b32.xlu0 %v7589, 8
        %v7595 = vpop.permute.xlu0 %7594
        %v7598 = vadd.f32 %v7582, %v7593
        %v7599 = vadd.f32 %v7583, %v7595
        %v7600 = vld [vmem:[#allocation2 + $0x7] sm:$0xff]
        %v7601 = vld [vmem:[#allocation2 + $0xf] sm:$0xff]
        %s7602 = sld [smem:[#allocation8 + $0x199]]
        %v7603 = vstv %s7602
        %v7604 = vmul.f32 %v7600, %v7603
        %v7605 = vmul.f32 %v7601, %v7603
        %7608 = vrot.lane.b32.xlu0 %v7604, 8
        %v7609 = vpop.permute.xlu0 %7608
        %7610 = vrot.lane.b32.xlu0 %v7605, 8
        %v7611 = vpop.permute.xlu0 %7610
        %v7614 = vadd.f32 %v7598, %v7609
        %v7615 = vadd.f32 %v7599, %v7611
        %v7616 = vld [vmem:[#allocation2 + $0x8] sm:$0xff]
        %v7617 = vld [vmem:[#allocation2 + $0x10] sm:$0xff]
        %s7618 = sld [smem:[#allocation8 + $0x19a]]
        %v7619 = vstv %s7618
        %v7620 = vmul.f32 %v7616, %v7619
        %v7621 = vmul.f32 %v7617, %v7619
        %7624 = vrot.lane.b32.xlu0 %v7620, 8
        %v7625 = vpop.permute.xlu0 %7624
        %7626 = vrot.lane.b32.xlu0 %v7621, 8
        %v7627 = vpop.permute.xlu0 %7626
        %v7630 = vadd.f32 %v7614, %v7625
        %v7631 = vadd.f32 %v7615, %v7627
        %v7632 = vld [vmem:[#allocation2 + $0x9] sm:$0xff]
        %v7633 = vld [vmem:[#allocation2 + $0x11] sm:$0xff]
        %s7634 = sld [smem:[#allocation8 + $0x19b]]
        %v7635 = vstv %s7634
        %v7636 = vmul.f32 %v7632, %v7635
        %v7637 = vmul.f32 %v7633, %v7635
        %7640 = vrot.lane.b32.xlu0 %v7636, 8
        %v7641 = vpop.permute.xlu0 %7640
        %7642 = vrot.lane.b32.xlu0 %v7637, 8
        %v7643 = vpop.permute.xlu0 %7642
        %v7646 = vadd.f32 %v7630, %v7641
        %v7647 = vadd.f32 %v7631, %v7643
        %v7648 = vld [vmem:[#allocation2 + $0xa] sm:$0xff]
        %v7649 = vld [vmem:[#allocation2 + $0x12] sm:$0xff]
        %s7650 = sld [smem:[#allocation8 + $0x19c]]
        %v7651 = vstv %s7650
        %v7652 = vmul.f32 %v7648, %v7651
        %v7653 = vmul.f32 %v7649, %v7651
        %7656 = vrot.lane.b32.xlu0 %v7652, 8
        %v7657 = vpop.permute.xlu0 %7656
        %7658 = vrot.lane.b32.xlu0 %v7653, 8
        %v7659 = vpop.permute.xlu0 %7658
        %v7662 = vadd.f32 %v7646, %v7657
        %v7663 = vadd.f32 %v7647, %v7659
        %v7664 = vld [vmem:[#allocation2 + $0xb] sm:$0xff]
        %v7665 = vld [vmem:[#allocation2 + $0x13] sm:$0xff]
        %s7666 = sld [smem:[#allocation8 + $0x19d]]
        %v7667 = vstv %s7666
        %v7668 = vmul.f32 %v7664, %v7667
        %v7669 = vmul.f32 %v7665, %v7667
        %7672 = vrot.lane.b32.xlu0 %v7668, 8
        %v7673 = vpop.permute.xlu0 %7672
        %7674 = vrot.lane.b32.xlu0 %v7669, 8
        %v7675 = vpop.permute.xlu0 %7674
        %v7678 = vadd.f32 %v7662, %v7673
        %v7679 = vadd.f32 %v7663, %v7675
        %v7680 = vld [vmem:[#allocation2 + $0xc] sm:$0xff]
        %v7681 = vld [vmem:[#allocation2 + $0x14] sm:$0xff]
        %s7682 = sld [smem:[#allocation8 + $0x19e]]
        %v7683 = vstv %s7682
        %v7684 = vmul.f32 %v7680, %v7683
        %v7685 = vmul.f32 %v7681, %v7683
        %7688 = vrot.lane.b32.xlu0 %v7684, 8
        %v7689 = vpop.permute.xlu0 %7688
        %7690 = vrot.lane.b32.xlu0 %v7685, 8
        %v7691 = vpop.permute.xlu0 %7690
        %v7694 = vadd.f32 %v7678, %v7689
        %v7695 = vadd.f32 %v7679, %v7691
        %v7696 = vld [vmem:[#allocation2 + $0xd] sm:$0xff]
        %v7697 = vld [vmem:[#allocation2 + $0x15] sm:$0xff]
        %s7698 = sld [smem:[#allocation8 + $0x19f]]
        %v7699 = vstv %s7698
        %v7700 = vmul.f32 %v7696, %v7699
        %v7701 = vmul.f32 %v7697, %v7699
        %7704 = vrot.lane.b32.xlu0 %v7700, 8
        %v7705 = vpop.permute.xlu0 %7704
        %7706 = vrot.lane.b32.xlu0 %v7701, 8
        %v7707 = vpop.permute.xlu0 %7706
        %v7710 = vadd.f32 %v7694, %v7705
        %v7711 = vadd.f32 %v7695, %v7707
        %v7712 = vld [vmem:[#allocation2 + $0xe] sm:$0xff]
        %v7713 = vld [vmem:[#allocation2 + $0x16] sm:$0xff]
        %s7714 = sld [smem:[#allocation8 + $0x1a0]]
        %v7715 = vstv %s7714
        %v7716 = vmul.f32 %v7712, %v7715
        %v7717 = vmul.f32 %v7713, %v7715
        %7720 = vrot.lane.b32.xlu0 %v7716, 8
        %v7721 = vpop.permute.xlu0 %7720
        %7722 = vrot.lane.b32.xlu0 %v7717, 8
        %v7723 = vpop.permute.xlu0 %7722
        %v7726 = vadd.f32 %v7710, %v7721
        %v7727 = vadd.f32 %v7711, %v7723
        %v7728 = vld [vmem:[#allocation2 + $0xf] sm:$0xff]
        %v7729 = vld [vmem:[#allocation2 + $0x17] sm:$0xff]
        %s7730 = sld [smem:[#allocation8 + $0x1a1]]
        %v7731 = vstv %s7730
        %v7732 = vmul.f32 %v7728, %v7731
        %v7733 = vmul.f32 %v7729, %v7731
        %7736 = vrot.lane.b32.xlu0 %v7732, 8
        %v7737 = vpop.permute.xlu0 %7736
        %7738 = vrot.lane.b32.xlu0 %v7733, 8
        %v7739 = vpop.permute.xlu0 %7738
        %v7742 = vadd.f32 %v7726, %v7737
        %v7743 = vadd.f32 %v7727, %v7739
        %v7744 = vld [vmem:[#allocation2 + $0x10] sm:$0xff]
        %v7745 = vld [vmem:[#allocation2 + $0x18] sm:$0xff]
        %s7746 = sld [smem:[#allocation8 + $0x1a2]]
        %v7747 = vstv %s7746
        %v7748 = vmul.f32 %v7744, %v7747
        %v7749 = vmul.f32 %v7745, %v7747
        %7752 = vrot.lane.b32.xlu0 %v7748, 8
        %v7753 = vpop.permute.xlu0 %7752
        %7754 = vrot.lane.b32.xlu0 %v7749, 8
        %v7755 = vpop.permute.xlu0 %7754
        %v7758 = vadd.f32 %v7742, %v7753
        %v7759 = vadd.f32 %v7743, %v7755
        %v7760 = vld [vmem:[#allocation2 + $0x11] sm:$0xff]
        %v7761 = vld [vmem:[#allocation2 + $0x19] sm:$0xff]
        %s7762 = sld [smem:[#allocation8 + $0x1a3]]
        %v7763 = vstv %s7762
        %v7764 = vmul.f32 %v7760, %v7763
        %v7765 = vmul.f32 %v7761, %v7763
        %7768 = vrot.lane.b32.xlu0 %v7764, 8
        %v7769 = vpop.permute.xlu0 %7768
        %7770 = vrot.lane.b32.xlu0 %v7765, 8
        %v7771 = vpop.permute.xlu0 %7770
        %v7774 = vadd.f32 %v7758, %v7769
        %v7775 = vadd.f32 %v7759, %v7771
        %v7776 = vld [vmem:[#allocation2 + $0x12] sm:$0xff]
        %v7777 = vld [vmem:[#allocation2 + $0x1a] sm:$0xff]
        %s7778 = sld [smem:[#allocation8 + $0x1a4]]
        %v7779 = vstv %s7778
        %v7780 = vmul.f32 %v7776, %v7779
        %v7781 = vmul.f32 %v7777, %v7779
        %7784 = vrot.lane.b32.xlu0 %v7780, 8
        %v7785 = vpop.permute.xlu0 %7784
        %7786 = vrot.lane.b32.xlu0 %v7781, 8
        %v7787 = vpop.permute.xlu0 %7786
        %v7790 = vadd.f32 %v7774, %v7785
        %v7791 = vadd.f32 %v7775, %v7787
        %v7792 = vld [vmem:[#allocation2 + $0x13] sm:$0xff]
        %v7793 = vld [vmem:[#allocation2 + $0x1b] sm:$0xff]
        %s7794 = sld [smem:[#allocation8 + $0x1a5]]
        %v7795 = vstv %s7794
        %v7796 = vmul.f32 %v7792, %v7795
        %v7797 = vmul.f32 %v7793, %v7795
        %7800 = vrot.lane.b32.xlu0 %v7796, 8
        %v7801 = vpop.permute.xlu0 %7800
        %7802 = vrot.lane.b32.xlu0 %v7797, 8
        %v7803 = vpop.permute.xlu0 %7802
        %v7806 = vadd.f32 %v7790, %v7801
        %v7807 = vadd.f32 %v7791, %v7803
        %v7808 = vld [vmem:[#allocation2 + $0x14] sm:$0xff]
        %v7809 = vld [vmem:[#allocation2 + $0x1c] sm:$0xff]
        %s7810 = sld [smem:[#allocation8 + $0x1a6]]
        %v7811 = vstv %s7810
        %v7812 = vmul.f32 %v7808, %v7811
        %v7813 = vmul.f32 %v7809, %v7811
        %7816 = vrot.lane.b32.xlu0 %v7812, 8
        %v7817 = vpop.permute.xlu0 %7816
        %7818 = vrot.lane.b32.xlu0 %v7813, 8
        %v7819 = vpop.permute.xlu0 %7818
        %v7822 = vadd.f32 %v7806, %v7817
        %v7823 = vadd.f32 %v7807, %v7819
        %s7824 = sld [smem:[#allocation9]]
        %v7825 = vstv %s7824
        %v7826 = vmul.f32 %v2197, %v7825
        %v7827 = vmul.f32 %v2198, %v7825
        %s7828 = sld [smem:[#allocation9 + $0x1]]
        %v7829 = vstv %s7828
        %v7830 = vmul.f32 %v4072, %v7829
        %v7831 = vmul.f32 %v4073, %v7829
        %v7832 = vadd.f32 %v7826, %v7830
        %v7833 = vadd.f32 %v7827, %v7831
        %s7834 = sld [smem:[#allocation9 + $0x2]]
        %v7835 = vstv %s7834
        %v7836 = vmul.f32 %v5947, %v7835
        %v7837 = vmul.f32 %v5948, %v7835
        %v7838 = vadd.f32 %v7832, %v7836
        %v7839 = vadd.f32 %v7833, %v7837
        %s7840 = sld [smem:[#allocation9 + $0x3]]
        %v7841 = vstv %s7840
        %v7842 = vmul.f32 %v7822, %v7841
        %v7843 = vmul.f32 %v7823, %v7841
        %v7844 = vadd.f32 %v7838, %v7842
        %v7845 = vadd.f32 %v7839, %v7843
        %s7846 = sld [smem:[#allocation11 + $0x3]]
        %v7847 = vstv %s7846
        %v7848 = vadd.f32 %v7844, %v7847
        %v7849 = vadd.f32 %v7845, %v7847
        %v7850 = vld [vmem:[%s313 + $0x2] sm:$0xff]
        %v7851 = vld [vmem:[%s313 + $0xa] sm:$0xff]
        %7854 = vrot.lane.b32.xlu0 %v7850, 126
        %v7855 = vpop.permute.xlu0 %7854
        %7856 = vrot.lane.b32.xlu0 %v7851, 126
        %v7857 = vpop.permute.xlu0 %7856
        %v7860 = vmul.f32 %v7848, %v7855
        %v7861 = vmul.f32 %v7849, %v7857
        %7864 = vrot.lane.b32.xlu0 %v7860, 120
        %v7865 = vpop.permute.xlu0 %7864
        %7866 = vrot.lane.b32.xlu0 %v7861, 120
        %v7867 = vpop.permute.xlu0 %7866
        %7870 = vst.msk [vmem:[%s308] sm:$0xff] %vm314, %v7865
        %7871 = vst.msk [vmem:[%s308 + $0x8] sm:$0xff] %vm314, %v7867
        %s7872 = sld [smem:[#allocation9 + $0x80]]
        %v7873 = vstv %s7872
        %v7874 = vmul.f32 %v2197, %v7873
        %v7875 = vmul.f32 %v2198, %v7873
        %s7876 = sld [smem:[#allocation9 + $0x81]]
        %v7877 = vstv %s7876
        %v7878 = vmul.f32 %v4072, %v7877
        %v7879 = vmul.f32 %v4073, %v7877
        %v7880 = vadd.f32 %v7874, %v7878
        %v7881 = vadd.f32 %v7875, %v7879
        %s7882 = sld [smem:[#allocation9 + $0x82]]
        %v7883 = vstv %s7882
        %v7884 = vmul.f32 %v5947, %v7883
        %v7885 = vmul.f32 %v5948, %v7883
        %v7886 = vadd.f32 %v7880, %v7884
        %v7887 = vadd.f32 %v7881, %v7885
        %s7888 = sld [smem:[#allocation9 + $0x83]]
        %v7889 = vstv %s7888
        %v7890 = vmul.f32 %v7822, %v7889
        %v7891 = vmul.f32 %v7823, %v7889
        %v7892 = vadd.f32 %v7886, %v7890
        %v7893 = vadd.f32 %v7887, %v7891
        %s7894 = sld [smem:[#allocation11 + $0x83]]
        %v7895 = vstv %s7894
        %v7896 = vadd.f32 %v7892, %v7895
        %v7897 = vadd.f32 %v7893, %v7895
        %v7898 = vld [vmem:[%s2199 + $0x2] sm:$0xff]
        %v7899 = vld [vmem:[%s2199 + $0xa] sm:$0xff]
        %7902 = vrot.lane.b32.xlu0 %v7898, 126
        %v7903 = vpop.permute.xlu0 %7902
        %7904 = vrot.lane.b32.xlu0 %v7899, 126
        %v7905 = vpop.permute.xlu0 %7904
        %v7908 = vmul.f32 %v7896, %v7903
        %v7909 = vmul.f32 %v7897, %v7905
        %7912 = vrot.lane.b32.xlu0 %v7908, 120
        %v7913 = vpop.permute.xlu0 %7912
        %7914 = vrot.lane.b32.xlu0 %v7909, 120
        %v7915 = vpop.permute.xlu0 %7914
        %s7918 = scalar_lea.vmem %s308, 16 [#allocation12]
        %7919 = vst.msk [vmem:[%s7918] sm:$0xff] %vm314, %v7913
        %7920 = vst.msk [vmem:[%s7918 + $0x8] sm:$0xff] %vm314, %v7915
        %s7921 = sld [smem:[#allocation9 + $0x100]]
        %v7922 = vstv %s7921
        %v7923 = vmul.f32 %v2197, %v7922
        %v7924 = vmul.f32 %v2198, %v7922
        %s7925 = sld [smem:[#allocation9 + $0x101]]
        %v7926 = vstv %s7925
        %v7927 = vmul.f32 %v4072, %v7926
        %v7928 = vmul.f32 %v4073, %v7926
        %v7929 = vadd.f32 %v7923, %v7927
        %v7930 = vadd.f32 %v7924, %v7928
        %s7931 = sld [smem:[#allocation9 + $0x102]]
        %v7932 = vstv %s7931
        %v7933 = vmul.f32 %v5947, %v7932
        %v7934 = vmul.f32 %v5948, %v7932
        %v7935 = vadd.f32 %v7929, %v7933
        %v7936 = vadd.f32 %v7930, %v7934
        %s7937 = sld [smem:[#allocation9 + $0x103]]
        %v7938 = vstv %s7937
        %v7939 = vmul.f32 %v7822, %v7938
        %v7940 = vmul.f32 %v7823, %v7938
        %v7941 = vadd.f32 %v7935, %v7939
        %v7942 = vadd.f32 %v7936, %v7940
        %s7943 = sld [smem:[#allocation11 + $0x103]]
        %v7944 = vstv %s7943
        %v7945 = vadd.f32 %v7941, %v7944
        %v7946 = vadd.f32 %v7942, %v7944
        %v7947 = vld [vmem:[%s4074 + $0x2] sm:$0xff]
        %v7948 = vld [vmem:[%s4074 + $0xa] sm:$0xff]
        %7951 = vrot.lane.b32.xlu0 %v7947, 126
        %v7952 = vpop.permute.xlu0 %7951
        %7953 = vrot.lane.b32.xlu0 %v7948, 126
        %v7954 = vpop.permute.xlu0 %7953
        %v7957 = vmul.f32 %v7945, %v7952
        %v7958 = vmul.f32 %v7946, %v7954
        %7961 = vrot.lane.b32.xlu0 %v7957, 120
        %v7962 = vpop.permute.xlu0 %7961
        %7963 = vrot.lane.b32.xlu0 %v7958, 120
        %v7964 = vpop.permute.xlu0 %7963
        %s7967 = scalar_lea.vmem %s308, 32 [#allocation12]
        %7968 = vst.msk [vmem:[%s7967] sm:$0xff] %vm314, %v7962
        %7969 = vst.msk [vmem:[%s7967 + $0x8] sm:$0xff] %vm314, %v7964
        %s7970 = sld [smem:[#allocation9 + $0x180]]
        %v7971 = vstv %s7970
        %v7972 = vmul.f32 %v2197, %v7971
        %v7973 = vmul.f32 %v2198, %v7971
        %s7974 = sld [smem:[#allocation9 + $0x181]]
        %v7975 = vstv %s7974
        %v7976 = vmul.f32 %v4072, %v7975
        %v7977 = vmul.f32 %v4073, %v7975
        %v7978 = vadd.f32 %v7972, %v7976
        %v7979 = vadd.f32 %v7973, %v7977
        %s7980 = sld [smem:[#allocation9 + $0x182]]
        %v7981 = vstv %s7980
        %v7982 = vmul.f32 %v5947, %v7981
        %v7983 = vmul.f32 %v5948, %v7981
        %v7984 = vadd.f32 %v7978, %v7982
        %v7985 = vadd.f32 %v7979, %v7983
        %s7986 = sld [smem:[#allocation9 + $0x183]]
        %v7987 = vstv %s7986
        %v7988 = vmul.f32 %v7822, %v7987
        %v7989 = vmul.f32 %v7823, %v7987
        %v7990 = vadd.f32 %v7984, %v7988
        %v7991 = vadd.f32 %v7985, %v7989
        %s7992 = sld [smem:[#allocation11 + $0x183]]
        %v7993 = vstv %s7992
        %v7994 = vadd.f32 %v7990, %v7993
        %v7995 = vadd.f32 %v7991, %v7993
        %v7996 = vld [vmem:[%s5949 + $0x2] sm:$0xff]
        %v7997 = vld [vmem:[%s5949 + $0xa] sm:$0xff]
        %8000 = vrot.lane.b32.xlu0 %v7996, 126
        %v8001 = vpop.permute.xlu0 %8000
        %8002 = vrot.lane.b32.xlu0 %v7997, 126
        %v8003 = vpop.permute.xlu0 %8002
        %v8006 = vmul.f32 %v7994, %v8001
        %v8007 = vmul.f32 %v7995, %v8003
        %8010 = vrot.lane.b32.xlu0 %v8006, 120
        %v8011 = vpop.permute.xlu0 %8010
        %8012 = vrot.lane.b32.xlu0 %v8007, 120
        %v8013 = vpop.permute.xlu0 %8012
        %s8016 = scalar_lea.vmem %s308, 48 [#allocation12]
        %8017 = vst.msk [vmem:[%s8016] sm:$0xff] %vm314, %v8011
        %8018 = vst.msk [vmem:[%s8016 + $0x8] sm:$0xff] %vm314, %v8013
        %s8019 = sand.u32 %s162, 1
        %s8020 = scalar_lea.sflag [#allocation4], %s8019
        %s8021 = sand.u32 %s162, 1
        %s8022 = smul.addr %s8021, 64
        %s8023 = scalar_lea.vmem [#allocation12], %s8022
        // Predicated region
        $region65: #{tpu_custom_call.1} parent=43 // pred_check
          %p8024 = pneg %p172
        $region66: #{tpu_custom_call.1} parent=43 // pred_check_branch
          %8026 = sbr.rel (%p8024) target = $region68
        $region67: #{tpu_custom_call.1} parent=43 // pred_region
          %8028 = vsyncadd %s8020, 0
          %s8029 = smul.addr %s23, 8
          %s8030 = smul.addr %s8029, 8
          %s8031 = scalar_lea.hbm %s6, %s8030
          %s8032 = sshll.u32 %s8023, 4
          %s8033 = int_to_ptr.vmem [resolvable:$true] %s8032
          %s8034 = sshll.u32 %s8031, 4
          %s8035 = int_to_ptr.hbm [resolvable:$true] %s8034
          %8040 = dma.vmem_to_hbm [thread:$0]  %s8033, 1024, %s8035, %s8020, 128, 128, 8
        $region68: #{tpu_custom_call.1} parent=43 // pred_fallthru
          _
      $region44: #{tpu_custom_call.1} parent=5 // pred_fallthru
        _
      %p8041 = scmp.le.s32.totalorder 2, %s18
      // Predicated region
      $region69: #{tpu_custom_call.1} parent=5 // pred_check
        %p8042 = pneg %p8041
      $region70: #{tpu_custom_call.1} parent=5 // pred_check_branch
        %8044 = sbr.rel (%p8042) target = $region72
      $region71: #{tpu_custom_call.1} parent=5 // pred_region
        %s8045 = ssub.s32 %s18, 2
        // Predicated region
        $region73: #{tpu_custom_call.1} parent=71 // pred_check
          %p8046 = pneg %p178
        $region74: #{tpu_custom_call.1} parent=71 // pred_check_branch
          %8048 = sbr.rel (%p8046) target = $region76
        $region75: #{tpu_custom_call.1} parent=71 // pred_region
          %s8049 = sand.u32 %s163, 1
          %s8050 = scalar_lea.sflag [#allocation4], %s8049
          %s8051 = sand.u32 %s163, 1
          %s8052 = smul.addr %s8051, 64
          %s8053 = scalar_lea.vmem [#allocation12], %s8052
          %8055 = dma.done %s8050, 1024
        $region76: #{tpu_custom_call.1} parent=71 // pred_fallthru
          _
      $region72: #{tpu_custom_call.1} parent=5 // pred_fallthru
        _
    $region6: #{tpu_custom_call.1} parent=1 // loop_footer
      %s22 = sadd.s32 1, %s18
    $region7: #{tpu_custom_call.1} parent=1 // loop_footer_branch
      %17 = sbr.rel target = $region3
    $region8: #{tpu_custom_call.1} parent=1 // loop_exit
      _
    %8056 = vsyncpa [#allocation4], 1
    %s8057 = scalar_lea.sflag [#allocation4], 1
    %8058 = vsyncpa %s8057, 1
    %8059 = vsyncpa [#allocation5], 1
    %s8060 = scalar_lea.sflag [#allocation5], 1
    %8061 = vsyncpa %s8060, 1
    %8062 = vsyncpa [#allocation7], 1
    %8063 = vsyncpa [#allocation10], 1

</llo_original>
